<compile_context>
chip_gen: v7x
topology: tpu7x:2x2x1
jax: 0.10.0
libtpu: 0.0.40
codegen_flags: <defaults>
</compile_context>

<pallas_src>
import functools

import jax
import jax.numpy as jnp
from jax import lax
from jax.experimental import pallas as pl
from jax.experimental.pallas import tpu as pltpu

C1 = 16        # conv1 output channels
C2 = 32        # conv2 output channels
HIDDEN = 128   # fc1 width


# ----------------------------- in-kernel helpers ----------------------------

def _pool2x2(a):
    """2x2 stride-2 max pool of an (N, H, W, C) value living in VMEM/vregs."""
    n, h, w, c = a.shape
    a = a.reshape(n, h // 2, 2, w, c)                     # split H (leading dim)
    a = jnp.maximum(a[:, :, 0], a[:, :, 1])               # (n, h//2, w, c)
    a = a.reshape(n, h // 2, w // 2, 2, c)                # split W (sublane dim)
    return jnp.maximum(a[:, :, :, 0, :], a[:, :, :, 1, :])


def _gaf_cnn_kernel(xp_ref, w1_ref, b1_ref, w2_ref, b2_ref,
                    fc1w_ref, fc1b_ref, fc2w_ref, fc2b_ref,
                    out_ref, pad_ref, *, H, W, NB):
    """Fully fused forward pass for a block of NB images."""
    H1, W1 = H // 2, W // 2
    P = (H1 // 2) * (W1 // 2)
    M = NB * H1 * W1

    # ---- conv1 (Cin=1) + ReLU: 9 shifted broadcast-MACs on the VPU, f32 ----
    acc1 = xp_ref[:, 0:H, 0:W, :] * w1_ref[0:1, :].reshape(1, 1, 1, C1)
    for di in range(3):
        for dj in range(3):
            k = di * 3 + dj
            if k == 0:
                continue
            win = xp_ref[:, di:di + H, dj:dj + W, :]                # (NB, H, W, 1)
            acc1 = acc1 + win * w1_ref[k:k + 1, :].reshape(1, 1, 1, C1)
    a1 = jnp.maximum(acc1 + b1_ref[...].reshape(1, 1, 1, C1), 0.0)  # (NB, H, W, C1)

    # ---- fused 2x2 max-pool #1 (never leaves VMEM) ----
    p1 = _pool2x2(a1)                                               # (NB, H1, W1, C1)

    # ---- conv2 + ReLU: zero-pad into VMEM scratch, 9 shifted bf16 MXU dots ----
    pad_ref[...] = jnp.zeros(pad_ref.shape, pad_ref.dtype)
    pad_ref[:, 1:H1 + 1, 1:W1 + 1, :] = p1
    acc2 = jnp.zeros((M, C2), jnp.float32)
    for di in range(3):
        for dj in range(3):
            k = di * 3 + dj
            win = pad_ref[:, di:di + H1, dj:dj + W1, :].reshape(M, C1)
            acc2 = acc2 + jnp.dot(win.astype(jnp.bfloat16), w2_ref[k],
                                  preferred_element_type=jnp.float32)
    a2 = jnp.maximum(acc2 + b2_ref[...], 0.0)                       # (M, C2)

    # ---- fused 2x2 max-pool #2 ----
    p2 = _pool2x2(a2.reshape(NB, H1, W1, C2))                       # (NB, H/4, W/4, C2)
    p2f = p2.reshape(NB, P, C2)                                     # pixel-major rows

    # ---- fc1 + ReLU + fc2, fused; pixel contraction as P batched MXU dots ----
    h = jnp.zeros((NB, HIDDEN), jnp.float32)
    for p in range(P):
        h = h + jnp.dot(p2f[:, p, :].astype(jnp.bfloat16), fc1w_ref[p],
                        preferred_element_type=jnp.float32)
    h = jnp.maximum(h + fc1b_ref[...], 0.0)
    logits = jnp.dot(h.astype(jnp.bfloat16), fc2w_ref[...],
                     preferred_element_type=jnp.float32) + fc2b_ref[...]
    out_ref[...] = logits                                           # dense (NB, 128)


# ------------------------------- host wrapper --------------------------------

def forward(x_nchw, params, *, batch_block=8):
    """Fused Pallas forward pass.  x_nchw: (N, 1, H, W) float32 (NCHW)."""
    N, cin, H, W = x_nchw.shape
    assert cin == 1 and H % 4 == 0 and W % 4 == 0
    assert batch_block % 8 == 0
    num_classes = params["fc2_w"].shape[0]
    H1, W1 = H // 2, W // 2
    P = (H // 4) * (W // 4)

    # Block size: whole batch if small (single grid step), else 8 (sublane-
    # aligned output blocks). Pad the batch to a multiple of NB.
    NB = N if N <= batch_block else batch_block
    n_blocks = pl.cdiv(N, NB)
    N_pad = n_blocks * NB

    # One-time input / weight repacking (cheap XLA glue, outside the kernel).
    x = x_nchw.reshape(N, H, W).astype(jnp.float32)
    if N_pad != N:
        x = jnp.pad(x, ((0, N_pad - N), (0, 0), (0, 0)))
    xp = jnp.pad(x, ((0, 0), (1, 1), (1, 1)))[..., None]                 # (N_pad,H+2,W+2,1)

    w1 = params["conv1_w"].reshape(C1, 9).T.astype(jnp.float32)          # (9, C1)
    b1 = params["conv1_b"].reshape(1, C1).astype(jnp.float32)
    w2 = jnp.transpose(params["conv2_w"], (2, 3, 1, 0)).reshape(9, C1, C2)
    w2 = w2.astype(jnp.bfloat16)                                         # (9, C1, C2)
    b2 = params["conv2_b"].reshape(1, C2).astype(jnp.float32)
    # Permute fc1 rows from PyTorch's NCHW flatten order (c*P + p) into the
    # kernel's (pixel, channel) order -> exact PyTorch flatten semantics.
    fc1w = params["fc1_w"].reshape(HIDDEN, C2, P).transpose(2, 1, 0)
    fc1w = fc1w.astype(jnp.bfloat16)                                     # (P, C2, 128)
    fc1b = params["fc1_b"].reshape(1, HIDDEN).astype(jnp.float32)
    # Pad fc2 output dim to 128 lanes -> unmasked, lane-dense output store.
    fc2w = jnp.zeros((HIDDEN, HIDDEN), jnp.float32).at[:, :num_classes].set(
        params["fc2_w"].T).astype(jnp.bfloat16)
    fc2b = jnp.zeros((1, HIDDEN), jnp.float32).at[:, :num_classes].set(
        params["fc2_b"][None, :])

    grid_spec = pltpu.PrefetchScalarGridSpec(
        num_scalar_prefetch=0,
        grid=(n_blocks,),                             # NB images per grid step
        in_specs=[
            pl.BlockSpec((NB, H + 2, W + 2, 1), lambda i: (i, 0, 0, 0)),
            pl.BlockSpec((9, C1), lambda i: (0, 0)),
            pl.BlockSpec((1, C1), lambda i: (0, 0)),
            pl.BlockSpec((9, C1, C2), lambda i: (0, 0, 0)),
            pl.BlockSpec((1, C2), lambda i: (0, 0)),
            pl.BlockSpec((P, C2, HIDDEN), lambda i: (0, 0, 0)),
            pl.BlockSpec((1, HIDDEN), lambda i: (0, 0)),
            pl.BlockSpec((HIDDEN, HIDDEN), lambda i: (0, 0)),
            pl.BlockSpec((1, HIDDEN), lambda i: (0, 0)),
        ],
        out_specs=pl.BlockSpec((NB, HIDDEN), lambda i: (i, 0)),
        scratch_shapes=[pltpu.VMEM((NB, H1 + 2, W1 + 2, C1), jnp.float32)],
    )

    out = pl.pallas_call(
        functools.partial(_gaf_cnn_kernel, H=H, W=W, NB=NB),
        out_shape=jax.ShapeDtypeStruct((N_pad, HIDDEN), jnp.float32),
        grid_spec=grid_spec,
        compiler_params=pltpu.CompilerParams(
            dimension_semantics=("parallel",)),        # batch blocks across TCs
    )(xp, w1, b1, w2, b2, fc1w, fc1b, fc2w, fc2b)

    return out[:N, :num_classes]


# --------------------------- params & XLA reference --------------------------

def init_params(key, num_classes=2, spatial=16):
    ks = jax.random.split(key, 8)
    feat = C2 * (spatial // 4) * (spatial // 4)
    return {  # PyTorch conventions: conv OIHW, linear (out, in)
        "conv1_w": 0.1 * jax.random.normal(ks[0], (C1, 1, 3, 3), jnp.float32),
        "conv1_b": 0.1 * jax.random.normal(ks[1], (C1,), jnp.float32),
        "conv2_w": 0.1 * jax.random.normal(ks[2], (C2, C1, 3, 3), jnp.float32),
        "conv2_b": 0.1 * jax.random.normal(ks[3], (C2,), jnp.float32),
        "fc1_w": 0.05 * jax.random.normal(ks[4], (HIDDEN, feat), jnp.float32),
        "fc1_b": 0.05 * jax.random.normal(ks[5], (HIDDEN,), jnp.float32),
        "fc2_w": 0.05 * jax.random.normal(ks[6], (num_classes, HIDDEN), jnp.float32),
        "fc2_b": 0.05 * jax.random.normal(ks[7], (num_classes,), jnp.float32),
    }


def reference_forward(x_nchw, params):
    """Pure-XLA (non-Pallas) f32 reference with exact PyTorch semantics."""
    def conv(x, w, b):
        dn = lax.conv_dimension_numbers(x.shape, w.shape, ("NCHW", "OIHW", "NCHW"))
        y = lax.conv_general_dilated(x, w, window_strides=(1, 1),
                                     padding=((1, 1), (1, 1)),
                                     dimension_numbers=dn)
        return jnp.maximum(y + b[None, :, None, None], 0.0)

    def pool(x):
        return lax.reduce_window(x, -jnp.inf, lax.max,
                                 (1, 1, 2, 2), (1, 1, 2, 2), "VALID")

    y = pool(conv(x_nchw.astype(jnp.float32), params["conv1_w"], params["conv1_b"]))
    y = pool(conv(y, params["conv2_w"], params["conv2_b"]))
    flat = y.reshape(y.shape[0], -1)                     # NCHW flatten, like torch
    h = jnp.maximum(flat @ params["fc1_w"].T + params["fc1_b"], 0.0)
    return h @ params["fc2_w"].T + params["fc2_b"]


# ---------------------------------- main -------------------------------------

if __name__ == "__main__":
    key = jax.random.PRNGKey(0)
    k_x, k_p = jax.random.split(key)

    # Small GAF-style input: batch=2, single channel, 16x16 image (NCHW).
    x = jax.random.normal(k_x, (2, 1, 16, 16), jnp.float32)
    params = init_params(k_p, num_classes=2, spatial=16)

    fwd = jax.jit(forward)
    out = jax.block_until_ready(fwd(x, params))

    assert out.shape == (2, 2), out.shape
    assert out.dtype == jnp.float32
    assert bool(jnp.all(jnp.isfinite(out)))

    # Validate against the f32 XLA reference (loose tol: conv2/fc use bf16 MXU).
    ref = jax.block_until_ready(reference_forward(x, params))
    assert bool(jnp.allclose(out, ref, rtol=0.15, atol=0.08)), (out, ref)

    # Exercise the multi-block path (grid > 1, 8 images per block) as well.
    x_big = jax.random.normal(jax.random.PRNGKey(1), (16, 1, 16, 16), jnp.float32)
    out_big = jax.block_until_ready(fwd(x_big, params))
    ref_big = jax.block_until_ready(reference_forward(x_big, params))
    assert out_big.shape == (16, 2)
    assert bool(jnp.allclose(out_big, ref_big, rtol=0.15, atol=0.08))

    print("KERNEL_OK")
</pallas_src>

<mosaic_0001>
module attributes {stable_mosaic.version = 11 : i64} {
  func.func @_gaf_cnn_kernel(%arg0: i32, %arg1: memref<2x18x18x1xf32, #tpu.memory_space<vmem>>, %arg2: memref<9x16xf32, #tpu.memory_space<vmem>>, %arg3: memref<1x16xf32, #tpu.memory_space<vmem>>, %arg4: memref<9x16x32xbf16, #tpu.memory_space<vmem>>, %arg5: memref<1x32xf32, #tpu.memory_space<vmem>>, %arg6: memref<16x32x128xbf16, #tpu.memory_space<vmem>>, %arg7: memref<1x128xf32, #tpu.memory_space<vmem>>, %arg8: memref<128x128xbf16, #tpu.memory_space<vmem>>, %arg9: memref<1x128xf32, #tpu.memory_space<vmem>>, %arg10: memref<2x128xf32, #tpu.memory_space<vmem>>, %arg11: memref<2x10x10x16xf32, #tpu.memory_space<vmem>>) attributes {dimension_semantics = [#tpu.dimension_semantics<parallel>], iteration_bounds = array<i64: 1>, scalar_prefetch = 0 : i64, scratch_operands = 1 : i64, tpu.core_type = #tpu.core_type<tc>, window_params = [{transform_indices = @transform_0, window_bounds = array<i64: 2, 18, 18, 1>}, {pipeline_mode = #tpu.pipeline_mode<synchronous>, transform_indices = @transform_1, window_bounds = array<i64: 9, 16>}, {pipeline_mode = #tpu.pipeline_mode<synchronous>, transform_indices = @transform_2, window_bounds = array<i64: 1, 16>}, {pipeline_mode = #tpu.pipeline_mode<synchronous>, transform_indices = @transform_3, window_bounds = array<i64: 9, 16, 32>}, {pipeline_mode = #tpu.pipeline_mode<synchronous>, transform_indices = @transform_4, window_bounds = array<i64: 1, 32>}, {pipeline_mode = #tpu.pipeline_mode<synchronous>, transform_indices = @transform_5, window_bounds = array<i64: 16, 32, 128>}, {pipeline_mode = #tpu.pipeline_mode<synchronous>, transform_indices = @transform_6, window_bounds = array<i64: 1, 128>}, {pipeline_mode = #tpu.pipeline_mode<synchronous>, transform_indices = @transform_7, window_bounds = array<i64: 128, 128>}, {pipeline_mode = #tpu.pipeline_mode<synchronous>, transform_indices = @transform_8, window_bounds = array<i64: 1, 128>}, {transform_indices = @transform_9, window_bounds = array<i64: 2, 128>}]} {
    %c0 = arith.constant 0 : index
    %c0_0 = arith.constant 0 : index
    %c0_1 = arith.constant 0 : index
    %c0_2 = arith.constant 0 : index
    %0 = vector.load %arg1[%c0, %c0_0, %c0_1, %c0_2] : memref<2x18x18x1xf32, #tpu.memory_space<vmem>>, vector<2x16x16x1xf32>
    %c0_3 = arith.constant 0 : index
    %c0_4 = arith.constant 0 : index
    %1 = vector.load %arg2[%c0_3, %c0_4] : memref<9x16xf32, #tpu.memory_space<vmem>>, vector<1x16xf32>
    %2 = vector.shape_cast %1 : vector<1x16xf32> to vector<1x1x1x16xf32>
    %3 = vector.broadcast %0 : vector<2x16x16x1xf32> to vector<2x16x16x16xf32>
    %4 = vector.broadcast %2 : vector<1x1x1x16xf32> to vector<2x16x16x16xf32>
    %5 = arith.mulf %3, %4 : vector<2x16x16x16xf32>
    %c0_5 = arith.constant 0 : index
    %c0_6 = arith.constant 0 : index
    %c1 = arith.constant 1 : index
    %c0_7 = arith.constant 0 : index
    %6 = vector.load %arg1[%c0_5, %c0_6, %c1, %c0_7] : memref<2x18x18x1xf32, #tpu.memory_space<vmem>>, vector<2x16x16x1xf32>
    %c1_8 = arith.constant 1 : index
    %c0_9 = arith.constant 0 : index
    %7 = vector.load %arg2[%c1_8, %c0_9] : memref<9x16xf32, #tpu.memory_space<vmem>>, vector<1x16xf32>
    %8 = vector.shape_cast %7 : vector<1x16xf32> to vector<1x1x1x16xf32>
    %9 = vector.broadcast %6 : vector<2x16x16x1xf32> to vector<2x16x16x16xf32>
    %10 = vector.broadcast %8 : vector<1x1x1x16xf32> to vector<2x16x16x16xf32>
    %11 = arith.mulf %9, %10 : vector<2x16x16x16xf32>
    %12 = arith.addf %5, %11 : vector<2x16x16x16xf32>
    %c0_10 = arith.constant 0 : index
    %c0_11 = arith.constant 0 : index
    %c2 = arith.constant 2 : index
    %c0_12 = arith.constant 0 : index
    %13 = vector.load %arg1[%c0_10, %c0_11, %c2, %c0_12] : memref<2x18x18x1xf32, #tpu.memory_space<vmem>>, vector<2x16x16x1xf32>
    %c2_13 = arith.constant 2 : index
    %c0_14 = arith.constant 0 : index
    %14 = vector.load %arg2[%c2_13, %c0_14] : memref<9x16xf32, #tpu.memory_space<vmem>>, vector<1x16xf32>
    %15 = vector.shape_cast %14 : vector<1x16xf32> to vector<1x1x1x16xf32>
    %16 = vector.broadcast %13 : vector<2x16x16x1xf32> to vector<2x16x16x16xf32>
    %17 = vector.broadcast %15 : vector<1x1x1x16xf32> to vector<2x16x16x16xf32>
    %18 = arith.mulf %16, %17 : vector<2x16x16x16xf32>
    %19 = arith.addf %12, %18 : vector<2x16x16x16xf32>
    %c0_15 = arith.constant 0 : index
    %c1_16 = arith.constant 1 : index
    %c0_17 = arith.constant 0 : index
    %c0_18 = arith.constant 0 : index
    %20 = vector.load %arg1[%c0_15, %c1_16, %c0_17, %c0_18] : memref<2x18x18x1xf32, #tpu.memory_space<vmem>>, vector<2x16x16x1xf32>
    %c3 = arith.constant 3 : index
    %c0_19 = arith.constant 0 : index
    %21 = vector.load %arg2[%c3, %c0_19] : memref<9x16xf32, #tpu.memory_space<vmem>>, vector<1x16xf32>
    %22 = vector.shape_cast %21 : vector<1x16xf32> to vector<1x1x1x16xf32>
    %23 = vector.broadcast %20 : vector<2x16x16x1xf32> to vector<2x16x16x16xf32>
    %24 = vector.broadcast %22 : vector<1x1x1x16xf32> to vector<2x16x16x16xf32>
    %25 = arith.mulf %23, %24 : vector<2x16x16x16xf32>
    %26 = arith.addf %19, %25 : vector<2x16x16x16xf32>
    %c0_20 = arith.constant 0 : index
    %c1_21 = arith.constant 1 : index
    %c1_22 = arith.constant 1 : index
    %c0_23 = arith.constant 0 : index
    %27 = vector.load %arg1[%c0_20, %c1_21, %c1_22, %c0_23] : memref<2x18x18x1xf32, #tpu.memory_space<vmem>>, vector<2x16x16x1xf32>
    %c4 = arith.constant 4 : index
    %c0_24 = arith.constant 0 : index
    %28 = vector.load %arg2[%c4, %c0_24] : memref<9x16xf32, #tpu.memory_space<vmem>>, vector<1x16xf32>
    %29 = vector.shape_cast %28 : vector<1x16xf32> to vector<1x1x1x16xf32>
    %30 = vector.broadcast %27 : vector<2x16x16x1xf32> to vector<2x16x16x16xf32>
    %31 = vector.broadcast %29 : vector<1x1x1x16xf32> to vector<2x16x16x16xf32>
    %32 = arith.mulf %30, %31 : vector<2x16x16x16xf32>
    %33 = arith.addf %26, %32 : vector<2x16x16x16xf32>
    %c0_25 = arith.constant 0 : index
    %c1_26 = arith.constant 1 : index
    %c2_27 = arith.constant 2 : index
    %c0_28 = arith.constant 0 : index
    %34 = vector.load %arg1[%c0_25, %c1_26, %c2_27, %c0_28] : memref<2x18x18x1xf32, #tpu.memory_space<vmem>>, vector<2x16x16x1xf32>
    %c5 = arith.constant 5 : index
    %c0_29 = arith.constant 0 : index
    %35 = vector.load %arg2[%c5, %c0_29] : memref<9x16xf32, #tpu.memory_space<vmem>>, vector<1x16xf32>
    %36 = vector.shape_cast %35 : vector<1x16xf32> to vector<1x1x1x16xf32>
    %37 = vector.broadcast %34 : vector<2x16x16x1xf32> to vector<2x16x16x16xf32>
    %38 = vector.broadcast %36 : vector<1x1x1x16xf32> to vector<2x16x16x16xf32>
    %39 = arith.mulf %37, %38 : vector<2x16x16x16xf32>
    %40 = arith.addf %33, %39 : vector<2x16x16x16xf32>
    %c0_30 = arith.constant 0 : index
    %c2_31 = arith.constant 2 : index
    %c0_32 = arith.constant 0 : index
    %c0_33 = arith.constant 0 : index
    %41 = vector.load %arg1[%c0_30, %c2_31, %c0_32, %c0_33] : memref<2x18x18x1xf32, #tpu.memory_space<vmem>>, vector<2x16x16x1xf32>
    %c6 = arith.constant 6 : index
    %c0_34 = arith.constant 0 : index
    %42 = vector.load %arg2[%c6, %c0_34] : memref<9x16xf32, #tpu.memory_space<vmem>>, vector<1x16xf32>
    %43 = vector.shape_cast %42 : vector<1x16xf32> to vector<1x1x1x16xf32>
    %44 = vector.broadcast %41 : vector<2x16x16x1xf32> to vector<2x16x16x16xf32>
    %45 = vector.broadcast %43 : vector<1x1x1x16xf32> to vector<2x16x16x16xf32>
    %46 = arith.mulf %44, %45 : vector<2x16x16x16xf32>
    %47 = arith.addf %40, %46 : vector<2x16x16x16xf32>
    %c0_35 = arith.constant 0 : index
    %c2_36 = arith.constant 2 : index
    %c1_37 = arith.constant 1 : index
    %c0_38 = arith.constant 0 : index
    %48 = vector.load %arg1[%c0_35, %c2_36, %c1_37, %c0_38] : memref<2x18x18x1xf32, #tpu.memory_space<vmem>>, vector<2x16x16x1xf32>
    %c7 = arith.constant 7 : index
    %c0_39 = arith.constant 0 : index
    %49 = vector.load %arg2[%c7, %c0_39] : memref<9x16xf32, #tpu.memory_space<vmem>>, vector<1x16xf32>
    %50 = vector.shape_cast %49 : vector<1x16xf32> to vector<1x1x1x16xf32>
    %51 = vector.broadcast %48 : vector<2x16x16x1xf32> to vector<2x16x16x16xf32>
    %52 = vector.broadcast %50 : vector<1x1x1x16xf32> to vector<2x16x16x16xf32>
    %53 = arith.mulf %51, %52 : vector<2x16x16x16xf32>
    %54 = arith.addf %47, %53 : vector<2x16x16x16xf32>
    %c0_40 = arith.constant 0 : index
    %c2_41 = arith.constant 2 : index
    %c2_42 = arith.constant 2 : index
    %c0_43 = arith.constant 0 : index
    %55 = vector.load %arg1[%c0_40, %c2_41, %c2_42, %c0_43] : memref<2x18x18x1xf32, #tpu.memory_space<vmem>>, vector<2x16x16x1xf32>
    %c8 = arith.constant 8 : index
    %c0_44 = arith.constant 0 : index
    %56 = vector.load %arg2[%c8, %c0_44] : memref<9x16xf32, #tpu.memory_space<vmem>>, vector<1x16xf32>
    %57 = vector.shape_cast %56 : vector<1x16xf32> to vector<1x1x1x16xf32>
    %58 = vector.broadcast %55 : vector<2x16x16x1xf32> to vector<2x16x16x16xf32>
    %59 = vector.broadcast %57 : vector<1x1x1x16xf32> to vector<2x16x16x16xf32>
    %60 = arith.mulf %58, %59 : vector<2x16x16x16xf32>
    %61 = arith.addf %54, %60 : vector<2x16x16x16xf32>
    %c0_45 = arith.constant 0 : index
    %c0_46 = arith.constant 0 : index
    %62 = vector.load %arg3[%c0_45, %c0_46] : memref<1x16xf32, #tpu.memory_space<vmem>>, vector<1x16xf32>
    %63 = vector.shape_cast %62 : vector<1x16xf32> to vector<1x1x1x16xf32>
    %64 = vector.broadcast %63 : vector<1x1x1x16xf32> to vector<2x16x16x16xf32>
    %65 = arith.addf %61, %64 : vector<2x16x16x16xf32>
    %cst = arith.constant 0.000000e+00 : f32
    %66 = vector.broadcast %cst : f32 to vector<2x16x16x16xf32>
    %67 = arith.maximumf %65, %66 : vector<2x16x16x16xf32>
    %68 = vector.shape_cast %67 : vector<2x16x16x16xf32> to vector<2x8x2x16x16xf32>
    %69 = vector.extract_strided_slice %68 {offsets = [0, 0, 0, 0, 0], sizes = [2, 8, 1, 16, 16], strides = [1, 1, 1, 1, 1]} : vector<2x8x2x16x16xf32> to vector<2x8x1x16x16xf32>
    %70 = vector.shape_cast %69 : vector<2x8x1x16x16xf32> to vector<2x8x16x16xf32>
    %71 = vector.extract_strided_slice %68 {offsets = [0, 0, 1, 0, 0], sizes = [2, 8, 1, 16, 16], strides = [1, 1, 1, 1, 1]} : vector<2x8x2x16x16xf32> to vector<2x8x1x16x16xf32>
    %72 = vector.shape_cast %71 : vector<2x8x1x16x16xf32> to vector<2x8x16x16xf32>
    %73 = arith.maximumf %70, %72 : vector<2x8x16x16xf32>
    %74 = vector.shape_cast %73 : vector<2x8x16x16xf32> to vector<2x8x8x2x16xf32>
    %75 = vector.extract_strided_slice %74 {offsets = [0, 0, 0, 0, 0], sizes = [2, 8, 8, 1, 16], strides = [1, 1, 1, 1, 1]} : vector<2x8x8x2x16xf32> to vector<2x8x8x1x16xf32>
    %76 = vector.shape_cast %75 : vector<2x8x8x1x16xf32> to vector<2x8x8x16xf32>
    %77 = vector.extract_strided_slice %74 {offsets = [0, 0, 0, 1, 0], sizes = [2, 8, 8, 1, 16], strides = [1, 1, 1, 1, 1]} : vector<2x8x8x2x16xf32> to vector<2x8x8x1x16xf32>
    %78 = vector.shape_cast %77 : vector<2x8x8x1x16xf32> to vector<2x8x8x16xf32>
    %79 = arith.maximumf %76, %78 : vector<2x8x8x16xf32>
    %cst_47 = arith.constant 0.000000e+00 : f32
    %80 = vector.broadcast %cst_47 : f32 to vector<2x10x10x16xf32>
    %c0_48 = arith.constant 0 : index
    %c0_49 = arith.constant 0 : index
    %c0_50 = arith.constant 0 : index
    %c0_51 = arith.constant 0 : index
    %81 = vector.load %arg11[%c0_48, %c0_49, %c0_50, %c0_51] : memref<2x10x10x16xf32, #tpu.memory_space<vmem>>, vector<2x10x10x16xf32>
    tpu.vector_store %arg11[%c0_48, %c0_49, %c0_50, %c0_51], %80 {strides = array<i32>} : memref<2x10x10x16xf32, #tpu.memory_space<vmem>>, vector<2x10x10x16xf32>,
    %c0_52 = arith.constant 0 : index
    %c1_53 = arith.constant 1 : index
    %c1_54 = arith.constant 1 : index
    %c0_55 = arith.constant 0 : index
    %82 = vector.load %arg11[%c0_52, %c1_53, %c1_54, %c0_55] : memref<2x10x10x16xf32, #tpu.memory_space<vmem>>, vector<2x8x8x16xf32>
    tpu.vector_store %arg11[%c0_52, %c1_53, %c1_54, %c0_55], %79 {strides = array<i32>} : memref<2x10x10x16xf32, #tpu.memory_space<vmem>>, vector<2x8x8x16xf32>,
    %cst_56 = arith.constant 0.000000e+00 : f32
    %83 = vector.broadcast %cst_56 : f32 to vector<128x32xf32>
    %c0_57 = arith.constant 0 : index
    %c0_58 = arith.constant 0 : index
    %c0_59 = arith.constant 0 : index
    %c0_60 = arith.constant 0 : index
    %84 = vector.load %arg11[%c0_57, %c0_58, %c0_59, %c0_60] : memref<2x10x10x16xf32, #tpu.memory_space<vmem>>, vector<2x8x8x16xf32>
    %85 = vector.shape_cast %84 : vector<2x8x8x16xf32> to vector<128x16xf32>
    %86 = arith.truncf %85 : vector<128x16xf32> to vector<128x16xbf16>
    %c0_61 = arith.constant 0 : index
    %c0_62 = arith.constant 0 : index
    %c0_63 = arith.constant 0 : index
    %87 = vector.load %arg4[%c0_61, %c0_62, %c0_63] : memref<9x16x32xbf16, #tpu.memory_space<vmem>>, vector<1x16x32xbf16>
    %88 = vector.shape_cast %87 : vector<1x16x32xbf16> to vector<16x32xbf16>
    %cst_64 = arith.constant dense<0.000000e+00> : vector<128x32xf32>
    %89 = tpu.matmul %86, %88, %cst_64 {dimension_numbers = #tpu.dot_dimension_numbers<[1], [0], [0], [1], [0, 0, 1, 1], [], []>} : vector<128x16xbf16>, vector<16x32xbf16>, vector<128x32xf32> -> vector<128x32xf32>
    %90 = arith.addf %83, %89 : vector<128x32xf32>
    %c0_65 = arith.constant 0 : index
    %c0_66 = arith.constant 0 : index
    %c1_67 = arith.constant 1 : index
    %c0_68 = arith.constant 0 : index
    %91 = vector.load %arg11[%c0_65, %c0_66, %c1_67, %c0_68] : memref<2x10x10x16xf32, #tpu.memory_space<vmem>>, vector<2x8x8x16xf32>
    %92 = vector.shape_cast %91 : vector<2x8x8x16xf32> to vector<128x16xf32>
    %93 = arith.truncf %92 : vector<128x16xf32> to vector<128x16xbf16>
    %c1_69 = arith.constant 1 : index
    %c0_70 = arith.constant 0 : index
    %c0_71 = arith.constant 0 : index
    %94 = vector.load %arg4[%c1_69, %c0_70, %c0_71] : memref<9x16x32xbf16, #tpu.memory_space<vmem>>, vector<1x16x32xbf16>
    %95 = vector.shape_cast %94 : vector<1x16x32xbf16> to vector<16x32xbf16>
    %cst_72 = arith.constant dense<0.000000e+00> : vector<128x32xf32>
    %96 = tpu.matmul %93, %95, %cst_72 {dimension_numbers = #tpu.dot_dimension_numbers<[1], [0], [0], [1], [0, 0, 1, 1], [], []>} : vector<128x16xbf16>, vector<16x32xbf16>, vector<128x32xf32> -> vector<128x32xf32>
    %97 = arith.addf %90, %96 : vector<128x32xf32>
    %c0_73 = arith.constant 0 : index
    %c0_74 = arith.constant 0 : index
    %c2_75 = arith.constant 2 : index
    %c0_76 = arith.constant 0 : index
    %98 = vector.load %arg11[%c0_73, %c0_74, %c2_75, %c0_76] : memref<2x10x10x16xf32, #tpu.memory_space<vmem>>, vector<2x8x8x16xf32>
    %99 = vector.shape_cast %98 : vector<2x8x8x16xf32> to vector<128x16xf32>
    %100 = arith.truncf %99 : vector<128x16xf32> to vector<128x16xbf16>
    %c2_77 = arith.constant 2 : index
    %c0_78 = arith.constant 0 : index
    %c0_79 = arith.constant 0 : index
    %101 = vector.load %arg4[%c2_77, %c0_78, %c0_79] : memref<9x16x32xbf16, #tpu.memory_space<vmem>>, vector<1x16x32xbf16>
    %102 = vector.shape_cast %101 : vector<1x16x32xbf16> to vector<16x32xbf16>
    %cst_80 = arith.constant dense<0.000000e+00> : vector<128x32xf32>
    %103 = tpu.matmul %100, %102, %cst_80 {dimension_numbers = #tpu.dot_dimension_numbers<[1], [0], [0], [1], [0, 0, 1, 1], [], []>} : vector<128x16xbf16>, vector<16x32xbf16>, vector<128x32xf32> -> vector<128x32xf32>
    %104 = arith.addf %97, %103 : vector<128x32xf32>
    %c0_81 = arith.constant 0 : index
    %c1_82 = arith.constant 1 : index
    %c0_83 = arith.constant 0 : index
    %c0_84 = arith.constant 0 : index
    %105 = vector.load %arg11[%c0_81, %c1_82, %c0_83, %c0_84] : memref<2x10x10x16xf32, #tpu.memory_space<vmem>>, vector<2x8x8x16xf32>
    %106 = vector.shape_cast %105 : vector<2x8x8x16xf32> to vector<128x16xf32>
    %107 = arith.truncf %106 : vector<128x16xf32> to vector<128x16xbf16>
    %c3_85 = arith.constant 3 : index
    %c0_86 = arith.constant 0 : index
    %c0_87 = arith.constant 0 : index
    %108 = vector.load %arg4[%c3_85, %c0_86, %c0_87] : memref<9x16x32xbf16, #tpu.memory_space<vmem>>, vector<1x16x32xbf16>
    %109 = vector.shape_cast %108 : vector<1x16x32xbf16> to vector<16x32xbf16>
    %cst_88 = arith.constant dense<0.000000e+00> : vector<128x32xf32>
    %110 = tpu.matmul %107, %109, %cst_88 {dimension_numbers = #tpu.dot_dimension_numbers<[1], [0], [0], [1], [0, 0, 1, 1], [], []>} : vector<128x16xbf16>, vector<16x32xbf16>, vector<128x32xf32> -> vector<128x32xf32>
    %111 = arith.addf %104, %110 : vector<128x32xf32>
    %c0_89 = arith.constant 0 : index
    %c1_90 = arith.constant 1 : index
    %c1_91 = arith.constant 1 : index
    %c0_92 = arith.constant 0 : index
    %112 = vector.load %arg11[%c0_89, %c1_90, %c1_91, %c0_92] : memref<2x10x10x16xf32, #tpu.memory_space<vmem>>, vector<2x8x8x16xf32>
    %113 = vector.shape_cast %112 : vector<2x8x8x16xf32> to vector<128x16xf32>
    %114 = arith.truncf %113 : vector<128x16xf32> to vector<128x16xbf16>
    %c4_93 = arith.constant 4 : index
    %c0_94 = arith.constant 0 : index
    %c0_95 = arith.constant 0 : index
    %115 = vector.load %arg4[%c4_93, %c0_94, %c0_95] : memref<9x16x32xbf16, #tpu.memory_space<vmem>>, vector<1x16x32xbf16>
    %116 = vector.shape_cast %115 : vector<1x16x32xbf16> to vector<16x32xbf16>
    %cst_96 = arith.constant dense<0.000000e+00> : vector<128x32xf32>
    %117 = tpu.matmul %114, %116, %cst_96 {dimension_numbers = #tpu.dot_dimension_numbers<[1], [0], [0], [1], [0, 0, 1, 1], [], []>} : vector<128x16xbf16>, vector<16x32xbf16>, vector<128x32xf32> -> vector<128x32xf32>
    %118 = arith.addf %111, %117 : vector<128x32xf32>
    %c0_97 = arith.constant 0 : index
    %c1_98 = arith.constant 1 : index
    %c2_99 = arith.constant 2 : index
    %c0_100 = arith.constant 0 : index
    %119 = vector.load %arg11[%c0_97, %c1_98, %c2_99, %c0_100] : memref<2x10x10x16xf32, #tpu.memory_space<vmem>>, vector<2x8x8x16xf32>
    %120 = vector.shape_cast %119 : vector<2x8x8x16xf32> to vector<128x16xf32>
    %121 = arith.truncf %120 : vector<128x16xf32> to vector<128x16xbf16>
    %c5_101 = arith.constant 5 : index
    %c0_102 = arith.constant 0 : index
    %c0_103 = arith.constant 0 : index
    %122 = vector.load %arg4[%c5_101, %c0_102, %c0_103] : memref<9x16x32xbf16, #tpu.memory_space<vmem>>, vector<1x16x32xbf16>
    %123 = vector.shape_cast %122 : vector<1x16x32xbf16> to vector<16x32xbf16>
    %cst_104 = arith.constant dense<0.000000e+00> : vector<128x32xf32>
    %124 = tpu.matmul %121, %123, %cst_104 {dimension_numbers = #tpu.dot_dimension_numbers<[1], [0], [0], [1], [0, 0, 1, 1], [], []>} : vector<128x16xbf16>, vector<16x32xbf16>, vector<128x32xf32> -> vector<128x32xf32>
    %125 = arith.addf %118, %124 : vector<128x32xf32>
    %c0_105 = arith.constant 0 : index
    %c2_106 = arith.constant 2 : index
    %c0_107 = arith.constant 0 : index
    %c0_108 = arith.constant 0 : index
    %126 = vector.load %arg11[%c0_105, %c2_106, %c0_107, %c0_108] : memref<2x10x10x16xf32, #tpu.memory_space<vmem>>, vector<2x8x8x16xf32>
    %127 = vector.shape_cast %126 : vector<2x8x8x16xf32> to vector<128x16xf32>
    %128 = arith.truncf %127 : vector<128x16xf32> to vector<128x16xbf16>
    %c6_109 = arith.constant 6 : index
    %c0_110 = arith.constant 0 : index
    %c0_111 = arith.constant 0 : index
    %129 = vector.load %arg4[%c6_109, %c0_110, %c0_111] : memref<9x16x32xbf16, #tpu.memory_space<vmem>>, vector<1x16x32xbf16>
    %130 = vector.shape_cast %129 : vector<1x16x32xbf16> to vector<16x32xbf16>
    %cst_112 = arith.constant dense<0.000000e+00> : vector<128x32xf32>
    %131 = tpu.matmul %128, %130, %cst_112 {dimension_numbers = #tpu.dot_dimension_numbers<[1], [0], [0], [1], [0, 0, 1, 1], [], []>} : vector<128x16xbf16>, vector<16x32xbf16>, vector<128x32xf32> -> vector<128x32xf32>
    %132 = arith.addf %125, %131 : vector<128x32xf32>
    %c0_113 = arith.constant 0 : index
    %c2_114 = arith.constant 2 : index
    %c1_115 = arith.constant 1 : index
    %c0_116 = arith.constant 0 : index
    %133 = vector.load %arg11[%c0_113, %c2_114, %c1_115, %c0_116] : memref<2x10x10x16xf32, #tpu.memory_space<vmem>>, vector<2x8x8x16xf32>
    %134 = vector.shape_cast %133 : vector<2x8x8x16xf32> to vector<128x16xf32>
    %135 = arith.truncf %134 : vector<128x16xf32> to vector<128x16xbf16>
    %c7_117 = arith.constant 7 : index
    %c0_118 = arith.constant 0 : index
    %c0_119 = arith.constant 0 : index
    %136 = vector.load %arg4[%c7_117, %c0_118, %c0_119] : memref<9x16x32xbf16, #tpu.memory_space<vmem>>, vector<1x16x32xbf16>
    %137 = vector.shape_cast %136 : vector<1x16x32xbf16> to vector<16x32xbf16>
    %cst_120 = arith.constant dense<0.000000e+00> : vector<128x32xf32>
    %138 = tpu.matmul %135, %137, %cst_120 {dimension_numbers = #tpu.dot_dimension_numbers<[1], [0], [0], [1], [0, 0, 1, 1], [], []>} : vector<128x16xbf16>, vector<16x32xbf16>, vector<128x32xf32> -> vector<128x32xf32>
    %139 = arith.addf %132, %138 : vector<128x32xf32>
    %c0_121 = arith.constant 0 : index
    %c2_122 = arith.constant 2 : index
    %c2_123 = arith.constant 2 : index
    %c0_124 = arith.constant 0 : index
    %140 = vector.load %arg11[%c0_121, %c2_122, %c2_123, %c0_124] : memref<2x10x10x16xf32, #tpu.memory_space<vmem>>, vector<2x8x8x16xf32>
    %141 = vector.shape_cast %140 : vector<2x8x8x16xf32> to vector<128x16xf32>
    %142 = arith.truncf %141 : vector<128x16xf32> to vector<128x16xbf16>
    %c8_125 = arith.constant 8 : index
    %c0_126 = arith.constant 0 : index
    %c0_127 = arith.constant 0 : index
    %143 = vector.load %arg4[%c8_125, %c0_126, %c0_127] : memref<9x16x32xbf16, #tpu.memory_space<vmem>>, vector<1x16x32xbf16>
    %144 = vector.shape_cast %143 : vector<1x16x32xbf16> to vector<16x32xbf16>
    %cst_128 = arith.constant dense<0.000000e+00> : vector<128x32xf32>
    %145 = tpu.matmul %142, %144, %cst_128 {dimension_numbers = #tpu.dot_dimension_numbers<[1], [0], [0], [1], [0, 0, 1, 1], [], []>} : vector<128x16xbf16>, vector<16x32xbf16>, vector<128x32xf32> -> vector<128x32xf32>
    %146 = arith.addf %139, %145 : vector<128x32xf32>
    %c0_129 = arith.constant 0 : index
    %c0_130 = arith.constant 0 : index
    %147 = vector.load %arg5[%c0_129, %c0_130] : memref<1x32xf32, #tpu.memory_space<vmem>>, vector<1x32xf32>
    %148 = vector.broadcast %147 : vector<1x32xf32> to vector<128x32xf32>
    %149 = arith.addf %146, %148 : vector<128x32xf32>
    %cst_131 = arith.constant 0.000000e+00 : f32
    %150 = vector.broadcast %cst_131 : f32 to vector<128x32xf32>
    %151 = arith.maximumf %149, %150 : vector<128x32xf32>
    %152 = vector.shape_cast %151 : vector<128x32xf32> to vector<2x8x8x32xf32>
    %153 = vector.shape_cast %152 : vector<2x8x8x32xf32> to vector<2x4x2x8x32xf32>
    %154 = vector.extract_strided_slice %153 {offsets = [0, 0, 0, 0, 0], sizes = [2, 4, 1, 8, 32], strides = [1, 1, 1, 1, 1]} : vector<2x4x2x8x32xf32> to vector<2x4x1x8x32xf32>
    %155 = vector.shape_cast %154 : vector<2x4x1x8x32xf32> to vector<2x4x8x32xf32>
    %156 = vector.extract_strided_slice %153 {offsets = [0, 0, 1, 0, 0], sizes = [2, 4, 1, 8, 32], strides = [1, 1, 1, 1, 1]} : vector<2x4x2x8x32xf32> to vector<2x4x1x8x32xf32>
    %157 = vector.shape_cast %156 : vector<2x4x1x8x32xf32> to vector<2x4x8x32xf32>
    %158 = arith.maximumf %155, %157 : vector<2x4x8x32xf32>
    %159 = vector.shape_cast %158 : vector<2x4x8x32xf32> to vector<2x4x4x2x32xf32>
    %160 = vector.extract_strided_slice %159 {offsets = [0, 0, 0, 0, 0], sizes = [2, 4, 4, 1, 32], strides = [1, 1, 1, 1, 1]} : vector<2x4x4x2x32xf32> to vector<2x4x4x1x32xf32>
    %161 = vector.shape_cast %160 : vector<2x4x4x1x32xf32> to vector<2x4x4x32xf32>
    %162 = vector.extract_strided_slice %159 {offsets = [0, 0, 0, 1, 0], sizes = [2, 4, 4, 1, 32], strides = [1, 1, 1, 1, 1]} : vector<2x4x4x2x32xf32> to vector<2x4x4x1x32xf32>
    %163 = vector.shape_cast %162 : vector<2x4x4x1x32xf32> to vector<2x4x4x32xf32>
    %164 = arith.maximumf %161, %163 : vector<2x4x4x32xf32>
    %165 = vector.shape_cast %164 : vector<2x4x4x32xf32> to vector<2x16x32xf32>
    %cst_132 = arith.constant 0.000000e+00 : f32
    %166 = vector.broadcast %cst_132 : f32 to vector<2x128xf32>
    %167 = vector.extract_strided_slice %165 {offsets = [0, 0, 0], sizes = [2, 1, 32], strides = [1, 1, 1]} : vector<2x16x32xf32> to vector<2x1x32xf32>
    %168 = vector.shape_cast %167 : vector<2x1x32xf32> to vector<2x32xf32>
    %169 = arith.truncf %168 : vector<2x32xf32> to vector<2x32xbf16>
    %c0_133 = arith.constant 0 : index
    %c0_134 = arith.constant 0 : index
    %c0_135 = arith.constant 0 : index
    %170 = vector.load %arg6[%c0_133, %c0_134, %c0_135] : memref<16x32x128xbf16, #tpu.memory_space<vmem>>, vector<1x32x128xbf16>
    %171 = vector.shape_cast %170 : vector<1x32x128xbf16> to vector<32x128xbf16>
    %cst_136 = arith.constant dense<0.000000e+00> : vector<2x128xf32>
    %172 = tpu.matmul %169, %171, %cst_136 {dimension_numbers = #tpu.dot_dimension_numbers<[1], [0], [0], [1], [0, 0, 1, 1], [], []>} : vector<2x32xbf16>, vector<32x128xbf16>, vector<2x128xf32> -> vector<2x128xf32>
    %173 = arith.addf %166, %172 : vector<2x128xf32>
    %174 = vector.extract_strided_slice %165 {offsets = [0, 1, 0], sizes = [2, 1, 32], strides = [1, 1, 1]} : vector<2x16x32xf32> to vector<2x1x32xf32>
    %175 = vector.shape_cast %174 : vector<2x1x32xf32> to vector<2x32xf32>
    %176 = arith.truncf %175 : vector<2x32xf32> to vector<2x32xbf16>
    %c1_137 = arith.constant 1 : index
    %c0_138 = arith.constant 0 : index
    %c0_139 = arith.constant 0 : index
    %177 = vector.load %arg6[%c1_137, %c0_138, %c0_139] : memref<16x32x128xbf16, #tpu.memory_space<vmem>>, vector<1x32x128xbf16>
    %178 = vector.shape_cast %177 : vector<1x32x128xbf16> to vector<32x128xbf16>
    %cst_140 = arith.constant dense<0.000000e+00> : vector<2x128xf32>
    %179 = tpu.matmul %176, %178, %cst_140 {dimension_numbers = #tpu.dot_dimension_numbers<[1], [0], [0], [1], [0, 0, 1, 1], [], []>} : vector<2x32xbf16>, vector<32x128xbf16>, vector<2x128xf32> -> vector<2x128xf32>
    %180 = arith.addf %173, %179 : vector<2x128xf32>
    %181 = vector.extract_strided_slice %165 {offsets = [0, 2, 0], sizes = [2, 1, 32], strides = [1, 1, 1]} : vector<2x16x32xf32> to vector<2x1x32xf32>
    %182 = vector.shape_cast %181 : vector<2x1x32xf32> to vector<2x32xf32>
    %183 = arith.truncf %182 : vector<2x32xf32> to vector<2x32xbf16>
    %c2_141 = arith.constant 2 : index
    %c0_142 = arith.constant 0 : index
    %c0_143 = arith.constant 0 : index
    %184 = vector.load %arg6[%c2_141, %c0_142, %c0_143] : memref<16x32x128xbf16, #tpu.memory_space<vmem>>, vector<1x32x128xbf16>
    %185 = vector.shape_cast %184 : vector<1x32x128xbf16> to vector<32x128xbf16>
    %cst_144 = arith.constant dense<0.000000e+00> : vector<2x128xf32>
    %186 = tpu.matmul %183, %185, %cst_144 {dimension_numbers = #tpu.dot_dimension_numbers<[1], [0], [0], [1], [0, 0, 1, 1], [], []>} : vector<2x32xbf16>, vector<32x128xbf16>, vector<2x128xf32> -> vector<2x128xf32>
    %187 = arith.addf %180, %186 : vector<2x128xf32>
    %188 = vector.extract_strided_slice %165 {offsets = [0, 3, 0], sizes = [2, 1, 32], strides = [1, 1, 1]} : vector<2x16x32xf32> to vector<2x1x32xf32>
    %189 = vector.shape_cast %188 : vector<2x1x32xf32> to vector<2x32xf32>
    %190 = arith.truncf %189 : vector<2x32xf32> to vector<2x32xbf16>
    %c3_145 = arith.constant 3 : index
    %c0_146 = arith.constant 0 : index
    %c0_147 = arith.constant 0 : index
    %191 = vector.load %arg6[%c3_145, %c0_146, %c0_147] : memref<16x32x128xbf16, #tpu.memory_space<vmem>>, vector<1x32x128xbf16>
    %192 = vector.shape_cast %191 : vector<1x32x128xbf16> to vector<32x128xbf16>
    %cst_148 = arith.constant dense<0.000000e+00> : vector<2x128xf32>
    %193 = tpu.matmul %190, %192, %cst_148 {dimension_numbers = #tpu.dot_dimension_numbers<[1], [0], [0], [1], [0, 0, 1, 1], [], []>} : vector<2x32xbf16>, vector<32x128xbf16>, vector<2x128xf32> -> vector<2x128xf32>
    %194 = arith.addf %187, %193 : vector<2x128xf32>
    %195 = vector.extract_strided_slice %165 {offsets = [0, 4, 0], sizes = [2, 1, 32], strides = [1, 1, 1]} : vector<2x16x32xf32> to vector<2x1x32xf32>
    %196 = vector.shape_cast %195 : vector<2x1x32xf32> to vector<2x32xf32>
    %197 = arith.truncf %196 : vector<2x32xf32> to vector<2x32xbf16>
    %c4_149 = arith.constant 4 : index
    %c0_150 = arith.constant 0 : index
    %c0_151 = arith.constant 0 : index
    %198 = vector.load %arg6[%c4_149, %c0_150, %c0_151] : memref<16x32x128xbf16, #tpu.memory_space<vmem>>, vector<1x32x128xbf16>
    %199 = vector.shape_cast %198 : vector<1x32x128xbf16> to vector<32x128xbf16>
    %cst_152 = arith.constant dense<0.000000e+00> : vector<2x128xf32>
    %200 = tpu.matmul %197, %199, %cst_152 {dimension_numbers = #tpu.dot_dimension_numbers<[1], [0], [0], [1], [0, 0, 1, 1], [], []>} : vector<2x32xbf16>, vector<32x128xbf16>, vector<2x128xf32> -> vector<2x128xf32>
    %201 = arith.addf %194, %200 : vector<2x128xf32>
    %202 = vector.extract_strided_slice %165 {offsets = [0, 5, 0], sizes = [2, 1, 32], strides = [1, 1, 1]} : vector<2x16x32xf32> to vector<2x1x32xf32>
    %203 = vector.shape_cast %202 : vector<2x1x32xf32> to vector<2x32xf32>
    %204 = arith.truncf %203 : vector<2x32xf32> to vector<2x32xbf16>
    %c5_153 = arith.constant 5 : index
    %c0_154 = arith.constant 0 : index
    %c0_155 = arith.constant 0 : index
    %205 = vector.load %arg6[%c5_153, %c0_154, %c0_155] : memref<16x32x128xbf16, #tpu.memory_space<vmem>>, vector<1x32x128xbf16>
    %206 = vector.shape_cast %205 : vector<1x32x128xbf16> to vector<32x128xbf16>
    %cst_156 = arith.constant dense<0.000000e+00> : vector<2x128xf32>
    %207 = tpu.matmul %204, %206, %cst_156 {dimension_numbers = #tpu.dot_dimension_numbers<[1], [0], [0], [1], [0, 0, 1, 1], [], []>} : vector<2x32xbf16>, vector<32x128xbf16>, vector<2x128xf32> -> vector<2x128xf32>
    %208 = arith.addf %201, %207 : vector<2x128xf32>
    %209 = vector.extract_strided_slice %165 {offsets = [0, 6, 0], sizes = [2, 1, 32], strides = [1, 1, 1]} : vector<2x16x32xf32> to vector<2x1x32xf32>
    %210 = vector.shape_cast %209 : vector<2x1x32xf32> to vector<2x32xf32>
    %211 = arith.truncf %210 : vector<2x32xf32> to vector<2x32xbf16>
    %c6_157 = arith.constant 6 : index
    %c0_158 = arith.constant 0 : index
    %c0_159 = arith.constant 0 : index
    %212 = vector.load %arg6[%c6_157, %c0_158, %c0_159] : memref<16x32x128xbf16, #tpu.memory_space<vmem>>, vector<1x32x128xbf16>
    %213 = vector.shape_cast %212 : vector<1x32x128xbf16> to vector<32x128xbf16>
    %cst_160 = arith.constant dense<0.000000e+00> : vector<2x128xf32>
    %214 = tpu.matmul %211, %213, %cst_160 {dimension_numbers = #tpu.dot_dimension_numbers<[1], [0], [0], [1], [0, 0, 1, 1], [], []>} : vector<2x32xbf16>, vector<32x128xbf16>, vector<2x128xf32> -> vector<2x128xf32>
    %215 = arith.addf %208, %214 : vector<2x128xf32>
    %216 = vector.extract_strided_slice %165 {offsets = [0, 7, 0], sizes = [2, 1, 32], strides = [1, 1, 1]} : vector<2x16x32xf32> to vector<2x1x32xf32>
    %217 = vector.shape_cast %216 : vector<2x1x32xf32> to vector<2x32xf32>
    %218 = arith.truncf %217 : vector<2x32xf32> to vector<2x32xbf16>
    %c7_161 = arith.constant 7 : index
    %c0_162 = arith.constant 0 : index
    %c0_163 = arith.constant 0 : index
    %219 = vector.load %arg6[%c7_161, %c0_162, %c0_163] : memref<16x32x128xbf16, #tpu.memory_space<vmem>>, vector<1x32x128xbf16>
    %220 = vector.shape_cast %219 : vector<1x32x128xbf16> to vector<32x128xbf16>
    %cst_164 = arith.constant dense<0.000000e+00> : vector<2x128xf32>
    %221 = tpu.matmul %218, %220, %cst_164 {dimension_numbers = #tpu.dot_dimension_numbers<[1], [0], [0], [1], [0, 0, 1, 1], [], []>} : vector<2x32xbf16>, vector<32x128xbf16>, vector<2x128xf32> -> vector<2x128xf32>
    %222 = arith.addf %215, %221 : vector<2x128xf32>
    %223 = vector.extract_strided_slice %165 {offsets = [0, 8, 0], sizes = [2, 1, 32], strides = [1, 1, 1]} : vector<2x16x32xf32> to vector<2x1x32xf32>
    %224 = vector.shape_cast %223 : vector<2x1x32xf32> to vector<2x32xf32>
    %225 = arith.truncf %224 : vector<2x32xf32> to vector<2x32xbf16>
    %c8_165 = arith.constant 8 : index
    %c0_166 = arith.constant 0 : index
    %c0_167 = arith.constant 0 : index
    %226 = vector.load %arg6[%c8_165, %c0_166, %c0_167] : memref<16x32x128xbf16, #tpu.memory_space<vmem>>, vector<1x32x128xbf16>
    %227 = vector.shape_cast %226 : vector<1x32x128xbf16> to vector<32x128xbf16>
    %cst_168 = arith.constant dense<0.000000e+00> : vector<2x128xf32>
    %228 = tpu.matmul %225, %227, %cst_168 {dimension_numbers = #tpu.dot_dimension_numbers<[1], [0], [0], [1], [0, 0, 1, 1], [], []>} : vector<2x32xbf16>, vector<32x128xbf16>, vector<2x128xf32> -> vector<2x128xf32>
    %229 = arith.addf %222, %228 : vector<2x128xf32>
    %230 = vector.extract_strided_slice %165 {offsets = [0, 9, 0], sizes = [2, 1, 32], strides = [1, 1, 1]} : vector<2x16x32xf32> to vector<2x1x32xf32>
    %231 = vector.shape_cast %230 : vector<2x1x32xf32> to vector<2x32xf32>
    %232 = arith.truncf %231 : vector<2x32xf32> to vector<2x32xbf16>
    %c9 = arith.constant 9 : index
    %c0_169 = arith.constant 0 : index
    %c0_170 = arith.constant 0 : index
    %233 = vector.load %arg6[%c9, %c0_169, %c0_170] : memref<16x32x128xbf16, #tpu.memory_space<vmem>>, vector<1x32x128xbf16>
    %234 = vector.shape_cast %233 : vector<1x32x128xbf16> to vector<32x128xbf16>
    %cst_171 = arith.constant dense<0.000000e+00> : vector<2x128xf32>
    %235 = tpu.matmul %232, %234, %cst_171 {dimension_numbers = #tpu.dot_dimension_numbers<[1], [0], [0], [1], [0, 0, 1, 1], [], []>} : vector<2x32xbf16>, vector<32x128xbf16>, vector<2x128xf32> -> vector<2x128xf32>
    %236 = arith.addf %229, %235 : vector<2x128xf32>
    %237 = vector.extract_strided_slice %165 {offsets = [0, 10, 0], sizes = [2, 1, 32], strides = [1, 1, 1]} : vector<2x16x32xf32> to vector<2x1x32xf32>
    %238 = vector.shape_cast %237 : vector<2x1x32xf32> to vector<2x32xf32>
    %239 = arith.truncf %238 : vector<2x32xf32> to vector<2x32xbf16>
    %c10 = arith.constant 10 : index
    %c0_172 = arith.constant 0 : index
    %c0_173 = arith.constant 0 : index
    %240 = vector.load %arg6[%c10, %c0_172, %c0_173] : memref<16x32x128xbf16, #tpu.memory_space<vmem>>, vector<1x32x128xbf16>
    %241 = vector.shape_cast %240 : vector<1x32x128xbf16> to vector<32x128xbf16>
    %cst_174 = arith.constant dense<0.000000e+00> : vector<2x128xf32>
    %242 = tpu.matmul %239, %241, %cst_174 {dimension_numbers = #tpu.dot_dimension_numbers<[1], [0], [0], [1], [0, 0, 1, 1], [], []>} : vector<2x32xbf16>, vector<32x128xbf16>, vector<2x128xf32> -> vector<2x128xf32>
    %243 = arith.addf %236, %242 : vector<2x128xf32>
    %244 = vector.extract_strided_slice %165 {offsets = [0, 11, 0], sizes = [2, 1, 32], strides = [1, 1, 1]} : vector<2x16x32xf32> to vector<2x1x32xf32>
    %245 = vector.shape_cast %244 : vector<2x1x32xf32> to vector<2x32xf32>
    %246 = arith.truncf %245 : vector<2x32xf32> to vector<2x32xbf16>
    %c11 = arith.constant 11 : index
    %c0_175 = arith.constant 0 : index
    %c0_176 = arith.constant 0 : index
    %247 = vector.load %arg6[%c11, %c0_175, %c0_176] : memref<16x32x128xbf16, #tpu.memory_space<vmem>>, vector<1x32x128xbf16>
    %248 = vector.shape_cast %247 : vector<1x32x128xbf16> to vector<32x128xbf16>
    %cst_177 = arith.constant dense<0.000000e+00> : vector<2x128xf32>
    %249 = tpu.matmul %246, %248, %cst_177 {dimension_numbers = #tpu.dot_dimension_numbers<[1], [0], [0], [1], [0, 0, 1, 1], [], []>} : vector<2x32xbf16>, vector<32x128xbf16>, vector<2x128xf32> -> vector<2x128xf32>
    %250 = arith.addf %243, %249 : vector<2x128xf32>
    %251 = vector.extract_strided_slice %165 {offsets = [0, 12, 0], sizes = [2, 1, 32], strides = [1, 1, 1]} : vector<2x16x32xf32> to vector<2x1x32xf32>
    %252 = vector.shape_cast %251 : vector<2x1x32xf32> to vector<2x32xf32>
    %253 = arith.truncf %252 : vector<2x32xf32> to vector<2x32xbf16>
    %c12 = arith.constant 12 : index
    %c0_178 = arith.constant 0 : index
    %c0_179 = arith.constant 0 : index
    %254 = vector.load %arg6[%c12, %c0_178, %c0_179] : memref<16x32x128xbf16, #tpu.memory_space<vmem>>, vector<1x32x128xbf16>
    %255 = vector.shape_cast %254 : vector<1x32x128xbf16> to vector<32x128xbf16>
    %cst_180 = arith.constant dense<0.000000e+00> : vector<2x128xf32>
    %256 = tpu.matmul %253, %255, %cst_180 {dimension_numbers = #tpu.dot_dimension_numbers<[1], [0], [0], [1], [0, 0, 1, 1], [], []>} : vector<2x32xbf16>, vector<32x128xbf16>, vector<2x128xf32> -> vector<2x128xf32>
    %257 = arith.addf %250, %256 : vector<2x128xf32>
    %258 = vector.extract_strided_slice %165 {offsets = [0, 13, 0], sizes = [2, 1, 32], strides = [1, 1, 1]} : vector<2x16x32xf32> to vector<2x1x32xf32>
    %259 = vector.shape_cast %258 : vector<2x1x32xf32> to vector<2x32xf32>
    %260 = arith.truncf %259 : vector<2x32xf32> to vector<2x32xbf16>
    %c13 = arith.constant 13 : index
    %c0_181 = arith.constant 0 : index
    %c0_182 = arith.constant 0 : index
    %261 = vector.load %arg6[%c13, %c0_181, %c0_182] : memref<16x32x128xbf16, #tpu.memory_space<vmem>>, vector<1x32x128xbf16>
    %262 = vector.shape_cast %261 : vector<1x32x128xbf16> to vector<32x128xbf16>
    %cst_183 = arith.constant dense<0.000000e+00> : vector<2x128xf32>
    %263 = tpu.matmul %260, %262, %cst_183 {dimension_numbers = #tpu.dot_dimension_numbers<[1], [0], [0], [1], [0, 0, 1, 1], [], []>} : vector<2x32xbf16>, vector<32x128xbf16>, vector<2x128xf32> -> vector<2x128xf32>
    %264 = arith.addf %257, %263 : vector<2x128xf32>
    %265 = vector.extract_strided_slice %165 {offsets = [0, 14, 0], sizes = [2, 1, 32], strides = [1, 1, 1]} : vector<2x16x32xf32> to vector<2x1x32xf32>
    %266 = vector.shape_cast %265 : vector<2x1x32xf32> to vector<2x32xf32>
    %267 = arith.truncf %266 : vector<2x32xf32> to vector<2x32xbf16>
    %c14 = arith.constant 14 : index
    %c0_184 = arith.constant 0 : index
    %c0_185 = arith.constant 0 : index
    %268 = vector.load %arg6[%c14, %c0_184, %c0_185] : memref<16x32x128xbf16, #tpu.memory_space<vmem>>, vector<1x32x128xbf16>
    %269 = vector.shape_cast %268 : vector<1x32x128xbf16> to vector<32x128xbf16>
    %cst_186 = arith.constant dense<0.000000e+00> : vector<2x128xf32>
    %270 = tpu.matmul %267, %269, %cst_186 {dimension_numbers = #tpu.dot_dimension_numbers<[1], [0], [0], [1], [0, 0, 1, 1], [], []>} : vector<2x32xbf16>, vector<32x128xbf16>, vector<2x128xf32> -> vector<2x128xf32>
    %271 = arith.addf %264, %270 : vector<2x128xf32>
    %272 = vector.extract_strided_slice %165 {offsets = [0, 15, 0], sizes = [2, 1, 32], strides = [1, 1, 1]} : vector<2x16x32xf32> to vector<2x1x32xf32>
    %273 = vector.shape_cast %272 : vector<2x1x32xf32> to vector<2x32xf32>
    %274 = arith.truncf %273 : vector<2x32xf32> to vector<2x32xbf16>
    %c15 = arith.constant 15 : index
    %c0_187 = arith.constant 0 : index
    %c0_188 = arith.constant 0 : index
    %275 = vector.load %arg6[%c15, %c0_187, %c0_188] : memref<16x32x128xbf16, #tpu.memory_space<vmem>>, vector<1x32x128xbf16>
    %276 = vector.shape_cast %275 : vector<1x32x128xbf16> to vector<32x128xbf16>
    %cst_189 = arith.constant dense<0.000000e+00> : vector<2x128xf32>
    %277 = tpu.matmul %274, %276, %cst_189 {dimension_numbers = #tpu.dot_dimension_numbers<[1], [0], [0], [1], [0, 0, 1, 1], [], []>} : vector<2x32xbf16>, vector<32x128xbf16>, vector<2x128xf32> -> vector<2x128xf32>
    %278 = arith.addf %271, %277 : vector<2x128xf32>
    %c0_190 = arith.constant 0 : index
    %c0_191 = arith.constant 0 : index
    %279 = vector.load %arg7[%c0_190, %c0_191] : memref<1x128xf32, #tpu.memory_space<vmem>>, vector<1x128xf32>
    %280 = vector.broadcast %279 : vector<1x128xf32> to vector<2x128xf32>
    %281 = arith.addf %278, %280 : vector<2x128xf32>
    %cst_192 = arith.constant 0.000000e+00 : f32
    %282 = vector.broadcast %cst_192 : f32 to vector<2x128xf32>
    %283 = arith.maximumf %281, %282 : vector<2x128xf32>
    %284 = arith.truncf %283 : vector<2x128xf32> to vector<2x128xbf16>
    %c0_193 = arith.constant 0 : index
    %c0_194 = arith.constant 0 : index
    %285 = vector.load %arg8[%c0_193, %c0_194] : memref<128x128xbf16, #tpu.memory_space<vmem>>, vector<128x128xbf16>
    %cst_195 = arith.constant dense<0.000000e+00> : vector<2x128xf32>
    %286 = tpu.matmul %284, %285, %cst_195 {dimension_numbers = #tpu.dot_dimension_numbers<[1], [0], [0], [1], [0, 0, 1, 1], [], []>} : vector<2x128xbf16>, vector<128x128xbf16>, vector<2x128xf32> -> vector<2x128xf32>
    %c0_196 = arith.constant 0 : index
    %c0_197 = arith.constant 0 : index
    %287 = vector.load %arg9[%c0_196, %c0_197] : memref<1x128xf32, #tpu.memory_space<vmem>>, vector<1x128xf32>
    %288 = vector.broadcast %287 : vector<1x128xf32> to vector<2x128xf32>
    %289 = arith.addf %286, %288 : vector<2x128xf32>
    %c0_198 = arith.constant 0 : index
    %c0_199 = arith.constant 0 : index
    %290 = vector.load %arg10[%c0_198, %c0_199] : memref<2x128xf32, #tpu.memory_space<vmem>>, vector<2x128xf32>
    tpu.vector_store %arg10[%c0_198, %c0_199], %289 {strides = array<i32>} : memref<2x128xf32, #tpu.memory_space<vmem>>, vector<2x128xf32>,
    return
  }
  func.func @transform_0(%arg0: i32) -> (i32, i32, i32, i32) {
    %c0_i32 = arith.constant 0 : i32
    %c0_i32_0 = arith.constant 0 : i32
    %c0_i32_1 = arith.constant 0 : i32
    %c0_i32_2 = arith.constant 0 : i32
    return %arg0, %c0_i32, %c0_i32_0, %c0_i32_1 : i32, i32, i32, i32
  }
  func.func @transform_1(%arg0: i32) -> (i32, i32) {
    %c0_i32 = arith.constant 0 : i32
    %c0_i32_0 = arith.constant 0 : i32
    %c0_i32_1 = arith.constant 0 : i32
    return %c0_i32, %c0_i32_0 : i32, i32
  }
  func.func @transform_2(%arg0: i32) -> (i32, i32) {
    %c0_i32 = arith.constant 0 : i32
    %c0_i32_0 = arith.constant 0 : i32
    %c0_i32_1 = arith.constant 0 : i32
    return %c0_i32, %c0_i32_0 : i32, i32
  }
  func.func @transform_3(%arg0: i32) -> (i32, i32, i32) {
    %c0_i32 = arith.constant 0 : i32
    %c0_i32_0 = arith.constant 0 : i32
    %c0_i32_1 = arith.constant 0 : i32
    %c0_i32_2 = arith.constant 0 : i32
    return %c0_i32, %c0_i32_0, %c0_i32_1 : i32, i32, i32
  }
  func.func @transform_4(%arg0: i32) -> (i32, i32) {
    %c0_i32 = arith.constant 0 : i32
    %c0_i32_0 = arith.constant 0 : i32
    %c0_i32_1 = arith.constant 0 : i32
    return %c0_i32, %c0_i32_0 : i32, i32
  }
  func.func @transform_5(%arg0: i32) -> (i32, i32, i32) {
    %c0_i32 = arith.constant 0 : i32
    %c0_i32_0 = arith.constant 0 : i32
    %c0_i32_1 = arith.constant 0 : i32
    %c0_i32_2 = arith.constant 0 : i32
    return %c0_i32, %c0_i32_0, %c0_i32_1 : i32, i32, i32
  }
  func.func @transform_6(%arg0: i32) -> (i32, i32) {
    %c0_i32 = arith.constant 0 : i32
    %c0_i32_0 = arith.constant 0 : i32
    %c0_i32_1 = arith.constant 0 : i32
    return %c0_i32, %c0_i32_0 : i32, i32
  }
  func.func @transform_7(%arg0: i32) -> (i32, i32) {
    %c0_i32 = arith.constant 0 : i32
    %c0_i32_0 = arith.constant 0 : i32
    %c0_i32_1 = arith.constant 0 : i32
    return %c0_i32, %c0_i32_0 : i32, i32
  }
  func.func @transform_8(%arg0: i32) -> (i32, i32) {
    %c0_i32 = arith.constant 0 : i32
    %c0_i32_0 = arith.constant 0 : i32
    %c0_i32_1 = arith.constant 0 : i32
    return %c0_i32, %c0_i32_0 : i32, i32
  }
  func.func @transform_9(%arg0: i32) -> (i32, i32) {
    %c0_i32 = arith.constant 0 : i32
    %c0_i32_0 = arith.constant 0 : i32
    return %arg0, %c0_i32 : i32, i32
  }
}

</mosaic_0001>

<llo_original>
// kernel: forward.1
$region0: #{forward.1}
  #allocation0 [shape = 'u32[]', space=smem, size = 0x4, offset = 0x4, fixed_abs, tag = 'smem constant byte address 0x4 - core index']
  #allocation1 [shape = 'u32[144,128]{1,0:T(1,128)}', space=vmem, size = 0x12000, scoped, tag = 'internal scratch']
  #allocation2 [shape = 'f32[2,10,10,16]{3,2,1,0:T(8,128)}', space=vmem, size = 0x28000, scoped, tag = 'scratch operand']
  %s0 = inlined_call_operand.vmem [shape: f32[2,18,18,1], index: 0, kind: input, shape index: {}]
  %s1 = inlined_call_operand.vmem [shape: f32[9,16], index: 1, kind: input, shape index: {}]
  %s2 = inlined_call_operand.vmem [shape: f32[1,16], index: 2, kind: input, shape index: {}]
  %s3 = inlined_call_operand.vmem [shape: bf16[9,16,32], index: 3, kind: input, shape index: {}]
  %s4 = inlined_call_operand.vmem [shape: f32[1,32], index: 4, kind: input, shape index: {}]
  %s5 = inlined_call_operand.vmem [shape: bf16[16,32,128], index: 5, kind: input, shape index: {}]
  %s6 = inlined_call_operand.vmem [shape: f32[1,128], index: 6, kind: input, shape index: {}]
  %s7 = inlined_call_operand.vmem [shape: bf16[128,128], index: 7, kind: input, shape index: {}]
  %s8 = inlined_call_operand.vmem [shape: f32[1,128], index: 8, kind: input, shape index: {}]
  %s9 = inlined_call_operand.hbm [shape: f32[2,128], index: 9, kind: output, shape index: {}]
  %s10 = sld [smem:[#allocation0]]
  $region46: #{forward.1} parent=0
    _
  %s12 = ssub.s32 1, %s10
  %s13 = scalar_select 0, %s12, %s10
  $region1: #{forward.1} parent=0
    #allocation3 [shape = 'u8[1024]{0}', space=vmem, size = 0x400, scoped, tag = 'output window, operand 0, single buffered']
    #allocation4 [shape = 's32[1]{0}', space=sflag, size = 0x4, scoped, tag = 'scoped memory for forward.1']
    %14 = vsyncpa [#allocation4], 0
    // Predicated region
    $region2: #{forward.1} parent=1 // pred_check
      _
    $region3: #{forward.1} parent=1 // pred_check_branch
      %16 = sbr.rel (0) target = $region5
    $region4: #{forward.1} parent=1 // pred_region
      _
    $region5: #{forward.1} parent=1 // pred_fallthru
      _
    // Predicated region
    $region6: #{forward.1} parent=1 // pred_check
      _
    $region7: #{forward.1} parent=1 // pred_check_branch
      %18 = sbr.rel (0) target = $region9
    $region8: #{forward.1} parent=1 // pred_region
      _
    $region9: #{forward.1} parent=1 // pred_fallthru
      _
    // Predicated region
    $region10: #{forward.1} parent=1 // pred_check
      _
    $region11: #{forward.1} parent=1 // pred_check_branch
      %20 = sbr.rel (0) target = $region13
    $region12: #{forward.1} parent=1 // pred_region
      _
    $region13: #{forward.1} parent=1 // pred_fallthru
      _
    // Predicated region
    $region14: #{forward.1} parent=1 // pred_check
      _
    $region15: #{forward.1} parent=1 // pred_check_branch
      %22 = sbr.rel (0) target = $region17
    $region16: #{forward.1} parent=1 // pred_region
      _
    $region17: #{forward.1} parent=1 // pred_fallthru
      _
    // Predicated region
    $region18: #{forward.1} parent=1 // pred_check
      _
    $region19: #{forward.1} parent=1 // pred_check_branch
      %24 = sbr.rel (0) target = $region21
    $region20: #{forward.1} parent=1 // pred_region
      _
    $region21: #{forward.1} parent=1 // pred_fallthru
      _
    // Predicated region
    $region22: #{forward.1} parent=1 // pred_check
      _
    $region23: #{forward.1} parent=1 // pred_check_branch
      %26 = sbr.rel (0) target = $region25
    $region24: #{forward.1} parent=1 // pred_region
      _
    $region25: #{forward.1} parent=1 // pred_fallthru
      _
    // Predicated region
    $region26: #{forward.1} parent=1 // pred_check
      _
    $region27: #{forward.1} parent=1 // pred_check_branch
      %28 = sbr.rel (0) target = $region29
    $region28: #{forward.1} parent=1 // pred_region
      _
    $region29: #{forward.1} parent=1 // pred_fallthru
      _
    // Predicated region
    $region30: #{forward.1} parent=1 // pred_check
      _
    $region31: #{forward.1} parent=1 // pred_check_branch
      %30 = sbr.rel (0) target = $region33
    $region32: #{forward.1} parent=1 // pred_region
      _
    $region33: #{forward.1} parent=1 // pred_fallthru
      _
    // Predicated region
    $region34: #{forward.1} parent=1 // pred_check
      _
    $region35: #{forward.1} parent=1 // pred_check_branch
      %32 = sbr.rel (0) target = $region37
    $region36: #{forward.1} parent=1 // pred_region
      _
    $region37: #{forward.1} parent=1 // pred_fallthru
      _
    %v34 = vld [vmem:[%s0] sm:$0xff]
    %v35 = vld [vmem:[%s0 + $0x8] sm:$0xff]
    %v36 = vld [vmem:[%s0 + $0x18] sm:$0xff]
    %v37 = vld [vmem:[%s0 + $0x20] sm:$0xff]
    %v38 = vld [vmem:[%s0 + $0x30] sm:$0xff]
    %v39 = vld [vmem:[%s0 + $0x38] sm:$0xff]
    %v40 = vld [vmem:[%s0 + $0x48] sm:$0xff]
    %v41 = vld [vmem:[%s0 + $0x50] sm:$0xff]
    %v42 = vld [vmem:[%s0 + $0x60] sm:$0xff]
    %v43 = vld [vmem:[%s0 + $0x68] sm:$0xff]
    %v44 = vld [vmem:[%s0 + $0x78] sm:$0xff]
    %v45 = vld [vmem:[%s0 + $0x80] sm:$0xff]
    %v46 = vld [vmem:[%s0 + $0x90] sm:$0xff]
    %v47 = vld [vmem:[%s0 + $0x98] sm:$0xff]
    %v48 = vld [vmem:[%s0 + $0xa8] sm:$0xff]
    %v49 = vld [vmem:[%s0 + $0xb0] sm:$0xff]
    %v50 = vld [vmem:[%s0 + $0xc0] sm:$0xff]
    %v51 = vld [vmem:[%s0 + $0xc8] sm:$0xff]
    %v52 = vld [vmem:[%s0 + $0xd8] sm:$0xff]
    %v53 = vld [vmem:[%s0 + $0xe0] sm:$0xff]
    %v54 = vld [vmem:[%s0 + $0xf0] sm:$0xff]
    %v55 = vld [vmem:[%s0 + $0xf8] sm:$0xff]
    %v56 = vld [vmem:[%s0 + $0x108] sm:$0xff]
    %v57 = vld [vmem:[%s0 + $0x110] sm:$0xff]
    %v58 = vld [vmem:[%s0 + $0x120] sm:$0xff]
    %v59 = vld [vmem:[%s0 + $0x128] sm:$0xff]
    %v60 = vld [vmem:[%s0 + $0x138] sm:$0xff]
    %v61 = vld [vmem:[%s0 + $0x140] sm:$0xff]
    %v62 = vld [vmem:[%s0 + $0x150] sm:$0xff]
    %v63 = vld [vmem:[%s0 + $0x158] sm:$0xff]
    %v64 = vld [vmem:[%s0 + $0x168] sm:$0xff]
    %v65 = vld [vmem:[%s0 + $0x170] sm:$0xff]
    %v66 = vld [vmem:[%s0 + $0x1b0] sm:$0xff]
    %v67 = vld [vmem:[%s0 + $0x1b8] sm:$0xff]
    %v68 = vld [vmem:[%s0 + $0x1c8] sm:$0xff]
    %v69 = vld [vmem:[%s0 + $0x1d0] sm:$0xff]
    %v70 = vld [vmem:[%s0 + $0x1e0] sm:$0xff]
    %v71 = vld [vmem:[%s0 + $0x1e8] sm:$0xff]
    %v72 = vld [vmem:[%s0 + $0x1f8] sm:$0xff]
    %v73 = vld [vmem:[%s0 + $0x200] sm:$0xff]
    %v74 = vld [vmem:[%s0 + $0x210] sm:$0xff]
    %v75 = vld [vmem:[%s0 + $0x218] sm:$0xff]
    %v76 = vld [vmem:[%s0 + $0x228] sm:$0xff]
    %v77 = vld [vmem:[%s0 + $0x230] sm:$0xff]
    %v78 = vld [vmem:[%s0 + $0x240] sm:$0xff]
    %v79 = vld [vmem:[%s0 + $0x248] sm:$0xff]
    %v80 = vld [vmem:[%s0 + $0x258] sm:$0xff]
    %v81 = vld [vmem:[%s0 + $0x260] sm:$0xff]
    %v82 = vld [vmem:[%s0 + $0x270] sm:$0xff]
    %v83 = vld [vmem:[%s0 + $0x278] sm:$0xff]
    %v84 = vld [vmem:[%s0 + $0x288] sm:$0xff]
    %v85 = vld [vmem:[%s0 + $0x290] sm:$0xff]
    %v86 = vld [vmem:[%s0 + $0x2a0] sm:$0xff]
    %v87 = vld [vmem:[%s0 + $0x2a8] sm:$0xff]
    %v88 = vld [vmem:[%s0 + $0x2b8] sm:$0xff]
    %v89 = vld [vmem:[%s0 + $0x2c0] sm:$0xff]
    %v90 = vld [vmem:[%s0 + $0x2d0] sm:$0xff]
    %v91 = vld [vmem:[%s0 + $0x2d8] sm:$0xff]
    %v92 = vld [vmem:[%s0 + $0x2e8] sm:$0xff]
    %v93 = vld [vmem:[%s0 + $0x2f0] sm:$0xff]
    %v94 = vld [vmem:[%s0 + $0x300] sm:$0xff]
    %v95 = vld [vmem:[%s0 + $0x308] sm:$0xff]
    %v96 = vld [vmem:[%s0 + $0x318] sm:$0xff]
    %v97 = vld [vmem:[%s0 + $0x320] sm:$0xff]
    %v98 = vld [vmem:[%s1] sm:$0x1]
    %100 = vset.pattern.permute.xlu0 0
    %101 = vperm.xlu0 %100, %v34
    %v102 = vpop.permute.xlu0 %101
    %105 = vset.pattern.permute.xlu0 0
    %106 = vperm.xlu0 %105, %v35
    %v107 = vpop.permute.xlu0 %106
    %110 = vset.pattern.permute.xlu0 0
    %111 = vperm.xlu0 %110, %v36
    %v112 = vpop.permute.xlu0 %111
    %115 = vset.pattern.permute.xlu0 0
    %116 = vperm.xlu0 %115, %v37
    %v117 = vpop.permute.xlu0 %116
    %120 = vset.pattern.permute.xlu0 0
    %121 = vperm.xlu0 %120, %v38
    %v122 = vpop.permute.xlu0 %121
    %125 = vset.pattern.permute.xlu0 0
    %126 = vperm.xlu0 %125, %v39
    %v127 = vpop.permute.xlu0 %126
    %130 = vset.pattern.permute.xlu0 0
    %131 = vperm.xlu0 %130, %v40
    %v132 = vpop.permute.xlu0 %131
    %135 = vset.pattern.permute.xlu0 0
    %136 = vperm.xlu0 %135, %v41
    %v137 = vpop.permute.xlu0 %136
    %140 = vset.pattern.permute.xlu0 0
    %141 = vperm.xlu0 %140, %v42
    %v142 = vpop.permute.xlu0 %141
    %145 = vset.pattern.permute.xlu0 0
    %146 = vperm.xlu0 %145, %v43
    %v147 = vpop.permute.xlu0 %146
    %150 = vset.pattern.permute.xlu0 0
    %151 = vperm.xlu0 %150, %v44
    %v152 = vpop.permute.xlu0 %151
    %155 = vset.pattern.permute.xlu0 0
    %156 = vperm.xlu0 %155, %v45
    %v157 = vpop.permute.xlu0 %156
    %160 = vset.pattern.permute.xlu0 0
    %161 = vperm.xlu0 %160, %v46
    %v162 = vpop.permute.xlu0 %161
    %165 = vset.pattern.permute.xlu0 0
    %166 = vperm.xlu0 %165, %v47
    %v167 = vpop.permute.xlu0 %166
    %170 = vset.pattern.permute.xlu0 0
    %171 = vperm.xlu0 %170, %v48
    %v172 = vpop.permute.xlu0 %171
    %175 = vset.pattern.permute.xlu0 0
    %176 = vperm.xlu0 %175, %v49
    %v177 = vpop.permute.xlu0 %176
    %180 = vset.pattern.permute.xlu0 0
    %181 = vperm.xlu0 %180, %v50
    %v182 = vpop.permute.xlu0 %181
    %185 = vset.pattern.permute.xlu0 0
    %186 = vperm.xlu0 %185, %v51
    %v187 = vpop.permute.xlu0 %186
    %190 = vset.pattern.permute.xlu0 0
    %191 = vperm.xlu0 %190, %v52
    %v192 = vpop.permute.xlu0 %191
    %195 = vset.pattern.permute.xlu0 0
    %196 = vperm.xlu0 %195, %v53
    %v197 = vpop.permute.xlu0 %196
    %200 = vset.pattern.permute.xlu0 0
    %201 = vperm.xlu0 %200, %v54
    %v202 = vpop.permute.xlu0 %201
    %205 = vset.pattern.permute.xlu0 0
    %206 = vperm.xlu0 %205, %v55
    %v207 = vpop.permute.xlu0 %206
    %210 = vset.pattern.permute.xlu0 0
    %211 = vperm.xlu0 %210, %v56
    %v212 = vpop.permute.xlu0 %211
    %215 = vset.pattern.permute.xlu0 0
    %216 = vperm.xlu0 %215, %v57
    %v217 = vpop.permute.xlu0 %216
    %220 = vset.pattern.permute.xlu0 0
    %221 = vperm.xlu0 %220, %v58
    %v222 = vpop.permute.xlu0 %221
    %225 = vset.pattern.permute.xlu0 0
    %226 = vperm.xlu0 %225, %v59
    %v227 = vpop.permute.xlu0 %226
    %230 = vset.pattern.permute.xlu0 0
    %231 = vperm.xlu0 %230, %v60
    %v232 = vpop.permute.xlu0 %231
    %235 = vset.pattern.permute.xlu0 0
    %236 = vperm.xlu0 %235, %v61
    %v237 = vpop.permute.xlu0 %236
    %240 = vset.pattern.permute.xlu0 0
    %241 = vperm.xlu0 %240, %v62
    %v242 = vpop.permute.xlu0 %241
    %245 = vset.pattern.permute.xlu0 0
    %246 = vperm.xlu0 %245, %v63
    %v247 = vpop.permute.xlu0 %246
    %250 = vset.pattern.permute.xlu0 0
    %251 = vperm.xlu0 %250, %v64
    %v252 = vpop.permute.xlu0 %251
    %255 = vset.pattern.permute.xlu0 0
    %256 = vperm.xlu0 %255, %v65
    %v257 = vpop.permute.xlu0 %256
    %260 = vset.pattern.permute.xlu0 0
    %261 = vperm.xlu0 %260, %v66
    %v262 = vpop.permute.xlu0 %261
    %265 = vset.pattern.permute.xlu0 0
    %266 = vperm.xlu0 %265, %v67
    %v267 = vpop.permute.xlu0 %266
    %270 = vset.pattern.permute.xlu0 0
    %271 = vperm.xlu0 %270, %v68
    %v272 = vpop.permute.xlu0 %271
    %275 = vset.pattern.permute.xlu0 0
    %276 = vperm.xlu0 %275, %v69
    %v277 = vpop.permute.xlu0 %276
    %280 = vset.pattern.permute.xlu0 0
    %281 = vperm.xlu0 %280, %v70
    %v282 = vpop.permute.xlu0 %281
    %285 = vset.pattern.permute.xlu0 0
    %286 = vperm.xlu0 %285, %v71
    %v287 = vpop.permute.xlu0 %286
    %290 = vset.pattern.permute.xlu0 0
    %291 = vperm.xlu0 %290, %v72
    %v292 = vpop.permute.xlu0 %291
    %295 = vset.pattern.permute.xlu0 0
    %296 = vperm.xlu0 %295, %v73
    %v297 = vpop.permute.xlu0 %296
    %300 = vset.pattern.permute.xlu0 0
    %301 = vperm.xlu0 %300, %v74
    %v302 = vpop.permute.xlu0 %301
    %305 = vset.pattern.permute.xlu0 0
    %306 = vperm.xlu0 %305, %v75
    %v307 = vpop.permute.xlu0 %306
    %310 = vset.pattern.permute.xlu0 0
    %311 = vperm.xlu0 %310, %v76
    %v312 = vpop.permute.xlu0 %311
    %315 = vset.pattern.permute.xlu0 0
    %316 = vperm.xlu0 %315, %v77
    %v317 = vpop.permute.xlu0 %316
    %320 = vset.pattern.permute.xlu0 0
    %321 = vperm.xlu0 %320, %v78
    %v322 = vpop.permute.xlu0 %321
    %325 = vset.pattern.permute.xlu0 0
    %326 = vperm.xlu0 %325, %v79
    %v327 = vpop.permute.xlu0 %326
    %330 = vset.pattern.permute.xlu0 0
    %331 = vperm.xlu0 %330, %v80
    %v332 = vpop.permute.xlu0 %331
    %335 = vset.pattern.permute.xlu0 0
    %336 = vperm.xlu0 %335, %v81
    %v337 = vpop.permute.xlu0 %336
    %340 = vset.pattern.permute.xlu0 0
    %341 = vperm.xlu0 %340, %v82
    %v342 = vpop.permute.xlu0 %341
    %345 = vset.pattern.permute.xlu0 0
    %346 = vperm.xlu0 %345, %v83
    %v347 = vpop.permute.xlu0 %346
    %350 = vset.pattern.permute.xlu0 0
    %351 = vperm.xlu0 %350, %v84
    %v352 = vpop.permute.xlu0 %351
    %355 = vset.pattern.permute.xlu0 0
    %356 = vperm.xlu0 %355, %v85
    %v357 = vpop.permute.xlu0 %356
    %360 = vset.pattern.permute.xlu0 0
    %361 = vperm.xlu0 %360, %v86
    %v362 = vpop.permute.xlu0 %361
    %365 = vset.pattern.permute.xlu0 0
    %366 = vperm.xlu0 %365, %v87
    %v367 = vpop.permute.xlu0 %366
    %370 = vset.pattern.permute.xlu0 0
    %371 = vperm.xlu0 %370, %v88
    %v372 = vpop.permute.xlu0 %371
    %375 = vset.pattern.permute.xlu0 0
    %376 = vperm.xlu0 %375, %v89
    %v377 = vpop.permute.xlu0 %376
    %380 = vset.pattern.permute.xlu0 0
    %381 = vperm.xlu0 %380, %v90
    %v382 = vpop.permute.xlu0 %381
    %385 = vset.pattern.permute.xlu0 0
    %386 = vperm.xlu0 %385, %v91
    %v387 = vpop.permute.xlu0 %386
    %390 = vset.pattern.permute.xlu0 0
    %391 = vperm.xlu0 %390, %v92
    %v392 = vpop.permute.xlu0 %391
    %395 = vset.pattern.permute.xlu0 0
    %396 = vperm.xlu0 %395, %v93
    %v397 = vpop.permute.xlu0 %396
    %400 = vset.pattern.permute.xlu0 0
    %401 = vperm.xlu0 %400, %v94
    %v402 = vpop.permute.xlu0 %401
    %405 = vset.pattern.permute.xlu0 0
    %406 = vperm.xlu0 %405, %v95
    %v407 = vpop.permute.xlu0 %406
    %410 = vset.pattern.permute.xlu0 0
    %411 = vperm.xlu0 %410, %v96
    %v412 = vpop.permute.xlu0 %411
    %415 = vset.pattern.permute.xlu0 0
    %416 = vperm.xlu0 %415, %v97
    %v417 = vpop.permute.xlu0 %416
    %v419 = vlaneseq
    %v420 = vshrl.u32 %v419, 7
    %v421 = vsub.s32 0, %v420
    %v422 = vrot.slane %v98, %v421
    %v423 = vmul.f32 %v102, %v422
    %v424 = vmul.f32 %v107, %v422
    %v425 = vmul.f32 %v112, %v422
    %v426 = vmul.f32 %v117, %v422
    %v427 = vmul.f32 %v122, %v422
    %v428 = vmul.f32 %v127, %v422
    %v429 = vmul.f32 %v132, %v422
    %v430 = vmul.f32 %v137, %v422
    %v431 = vmul.f32 %v142, %v422
    %v432 = vmul.f32 %v147, %v422
    %v433 = vmul.f32 %v152, %v422
    %v434 = vmul.f32 %v157, %v422
    %v435 = vmul.f32 %v162, %v422
    %v436 = vmul.f32 %v167, %v422
    %v437 = vmul.f32 %v172, %v422
    %v438 = vmul.f32 %v177, %v422
    %v439 = vmul.f32 %v182, %v422
    %v440 = vmul.f32 %v187, %v422
    %v441 = vmul.f32 %v192, %v422
    %v442 = vmul.f32 %v197, %v422
    %v443 = vmul.f32 %v202, %v422
    %v444 = vmul.f32 %v207, %v422
    %v445 = vmul.f32 %v212, %v422
    %v446 = vmul.f32 %v217, %v422
    %v447 = vmul.f32 %v222, %v422
    %v448 = vmul.f32 %v227, %v422
    %v449 = vmul.f32 %v232, %v422
    %v450 = vmul.f32 %v237, %v422
    %v451 = vmul.f32 %v242, %v422
    %v452 = vmul.f32 %v247, %v422
    %v453 = vmul.f32 %v252, %v422
    %v454 = vmul.f32 %v257, %v422
    %v455 = vmul.f32 %v262, %v422
    %v456 = vmul.f32 %v267, %v422
    %v457 = vmul.f32 %v272, %v422
    %v458 = vmul.f32 %v277, %v422
    %v459 = vmul.f32 %v282, %v422
    %v460 = vmul.f32 %v287, %v422
    %v461 = vmul.f32 %v292, %v422
    %v462 = vmul.f32 %v297, %v422
    %v463 = vmul.f32 %v302, %v422
    %v464 = vmul.f32 %v307, %v422
    %v465 = vmul.f32 %v312, %v422
    %v466 = vmul.f32 %v317, %v422
    %v467 = vmul.f32 %v322, %v422
    %v468 = vmul.f32 %v327, %v422
    %v469 = vmul.f32 %v332, %v422
    %v470 = vmul.f32 %v337, %v422
    %v471 = vmul.f32 %v342, %v422
    %v472 = vmul.f32 %v347, %v422
    %v473 = vmul.f32 %v352, %v422
    %v474 = vmul.f32 %v357, %v422
    %v475 = vmul.f32 %v362, %v422
    %v476 = vmul.f32 %v367, %v422
    %v477 = vmul.f32 %v372, %v422
    %v478 = vmul.f32 %v377, %v422
    %v479 = vmul.f32 %v382, %v422
    %v480 = vmul.f32 %v387, %v422
    %v481 = vmul.f32 %v392, %v422
    %v482 = vmul.f32 %v397, %v422
    %v483 = vmul.f32 %v402, %v422
    %v484 = vmul.f32 %v407, %v422
    %v485 = vmul.f32 %v412, %v422
    %v486 = vmul.f32 %v417, %v422
    %v487 = vld [vmem:[%s0 + $0x1] sm:$0xff]
    %v488 = vld [vmem:[%s0 + $0x9] sm:$0xff]
    %v489 = vld [vmem:[%s0 + $0x19] sm:$0xff]
    %v490 = vld [vmem:[%s0 + $0x21] sm:$0xff]
    %v491 = vld [vmem:[%s0 + $0x31] sm:$0xff]
    %v492 = vld [vmem:[%s0 + $0x39] sm:$0xff]
    %v493 = vld [vmem:[%s0 + $0x49] sm:$0xff]
    %v494 = vld [vmem:[%s0 + $0x51] sm:$0xff]
    %v495 = vld [vmem:[%s0 + $0x61] sm:$0xff]
    %v496 = vld [vmem:[%s0 + $0x69] sm:$0xff]
    %v497 = vld [vmem:[%s0 + $0x79] sm:$0xff]
    %v498 = vld [vmem:[%s0 + $0x81] sm:$0xff]
    %v499 = vld [vmem:[%s0 + $0x91] sm:$0xff]
    %v500 = vld [vmem:[%s0 + $0x99] sm:$0xff]
    %v501 = vld [vmem:[%s0 + $0xa9] sm:$0xff]
    %v502 = vld [vmem:[%s0 + $0xb1] sm:$0xff]
    %v503 = vld [vmem:[%s0 + $0xc1] sm:$0xff]
    %v504 = vld [vmem:[%s0 + $0xc9] sm:$0xff]
    %v505 = vld [vmem:[%s0 + $0xd9] sm:$0xff]
    %v506 = vld [vmem:[%s0 + $0xe1] sm:$0xff]
    %v507 = vld [vmem:[%s0 + $0xf1] sm:$0xff]
    %v508 = vld [vmem:[%s0 + $0xf9] sm:$0xff]
    %v509 = vld [vmem:[%s0 + $0x109] sm:$0xff]
    %v510 = vld [vmem:[%s0 + $0x111] sm:$0xff]
    %v511 = vld [vmem:[%s0 + $0x121] sm:$0xff]
    %v512 = vld [vmem:[%s0 + $0x129] sm:$0xff]
    %v513 = vld [vmem:[%s0 + $0x139] sm:$0xff]
    %v514 = vld [vmem:[%s0 + $0x141] sm:$0xff]
    %v515 = vld [vmem:[%s0 + $0x151] sm:$0xff]
    %v516 = vld [vmem:[%s0 + $0x159] sm:$0xff]
    %v517 = vld [vmem:[%s0 + $0x169] sm:$0xff]
    %v518 = vld [vmem:[%s0 + $0x171] sm:$0xff]
    %v519 = vld [vmem:[%s0 + $0x1b1] sm:$0xff]
    %v520 = vld [vmem:[%s0 + $0x1b9] sm:$0xff]
    %v521 = vld [vmem:[%s0 + $0x1c9] sm:$0xff]
    %v522 = vld [vmem:[%s0 + $0x1d1] sm:$0xff]
    %v523 = vld [vmem:[%s0 + $0x1e1] sm:$0xff]
    %v524 = vld [vmem:[%s0 + $0x1e9] sm:$0xff]
    %v525 = vld [vmem:[%s0 + $0x1f9] sm:$0xff]
    %v526 = vld [vmem:[%s0 + $0x201] sm:$0xff]
    %v527 = vld [vmem:[%s0 + $0x211] sm:$0xff]
    %v528 = vld [vmem:[%s0 + $0x219] sm:$0xff]
    %v529 = vld [vmem:[%s0 + $0x229] sm:$0xff]
    %v530 = vld [vmem:[%s0 + $0x231] sm:$0xff]
    %v531 = vld [vmem:[%s0 + $0x241] sm:$0xff]
    %v532 = vld [vmem:[%s0 + $0x249] sm:$0xff]
    %v533 = vld [vmem:[%s0 + $0x259] sm:$0xff]
    %v534 = vld [vmem:[%s0 + $0x261] sm:$0xff]
    %v535 = vld [vmem:[%s0 + $0x271] sm:$0xff]
    %v536 = vld [vmem:[%s0 + $0x279] sm:$0xff]
    %v537 = vld [vmem:[%s0 + $0x289] sm:$0xff]
    %v538 = vld [vmem:[%s0 + $0x291] sm:$0xff]
    %v539 = vld [vmem:[%s0 + $0x2a1] sm:$0xff]
    %v540 = vld [vmem:[%s0 + $0x2a9] sm:$0xff]
    %v541 = vld [vmem:[%s0 + $0x2b9] sm:$0xff]
    %v542 = vld [vmem:[%s0 + $0x2c1] sm:$0xff]
    %v543 = vld [vmem:[%s0 + $0x2d1] sm:$0xff]
    %v544 = vld [vmem:[%s0 + $0x2d9] sm:$0xff]
    %v545 = vld [vmem:[%s0 + $0x2e9] sm:$0xff]
    %v546 = vld [vmem:[%s0 + $0x2f1] sm:$0xff]
    %v547 = vld [vmem:[%s0 + $0x301] sm:$0xff]
    %v548 = vld [vmem:[%s0 + $0x309] sm:$0xff]
    %v549 = vld [vmem:[%s0 + $0x319] sm:$0xff]
    %v550 = vld [vmem:[%s0 + $0x321] sm:$0xff]
    %v551 = vld [vmem:[%s1 + $0x1] sm:$0x1]
    %553 = vset.pattern.permute.xlu0 0
    %554 = vperm.xlu0 %553, %v487
    %v555 = vpop.permute.xlu0 %554
    %558 = vset.pattern.permute.xlu0 0
    %559 = vperm.xlu0 %558, %v488
    %v560 = vpop.permute.xlu0 %559
    %563 = vset.pattern.permute.xlu0 0
    %564 = vperm.xlu0 %563, %v489
    %v565 = vpop.permute.xlu0 %564
    %568 = vset.pattern.permute.xlu0 0
    %569 = vperm.xlu0 %568, %v490
    %v570 = vpop.permute.xlu0 %569
    %573 = vset.pattern.permute.xlu0 0
    %574 = vperm.xlu0 %573, %v491
    %v575 = vpop.permute.xlu0 %574
    %578 = vset.pattern.permute.xlu0 0
    %579 = vperm.xlu0 %578, %v492
    %v580 = vpop.permute.xlu0 %579
    %583 = vset.pattern.permute.xlu0 0
    %584 = vperm.xlu0 %583, %v493
    %v585 = vpop.permute.xlu0 %584
    %588 = vset.pattern.permute.xlu0 0
    %589 = vperm.xlu0 %588, %v494
    %v590 = vpop.permute.xlu0 %589
    %593 = vset.pattern.permute.xlu0 0
    %594 = vperm.xlu0 %593, %v495
    %v595 = vpop.permute.xlu0 %594
    %598 = vset.pattern.permute.xlu0 0
    %599 = vperm.xlu0 %598, %v496
    %v600 = vpop.permute.xlu0 %599
    %603 = vset.pattern.permute.xlu0 0
    %604 = vperm.xlu0 %603, %v497
    %v605 = vpop.permute.xlu0 %604
    %608 = vset.pattern.permute.xlu0 0
    %609 = vperm.xlu0 %608, %v498
    %v610 = vpop.permute.xlu0 %609
    %613 = vset.pattern.permute.xlu0 0
    %614 = vperm.xlu0 %613, %v499
    %v615 = vpop.permute.xlu0 %614
    %618 = vset.pattern.permute.xlu0 0
    %619 = vperm.xlu0 %618, %v500
    %v620 = vpop.permute.xlu0 %619
    %623 = vset.pattern.permute.xlu0 0
    %624 = vperm.xlu0 %623, %v501
    %v625 = vpop.permute.xlu0 %624
    %628 = vset.pattern.permute.xlu0 0
    %629 = vperm.xlu0 %628, %v502
    %v630 = vpop.permute.xlu0 %629
    %633 = vset.pattern.permute.xlu0 0
    %634 = vperm.xlu0 %633, %v503
    %v635 = vpop.permute.xlu0 %634
    %638 = vset.pattern.permute.xlu0 0
    %639 = vperm.xlu0 %638, %v504
    %v640 = vpop.permute.xlu0 %639
    %643 = vset.pattern.permute.xlu0 0
    %644 = vperm.xlu0 %643, %v505
    %v645 = vpop.permute.xlu0 %644
    %648 = vset.pattern.permute.xlu0 0
    %649 = vperm.xlu0 %648, %v506
    %v650 = vpop.permute.xlu0 %649
    %653 = vset.pattern.permute.xlu0 0
    %654 = vperm.xlu0 %653, %v507
    %v655 = vpop.permute.xlu0 %654
    %658 = vset.pattern.permute.xlu0 0
    %659 = vperm.xlu0 %658, %v508
    %v660 = vpop.permute.xlu0 %659
    %663 = vset.pattern.permute.xlu0 0
    %664 = vperm.xlu0 %663, %v509
    %v665 = vpop.permute.xlu0 %664
    %668 = vset.pattern.permute.xlu0 0
    %669 = vperm.xlu0 %668, %v510
    %v670 = vpop.permute.xlu0 %669
    %673 = vset.pattern.permute.xlu0 0
    %674 = vperm.xlu0 %673, %v511
    %v675 = vpop.permute.xlu0 %674
    %678 = vset.pattern.permute.xlu0 0
    %679 = vperm.xlu0 %678, %v512
    %v680 = vpop.permute.xlu0 %679
    %683 = vset.pattern.permute.xlu0 0
    %684 = vperm.xlu0 %683, %v513
    %v685 = vpop.permute.xlu0 %684
    %688 = vset.pattern.permute.xlu0 0
    %689 = vperm.xlu0 %688, %v514
    %v690 = vpop.permute.xlu0 %689
    %693 = vset.pattern.permute.xlu0 0
    %694 = vperm.xlu0 %693, %v515
    %v695 = vpop.permute.xlu0 %694
    %698 = vset.pattern.permute.xlu0 0
    %699 = vperm.xlu0 %698, %v516
    %v700 = vpop.permute.xlu0 %699
    %703 = vset.pattern.permute.xlu0 0
    %704 = vperm.xlu0 %703, %v517
    %v705 = vpop.permute.xlu0 %704
    %708 = vset.pattern.permute.xlu0 0
    %709 = vperm.xlu0 %708, %v518
    %v710 = vpop.permute.xlu0 %709
    %713 = vset.pattern.permute.xlu0 0
    %714 = vperm.xlu0 %713, %v519
    %v715 = vpop.permute.xlu0 %714
    %718 = vset.pattern.permute.xlu0 0
    %719 = vperm.xlu0 %718, %v520
    %v720 = vpop.permute.xlu0 %719
    %723 = vset.pattern.permute.xlu0 0
    %724 = vperm.xlu0 %723, %v521
    %v725 = vpop.permute.xlu0 %724
    %728 = vset.pattern.permute.xlu0 0
    %729 = vperm.xlu0 %728, %v522
    %v730 = vpop.permute.xlu0 %729
    %733 = vset.pattern.permute.xlu0 0
    %734 = vperm.xlu0 %733, %v523
    %v735 = vpop.permute.xlu0 %734
    %738 = vset.pattern.permute.xlu0 0
    %739 = vperm.xlu0 %738, %v524
    %v740 = vpop.permute.xlu0 %739
    %743 = vset.pattern.permute.xlu0 0
    %744 = vperm.xlu0 %743, %v525
    %v745 = vpop.permute.xlu0 %744
    %748 = vset.pattern.permute.xlu0 0
    %749 = vperm.xlu0 %748, %v526
    %v750 = vpop.permute.xlu0 %749
    %753 = vset.pattern.permute.xlu0 0
    %754 = vperm.xlu0 %753, %v527
    %v755 = vpop.permute.xlu0 %754
    %758 = vset.pattern.permute.xlu0 0
    %759 = vperm.xlu0 %758, %v528
    %v760 = vpop.permute.xlu0 %759
    %763 = vset.pattern.permute.xlu0 0
    %764 = vperm.xlu0 %763, %v529
    %v765 = vpop.permute.xlu0 %764
    %768 = vset.pattern.permute.xlu0 0
    %769 = vperm.xlu0 %768, %v530
    %v770 = vpop.permute.xlu0 %769
    %773 = vset.pattern.permute.xlu0 0
    %774 = vperm.xlu0 %773, %v531
    %v775 = vpop.permute.xlu0 %774
    %778 = vset.pattern.permute.xlu0 0
    %779 = vperm.xlu0 %778, %v532
    %v780 = vpop.permute.xlu0 %779
    %783 = vset.pattern.permute.xlu0 0
    %784 = vperm.xlu0 %783, %v533
    %v785 = vpop.permute.xlu0 %784
    %788 = vset.pattern.permute.xlu0 0
    %789 = vperm.xlu0 %788, %v534
    %v790 = vpop.permute.xlu0 %789
    %793 = vset.pattern.permute.xlu0 0
    %794 = vperm.xlu0 %793, %v535
    %v795 = vpop.permute.xlu0 %794
    %798 = vset.pattern.permute.xlu0 0
    %799 = vperm.xlu0 %798, %v536
    %v800 = vpop.permute.xlu0 %799
    %803 = vset.pattern.permute.xlu0 0
    %804 = vperm.xlu0 %803, %v537
    %v805 = vpop.permute.xlu0 %804
    %808 = vset.pattern.permute.xlu0 0
    %809 = vperm.xlu0 %808, %v538
    %v810 = vpop.permute.xlu0 %809
    %813 = vset.pattern.permute.xlu0 0
    %814 = vperm.xlu0 %813, %v539
    %v815 = vpop.permute.xlu0 %814
    %818 = vset.pattern.permute.xlu0 0
    %819 = vperm.xlu0 %818, %v540
    %v820 = vpop.permute.xlu0 %819
    %823 = vset.pattern.permute.xlu0 0
    %824 = vperm.xlu0 %823, %v541
    %v825 = vpop.permute.xlu0 %824
    %828 = vset.pattern.permute.xlu0 0
    %829 = vperm.xlu0 %828, %v542
    %v830 = vpop.permute.xlu0 %829
    %833 = vset.pattern.permute.xlu0 0
    %834 = vperm.xlu0 %833, %v543
    %v835 = vpop.permute.xlu0 %834
    %838 = vset.pattern.permute.xlu0 0
    %839 = vperm.xlu0 %838, %v544
    %v840 = vpop.permute.xlu0 %839
    %843 = vset.pattern.permute.xlu0 0
    %844 = vperm.xlu0 %843, %v545
    %v845 = vpop.permute.xlu0 %844
    %848 = vset.pattern.permute.xlu0 0
    %849 = vperm.xlu0 %848, %v546
    %v850 = vpop.permute.xlu0 %849
    %853 = vset.pattern.permute.xlu0 0
    %854 = vperm.xlu0 %853, %v547
    %v855 = vpop.permute.xlu0 %854
    %858 = vset.pattern.permute.xlu0 0
    %859 = vperm.xlu0 %858, %v548
    %v860 = vpop.permute.xlu0 %859
    %863 = vset.pattern.permute.xlu0 0
    %864 = vperm.xlu0 %863, %v549
    %v865 = vpop.permute.xlu0 %864
    %868 = vset.pattern.permute.xlu0 0
    %869 = vperm.xlu0 %868, %v550
    %v870 = vpop.permute.xlu0 %869
    %v872 = vlaneseq
    %v873 = vshrl.u32 %v872, 7
    %v874 = vsub.s32 0, %v873
    %v875 = vrot.slane %v551, %v874
    %v876 = vmul.f32 %v555, %v875
    %v877 = vmul.f32 %v560, %v875
    %v878 = vmul.f32 %v565, %v875
    %v879 = vmul.f32 %v570, %v875
    %v880 = vmul.f32 %v575, %v875
    %v881 = vmul.f32 %v580, %v875
    %v882 = vmul.f32 %v585, %v875
    %v883 = vmul.f32 %v590, %v875
    %v884 = vmul.f32 %v595, %v875
    %v885 = vmul.f32 %v600, %v875
    %v886 = vmul.f32 %v605, %v875
    %v887 = vmul.f32 %v610, %v875
    %v888 = vmul.f32 %v615, %v875
    %v889 = vmul.f32 %v620, %v875
    %v890 = vmul.f32 %v625, %v875
    %v891 = vmul.f32 %v630, %v875
    %v892 = vmul.f32 %v635, %v875
    %v893 = vmul.f32 %v640, %v875
    %v894 = vmul.f32 %v645, %v875
    %v895 = vmul.f32 %v650, %v875
    %v896 = vmul.f32 %v655, %v875
    %v897 = vmul.f32 %v660, %v875
    %v898 = vmul.f32 %v665, %v875
    %v899 = vmul.f32 %v670, %v875
    %v900 = vmul.f32 %v675, %v875
    %v901 = vmul.f32 %v680, %v875
    %v902 = vmul.f32 %v685, %v875
    %v903 = vmul.f32 %v690, %v875
    %v904 = vmul.f32 %v695, %v875
    %v905 = vmul.f32 %v700, %v875
    %v906 = vmul.f32 %v705, %v875
    %v907 = vmul.f32 %v710, %v875
    %v908 = vmul.f32 %v715, %v875
    %v909 = vmul.f32 %v720, %v875
    %v910 = vmul.f32 %v725, %v875
    %v911 = vmul.f32 %v730, %v875
    %v912 = vmul.f32 %v735, %v875
    %v913 = vmul.f32 %v740, %v875
    %v914 = vmul.f32 %v745, %v875
    %v915 = vmul.f32 %v750, %v875
    %v916 = vmul.f32 %v755, %v875
    %v917 = vmul.f32 %v760, %v875
    %v918 = vmul.f32 %v765, %v875
    %v919 = vmul.f32 %v770, %v875
    %v920 = vmul.f32 %v775, %v875
    %v921 = vmul.f32 %v780, %v875
    %v922 = vmul.f32 %v785, %v875
    %v923 = vmul.f32 %v790, %v875
    %v924 = vmul.f32 %v795, %v875
    %v925 = vmul.f32 %v800, %v875
    %v926 = vmul.f32 %v805, %v875
    %v927 = vmul.f32 %v810, %v875
    %v928 = vmul.f32 %v815, %v875
    %v929 = vmul.f32 %v820, %v875
    %v930 = vmul.f32 %v825, %v875
    %v931 = vmul.f32 %v830, %v875
    %v932 = vmul.f32 %v835, %v875
    %v933 = vmul.f32 %v840, %v875
    %v934 = vmul.f32 %v845, %v875
    %v935 = vmul.f32 %v850, %v875
    %v936 = vmul.f32 %v855, %v875
    %v937 = vmul.f32 %v860, %v875
    %v938 = vmul.f32 %v865, %v875
    %v939 = vmul.f32 %v870, %v875
    %v940 = vadd.f32 %v423, %v876
    %v941 = vadd.f32 %v424, %v877
    %v942 = vadd.f32 %v425, %v878
    %v943 = vadd.f32 %v426, %v879
    %v944 = vadd.f32 %v427, %v880
    %v945 = vadd.f32 %v428, %v881
    %v946 = vadd.f32 %v429, %v882
    %v947 = vadd.f32 %v430, %v883
    %v948 = vadd.f32 %v431, %v884
    %v949 = vadd.f32 %v432, %v885
    %v950 = vadd.f32 %v433, %v886
    %v951 = vadd.f32 %v434, %v887
    %v952 = vadd.f32 %v435, %v888
    %v953 = vadd.f32 %v436, %v889
    %v954 = vadd.f32 %v437, %v890
    %v955 = vadd.f32 %v438, %v891
    %v956 = vadd.f32 %v439, %v892
    %v957 = vadd.f32 %v440, %v893
    %v958 = vadd.f32 %v441, %v894
    %v959 = vadd.f32 %v442, %v895
    %v960 = vadd.f32 %v443, %v896
    %v961 = vadd.f32 %v444, %v897
    %v962 = vadd.f32 %v445, %v898
    %v963 = vadd.f32 %v446, %v899
    %v964 = vadd.f32 %v447, %v900
    %v965 = vadd.f32 %v448, %v901
    %v966 = vadd.f32 %v449, %v902
    %v967 = vadd.f32 %v450, %v903
    %v968 = vadd.f32 %v451, %v904
    %v969 = vadd.f32 %v452, %v905
    %v970 = vadd.f32 %v453, %v906
    %v971 = vadd.f32 %v454, %v907
    %v972 = vadd.f32 %v455, %v908
    %v973 = vadd.f32 %v456, %v909
    %v974 = vadd.f32 %v457, %v910
    %v975 = vadd.f32 %v458, %v911
    %v976 = vadd.f32 %v459, %v912
    %v977 = vadd.f32 %v460, %v913
    %v978 = vadd.f32 %v461, %v914
    %v979 = vadd.f32 %v462, %v915
    %v980 = vadd.f32 %v463, %v916
    %v981 = vadd.f32 %v464, %v917
    %v982 = vadd.f32 %v465, %v918
    %v983 = vadd.f32 %v466, %v919
    %v984 = vadd.f32 %v467, %v920
    %v985 = vadd.f32 %v468, %v921
    %v986 = vadd.f32 %v469, %v922
    %v987 = vadd.f32 %v470, %v923
    %v988 = vadd.f32 %v471, %v924
    %v989 = vadd.f32 %v472, %v925
    %v990 = vadd.f32 %v473, %v926
    %v991 = vadd.f32 %v474, %v927
    %v992 = vadd.f32 %v475, %v928
    %v993 = vadd.f32 %v476, %v929
    %v994 = vadd.f32 %v477, %v930
    %v995 = vadd.f32 %v478, %v931
    %v996 = vadd.f32 %v479, %v932
    %v997 = vadd.f32 %v480, %v933
    %v998 = vadd.f32 %v481, %v934
    %v999 = vadd.f32 %v482, %v935
    %v1000 = vadd.f32 %v483, %v936
    %v1001 = vadd.f32 %v484, %v937
    %v1002 = vadd.f32 %v485, %v938
    %v1003 = vadd.f32 %v486, %v939
    %v1004 = vld [vmem:[%s0 + $0x2] sm:$0xff]
    %v1005 = vld [vmem:[%s0 + $0xa] sm:$0xff]
    %v1006 = vld [vmem:[%s0 + $0x1a] sm:$0xff]
    %v1007 = vld [vmem:[%s0 + $0x22] sm:$0xff]
    %v1008 = vld [vmem:[%s0 + $0x32] sm:$0xff]
    %v1009 = vld [vmem:[%s0 + $0x3a] sm:$0xff]
    %v1010 = vld [vmem:[%s0 + $0x4a] sm:$0xff]
    %v1011 = vld [vmem:[%s0 + $0x52] sm:$0xff]
    %v1012 = vld [vmem:[%s0 + $0x62] sm:$0xff]
    %v1013 = vld [vmem:[%s0 + $0x6a] sm:$0xff]
    %v1014 = vld [vmem:[%s0 + $0x7a] sm:$0xff]
    %v1015 = vld [vmem:[%s0 + $0x82] sm:$0xff]
    %v1016 = vld [vmem:[%s0 + $0x92] sm:$0xff]
    %v1017 = vld [vmem:[%s0 + $0x9a] sm:$0xff]
    %v1018 = vld [vmem:[%s0 + $0xaa] sm:$0xff]
    %v1019 = vld [vmem:[%s0 + $0xb2] sm:$0xff]
    %v1020 = vld [vmem:[%s0 + $0xc2] sm:$0xff]
    %v1021 = vld [vmem:[%s0 + $0xca] sm:$0xff]
    %v1022 = vld [vmem:[%s0 + $0xda] sm:$0xff]
    %v1023 = vld [vmem:[%s0 + $0xe2] sm:$0xff]
    %v1024 = vld [vmem:[%s0 + $0xf2] sm:$0xff]
    %v1025 = vld [vmem:[%s0 + $0xfa] sm:$0xff]
    %v1026 = vld [vmem:[%s0 + $0x10a] sm:$0xff]
    %v1027 = vld [vmem:[%s0 + $0x112] sm:$0xff]
    %v1028 = vld [vmem:[%s0 + $0x122] sm:$0xff]
    %v1029 = vld [vmem:[%s0 + $0x12a] sm:$0xff]
    %v1030 = vld [vmem:[%s0 + $0x13a] sm:$0xff]
    %v1031 = vld [vmem:[%s0 + $0x142] sm:$0xff]
    %v1032 = vld [vmem:[%s0 + $0x152] sm:$0xff]
    %v1033 = vld [vmem:[%s0 + $0x15a] sm:$0xff]
    %v1034 = vld [vmem:[%s0 + $0x16a] sm:$0xff]
    %v1035 = vld [vmem:[%s0 + $0x172] sm:$0xff]
    %v1036 = vld [vmem:[%s0 + $0x1b2] sm:$0xff]
    %v1037 = vld [vmem:[%s0 + $0x1ba] sm:$0xff]
    %v1038 = vld [vmem:[%s0 + $0x1ca] sm:$0xff]
    %v1039 = vld [vmem:[%s0 + $0x1d2] sm:$0xff]
    %v1040 = vld [vmem:[%s0 + $0x1e2] sm:$0xff]
    %v1041 = vld [vmem:[%s0 + $0x1ea] sm:$0xff]
    %v1042 = vld [vmem:[%s0 + $0x1fa] sm:$0xff]
    %v1043 = vld [vmem:[%s0 + $0x202] sm:$0xff]
    %v1044 = vld [vmem:[%s0 + $0x212] sm:$0xff]
    %v1045 = vld [vmem:[%s0 + $0x21a] sm:$0xff]
    %v1046 = vld [vmem:[%s0 + $0x22a] sm:$0xff]
    %v1047 = vld [vmem:[%s0 + $0x232] sm:$0xff]
    %v1048 = vld [vmem:[%s0 + $0x242] sm:$0xff]
    %v1049 = vld [vmem:[%s0 + $0x24a] sm:$0xff]
    %v1050 = vld [vmem:[%s0 + $0x25a] sm:$0xff]
    %v1051 = vld [vmem:[%s0 + $0x262] sm:$0xff]
    %v1052 = vld [vmem:[%s0 + $0x272] sm:$0xff]
    %v1053 = vld [vmem:[%s0 + $0x27a] sm:$0xff]
    %v1054 = vld [vmem:[%s0 + $0x28a] sm:$0xff]
    %v1055 = vld [vmem:[%s0 + $0x292] sm:$0xff]
    %v1056 = vld [vmem:[%s0 + $0x2a2] sm:$0xff]
    %v1057 = vld [vmem:[%s0 + $0x2aa] sm:$0xff]
    %v1058 = vld [vmem:[%s0 + $0x2ba] sm:$0xff]
    %v1059 = vld [vmem:[%s0 + $0x2c2] sm:$0xff]
    %v1060 = vld [vmem:[%s0 + $0x2d2] sm:$0xff]
    %v1061 = vld [vmem:[%s0 + $0x2da] sm:$0xff]
    %v1062 = vld [vmem:[%s0 + $0x2ea] sm:$0xff]
    %v1063 = vld [vmem:[%s0 + $0x2f2] sm:$0xff]
    %v1064 = vld [vmem:[%s0 + $0x302] sm:$0xff]
    %v1065 = vld [vmem:[%s0 + $0x30a] sm:$0xff]
    %v1066 = vld [vmem:[%s0 + $0x31a] sm:$0xff]
    %v1067 = vld [vmem:[%s0 + $0x322] sm:$0xff]
    %v1068 = vld [vmem:[%s1 + $0x2] sm:$0x1]
    %1070 = vset.pattern.permute.xlu0 0
    %1071 = vperm.xlu0 %1070, %v1004
    %v1072 = vpop.permute.xlu0 %1071
    %1075 = vset.pattern.permute.xlu0 0
    %1076 = vperm.xlu0 %1075, %v1005
    %v1077 = vpop.permute.xlu0 %1076
    %1080 = vset.pattern.permute.xlu0 0
    %1081 = vperm.xlu0 %1080, %v1006
    %v1082 = vpop.permute.xlu0 %1081
    %1085 = vset.pattern.permute.xlu0 0
    %1086 = vperm.xlu0 %1085, %v1007
    %v1087 = vpop.permute.xlu0 %1086
    %1090 = vset.pattern.permute.xlu0 0
    %1091 = vperm.xlu0 %1090, %v1008
    %v1092 = vpop.permute.xlu0 %1091
    %1095 = vset.pattern.permute.xlu0 0
    %1096 = vperm.xlu0 %1095, %v1009
    %v1097 = vpop.permute.xlu0 %1096
    %1100 = vset.pattern.permute.xlu0 0
    %1101 = vperm.xlu0 %1100, %v1010
    %v1102 = vpop.permute.xlu0 %1101
    %1105 = vset.pattern.permute.xlu0 0
    %1106 = vperm.xlu0 %1105, %v1011
    %v1107 = vpop.permute.xlu0 %1106
    %1110 = vset.pattern.permute.xlu0 0
    %1111 = vperm.xlu0 %1110, %v1012
    %v1112 = vpop.permute.xlu0 %1111
    %1115 = vset.pattern.permute.xlu0 0
    %1116 = vperm.xlu0 %1115, %v1013
    %v1117 = vpop.permute.xlu0 %1116
    %1120 = vset.pattern.permute.xlu0 0
    %1121 = vperm.xlu0 %1120, %v1014
    %v1122 = vpop.permute.xlu0 %1121
    %1125 = vset.pattern.permute.xlu0 0
    %1126 = vperm.xlu0 %1125, %v1015
    %v1127 = vpop.permute.xlu0 %1126
    %1130 = vset.pattern.permute.xlu0 0
    %1131 = vperm.xlu0 %1130, %v1016
    %v1132 = vpop.permute.xlu0 %1131
    %1135 = vset.pattern.permute.xlu0 0
    %1136 = vperm.xlu0 %1135, %v1017
    %v1137 = vpop.permute.xlu0 %1136
    %1140 = vset.pattern.permute.xlu0 0
    %1141 = vperm.xlu0 %1140, %v1018
    %v1142 = vpop.permute.xlu0 %1141
    %1145 = vset.pattern.permute.xlu0 0
    %1146 = vperm.xlu0 %1145, %v1019
    %v1147 = vpop.permute.xlu0 %1146
    %1150 = vset.pattern.permute.xlu0 0
    %1151 = vperm.xlu0 %1150, %v1020
    %v1152 = vpop.permute.xlu0 %1151
    %1155 = vset.pattern.permute.xlu0 0
    %1156 = vperm.xlu0 %1155, %v1021
    %v1157 = vpop.permute.xlu0 %1156
    %1160 = vset.pattern.permute.xlu0 0
    %1161 = vperm.xlu0 %1160, %v1022
    %v1162 = vpop.permute.xlu0 %1161
    %1165 = vset.pattern.permute.xlu0 0
    %1166 = vperm.xlu0 %1165, %v1023
    %v1167 = vpop.permute.xlu0 %1166
    %1170 = vset.pattern.permute.xlu0 0
    %1171 = vperm.xlu0 %1170, %v1024
    %v1172 = vpop.permute.xlu0 %1171
    %1175 = vset.pattern.permute.xlu0 0
    %1176 = vperm.xlu0 %1175, %v1025
    %v1177 = vpop.permute.xlu0 %1176
    %1180 = vset.pattern.permute.xlu0 0
    %1181 = vperm.xlu0 %1180, %v1026
    %v1182 = vpop.permute.xlu0 %1181
    %1185 = vset.pattern.permute.xlu0 0
    %1186 = vperm.xlu0 %1185, %v1027
    %v1187 = vpop.permute.xlu0 %1186
    %1190 = vset.pattern.permute.xlu0 0
    %1191 = vperm.xlu0 %1190, %v1028
    %v1192 = vpop.permute.xlu0 %1191
    %1195 = vset.pattern.permute.xlu0 0
    %1196 = vperm.xlu0 %1195, %v1029
    %v1197 = vpop.permute.xlu0 %1196
    %1200 = vset.pattern.permute.xlu0 0
    %1201 = vperm.xlu0 %1200, %v1030
    %v1202 = vpop.permute.xlu0 %1201
    %1205 = vset.pattern.permute.xlu0 0
    %1206 = vperm.xlu0 %1205, %v1031
    %v1207 = vpop.permute.xlu0 %1206
    %1210 = vset.pattern.permute.xlu0 0
    %1211 = vperm.xlu0 %1210, %v1032
    %v1212 = vpop.permute.xlu0 %1211
    %1215 = vset.pattern.permute.xlu0 0
    %1216 = vperm.xlu0 %1215, %v1033
    %v1217 = vpop.permute.xlu0 %1216
    %1220 = vset.pattern.permute.xlu0 0
    %1221 = vperm.xlu0 %1220, %v1034
    %v1222 = vpop.permute.xlu0 %1221
    %1225 = vset.pattern.permute.xlu0 0
    %1226 = vperm.xlu0 %1225, %v1035
    %v1227 = vpop.permute.xlu0 %1226
    %1230 = vset.pattern.permute.xlu0 0
    %1231 = vperm.xlu0 %1230, %v1036
    %v1232 = vpop.permute.xlu0 %1231
    %1235 = vset.pattern.permute.xlu0 0
    %1236 = vperm.xlu0 %1235, %v1037
    %v1237 = vpop.permute.xlu0 %1236
    %1240 = vset.pattern.permute.xlu0 0
    %1241 = vperm.xlu0 %1240, %v1038
    %v1242 = vpop.permute.xlu0 %1241
    %1245 = vset.pattern.permute.xlu0 0
    %1246 = vperm.xlu0 %1245, %v1039
    %v1247 = vpop.permute.xlu0 %1246
    %1250 = vset.pattern.permute.xlu0 0
    %1251 = vperm.xlu0 %1250, %v1040
    %v1252 = vpop.permute.xlu0 %1251
    %1255 = vset.pattern.permute.xlu0 0
    %1256 = vperm.xlu0 %1255, %v1041
    %v1257 = vpop.permute.xlu0 %1256
    %1260 = vset.pattern.permute.xlu0 0
    %1261 = vperm.xlu0 %1260, %v1042
    %v1262 = vpop.permute.xlu0 %1261
    %1265 = vset.pattern.permute.xlu0 0
    %1266 = vperm.xlu0 %1265, %v1043
    %v1267 = vpop.permute.xlu0 %1266
    %1270 = vset.pattern.permute.xlu0 0
    %1271 = vperm.xlu0 %1270, %v1044
    %v1272 = vpop.permute.xlu0 %1271
    %1275 = vset.pattern.permute.xlu0 0
    %1276 = vperm.xlu0 %1275, %v1045
    %v1277 = vpop.permute.xlu0 %1276
    %1280 = vset.pattern.permute.xlu0 0
    %1281 = vperm.xlu0 %1280, %v1046
    %v1282 = vpop.permute.xlu0 %1281
    %1285 = vset.pattern.permute.xlu0 0
    %1286 = vperm.xlu0 %1285, %v1047
    %v1287 = vpop.permute.xlu0 %1286
    %1290 = vset.pattern.permute.xlu0 0
    %1291 = vperm.xlu0 %1290, %v1048
    %v1292 = vpop.permute.xlu0 %1291
    %1295 = vset.pattern.permute.xlu0 0
    %1296 = vperm.xlu0 %1295, %v1049
    %v1297 = vpop.permute.xlu0 %1296
    %1300 = vset.pattern.permute.xlu0 0
    %1301 = vperm.xlu0 %1300, %v1050
    %v1302 = vpop.permute.xlu0 %1301
    %1305 = vset.pattern.permute.xlu0 0
    %1306 = vperm.xlu0 %1305, %v1051
    %v1307 = vpop.permute.xlu0 %1306
    %1310 = vset.pattern.permute.xlu0 0
    %1311 = vperm.xlu0 %1310, %v1052
    %v1312 = vpop.permute.xlu0 %1311
    %1315 = vset.pattern.permute.xlu0 0
    %1316 = vperm.xlu0 %1315, %v1053
    %v1317 = vpop.permute.xlu0 %1316
    %1320 = vset.pattern.permute.xlu0 0
    %1321 = vperm.xlu0 %1320, %v1054
    %v1322 = vpop.permute.xlu0 %1321
    %1325 = vset.pattern.permute.xlu0 0
    %1326 = vperm.xlu0 %1325, %v1055
    %v1327 = vpop.permute.xlu0 %1326
    %1330 = vset.pattern.permute.xlu0 0
    %1331 = vperm.xlu0 %1330, %v1056
    %v1332 = vpop.permute.xlu0 %1331
    %1335 = vset.pattern.permute.xlu0 0
    %1336 = vperm.xlu0 %1335, %v1057
    %v1337 = vpop.permute.xlu0 %1336
    %1340 = vset.pattern.permute.xlu0 0
    %1341 = vperm.xlu0 %1340, %v1058
    %v1342 = vpop.permute.xlu0 %1341
    %1345 = vset.pattern.permute.xlu0 0
    %1346 = vperm.xlu0 %1345, %v1059
    %v1347 = vpop.permute.xlu0 %1346
    %1350 = vset.pattern.permute.xlu0 0
    %1351 = vperm.xlu0 %1350, %v1060
    %v1352 = vpop.permute.xlu0 %1351
    %1355 = vset.pattern.permute.xlu0 0
    %1356 = vperm.xlu0 %1355, %v1061
    %v1357 = vpop.permute.xlu0 %1356
    %1360 = vset.pattern.permute.xlu0 0
    %1361 = vperm.xlu0 %1360, %v1062
    %v1362 = vpop.permute.xlu0 %1361
    %1365 = vset.pattern.permute.xlu0 0
    %1366 = vperm.xlu0 %1365, %v1063
    %v1367 = vpop.permute.xlu0 %1366
    %1370 = vset.pattern.permute.xlu0 0
    %1371 = vperm.xlu0 %1370, %v1064
    %v1372 = vpop.permute.xlu0 %1371
    %1375 = vset.pattern.permute.xlu0 0
    %1376 = vperm.xlu0 %1375, %v1065
    %v1377 = vpop.permute.xlu0 %1376
    %1380 = vset.pattern.permute.xlu0 0
    %1381 = vperm.xlu0 %1380, %v1066
    %v1382 = vpop.permute.xlu0 %1381
    %1385 = vset.pattern.permute.xlu0 0
    %1386 = vperm.xlu0 %1385, %v1067
    %v1387 = vpop.permute.xlu0 %1386
    %v1389 = vlaneseq
    %v1390 = vshrl.u32 %v1389, 7
    %v1391 = vsub.s32 0, %v1390
    %v1392 = vrot.slane %v1068, %v1391
    %v1393 = vmul.f32 %v1072, %v1392
    %v1394 = vmul.f32 %v1077, %v1392
    %v1395 = vmul.f32 %v1082, %v1392
    %v1396 = vmul.f32 %v1087, %v1392
    %v1397 = vmul.f32 %v1092, %v1392
    %v1398 = vmul.f32 %v1097, %v1392
    %v1399 = vmul.f32 %v1102, %v1392
    %v1400 = vmul.f32 %v1107, %v1392
    %v1401 = vmul.f32 %v1112, %v1392
    %v1402 = vmul.f32 %v1117, %v1392
    %v1403 = vmul.f32 %v1122, %v1392
    %v1404 = vmul.f32 %v1127, %v1392
    %v1405 = vmul.f32 %v1132, %v1392
    %v1406 = vmul.f32 %v1137, %v1392
    %v1407 = vmul.f32 %v1142, %v1392
    %v1408 = vmul.f32 %v1147, %v1392
    %v1409 = vmul.f32 %v1152, %v1392
    %v1410 = vmul.f32 %v1157, %v1392
    %v1411 = vmul.f32 %v1162, %v1392
    %v1412 = vmul.f32 %v1167, %v1392
    %v1413 = vmul.f32 %v1172, %v1392
    %v1414 = vmul.f32 %v1177, %v1392
    %v1415 = vmul.f32 %v1182, %v1392
    %v1416 = vmul.f32 %v1187, %v1392
    %v1417 = vmul.f32 %v1192, %v1392
    %v1418 = vmul.f32 %v1197, %v1392
    %v1419 = vmul.f32 %v1202, %v1392
    %v1420 = vmul.f32 %v1207, %v1392
    %v1421 = vmul.f32 %v1212, %v1392
    %v1422 = vmul.f32 %v1217, %v1392
    %v1423 = vmul.f32 %v1222, %v1392
    %v1424 = vmul.f32 %v1227, %v1392
    %v1425 = vmul.f32 %v1232, %v1392
    %v1426 = vmul.f32 %v1237, %v1392
    %v1427 = vmul.f32 %v1242, %v1392
    %v1428 = vmul.f32 %v1247, %v1392
    %v1429 = vmul.f32 %v1252, %v1392
    %v1430 = vmul.f32 %v1257, %v1392
    %v1431 = vmul.f32 %v1262, %v1392
    %v1432 = vmul.f32 %v1267, %v1392
    %v1433 = vmul.f32 %v1272, %v1392
    %v1434 = vmul.f32 %v1277, %v1392
    %v1435 = vmul.f32 %v1282, %v1392
    %v1436 = vmul.f32 %v1287, %v1392
    %v1437 = vmul.f32 %v1292, %v1392
    %v1438 = vmul.f32 %v1297, %v1392
    %v1439 = vmul.f32 %v1302, %v1392
    %v1440 = vmul.f32 %v1307, %v1392
    %v1441 = vmul.f32 %v1312, %v1392
    %v1442 = vmul.f32 %v1317, %v1392
    %v1443 = vmul.f32 %v1322, %v1392
    %v1444 = vmul.f32 %v1327, %v1392
    %v1445 = vmul.f32 %v1332, %v1392
    %v1446 = vmul.f32 %v1337, %v1392
    %v1447 = vmul.f32 %v1342, %v1392
    %v1448 = vmul.f32 %v1347, %v1392
    %v1449 = vmul.f32 %v1352, %v1392
    %v1450 = vmul.f32 %v1357, %v1392
    %v1451 = vmul.f32 %v1362, %v1392
    %v1452 = vmul.f32 %v1367, %v1392
    %v1453 = vmul.f32 %v1372, %v1392
    %v1454 = vmul.f32 %v1377, %v1392
    %v1455 = vmul.f32 %v1382, %v1392
    %v1456 = vmul.f32 %v1387, %v1392
    %v1457 = vadd.f32 %v940, %v1393
    %v1458 = vadd.f32 %v941, %v1394
    %v1459 = vadd.f32 %v942, %v1395
    %v1460 = vadd.f32 %v943, %v1396
    %v1461 = vadd.f32 %v944, %v1397
    %v1462 = vadd.f32 %v945, %v1398
    %v1463 = vadd.f32 %v946, %v1399
    %v1464 = vadd.f32 %v947, %v1400
    %v1465 = vadd.f32 %v948, %v1401
    %v1466 = vadd.f32 %v949, %v1402
    %v1467 = vadd.f32 %v950, %v1403
    %v1468 = vadd.f32 %v951, %v1404
    %v1469 = vadd.f32 %v952, %v1405
    %v1470 = vadd.f32 %v953, %v1406
    %v1471 = vadd.f32 %v954, %v1407
    %v1472 = vadd.f32 %v955, %v1408
    %v1473 = vadd.f32 %v956, %v1409
    %v1474 = vadd.f32 %v957, %v1410
    %v1475 = vadd.f32 %v958, %v1411
    %v1476 = vadd.f32 %v959, %v1412
    %v1477 = vadd.f32 %v960, %v1413
    %v1478 = vadd.f32 %v961, %v1414
    %v1479 = vadd.f32 %v962, %v1415
    %v1480 = vadd.f32 %v963, %v1416
    %v1481 = vadd.f32 %v964, %v1417
    %v1482 = vadd.f32 %v965, %v1418
    %v1483 = vadd.f32 %v966, %v1419
    %v1484 = vadd.f32 %v967, %v1420
    %v1485 = vadd.f32 %v968, %v1421
    %v1486 = vadd.f32 %v969, %v1422
    %v1487 = vadd.f32 %v970, %v1423
    %v1488 = vadd.f32 %v971, %v1424
    %v1489 = vadd.f32 %v972, %v1425
    %v1490 = vadd.f32 %v973, %v1426
    %v1491 = vadd.f32 %v974, %v1427
    %v1492 = vadd.f32 %v975, %v1428
    %v1493 = vadd.f32 %v976, %v1429
    %v1494 = vadd.f32 %v977, %v1430
    %v1495 = vadd.f32 %v978, %v1431
    %v1496 = vadd.f32 %v979, %v1432
    %v1497 = vadd.f32 %v980, %v1433
    %v1498 = vadd.f32 %v981, %v1434
    %v1499 = vadd.f32 %v982, %v1435
    %v1500 = vadd.f32 %v983, %v1436
    %v1501 = vadd.f32 %v984, %v1437
    %v1502 = vadd.f32 %v985, %v1438
    %v1503 = vadd.f32 %v986, %v1439
    %v1504 = vadd.f32 %v987, %v1440
    %v1505 = vadd.f32 %v988, %v1441
    %v1506 = vadd.f32 %v989, %v1442
    %v1507 = vadd.f32 %v990, %v1443
    %v1508 = vadd.f32 %v991, %v1444
    %v1509 = vadd.f32 %v992, %v1445
    %v1510 = vadd.f32 %v993, %v1446
    %v1511 = vadd.f32 %v994, %v1447
    %v1512 = vadd.f32 %v995, %v1448
    %v1513 = vadd.f32 %v996, %v1449
    %v1514 = vadd.f32 %v997, %v1450
    %v1515 = vadd.f32 %v998, %v1451
    %v1516 = vadd.f32 %v999, %v1452
    %v1517 = vadd.f32 %v1000, %v1453
    %v1518 = vadd.f32 %v1001, %v1454
    %v1519 = vadd.f32 %v1002, %v1455
    %v1520 = vadd.f32 %v1003, %v1456
    %s1521 = scalar_lea.vmem %s0, 24
    %v1522 = vld [vmem:[%s1521] sm:$0xff]
    %v1523 = vld [vmem:[%s1521 + $0x8] sm:$0xff]
    %v1524 = vld [vmem:[%s1521 + $0x18] sm:$0xff]
    %v1525 = vld [vmem:[%s1521 + $0x20] sm:$0xff]
    %v1526 = vld [vmem:[%s1521 + $0x30] sm:$0xff]
    %v1527 = vld [vmem:[%s1521 + $0x38] sm:$0xff]
    %v1528 = vld [vmem:[%s1521 + $0x48] sm:$0xff]
    %v1529 = vld [vmem:[%s1521 + $0x50] sm:$0xff]
    %v1530 = vld [vmem:[%s1521 + $0x60] sm:$0xff]
    %v1531 = vld [vmem:[%s1521 + $0x68] sm:$0xff]
    %v1532 = vld [vmem:[%s1521 + $0x78] sm:$0xff]
    %v1533 = vld [vmem:[%s1521 + $0x80] sm:$0xff]
    %v1534 = vld [vmem:[%s1521 + $0x90] sm:$0xff]
    %v1535 = vld [vmem:[%s1521 + $0x98] sm:$0xff]
    %v1536 = vld [vmem:[%s1521 + $0xa8] sm:$0xff]
    %v1537 = vld [vmem:[%s1521 + $0xb0] sm:$0xff]
    %v1538 = vld [vmem:[%s1521 + $0xc0] sm:$0xff]
    %v1539 = vld [vmem:[%s1521 + $0xc8] sm:$0xff]
    %v1540 = vld [vmem:[%s1521 + $0xd8] sm:$0xff]
    %v1541 = vld [vmem:[%s1521 + $0xe0] sm:$0xff]
    %v1542 = vld [vmem:[%s1521 + $0xf0] sm:$0xff]
    %v1543 = vld [vmem:[%s1521 + $0xf8] sm:$0xff]
    %v1544 = vld [vmem:[%s1521 + $0x108] sm:$0xff]
    %v1545 = vld [vmem:[%s1521 + $0x110] sm:$0xff]
    %v1546 = vld [vmem:[%s1521 + $0x120] sm:$0xff]
    %v1547 = vld [vmem:[%s1521 + $0x128] sm:$0xff]
    %v1548 = vld [vmem:[%s1521 + $0x138] sm:$0xff]
    %v1549 = vld [vmem:[%s1521 + $0x140] sm:$0xff]
    %v1550 = vld [vmem:[%s1521 + $0x150] sm:$0xff]
    %v1551 = vld [vmem:[%s1521 + $0x158] sm:$0xff]
    %v1552 = vld [vmem:[%s1521 + $0x168] sm:$0xff]
    %v1553 = vld [vmem:[%s1521 + $0x170] sm:$0xff]
    %v1554 = vld [vmem:[%s1521 + $0x1b0] sm:$0xff]
    %v1555 = vld [vmem:[%s1521 + $0x1b8] sm:$0xff]
    %v1556 = vld [vmem:[%s1521 + $0x1c8] sm:$0xff]
    %v1557 = vld [vmem:[%s1521 + $0x1d0] sm:$0xff]
    %v1558 = vld [vmem:[%s1521 + $0x1e0] sm:$0xff]
    %v1559 = vld [vmem:[%s1521 + $0x1e8] sm:$0xff]
    %v1560 = vld [vmem:[%s1521 + $0x1f8] sm:$0xff]
    %v1561 = vld [vmem:[%s1521 + $0x200] sm:$0xff]
    %v1562 = vld [vmem:[%s1521 + $0x210] sm:$0xff]
    %v1563 = vld [vmem:[%s1521 + $0x218] sm:$0xff]
    %v1564 = vld [vmem:[%s1521 + $0x228] sm:$0xff]
    %v1565 = vld [vmem:[%s1521 + $0x230] sm:$0xff]
    %v1566 = vld [vmem:[%s1521 + $0x240] sm:$0xff]
    %v1567 = vld [vmem:[%s1521 + $0x248] sm:$0xff]
    %v1568 = vld [vmem:[%s1521 + $0x258] sm:$0xff]
    %v1569 = vld [vmem:[%s1521 + $0x260] sm:$0xff]
    %v1570 = vld [vmem:[%s1521 + $0x270] sm:$0xff]
    %v1571 = vld [vmem:[%s1521 + $0x278] sm:$0xff]
    %v1572 = vld [vmem:[%s1521 + $0x288] sm:$0xff]
    %v1573 = vld [vmem:[%s1521 + $0x290] sm:$0xff]
    %v1574 = vld [vmem:[%s1521 + $0x2a0] sm:$0xff]
    %v1575 = vld [vmem:[%s1521 + $0x2a8] sm:$0xff]
    %v1576 = vld [vmem:[%s1521 + $0x2b8] sm:$0xff]
    %v1577 = vld [vmem:[%s1521 + $0x2c0] sm:$0xff]
    %v1578 = vld [vmem:[%s1521 + $0x2d0] sm:$0xff]
    %v1579 = vld [vmem:[%s1521 + $0x2d8] sm:$0xff]
    %v1580 = vld [vmem:[%s1521 + $0x2e8] sm:$0xff]
    %v1581 = vld [vmem:[%s1521 + $0x2f0] sm:$0xff]
    %v1582 = vld [vmem:[%s1521 + $0x300] sm:$0xff]
    %v1583 = vld [vmem:[%s1521 + $0x308] sm:$0xff]
    %v1584 = vld [vmem:[%s1521 + $0x318] sm:$0xff]
    %v1585 = vld [vmem:[%s1521 + $0x320] sm:$0xff]
    %v1586 = vld [vmem:[%s1 + $0x3] sm:$0x1]
    %1588 = vset.pattern.permute.xlu0 0
    %1589 = vperm.xlu0 %1588, %v1522
    %v1590 = vpop.permute.xlu0 %1589
    %1593 = vset.pattern.permute.xlu0 0
    %1594 = vperm.xlu0 %1593, %v1523
    %v1595 = vpop.permute.xlu0 %1594
    %1598 = vset.pattern.permute.xlu0 0
    %1599 = vperm.xlu0 %1598, %v1524
    %v1600 = vpop.permute.xlu0 %1599
    %1603 = vset.pattern.permute.xlu0 0
    %1604 = vperm.xlu0 %1603, %v1525
    %v1605 = vpop.permute.xlu0 %1604
    %1608 = vset.pattern.permute.xlu0 0
    %1609 = vperm.xlu0 %1608, %v1526
    %v1610 = vpop.permute.xlu0 %1609
    %1613 = vset.pattern.permute.xlu0 0
    %1614 = vperm.xlu0 %1613, %v1527
    %v1615 = vpop.permute.xlu0 %1614
    %1618 = vset.pattern.permute.xlu0 0
    %1619 = vperm.xlu0 %1618, %v1528
    %v1620 = vpop.permute.xlu0 %1619
    %1623 = vset.pattern.permute.xlu0 0
    %1624 = vperm.xlu0 %1623, %v1529
    %v1625 = vpop.permute.xlu0 %1624
    %1628 = vset.pattern.permute.xlu0 0
    %1629 = vperm.xlu0 %1628, %v1530
    %v1630 = vpop.permute.xlu0 %1629
    %1633 = vset.pattern.permute.xlu0 0
    %1634 = vperm.xlu0 %1633, %v1531
    %v1635 = vpop.permute.xlu0 %1634
    %1638 = vset.pattern.permute.xlu0 0
    %1639 = vperm.xlu0 %1638, %v1532
    %v1640 = vpop.permute.xlu0 %1639
    %1643 = vset.pattern.permute.xlu0 0
    %1644 = vperm.xlu0 %1643, %v1533
    %v1645 = vpop.permute.xlu0 %1644
    %1648 = vset.pattern.permute.xlu0 0
    %1649 = vperm.xlu0 %1648, %v1534
    %v1650 = vpop.permute.xlu0 %1649
    %1653 = vset.pattern.permute.xlu0 0
    %1654 = vperm.xlu0 %1653, %v1535
    %v1655 = vpop.permute.xlu0 %1654
    %1658 = vset.pattern.permute.xlu0 0
    %1659 = vperm.xlu0 %1658, %v1536
    %v1660 = vpop.permute.xlu0 %1659
    %1663 = vset.pattern.permute.xlu0 0
    %1664 = vperm.xlu0 %1663, %v1537
    %v1665 = vpop.permute.xlu0 %1664
    %1668 = vset.pattern.permute.xlu0 0
    %1669 = vperm.xlu0 %1668, %v1538
    %v1670 = vpop.permute.xlu0 %1669
    %1673 = vset.pattern.permute.xlu0 0
    %1674 = vperm.xlu0 %1673, %v1539
    %v1675 = vpop.permute.xlu0 %1674
    %1678 = vset.pattern.permute.xlu0 0
    %1679 = vperm.xlu0 %1678, %v1540
    %v1680 = vpop.permute.xlu0 %1679
    %1683 = vset.pattern.permute.xlu0 0
    %1684 = vperm.xlu0 %1683, %v1541
    %v1685 = vpop.permute.xlu0 %1684
    %1688 = vset.pattern.permute.xlu0 0
    %1689 = vperm.xlu0 %1688, %v1542
    %v1690 = vpop.permute.xlu0 %1689
    %1693 = vset.pattern.permute.xlu0 0
    %1694 = vperm.xlu0 %1693, %v1543
    %v1695 = vpop.permute.xlu0 %1694
    %1698 = vset.pattern.permute.xlu0 0
    %1699 = vperm.xlu0 %1698, %v1544
    %v1700 = vpop.permute.xlu0 %1699
    %1703 = vset.pattern.permute.xlu0 0
    %1704 = vperm.xlu0 %1703, %v1545
    %v1705 = vpop.permute.xlu0 %1704
    %1708 = vset.pattern.permute.xlu0 0
    %1709 = vperm.xlu0 %1708, %v1546
    %v1710 = vpop.permute.xlu0 %1709
    %1713 = vset.pattern.permute.xlu0 0
    %1714 = vperm.xlu0 %1713, %v1547
    %v1715 = vpop.permute.xlu0 %1714
    %1718 = vset.pattern.permute.xlu0 0
    %1719 = vperm.xlu0 %1718, %v1548
    %v1720 = vpop.permute.xlu0 %1719
    %1723 = vset.pattern.permute.xlu0 0
    %1724 = vperm.xlu0 %1723, %v1549
    %v1725 = vpop.permute.xlu0 %1724
    %1728 = vset.pattern.permute.xlu0 0
    %1729 = vperm.xlu0 %1728, %v1550
    %v1730 = vpop.permute.xlu0 %1729
    %1733 = vset.pattern.permute.xlu0 0
    %1734 = vperm.xlu0 %1733, %v1551
    %v1735 = vpop.permute.xlu0 %1734
    %1738 = vset.pattern.permute.xlu0 0
    %1739 = vperm.xlu0 %1738, %v1552
    %v1740 = vpop.permute.xlu0 %1739
    %1743 = vset.pattern.permute.xlu0 0
    %1744 = vperm.xlu0 %1743, %v1553
    %v1745 = vpop.permute.xlu0 %1744
    %1748 = vset.pattern.permute.xlu0 0
    %1749 = vperm.xlu0 %1748, %v1554
    %v1750 = vpop.permute.xlu0 %1749
    %1753 = vset.pattern.permute.xlu0 0
    %1754 = vperm.xlu0 %1753, %v1555
    %v1755 = vpop.permute.xlu0 %1754
    %1758 = vset.pattern.permute.xlu0 0
    %1759 = vperm.xlu0 %1758, %v1556
    %v1760 = vpop.permute.xlu0 %1759
    %1763 = vset.pattern.permute.xlu0 0
    %1764 = vperm.xlu0 %1763, %v1557
    %v1765 = vpop.permute.xlu0 %1764
    %1768 = vset.pattern.permute.xlu0 0
    %1769 = vperm.xlu0 %1768, %v1558
    %v1770 = vpop.permute.xlu0 %1769
    %1773 = vset.pattern.permute.xlu0 0
    %1774 = vperm.xlu0 %1773, %v1559
    %v1775 = vpop.permute.xlu0 %1774
    %1778 = vset.pattern.permute.xlu0 0
    %1779 = vperm.xlu0 %1778, %v1560
    %v1780 = vpop.permute.xlu0 %1779
    %1783 = vset.pattern.permute.xlu0 0
    %1784 = vperm.xlu0 %1783, %v1561
    %v1785 = vpop.permute.xlu0 %1784
    %1788 = vset.pattern.permute.xlu0 0
    %1789 = vperm.xlu0 %1788, %v1562
    %v1790 = vpop.permute.xlu0 %1789
    %1793 = vset.pattern.permute.xlu0 0
    %1794 = vperm.xlu0 %1793, %v1563
    %v1795 = vpop.permute.xlu0 %1794
    %1798 = vset.pattern.permute.xlu0 0
    %1799 = vperm.xlu0 %1798, %v1564
    %v1800 = vpop.permute.xlu0 %1799
    %1803 = vset.pattern.permute.xlu0 0
    %1804 = vperm.xlu0 %1803, %v1565
    %v1805 = vpop.permute.xlu0 %1804
    %1808 = vset.pattern.permute.xlu0 0
    %1809 = vperm.xlu0 %1808, %v1566
    %v1810 = vpop.permute.xlu0 %1809
    %1813 = vset.pattern.permute.xlu0 0
    %1814 = vperm.xlu0 %1813, %v1567
    %v1815 = vpop.permute.xlu0 %1814
    %1818 = vset.pattern.permute.xlu0 0
    %1819 = vperm.xlu0 %1818, %v1568
    %v1820 = vpop.permute.xlu0 %1819
    %1823 = vset.pattern.permute.xlu0 0
    %1824 = vperm.xlu0 %1823, %v1569
    %v1825 = vpop.permute.xlu0 %1824
    %1828 = vset.pattern.permute.xlu0 0
    %1829 = vperm.xlu0 %1828, %v1570
    %v1830 = vpop.permute.xlu0 %1829
    %1833 = vset.pattern.permute.xlu0 0
    %1834 = vperm.xlu0 %1833, %v1571
    %v1835 = vpop.permute.xlu0 %1834
    %1838 = vset.pattern.permute.xlu0 0
    %1839 = vperm.xlu0 %1838, %v1572
    %v1840 = vpop.permute.xlu0 %1839
    %1843 = vset.pattern.permute.xlu0 0
    %1844 = vperm.xlu0 %1843, %v1573
    %v1845 = vpop.permute.xlu0 %1844
    %1848 = vset.pattern.permute.xlu0 0
    %1849 = vperm.xlu0 %1848, %v1574
    %v1850 = vpop.permute.xlu0 %1849
    %1853 = vset.pattern.permute.xlu0 0
    %1854 = vperm.xlu0 %1853, %v1575
    %v1855 = vpop.permute.xlu0 %1854
    %1858 = vset.pattern.permute.xlu0 0
    %1859 = vperm.xlu0 %1858, %v1576
    %v1860 = vpop.permute.xlu0 %1859
    %1863 = vset.pattern.permute.xlu0 0
    %1864 = vperm.xlu0 %1863, %v1577
    %v1865 = vpop.permute.xlu0 %1864
    %1868 = vset.pattern.permute.xlu0 0
    %1869 = vperm.xlu0 %1868, %v1578
    %v1870 = vpop.permute.xlu0 %1869
    %1873 = vset.pattern.permute.xlu0 0
    %1874 = vperm.xlu0 %1873, %v1579
    %v1875 = vpop.permute.xlu0 %1874
    %1878 = vset.pattern.permute.xlu0 0
    %1879 = vperm.xlu0 %1878, %v1580
    %v1880 = vpop.permute.xlu0 %1879
    %1883 = vset.pattern.permute.xlu0 0
    %1884 = vperm.xlu0 %1883, %v1581
    %v1885 = vpop.permute.xlu0 %1884
    %1888 = vset.pattern.permute.xlu0 0
    %1889 = vperm.xlu0 %1888, %v1582
    %v1890 = vpop.permute.xlu0 %1889
    %1893 = vset.pattern.permute.xlu0 0
    %1894 = vperm.xlu0 %1893, %v1583
    %v1895 = vpop.permute.xlu0 %1894
    %1898 = vset.pattern.permute.xlu0 0
    %1899 = vperm.xlu0 %1898, %v1584
    %v1900 = vpop.permute.xlu0 %1899
    %1903 = vset.pattern.permute.xlu0 0
    %1904 = vperm.xlu0 %1903, %v1585
    %v1905 = vpop.permute.xlu0 %1904
    %v1907 = vlaneseq
    %v1908 = vshrl.u32 %v1907, 7
    %v1909 = vsub.s32 0, %v1908
    %v1910 = vrot.slane %v1586, %v1909
    %v1911 = vmul.f32 %v1590, %v1910
    %v1912 = vmul.f32 %v1595, %v1910
    %v1913 = vmul.f32 %v1600, %v1910
    %v1914 = vmul.f32 %v1605, %v1910
    %v1915 = vmul.f32 %v1610, %v1910
    %v1916 = vmul.f32 %v1615, %v1910
    %v1917 = vmul.f32 %v1620, %v1910
    %v1918 = vmul.f32 %v1625, %v1910
    %v1919 = vmul.f32 %v1630, %v1910
    %v1920 = vmul.f32 %v1635, %v1910
    %v1921 = vmul.f32 %v1640, %v1910
    %v1922 = vmul.f32 %v1645, %v1910
    %v1923 = vmul.f32 %v1650, %v1910
    %v1924 = vmul.f32 %v1655, %v1910
    %v1925 = vmul.f32 %v1660, %v1910
    %v1926 = vmul.f32 %v1665, %v1910
    %v1927 = vmul.f32 %v1670, %v1910
    %v1928 = vmul.f32 %v1675, %v1910
    %v1929 = vmul.f32 %v1680, %v1910
    %v1930 = vmul.f32 %v1685, %v1910
    %v1931 = vmul.f32 %v1690, %v1910
    %v1932 = vmul.f32 %v1695, %v1910
    %v1933 = vmul.f32 %v1700, %v1910
    %v1934 = vmul.f32 %v1705, %v1910
    %v1935 = vmul.f32 %v1710, %v1910
    %v1936 = vmul.f32 %v1715, %v1910
    %v1937 = vmul.f32 %v1720, %v1910
    %v1938 = vmul.f32 %v1725, %v1910
    %v1939 = vmul.f32 %v1730, %v1910
    %v1940 = vmul.f32 %v1735, %v1910
    %v1941 = vmul.f32 %v1740, %v1910
    %v1942 = vmul.f32 %v1745, %v1910
    %v1943 = vmul.f32 %v1750, %v1910
    %v1944 = vmul.f32 %v1755, %v1910
    %v1945 = vmul.f32 %v1760, %v1910
    %v1946 = vmul.f32 %v1765, %v1910
    %v1947 = vmul.f32 %v1770, %v1910
    %v1948 = vmul.f32 %v1775, %v1910
    %v1949 = vmul.f32 %v1780, %v1910
    %v1950 = vmul.f32 %v1785, %v1910
    %v1951 = vmul.f32 %v1790, %v1910
    %v1952 = vmul.f32 %v1795, %v1910
    %v1953 = vmul.f32 %v1800, %v1910
    %v1954 = vmul.f32 %v1805, %v1910
    %v1955 = vmul.f32 %v1810, %v1910
    %v1956 = vmul.f32 %v1815, %v1910
    %v1957 = vmul.f32 %v1820, %v1910
    %v1958 = vmul.f32 %v1825, %v1910
    %v1959 = vmul.f32 %v1830, %v1910
    %v1960 = vmul.f32 %v1835, %v1910
    %v1961 = vmul.f32 %v1840, %v1910
    %v1962 = vmul.f32 %v1845, %v1910
    %v1963 = vmul.f32 %v1850, %v1910
    %v1964 = vmul.f32 %v1855, %v1910
    %v1965 = vmul.f32 %v1860, %v1910
    %v1966 = vmul.f32 %v1865, %v1910
    %v1967 = vmul.f32 %v1870, %v1910
    %v1968 = vmul.f32 %v1875, %v1910
    %v1969 = vmul.f32 %v1880, %v1910
    %v1970 = vmul.f32 %v1885, %v1910
    %v1971 = vmul.f32 %v1890, %v1910
    %v1972 = vmul.f32 %v1895, %v1910
    %v1973 = vmul.f32 %v1900, %v1910
    %v1974 = vmul.f32 %v1905, %v1910
    %v1975 = vadd.f32 %v1457, %v1911
    %v1976 = vadd.f32 %v1458, %v1912
    %v1977 = vadd.f32 %v1459, %v1913
    %v1978 = vadd.f32 %v1460, %v1914
    %v1979 = vadd.f32 %v1461, %v1915
    %v1980 = vadd.f32 %v1462, %v1916
    %v1981 = vadd.f32 %v1463, %v1917
    %v1982 = vadd.f32 %v1464, %v1918
    %v1983 = vadd.f32 %v1465, %v1919
    %v1984 = vadd.f32 %v1466, %v1920
    %v1985 = vadd.f32 %v1467, %v1921
    %v1986 = vadd.f32 %v1468, %v1922
    %v1987 = vadd.f32 %v1469, %v1923
    %v1988 = vadd.f32 %v1470, %v1924
    %v1989 = vadd.f32 %v1471, %v1925
    %v1990 = vadd.f32 %v1472, %v1926
    %v1991 = vadd.f32 %v1473, %v1927
    %v1992 = vadd.f32 %v1474, %v1928
    %v1993 = vadd.f32 %v1475, %v1929
    %v1994 = vadd.f32 %v1476, %v1930
    %v1995 = vadd.f32 %v1477, %v1931
    %v1996 = vadd.f32 %v1478, %v1932
    %v1997 = vadd.f32 %v1479, %v1933
    %v1998 = vadd.f32 %v1480, %v1934
    %v1999 = vadd.f32 %v1481, %v1935
    %v2000 = vadd.f32 %v1482, %v1936
    %v2001 = vadd.f32 %v1483, %v1937
    %v2002 = vadd.f32 %v1484, %v1938
    %v2003 = vadd.f32 %v1485, %v1939
    %v2004 = vadd.f32 %v1486, %v1940
    %v2005 = vadd.f32 %v1487, %v1941
    %v2006 = vadd.f32 %v1488, %v1942
    %v2007 = vadd.f32 %v1489, %v1943
    %v2008 = vadd.f32 %v1490, %v1944
    %v2009 = vadd.f32 %v1491, %v1945
    %v2010 = vadd.f32 %v1492, %v1946
    %v2011 = vadd.f32 %v1493, %v1947
    %v2012 = vadd.f32 %v1494, %v1948
    %v2013 = vadd.f32 %v1495, %v1949
    %v2014 = vadd.f32 %v1496, %v1950
    %v2015 = vadd.f32 %v1497, %v1951
    %v2016 = vadd.f32 %v1498, %v1952
    %v2017 = vadd.f32 %v1499, %v1953
    %v2018 = vadd.f32 %v1500, %v1954
    %v2019 = vadd.f32 %v1501, %v1955
    %v2020 = vadd.f32 %v1502, %v1956
    %v2021 = vadd.f32 %v1503, %v1957
    %v2022 = vadd.f32 %v1504, %v1958
    %v2023 = vadd.f32 %v1505, %v1959
    %v2024 = vadd.f32 %v1506, %v1960
    %v2025 = vadd.f32 %v1507, %v1961
    %v2026 = vadd.f32 %v1508, %v1962
    %v2027 = vadd.f32 %v1509, %v1963
    %v2028 = vadd.f32 %v1510, %v1964
    %v2029 = vadd.f32 %v1511, %v1965
    %v2030 = vadd.f32 %v1512, %v1966
    %v2031 = vadd.f32 %v1513, %v1967
    %v2032 = vadd.f32 %v1514, %v1968
    %v2033 = vadd.f32 %v1515, %v1969
    %v2034 = vadd.f32 %v1516, %v1970
    %v2035 = vadd.f32 %v1517, %v1971
    %v2036 = vadd.f32 %v1518, %v1972
    %v2037 = vadd.f32 %v1519, %v1973
    %v2038 = vadd.f32 %v1520, %v1974
    %v2039 = vld [vmem:[%s1521 + $0x1] sm:$0xff]
    %v2040 = vld [vmem:[%s1521 + $0x9] sm:$0xff]
    %v2041 = vld [vmem:[%s1521 + $0x19] sm:$0xff]
    %v2042 = vld [vmem:[%s1521 + $0x21] sm:$0xff]
    %v2043 = vld [vmem:[%s1521 + $0x31] sm:$0xff]
    %v2044 = vld [vmem:[%s1521 + $0x39] sm:$0xff]
    %v2045 = vld [vmem:[%s1521 + $0x49] sm:$0xff]
    %v2046 = vld [vmem:[%s1521 + $0x51] sm:$0xff]
    %v2047 = vld [vmem:[%s1521 + $0x61] sm:$0xff]
    %v2048 = vld [vmem:[%s1521 + $0x69] sm:$0xff]
    %v2049 = vld [vmem:[%s1521 + $0x79] sm:$0xff]
    %v2050 = vld [vmem:[%s1521 + $0x81] sm:$0xff]
    %v2051 = vld [vmem:[%s1521 + $0x91] sm:$0xff]
    %v2052 = vld [vmem:[%s1521 + $0x99] sm:$0xff]
    %v2053 = vld [vmem:[%s1521 + $0xa9] sm:$0xff]
    %v2054 = vld [vmem:[%s1521 + $0xb1] sm:$0xff]
    %v2055 = vld [vmem:[%s1521 + $0xc1] sm:$0xff]
    %v2056 = vld [vmem:[%s1521 + $0xc9] sm:$0xff]
    %v2057 = vld [vmem:[%s1521 + $0xd9] sm:$0xff]
    %v2058 = vld [vmem:[%s1521 + $0xe1] sm:$0xff]
    %v2059 = vld [vmem:[%s1521 + $0xf1] sm:$0xff]
    %v2060 = vld [vmem:[%s1521 + $0xf9] sm:$0xff]
    %v2061 = vld [vmem:[%s1521 + $0x109] sm:$0xff]
    %v2062 = vld [vmem:[%s1521 + $0x111] sm:$0xff]
    %v2063 = vld [vmem:[%s1521 + $0x121] sm:$0xff]
    %v2064 = vld [vmem:[%s1521 + $0x129] sm:$0xff]
    %v2065 = vld [vmem:[%s1521 + $0x139] sm:$0xff]
    %v2066 = vld [vmem:[%s1521 + $0x141] sm:$0xff]
    %v2067 = vld [vmem:[%s1521 + $0x151] sm:$0xff]
    %v2068 = vld [vmem:[%s1521 + $0x159] sm:$0xff]
    %v2069 = vld [vmem:[%s1521 + $0x169] sm:$0xff]
    %v2070 = vld [vmem:[%s1521 + $0x171] sm:$0xff]
    %v2071 = vld [vmem:[%s1521 + $0x1b1] sm:$0xff]
    %v2072 = vld [vmem:[%s1521 + $0x1b9] sm:$0xff]
    %v2073 = vld [vmem:[%s1521 + $0x1c9] sm:$0xff]
    %v2074 = vld [vmem:[%s1521 + $0x1d1] sm:$0xff]
    %v2075 = vld [vmem:[%s1521 + $0x1e1] sm:$0xff]
    %v2076 = vld [vmem:[%s1521 + $0x1e9] sm:$0xff]
    %v2077 = vld [vmem:[%s1521 + $0x1f9] sm:$0xff]
    %v2078 = vld [vmem:[%s1521 + $0x201] sm:$0xff]
    %v2079 = vld [vmem:[%s1521 + $0x211] sm:$0xff]
    %v2080 = vld [vmem:[%s1521 + $0x219] sm:$0xff]
    %v2081 = vld [vmem:[%s1521 + $0x229] sm:$0xff]
    %v2082 = vld [vmem:[%s1521 + $0x231] sm:$0xff]
    %v2083 = vld [vmem:[%s1521 + $0x241] sm:$0xff]
    %v2084 = vld [vmem:[%s1521 + $0x249] sm:$0xff]
    %v2085 = vld [vmem:[%s1521 + $0x259] sm:$0xff]
    %v2086 = vld [vmem:[%s1521 + $0x261] sm:$0xff]
    %v2087 = vld [vmem:[%s1521 + $0x271] sm:$0xff]
    %v2088 = vld [vmem:[%s1521 + $0x279] sm:$0xff]
    %v2089 = vld [vmem:[%s1521 + $0x289] sm:$0xff]
    %v2090 = vld [vmem:[%s1521 + $0x291] sm:$0xff]
    %v2091 = vld [vmem:[%s1521 + $0x2a1] sm:$0xff]
    %v2092 = vld [vmem:[%s1521 + $0x2a9] sm:$0xff]
    %v2093 = vld [vmem:[%s1521 + $0x2b9] sm:$0xff]
    %v2094 = vld [vmem:[%s1521 + $0x2c1] sm:$0xff]
    %v2095 = vld [vmem:[%s1521 + $0x2d1] sm:$0xff]
    %v2096 = vld [vmem:[%s1521 + $0x2d9] sm:$0xff]
    %v2097 = vld [vmem:[%s1521 + $0x2e9] sm:$0xff]
    %v2098 = vld [vmem:[%s1521 + $0x2f1] sm:$0xff]
    %v2099 = vld [vmem:[%s1521 + $0x301] sm:$0xff]
    %v2100 = vld [vmem:[%s1521 + $0x309] sm:$0xff]
    %v2101 = vld [vmem:[%s1521 + $0x319] sm:$0xff]
    %v2102 = vld [vmem:[%s1521 + $0x321] sm:$0xff]
    %v2103 = vld [vmem:[%s1 + $0x4] sm:$0x1]
    %2105 = vset.pattern.permute.xlu0 0
    %2106 = vperm.xlu0 %2105, %v2039
    %v2107 = vpop.permute.xlu0 %2106
    %2110 = vset.pattern.permute.xlu0 0
    %2111 = vperm.xlu0 %2110, %v2040
    %v2112 = vpop.permute.xlu0 %2111
    %2115 = vset.pattern.permute.xlu0 0
    %2116 = vperm.xlu0 %2115, %v2041
    %v2117 = vpop.permute.xlu0 %2116
    %2120 = vset.pattern.permute.xlu0 0
    %2121 = vperm.xlu0 %2120, %v2042
    %v2122 = vpop.permute.xlu0 %2121
    %2125 = vset.pattern.permute.xlu0 0
    %2126 = vperm.xlu0 %2125, %v2043
    %v2127 = vpop.permute.xlu0 %2126
    %2130 = vset.pattern.permute.xlu0 0
    %2131 = vperm.xlu0 %2130, %v2044
    %v2132 = vpop.permute.xlu0 %2131
    %2135 = vset.pattern.permute.xlu0 0
    %2136 = vperm.xlu0 %2135, %v2045
    %v2137 = vpop.permute.xlu0 %2136
    %2140 = vset.pattern.permute.xlu0 0
    %2141 = vperm.xlu0 %2140, %v2046
    %v2142 = vpop.permute.xlu0 %2141
    %2145 = vset.pattern.permute.xlu0 0
    %2146 = vperm.xlu0 %2145, %v2047
    %v2147 = vpop.permute.xlu0 %2146
    %2150 = vset.pattern.permute.xlu0 0
    %2151 = vperm.xlu0 %2150, %v2048
    %v2152 = vpop.permute.xlu0 %2151
    %2155 = vset.pattern.permute.xlu0 0
    %2156 = vperm.xlu0 %2155, %v2049
    %v2157 = vpop.permute.xlu0 %2156
    %2160 = vset.pattern.permute.xlu0 0
    %2161 = vperm.xlu0 %2160, %v2050
    %v2162 = vpop.permute.xlu0 %2161
    %2165 = vset.pattern.permute.xlu0 0
    %2166 = vperm.xlu0 %2165, %v2051
    %v2167 = vpop.permute.xlu0 %2166
    %2170 = vset.pattern.permute.xlu0 0
    %2171 = vperm.xlu0 %2170, %v2052
    %v2172 = vpop.permute.xlu0 %2171
    %2175 = vset.pattern.permute.xlu0 0
    %2176 = vperm.xlu0 %2175, %v2053
    %v2177 = vpop.permute.xlu0 %2176
    %2180 = vset.pattern.permute.xlu0 0
    %2181 = vperm.xlu0 %2180, %v2054
    %v2182 = vpop.permute.xlu0 %2181
    %2185 = vset.pattern.permute.xlu0 0
    %2186 = vperm.xlu0 %2185, %v2055
    %v2187 = vpop.permute.xlu0 %2186
    %2190 = vset.pattern.permute.xlu0 0
    %2191 = vperm.xlu0 %2190, %v2056
    %v2192 = vpop.permute.xlu0 %2191
    %2195 = vset.pattern.permute.xlu0 0
    %2196 = vperm.xlu0 %2195, %v2057
    %v2197 = vpop.permute.xlu0 %2196
    %2200 = vset.pattern.permute.xlu0 0
    %2201 = vperm.xlu0 %2200, %v2058
    %v2202 = vpop.permute.xlu0 %2201
    %2205 = vset.pattern.permute.xlu0 0
    %2206 = vperm.xlu0 %2205, %v2059
    %v2207 = vpop.permute.xlu0 %2206
    %2210 = vset.pattern.permute.xlu0 0
    %2211 = vperm.xlu0 %2210, %v2060
    %v2212 = vpop.permute.xlu0 %2211
    %2215 = vset.pattern.permute.xlu0 0
    %2216 = vperm.xlu0 %2215, %v2061
    %v2217 = vpop.permute.xlu0 %2216
    %2220 = vset.pattern.permute.xlu0 0
    %2221 = vperm.xlu0 %2220, %v2062
    %v2222 = vpop.permute.xlu0 %2221
    %2225 = vset.pattern.permute.xlu0 0
    %2226 = vperm.xlu0 %2225, %v2063
    %v2227 = vpop.permute.xlu0 %2226
    %2230 = vset.pattern.permute.xlu0 0
    %2231 = vperm.xlu0 %2230, %v2064
    %v2232 = vpop.permute.xlu0 %2231
    %2235 = vset.pattern.permute.xlu0 0
    %2236 = vperm.xlu0 %2235, %v2065
    %v2237 = vpop.permute.xlu0 %2236
    %2240 = vset.pattern.permute.xlu0 0
    %2241 = vperm.xlu0 %2240, %v2066
    %v2242 = vpop.permute.xlu0 %2241
    %2245 = vset.pattern.permute.xlu0 0
    %2246 = vperm.xlu0 %2245, %v2067
    %v2247 = vpop.permute.xlu0 %2246
    %2250 = vset.pattern.permute.xlu0 0
    %2251 = vperm.xlu0 %2250, %v2068
    %v2252 = vpop.permute.xlu0 %2251
    %2255 = vset.pattern.permute.xlu0 0
    %2256 = vperm.xlu0 %2255, %v2069
    %v2257 = vpop.permute.xlu0 %2256
    %2260 = vset.pattern.permute.xlu0 0
    %2261 = vperm.xlu0 %2260, %v2070
    %v2262 = vpop.permute.xlu0 %2261
    %2265 = vset.pattern.permute.xlu0 0
    %2266 = vperm.xlu0 %2265, %v2071
    %v2267 = vpop.permute.xlu0 %2266
    %2270 = vset.pattern.permute.xlu0 0
    %2271 = vperm.xlu0 %2270, %v2072
    %v2272 = vpop.permute.xlu0 %2271
    %2275 = vset.pattern.permute.xlu0 0
    %2276 = vperm.xlu0 %2275, %v2073
    %v2277 = vpop.permute.xlu0 %2276
    %2280 = vset.pattern.permute.xlu0 0
    %2281 = vperm.xlu0 %2280, %v2074
    %v2282 = vpop.permute.xlu0 %2281
    %2285 = vset.pattern.permute.xlu0 0
    %2286 = vperm.xlu0 %2285, %v2075
    %v2287 = vpop.permute.xlu0 %2286
    %2290 = vset.pattern.permute.xlu0 0
    %2291 = vperm.xlu0 %2290, %v2076
    %v2292 = vpop.permute.xlu0 %2291
    %2295 = vset.pattern.permute.xlu0 0
    %2296 = vperm.xlu0 %2295, %v2077
    %v2297 = vpop.permute.xlu0 %2296
    %2300 = vset.pattern.permute.xlu0 0
    %2301 = vperm.xlu0 %2300, %v2078
    %v2302 = vpop.permute.xlu0 %2301
    %2305 = vset.pattern.permute.xlu0 0
    %2306 = vperm.xlu0 %2305, %v2079
    %v2307 = vpop.permute.xlu0 %2306
    %2310 = vset.pattern.permute.xlu0 0
    %2311 = vperm.xlu0 %2310, %v2080
    %v2312 = vpop.permute.xlu0 %2311
    %2315 = vset.pattern.permute.xlu0 0
    %2316 = vperm.xlu0 %2315, %v2081
    %v2317 = vpop.permute.xlu0 %2316
    %2320 = vset.pattern.permute.xlu0 0
    %2321 = vperm.xlu0 %2320, %v2082
    %v2322 = vpop.permute.xlu0 %2321
    %2325 = vset.pattern.permute.xlu0 0
    %2326 = vperm.xlu0 %2325, %v2083
    %v2327 = vpop.permute.xlu0 %2326
    %2330 = vset.pattern.permute.xlu0 0
    %2331 = vperm.xlu0 %2330, %v2084
    %v2332 = vpop.permute.xlu0 %2331
    %2335 = vset.pattern.permute.xlu0 0
    %2336 = vperm.xlu0 %2335, %v2085
    %v2337 = vpop.permute.xlu0 %2336
    %2340 = vset.pattern.permute.xlu0 0
    %2341 = vperm.xlu0 %2340, %v2086
    %v2342 = vpop.permute.xlu0 %2341
    %2345 = vset.pattern.permute.xlu0 0
    %2346 = vperm.xlu0 %2345, %v2087
    %v2347 = vpop.permute.xlu0 %2346
    %2350 = vset.pattern.permute.xlu0 0
    %2351 = vperm.xlu0 %2350, %v2088
    %v2352 = vpop.permute.xlu0 %2351
    %2355 = vset.pattern.permute.xlu0 0
    %2356 = vperm.xlu0 %2355, %v2089
    %v2357 = vpop.permute.xlu0 %2356
    %2360 = vset.pattern.permute.xlu0 0
    %2361 = vperm.xlu0 %2360, %v2090
    %v2362 = vpop.permute.xlu0 %2361
    %2365 = vset.pattern.permute.xlu0 0
    %2366 = vperm.xlu0 %2365, %v2091
    %v2367 = vpop.permute.xlu0 %2366
    %2370 = vset.pattern.permute.xlu0 0
    %2371 = vperm.xlu0 %2370, %v2092
    %v2372 = vpop.permute.xlu0 %2371
    %2375 = vset.pattern.permute.xlu0 0
    %2376 = vperm.xlu0 %2375, %v2093
    %v2377 = vpop.permute.xlu0 %2376
    %2380 = vset.pattern.permute.xlu0 0
    %2381 = vperm.xlu0 %2380, %v2094
    %v2382 = vpop.permute.xlu0 %2381
    %2385 = vset.pattern.permute.xlu0 0
    %2386 = vperm.xlu0 %2385, %v2095
    %v2387 = vpop.permute.xlu0 %2386
    %2390 = vset.pattern.permute.xlu0 0
    %2391 = vperm.xlu0 %2390, %v2096
    %v2392 = vpop.permute.xlu0 %2391
    %2395 = vset.pattern.permute.xlu0 0
    %2396 = vperm.xlu0 %2395, %v2097
    %v2397 = vpop.permute.xlu0 %2396
    %2400 = vset.pattern.permute.xlu0 0
    %2401 = vperm.xlu0 %2400, %v2098
    %v2402 = vpop.permute.xlu0 %2401
    %2405 = vset.pattern.permute.xlu0 0
    %2406 = vperm.xlu0 %2405, %v2099
    %v2407 = vpop.permute.xlu0 %2406
    %2410 = vset.pattern.permute.xlu0 0
    %2411 = vperm.xlu0 %2410, %v2100
    %v2412 = vpop.permute.xlu0 %2411
    %2415 = vset.pattern.permute.xlu0 0
    %2416 = vperm.xlu0 %2415, %v2101
    %v2417 = vpop.permute.xlu0 %2416
    %2420 = vset.pattern.permute.xlu0 0
    %2421 = vperm.xlu0 %2420, %v2102
    %v2422 = vpop.permute.xlu0 %2421
    %v2424 = vlaneseq
    %v2425 = vshrl.u32 %v2424, 7
    %v2426 = vsub.s32 0, %v2425
    %v2427 = vrot.slane %v2103, %v2426
    %v2428 = vmul.f32 %v2107, %v2427
    %v2429 = vmul.f32 %v2112, %v2427
    %v2430 = vmul.f32 %v2117, %v2427
    %v2431 = vmul.f32 %v2122, %v2427
    %v2432 = vmul.f32 %v2127, %v2427
    %v2433 = vmul.f32 %v2132, %v2427
    %v2434 = vmul.f32 %v2137, %v2427
    %v2435 = vmul.f32 %v2142, %v2427
    %v2436 = vmul.f32 %v2147, %v2427
    %v2437 = vmul.f32 %v2152, %v2427
    %v2438 = vmul.f32 %v2157, %v2427
    %v2439 = vmul.f32 %v2162, %v2427
    %v2440 = vmul.f32 %v2167, %v2427
    %v2441 = vmul.f32 %v2172, %v2427
    %v2442 = vmul.f32 %v2177, %v2427
    %v2443 = vmul.f32 %v2182, %v2427
    %v2444 = vmul.f32 %v2187, %v2427
    %v2445 = vmul.f32 %v2192, %v2427
    %v2446 = vmul.f32 %v2197, %v2427
    %v2447 = vmul.f32 %v2202, %v2427
    %v2448 = vmul.f32 %v2207, %v2427
    %v2449 = vmul.f32 %v2212, %v2427
    %v2450 = vmul.f32 %v2217, %v2427
    %v2451 = vmul.f32 %v2222, %v2427
    %v2452 = vmul.f32 %v2227, %v2427
    %v2453 = vmul.f32 %v2232, %v2427
    %v2454 = vmul.f32 %v2237, %v2427
    %v2455 = vmul.f32 %v2242, %v2427
    %v2456 = vmul.f32 %v2247, %v2427
    %v2457 = vmul.f32 %v2252, %v2427
    %v2458 = vmul.f32 %v2257, %v2427
    %v2459 = vmul.f32 %v2262, %v2427
    %v2460 = vmul.f32 %v2267, %v2427
    %v2461 = vmul.f32 %v2272, %v2427
    %v2462 = vmul.f32 %v2277, %v2427
    %v2463 = vmul.f32 %v2282, %v2427
    %v2464 = vmul.f32 %v2287, %v2427
    %v2465 = vmul.f32 %v2292, %v2427
    %v2466 = vmul.f32 %v2297, %v2427
    %v2467 = vmul.f32 %v2302, %v2427
    %v2468 = vmul.f32 %v2307, %v2427
    %v2469 = vmul.f32 %v2312, %v2427
    %v2470 = vmul.f32 %v2317, %v2427
    %v2471 = vmul.f32 %v2322, %v2427
    %v2472 = vmul.f32 %v2327, %v2427
    %v2473 = vmul.f32 %v2332, %v2427
    %v2474 = vmul.f32 %v2337, %v2427
    %v2475 = vmul.f32 %v2342, %v2427
    %v2476 = vmul.f32 %v2347, %v2427
    %v2477 = vmul.f32 %v2352, %v2427
    %v2478 = vmul.f32 %v2357, %v2427
    %v2479 = vmul.f32 %v2362, %v2427
    %v2480 = vmul.f32 %v2367, %v2427
    %v2481 = vmul.f32 %v2372, %v2427
    %v2482 = vmul.f32 %v2377, %v2427
    %v2483 = vmul.f32 %v2382, %v2427
    %v2484 = vmul.f32 %v2387, %v2427
    %v2485 = vmul.f32 %v2392, %v2427
    %v2486 = vmul.f32 %v2397, %v2427
    %v2487 = vmul.f32 %v2402, %v2427
    %v2488 = vmul.f32 %v2407, %v2427
    %v2489 = vmul.f32 %v2412, %v2427
    %v2490 = vmul.f32 %v2417, %v2427
    %v2491 = vmul.f32 %v2422, %v2427
    %v2492 = vadd.f32 %v1975, %v2428
    %v2493 = vadd.f32 %v1976, %v2429
    %v2494 = vadd.f32 %v1977, %v2430
    %v2495 = vadd.f32 %v1978, %v2431
    %v2496 = vadd.f32 %v1979, %v2432
    %v2497 = vadd.f32 %v1980, %v2433
    %v2498 = vadd.f32 %v1981, %v2434
    %v2499 = vadd.f32 %v1982, %v2435
    %v2500 = vadd.f32 %v1983, %v2436
    %v2501 = vadd.f32 %v1984, %v2437
    %v2502 = vadd.f32 %v1985, %v2438
    %v2503 = vadd.f32 %v1986, %v2439
    %v2504 = vadd.f32 %v1987, %v2440
    %v2505 = vadd.f32 %v1988, %v2441
    %v2506 = vadd.f32 %v1989, %v2442
    %v2507 = vadd.f32 %v1990, %v2443
    %v2508 = vadd.f32 %v1991, %v2444
    %v2509 = vadd.f32 %v1992, %v2445
    %v2510 = vadd.f32 %v1993, %v2446
    %v2511 = vadd.f32 %v1994, %v2447
    %v2512 = vadd.f32 %v1995, %v2448
    %v2513 = vadd.f32 %v1996, %v2449
    %v2514 = vadd.f32 %v1997, %v2450
    %v2515 = vadd.f32 %v1998, %v2451
    %v2516 = vadd.f32 %v1999, %v2452
    %v2517 = vadd.f32 %v2000, %v2453
    %v2518 = vadd.f32 %v2001, %v2454
    %v2519 = vadd.f32 %v2002, %v2455
    %v2520 = vadd.f32 %v2003, %v2456
    %v2521 = vadd.f32 %v2004, %v2457
    %v2522 = vadd.f32 %v2005, %v2458
    %v2523 = vadd.f32 %v2006, %v2459
    %v2524 = vadd.f32 %v2007, %v2460
    %v2525 = vadd.f32 %v2008, %v2461
    %v2526 = vadd.f32 %v2009, %v2462
    %v2527 = vadd.f32 %v2010, %v2463
    %v2528 = vadd.f32 %v2011, %v2464
    %v2529 = vadd.f32 %v2012, %v2465
    %v2530 = vadd.f32 %v2013, %v2466
    %v2531 = vadd.f32 %v2014, %v2467
    %v2532 = vadd.f32 %v2015, %v2468
    %v2533 = vadd.f32 %v2016, %v2469
    %v2534 = vadd.f32 %v2017, %v2470
    %v2535 = vadd.f32 %v2018, %v2471
    %v2536 = vadd.f32 %v2019, %v2472
    %v2537 = vadd.f32 %v2020, %v2473
    %v2538 = vadd.f32 %v2021, %v2474
    %v2539 = vadd.f32 %v2022, %v2475
    %v2540 = vadd.f32 %v2023, %v2476
    %v2541 = vadd.f32 %v2024, %v2477
    %v2542 = vadd.f32 %v2025, %v2478
    %v2543 = vadd.f32 %v2026, %v2479
    %v2544 = vadd.f32 %v2027, %v2480
    %v2545 = vadd.f32 %v2028, %v2481
    %v2546 = vadd.f32 %v2029, %v2482
    %v2547 = vadd.f32 %v2030, %v2483
    %v2548 = vadd.f32 %v2031, %v2484
    %v2549 = vadd.f32 %v2032, %v2485
    %v2550 = vadd.f32 %v2033, %v2486
    %v2551 = vadd.f32 %v2034, %v2487
    %v2552 = vadd.f32 %v2035, %v2488
    %v2553 = vadd.f32 %v2036, %v2489
    %v2554 = vadd.f32 %v2037, %v2490
    %v2555 = vadd.f32 %v2038, %v2491
    %v2556 = vld [vmem:[%s1521 + $0x2] sm:$0xff]
    %v2557 = vld [vmem:[%s1521 + $0xa] sm:$0xff]
    %v2558 = vld [vmem:[%s1521 + $0x1a] sm:$0xff]
    %v2559 = vld [vmem:[%s1521 + $0x22] sm:$0xff]
    %v2560 = vld [vmem:[%s1521 + $0x32] sm:$0xff]
    %v2561 = vld [vmem:[%s1521 + $0x3a] sm:$0xff]
    %v2562 = vld [vmem:[%s1521 + $0x4a] sm:$0xff]
    %v2563 = vld [vmem:[%s1521 + $0x52] sm:$0xff]
    %v2564 = vld [vmem:[%s1521 + $0x62] sm:$0xff]
    %v2565 = vld [vmem:[%s1521 + $0x6a] sm:$0xff]
    %v2566 = vld [vmem:[%s1521 + $0x7a] sm:$0xff]
    %v2567 = vld [vmem:[%s1521 + $0x82] sm:$0xff]
    %v2568 = vld [vmem:[%s1521 + $0x92] sm:$0xff]
    %v2569 = vld [vmem:[%s1521 + $0x9a] sm:$0xff]
    %v2570 = vld [vmem:[%s1521 + $0xaa] sm:$0xff]
    %v2571 = vld [vmem:[%s1521 + $0xb2] sm:$0xff]
    %v2572 = vld [vmem:[%s1521 + $0xc2] sm:$0xff]
    %v2573 = vld [vmem:[%s1521 + $0xca] sm:$0xff]
    %v2574 = vld [vmem:[%s1521 + $0xda] sm:$0xff]
    %v2575 = vld [vmem:[%s1521 + $0xe2] sm:$0xff]
    %v2576 = vld [vmem:[%s1521 + $0xf2] sm:$0xff]
    %v2577 = vld [vmem:[%s1521 + $0xfa] sm:$0xff]
    %v2578 = vld [vmem:[%s1521 + $0x10a] sm:$0xff]
    %v2579 = vld [vmem:[%s1521 + $0x112] sm:$0xff]
    %v2580 = vld [vmem:[%s1521 + $0x122] sm:$0xff]
    %v2581 = vld [vmem:[%s1521 + $0x12a] sm:$0xff]
    %v2582 = vld [vmem:[%s1521 + $0x13a] sm:$0xff]
    %v2583 = vld [vmem:[%s1521 + $0x142] sm:$0xff]
    %v2584 = vld [vmem:[%s1521 + $0x152] sm:$0xff]
    %v2585 = vld [vmem:[%s1521 + $0x15a] sm:$0xff]
    %v2586 = vld [vmem:[%s1521 + $0x16a] sm:$0xff]
    %v2587 = vld [vmem:[%s1521 + $0x172] sm:$0xff]
    %v2588 = vld [vmem:[%s1521 + $0x1b2] sm:$0xff]
    %v2589 = vld [vmem:[%s1521 + $0x1ba] sm:$0xff]
    %v2590 = vld [vmem:[%s1521 + $0x1ca] sm:$0xff]
    %v2591 = vld [vmem:[%s1521 + $0x1d2] sm:$0xff]
    %v2592 = vld [vmem:[%s1521 + $0x1e2] sm:$0xff]
    %v2593 = vld [vmem:[%s1521 + $0x1ea] sm:$0xff]
    %v2594 = vld [vmem:[%s1521 + $0x1fa] sm:$0xff]
    %v2595 = vld [vmem:[%s1521 + $0x202] sm:$0xff]
    %v2596 = vld [vmem:[%s1521 + $0x212] sm:$0xff]
    %v2597 = vld [vmem:[%s1521 + $0x21a] sm:$0xff]
    %v2598 = vld [vmem:[%s1521 + $0x22a] sm:$0xff]
    %v2599 = vld [vmem:[%s1521 + $0x232] sm:$0xff]
    %v2600 = vld [vmem:[%s1521 + $0x242] sm:$0xff]
    %v2601 = vld [vmem:[%s1521 + $0x24a] sm:$0xff]
    %v2602 = vld [vmem:[%s1521 + $0x25a] sm:$0xff]
    %v2603 = vld [vmem:[%s1521 + $0x262] sm:$0xff]
    %v2604 = vld [vmem:[%s1521 + $0x272] sm:$0xff]
    %v2605 = vld [vmem:[%s1521 + $0x27a] sm:$0xff]
    %v2606 = vld [vmem:[%s1521 + $0x28a] sm:$0xff]
    %v2607 = vld [vmem:[%s1521 + $0x292] sm:$0xff]
    %v2608 = vld [vmem:[%s1521 + $0x2a2] sm:$0xff]
    %v2609 = vld [vmem:[%s1521 + $0x2aa] sm:$0xff]
    %v2610 = vld [vmem:[%s1521 + $0x2ba] sm:$0xff]
    %v2611 = vld [vmem:[%s1521 + $0x2c2] sm:$0xff]
    %v2612 = vld [vmem:[%s1521 + $0x2d2] sm:$0xff]
    %v2613 = vld [vmem:[%s1521 + $0x2da] sm:$0xff]
    %v2614 = vld [vmem:[%s1521 + $0x2ea] sm:$0xff]
    %v2615 = vld [vmem:[%s1521 + $0x2f2] sm:$0xff]
    %v2616 = vld [vmem:[%s1521 + $0x302] sm:$0xff]
    %v2617 = vld [vmem:[%s1521 + $0x30a] sm:$0xff]
    %v2618 = vld [vmem:[%s1521 + $0x31a] sm:$0xff]
    %v2619 = vld [vmem:[%s1521 + $0x322] sm:$0xff]
    %v2620 = vld [vmem:[%s1 + $0x5] sm:$0x1]
    %2622 = vset.pattern.permute.xlu0 0
    %2623 = vperm.xlu0 %2622, %v2556
    %v2624 = vpop.permute.xlu0 %2623
    %2627 = vset.pattern.permute.xlu0 0
    %2628 = vperm.xlu0 %2627, %v2557
    %v2629 = vpop.permute.xlu0 %2628
    %2632 = vset.pattern.permute.xlu0 0
    %2633 = vperm.xlu0 %2632, %v2558
    %v2634 = vpop.permute.xlu0 %2633
    %2637 = vset.pattern.permute.xlu0 0
    %2638 = vperm.xlu0 %2637, %v2559
    %v2639 = vpop.permute.xlu0 %2638
    %2642 = vset.pattern.permute.xlu0 0
    %2643 = vperm.xlu0 %2642, %v2560
    %v2644 = vpop.permute.xlu0 %2643
    %2647 = vset.pattern.permute.xlu0 0
    %2648 = vperm.xlu0 %2647, %v2561
    %v2649 = vpop.permute.xlu0 %2648
    %2652 = vset.pattern.permute.xlu0 0
    %2653 = vperm.xlu0 %2652, %v2562
    %v2654 = vpop.permute.xlu0 %2653
    %2657 = vset.pattern.permute.xlu0 0
    %2658 = vperm.xlu0 %2657, %v2563
    %v2659 = vpop.permute.xlu0 %2658
    %2662 = vset.pattern.permute.xlu0 0
    %2663 = vperm.xlu0 %2662, %v2564
    %v2664 = vpop.permute.xlu0 %2663
    %2667 = vset.pattern.permute.xlu0 0
    %2668 = vperm.xlu0 %2667, %v2565
    %v2669 = vpop.permute.xlu0 %2668
    %2672 = vset.pattern.permute.xlu0 0
    %2673 = vperm.xlu0 %2672, %v2566
    %v2674 = vpop.permute.xlu0 %2673
    %2677 = vset.pattern.permute.xlu0 0
    %2678 = vperm.xlu0 %2677, %v2567
    %v2679 = vpop.permute.xlu0 %2678
    %2682 = vset.pattern.permute.xlu0 0
    %2683 = vperm.xlu0 %2682, %v2568
    %v2684 = vpop.permute.xlu0 %2683
    %2687 = vset.pattern.permute.xlu0 0
    %2688 = vperm.xlu0 %2687, %v2569
    %v2689 = vpop.permute.xlu0 %2688
    %2692 = vset.pattern.permute.xlu0 0
    %2693 = vperm.xlu0 %2692, %v2570
    %v2694 = vpop.permute.xlu0 %2693
    %2697 = vset.pattern.permute.xlu0 0
    %2698 = vperm.xlu0 %2697, %v2571
    %v2699 = vpop.permute.xlu0 %2698
    %2702 = vset.pattern.permute.xlu0 0
    %2703 = vperm.xlu0 %2702, %v2572
    %v2704 = vpop.permute.xlu0 %2703
    %2707 = vset.pattern.permute.xlu0 0
    %2708 = vperm.xlu0 %2707, %v2573
    %v2709 = vpop.permute.xlu0 %2708
    %2712 = vset.pattern.permute.xlu0 0
    %2713 = vperm.xlu0 %2712, %v2574
    %v2714 = vpop.permute.xlu0 %2713
    %2717 = vset.pattern.permute.xlu0 0
    %2718 = vperm.xlu0 %2717, %v2575
    %v2719 = vpop.permute.xlu0 %2718
    %2722 = vset.pattern.permute.xlu0 0
    %2723 = vperm.xlu0 %2722, %v2576
    %v2724 = vpop.permute.xlu0 %2723
    %2727 = vset.pattern.permute.xlu0 0
    %2728 = vperm.xlu0 %2727, %v2577
    %v2729 = vpop.permute.xlu0 %2728
    %2732 = vset.pattern.permute.xlu0 0
    %2733 = vperm.xlu0 %2732, %v2578
    %v2734 = vpop.permute.xlu0 %2733
    %2737 = vset.pattern.permute.xlu0 0
    %2738 = vperm.xlu0 %2737, %v2579
    %v2739 = vpop.permute.xlu0 %2738
    %2742 = vset.pattern.permute.xlu0 0
    %2743 = vperm.xlu0 %2742, %v2580
    %v2744 = vpop.permute.xlu0 %2743
    %2747 = vset.pattern.permute.xlu0 0
    %2748 = vperm.xlu0 %2747, %v2581
    %v2749 = vpop.permute.xlu0 %2748
    %2752 = vset.pattern.permute.xlu0 0
    %2753 = vperm.xlu0 %2752, %v2582
    %v2754 = vpop.permute.xlu0 %2753
    %2757 = vset.pattern.permute.xlu0 0
    %2758 = vperm.xlu0 %2757, %v2583
    %v2759 = vpop.permute.xlu0 %2758
    %2762 = vset.pattern.permute.xlu0 0
    %2763 = vperm.xlu0 %2762, %v2584
    %v2764 = vpop.permute.xlu0 %2763
    %2767 = vset.pattern.permute.xlu0 0
    %2768 = vperm.xlu0 %2767, %v2585
    %v2769 = vpop.permute.xlu0 %2768
    %2772 = vset.pattern.permute.xlu0 0
    %2773 = vperm.xlu0 %2772, %v2586
    %v2774 = vpop.permute.xlu0 %2773
    %2777 = vset.pattern.permute.xlu0 0
    %2778 = vperm.xlu0 %2777, %v2587
    %v2779 = vpop.permute.xlu0 %2778
    %2782 = vset.pattern.permute.xlu0 0
    %2783 = vperm.xlu0 %2782, %v2588
    %v2784 = vpop.permute.xlu0 %2783
    %2787 = vset.pattern.permute.xlu0 0
    %2788 = vperm.xlu0 %2787, %v2589
    %v2789 = vpop.permute.xlu0 %2788
    %2792 = vset.pattern.permute.xlu0 0
    %2793 = vperm.xlu0 %2792, %v2590
    %v2794 = vpop.permute.xlu0 %2793
    %2797 = vset.pattern.permute.xlu0 0
    %2798 = vperm.xlu0 %2797, %v2591
    %v2799 = vpop.permute.xlu0 %2798
    %2802 = vset.pattern.permute.xlu0 0
    %2803 = vperm.xlu0 %2802, %v2592
    %v2804 = vpop.permute.xlu0 %2803
    %2807 = vset.pattern.permute.xlu0 0
    %2808 = vperm.xlu0 %2807, %v2593
    %v2809 = vpop.permute.xlu0 %2808
    %2812 = vset.pattern.permute.xlu0 0
    %2813 = vperm.xlu0 %2812, %v2594
    %v2814 = vpop.permute.xlu0 %2813
    %2817 = vset.pattern.permute.xlu0 0
    %2818 = vperm.xlu0 %2817, %v2595
    %v2819 = vpop.permute.xlu0 %2818
    %2822 = vset.pattern.permute.xlu0 0
    %2823 = vperm.xlu0 %2822, %v2596
    %v2824 = vpop.permute.xlu0 %2823
    %2827 = vset.pattern.permute.xlu0 0
    %2828 = vperm.xlu0 %2827, %v2597
    %v2829 = vpop.permute.xlu0 %2828
    %2832 = vset.pattern.permute.xlu0 0
    %2833 = vperm.xlu0 %2832, %v2598
    %v2834 = vpop.permute.xlu0 %2833
    %2837 = vset.pattern.permute.xlu0 0
    %2838 = vperm.xlu0 %2837, %v2599
    %v2839 = vpop.permute.xlu0 %2838
    %2842 = vset.pattern.permute.xlu0 0
    %2843 = vperm.xlu0 %2842, %v2600
    %v2844 = vpop.permute.xlu0 %2843
    %2847 = vset.pattern.permute.xlu0 0
    %2848 = vperm.xlu0 %2847, %v2601
    %v2849 = vpop.permute.xlu0 %2848
    %2852 = vset.pattern.permute.xlu0 0
    %2853 = vperm.xlu0 %2852, %v2602
    %v2854 = vpop.permute.xlu0 %2853
    %2857 = vset.pattern.permute.xlu0 0
    %2858 = vperm.xlu0 %2857, %v2603
    %v2859 = vpop.permute.xlu0 %2858
    %2862 = vset.pattern.permute.xlu0 0
    %2863 = vperm.xlu0 %2862, %v2604
    %v2864 = vpop.permute.xlu0 %2863
    %2867 = vset.pattern.permute.xlu0 0
    %2868 = vperm.xlu0 %2867, %v2605
    %v2869 = vpop.permute.xlu0 %2868
    %2872 = vset.pattern.permute.xlu0 0
    %2873 = vperm.xlu0 %2872, %v2606
    %v2874 = vpop.permute.xlu0 %2873
    %2877 = vset.pattern.permute.xlu0 0
    %2878 = vperm.xlu0 %2877, %v2607
    %v2879 = vpop.permute.xlu0 %2878
    %2882 = vset.pattern.permute.xlu0 0
    %2883 = vperm.xlu0 %2882, %v2608
    %v2884 = vpop.permute.xlu0 %2883
    %2887 = vset.pattern.permute.xlu0 0
    %2888 = vperm.xlu0 %2887, %v2609
    %v2889 = vpop.permute.xlu0 %2888
    %2892 = vset.pattern.permute.xlu0 0
    %2893 = vperm.xlu0 %2892, %v2610
    %v2894 = vpop.permute.xlu0 %2893
    %2897 = vset.pattern.permute.xlu0 0
    %2898 = vperm.xlu0 %2897, %v2611
    %v2899 = vpop.permute.xlu0 %2898
    %2902 = vset.pattern.permute.xlu0 0
    %2903 = vperm.xlu0 %2902, %v2612
    %v2904 = vpop.permute.xlu0 %2903
    %2907 = vset.pattern.permute.xlu0 0
    %2908 = vperm.xlu0 %2907, %v2613
    %v2909 = vpop.permute.xlu0 %2908
    %2912 = vset.pattern.permute.xlu0 0
    %2913 = vperm.xlu0 %2912, %v2614
    %v2914 = vpop.permute.xlu0 %2913
    %2917 = vset.pattern.permute.xlu0 0
    %2918 = vperm.xlu0 %2917, %v2615
    %v2919 = vpop.permute.xlu0 %2918
    %2922 = vset.pattern.permute.xlu0 0
    %2923 = vperm.xlu0 %2922, %v2616
    %v2924 = vpop.permute.xlu0 %2923
    %2927 = vset.pattern.permute.xlu0 0
    %2928 = vperm.xlu0 %2927, %v2617
    %v2929 = vpop.permute.xlu0 %2928
    %2932 = vset.pattern.permute.xlu0 0
    %2933 = vperm.xlu0 %2932, %v2618
    %v2934 = vpop.permute.xlu0 %2933
    %2937 = vset.pattern.permute.xlu0 0
    %2938 = vperm.xlu0 %2937, %v2619
    %v2939 = vpop.permute.xlu0 %2938
    %v2941 = vlaneseq
    %v2942 = vshrl.u32 %v2941, 7
    %v2943 = vsub.s32 0, %v2942
    %v2944 = vrot.slane %v2620, %v2943
    %v2945 = vmul.f32 %v2624, %v2944
    %v2946 = vmul.f32 %v2629, %v2944
    %v2947 = vmul.f32 %v2634, %v2944
    %v2948 = vmul.f32 %v2639, %v2944
    %v2949 = vmul.f32 %v2644, %v2944
    %v2950 = vmul.f32 %v2649, %v2944
    %v2951 = vmul.f32 %v2654, %v2944
    %v2952 = vmul.f32 %v2659, %v2944
    %v2953 = vmul.f32 %v2664, %v2944
    %v2954 = vmul.f32 %v2669, %v2944
    %v2955 = vmul.f32 %v2674, %v2944
    %v2956 = vmul.f32 %v2679, %v2944
    %v2957 = vmul.f32 %v2684, %v2944
    %v2958 = vmul.f32 %v2689, %v2944
    %v2959 = vmul.f32 %v2694, %v2944
    %v2960 = vmul.f32 %v2699, %v2944
    %v2961 = vmul.f32 %v2704, %v2944
    %v2962 = vmul.f32 %v2709, %v2944
    %v2963 = vmul.f32 %v2714, %v2944
    %v2964 = vmul.f32 %v2719, %v2944
    %v2965 = vmul.f32 %v2724, %v2944
    %v2966 = vmul.f32 %v2729, %v2944
    %v2967 = vmul.f32 %v2734, %v2944
    %v2968 = vmul.f32 %v2739, %v2944
    %v2969 = vmul.f32 %v2744, %v2944
    %v2970 = vmul.f32 %v2749, %v2944
    %v2971 = vmul.f32 %v2754, %v2944
    %v2972 = vmul.f32 %v2759, %v2944
    %v2973 = vmul.f32 %v2764, %v2944
    %v2974 = vmul.f32 %v2769, %v2944
    %v2975 = vmul.f32 %v2774, %v2944
    %v2976 = vmul.f32 %v2779, %v2944
    %v2977 = vmul.f32 %v2784, %v2944
    %v2978 = vmul.f32 %v2789, %v2944
    %v2979 = vmul.f32 %v2794, %v2944
    %v2980 = vmul.f32 %v2799, %v2944
    %v2981 = vmul.f32 %v2804, %v2944
    %v2982 = vmul.f32 %v2809, %v2944
    %v2983 = vmul.f32 %v2814, %v2944
    %v2984 = vmul.f32 %v2819, %v2944
    %v2985 = vmul.f32 %v2824, %v2944
    %v2986 = vmul.f32 %v2829, %v2944
    %v2987 = vmul.f32 %v2834, %v2944
    %v2988 = vmul.f32 %v2839, %v2944
    %v2989 = vmul.f32 %v2844, %v2944
    %v2990 = vmul.f32 %v2849, %v2944
    %v2991 = vmul.f32 %v2854, %v2944
    %v2992 = vmul.f32 %v2859, %v2944
    %v2993 = vmul.f32 %v2864, %v2944
    %v2994 = vmul.f32 %v2869, %v2944
    %v2995 = vmul.f32 %v2874, %v2944
    %v2996 = vmul.f32 %v2879, %v2944
    %v2997 = vmul.f32 %v2884, %v2944
    %v2998 = vmul.f32 %v2889, %v2944
    %v2999 = vmul.f32 %v2894, %v2944
    %v3000 = vmul.f32 %v2899, %v2944
    %v3001 = vmul.f32 %v2904, %v2944
    %v3002 = vmul.f32 %v2909, %v2944
    %v3003 = vmul.f32 %v2914, %v2944
    %v3004 = vmul.f32 %v2919, %v2944
    %v3005 = vmul.f32 %v2924, %v2944
    %v3006 = vmul.f32 %v2929, %v2944
    %v3007 = vmul.f32 %v2934, %v2944
    %v3008 = vmul.f32 %v2939, %v2944
    %v3009 = vadd.f32 %v2492, %v2945
    %v3010 = vadd.f32 %v2493, %v2946
    %v3011 = vadd.f32 %v2494, %v2947
    %v3012 = vadd.f32 %v2495, %v2948
    %v3013 = vadd.f32 %v2496, %v2949
    %v3014 = vadd.f32 %v2497, %v2950
    %v3015 = vadd.f32 %v2498, %v2951
    %v3016 = vadd.f32 %v2499, %v2952
    %v3017 = vadd.f32 %v2500, %v2953
    %v3018 = vadd.f32 %v2501, %v2954
    %v3019 = vadd.f32 %v2502, %v2955
    %v3020 = vadd.f32 %v2503, %v2956
    %v3021 = vadd.f32 %v2504, %v2957
    %v3022 = vadd.f32 %v2505, %v2958
    %v3023 = vadd.f32 %v2506, %v2959
    %v3024 = vadd.f32 %v2507, %v2960
    %v3025 = vadd.f32 %v2508, %v2961
    %v3026 = vadd.f32 %v2509, %v2962
    %v3027 = vadd.f32 %v2510, %v2963
    %v3028 = vadd.f32 %v2511, %v2964
    %v3029 = vadd.f32 %v2512, %v2965
    %v3030 = vadd.f32 %v2513, %v2966
    %v3031 = vadd.f32 %v2514, %v2967
    %v3032 = vadd.f32 %v2515, %v2968
    %v3033 = vadd.f32 %v2516, %v2969
    %v3034 = vadd.f32 %v2517, %v2970
    %v3035 = vadd.f32 %v2518, %v2971
    %v3036 = vadd.f32 %v2519, %v2972
    %v3037 = vadd.f32 %v2520, %v2973
    %v3038 = vadd.f32 %v2521, %v2974
    %v3039 = vadd.f32 %v2522, %v2975
    %v3040 = vadd.f32 %v2523, %v2976
    %v3041 = vadd.f32 %v2524, %v2977
    %v3042 = vadd.f32 %v2525, %v2978
    %v3043 = vadd.f32 %v2526, %v2979
    %v3044 = vadd.f32 %v2527, %v2980
    %v3045 = vadd.f32 %v2528, %v2981
    %v3046 = vadd.f32 %v2529, %v2982
    %v3047 = vadd.f32 %v2530, %v2983
    %v3048 = vadd.f32 %v2531, %v2984
    %v3049 = vadd.f32 %v2532, %v2985
    %v3050 = vadd.f32 %v2533, %v2986
    %v3051 = vadd.f32 %v2534, %v2987
    %v3052 = vadd.f32 %v2535, %v2988
    %v3053 = vadd.f32 %v2536, %v2989
    %v3054 = vadd.f32 %v2537, %v2990
    %v3055 = vadd.f32 %v2538, %v2991
    %v3056 = vadd.f32 %v2539, %v2992
    %v3057 = vadd.f32 %v2540, %v2993
    %v3058 = vadd.f32 %v2541, %v2994
    %v3059 = vadd.f32 %v2542, %v2995
    %v3060 = vadd.f32 %v2543, %v2996
    %v3061 = vadd.f32 %v2544, %v2997
    %v3062 = vadd.f32 %v2545, %v2998
    %v3063 = vadd.f32 %v2546, %v2999
    %v3064 = vadd.f32 %v2547, %v3000
    %v3065 = vadd.f32 %v2548, %v3001
    %v3066 = vadd.f32 %v2549, %v3002
    %v3067 = vadd.f32 %v2550, %v3003
    %v3068 = vadd.f32 %v2551, %v3004
    %v3069 = vadd.f32 %v2552, %v3005
    %v3070 = vadd.f32 %v2553, %v3006
    %v3071 = vadd.f32 %v2554, %v3007
    %v3072 = vadd.f32 %v2555, %v3008
    %s3073 = scalar_lea.vmem %s0, 48
    %v3074 = vld [vmem:[%s3073] sm:$0xff]
    %v3075 = vld [vmem:[%s3073 + $0x8] sm:$0xff]
    %v3076 = vld [vmem:[%s3073 + $0x18] sm:$0xff]
    %v3077 = vld [vmem:[%s3073 + $0x20] sm:$0xff]
    %v3078 = vld [vmem:[%s3073 + $0x30] sm:$0xff]
    %v3079 = vld [vmem:[%s3073 + $0x38] sm:$0xff]
    %v3080 = vld [vmem:[%s3073 + $0x48] sm:$0xff]
    %v3081 = vld [vmem:[%s3073 + $0x50] sm:$0xff]
    %v3082 = vld [vmem:[%s3073 + $0x60] sm:$0xff]
    %v3083 = vld [vmem:[%s3073 + $0x68] sm:$0xff]
    %v3084 = vld [vmem:[%s3073 + $0x78] sm:$0xff]
    %v3085 = vld [vmem:[%s3073 + $0x80] sm:$0xff]
    %v3086 = vld [vmem:[%s3073 + $0x90] sm:$0xff]
    %v3087 = vld [vmem:[%s3073 + $0x98] sm:$0xff]
    %v3088 = vld [vmem:[%s3073 + $0xa8] sm:$0xff]
    %v3089 = vld [vmem:[%s3073 + $0xb0] sm:$0xff]
    %v3090 = vld [vmem:[%s3073 + $0xc0] sm:$0xff]
    %v3091 = vld [vmem:[%s3073 + $0xc8] sm:$0xff]
    %v3092 = vld [vmem:[%s3073 + $0xd8] sm:$0xff]
    %v3093 = vld [vmem:[%s3073 + $0xe0] sm:$0xff]
    %v3094 = vld [vmem:[%s3073 + $0xf0] sm:$0xff]
    %v3095 = vld [vmem:[%s3073 + $0xf8] sm:$0xff]
    %v3096 = vld [vmem:[%s3073 + $0x108] sm:$0xff]
    %v3097 = vld [vmem:[%s3073 + $0x110] sm:$0xff]
    %v3098 = vld [vmem:[%s3073 + $0x120] sm:$0xff]
    %v3099 = vld [vmem:[%s3073 + $0x128] sm:$0xff]
    %v3100 = vld [vmem:[%s3073 + $0x138] sm:$0xff]
    %v3101 = vld [vmem:[%s3073 + $0x140] sm:$0xff]
    %v3102 = vld [vmem:[%s3073 + $0x150] sm:$0xff]
    %v3103 = vld [vmem:[%s3073 + $0x158] sm:$0xff]
    %v3104 = vld [vmem:[%s3073 + $0x168] sm:$0xff]
    %v3105 = vld [vmem:[%s3073 + $0x170] sm:$0xff]
    %v3106 = vld [vmem:[%s3073 + $0x1b0] sm:$0xff]
    %v3107 = vld [vmem:[%s3073 + $0x1b8] sm:$0xff]
    %v3108 = vld [vmem:[%s3073 + $0x1c8] sm:$0xff]
    %v3109 = vld [vmem:[%s3073 + $0x1d0] sm:$0xff]
    %v3110 = vld [vmem:[%s3073 + $0x1e0] sm:$0xff]
    %v3111 = vld [vmem:[%s3073 + $0x1e8] sm:$0xff]
    %v3112 = vld [vmem:[%s3073 + $0x1f8] sm:$0xff]
    %v3113 = vld [vmem:[%s3073 + $0x200] sm:$0xff]
    %v3114 = vld [vmem:[%s3073 + $0x210] sm:$0xff]
    %v3115 = vld [vmem:[%s3073 + $0x218] sm:$0xff]
    %v3116 = vld [vmem:[%s3073 + $0x228] sm:$0xff]
    %v3117 = vld [vmem:[%s3073 + $0x230] sm:$0xff]
    %v3118 = vld [vmem:[%s3073 + $0x240] sm:$0xff]
    %v3119 = vld [vmem:[%s3073 + $0x248] sm:$0xff]
    %v3120 = vld [vmem:[%s3073 + $0x258] sm:$0xff]
    %v3121 = vld [vmem:[%s3073 + $0x260] sm:$0xff]
    %v3122 = vld [vmem:[%s3073 + $0x270] sm:$0xff]
    %v3123 = vld [vmem:[%s3073 + $0x278] sm:$0xff]
    %v3124 = vld [vmem:[%s3073 + $0x288] sm:$0xff]
    %v3125 = vld [vmem:[%s3073 + $0x290] sm:$0xff]
    %v3126 = vld [vmem:[%s3073 + $0x2a0] sm:$0xff]
    %v3127 = vld [vmem:[%s3073 + $0x2a8] sm:$0xff]
    %v3128 = vld [vmem:[%s3073 + $0x2b8] sm:$0xff]
    %v3129 = vld [vmem:[%s3073 + $0x2c0] sm:$0xff]
    %v3130 = vld [vmem:[%s3073 + $0x2d0] sm:$0xff]
    %v3131 = vld [vmem:[%s3073 + $0x2d8] sm:$0xff]
    %v3132 = vld [vmem:[%s3073 + $0x2e8] sm:$0xff]
    %v3133 = vld [vmem:[%s3073 + $0x2f0] sm:$0xff]
    %v3134 = vld [vmem:[%s3073 + $0x300] sm:$0xff]
    %v3135 = vld [vmem:[%s3073 + $0x308] sm:$0xff]
    %v3136 = vld [vmem:[%s3073 + $0x318] sm:$0xff]
    %v3137 = vld [vmem:[%s3073 + $0x320] sm:$0xff]
    %v3138 = vld [vmem:[%s1 + $0x6] sm:$0x1]
    %3140 = vset.pattern.permute.xlu0 0
    %3141 = vperm.xlu0 %3140, %v3074
    %v3142 = vpop.permute.xlu0 %3141
    %3145 = vset.pattern.permute.xlu0 0
    %3146 = vperm.xlu0 %3145, %v3075
    %v3147 = vpop.permute.xlu0 %3146
    %3150 = vset.pattern.permute.xlu0 0
    %3151 = vperm.xlu0 %3150, %v3076
    %v3152 = vpop.permute.xlu0 %3151
    %3155 = vset.pattern.permute.xlu0 0
    %3156 = vperm.xlu0 %3155, %v3077
    %v3157 = vpop.permute.xlu0 %3156
    %3160 = vset.pattern.permute.xlu0 0
    %3161 = vperm.xlu0 %3160, %v3078
    %v3162 = vpop.permute.xlu0 %3161
    %3165 = vset.pattern.permute.xlu0 0
    %3166 = vperm.xlu0 %3165, %v3079
    %v3167 = vpop.permute.xlu0 %3166
    %3170 = vset.pattern.permute.xlu0 0
    %3171 = vperm.xlu0 %3170, %v3080
    %v3172 = vpop.permute.xlu0 %3171
    %3175 = vset.pattern.permute.xlu0 0
    %3176 = vperm.xlu0 %3175, %v3081
    %v3177 = vpop.permute.xlu0 %3176
    %3180 = vset.pattern.permute.xlu0 0
    %3181 = vperm.xlu0 %3180, %v3082
    %v3182 = vpop.permute.xlu0 %3181
    %3185 = vset.pattern.permute.xlu0 0
    %3186 = vperm.xlu0 %3185, %v3083
    %v3187 = vpop.permute.xlu0 %3186
    %3190 = vset.pattern.permute.xlu0 0
    %3191 = vperm.xlu0 %3190, %v3084
    %v3192 = vpop.permute.xlu0 %3191
    %3195 = vset.pattern.permute.xlu0 0
    %3196 = vperm.xlu0 %3195, %v3085
    %v3197 = vpop.permute.xlu0 %3196
    %3200 = vset.pattern.permute.xlu0 0
    %3201 = vperm.xlu0 %3200, %v3086
    %v3202 = vpop.permute.xlu0 %3201
    %3205 = vset.pattern.permute.xlu0 0
    %3206 = vperm.xlu0 %3205, %v3087
    %v3207 = vpop.permute.xlu0 %3206
    %3210 = vset.pattern.permute.xlu0 0
    %3211 = vperm.xlu0 %3210, %v3088
    %v3212 = vpop.permute.xlu0 %3211
    %3215 = vset.pattern.permute.xlu0 0
    %3216 = vperm.xlu0 %3215, %v3089
    %v3217 = vpop.permute.xlu0 %3216
    %3220 = vset.pattern.permute.xlu0 0
    %3221 = vperm.xlu0 %3220, %v3090
    %v3222 = vpop.permute.xlu0 %3221
    %3225 = vset.pattern.permute.xlu0 0
    %3226 = vperm.xlu0 %3225, %v3091
    %v3227 = vpop.permute.xlu0 %3226
    %3230 = vset.pattern.permute.xlu0 0
    %3231 = vperm.xlu0 %3230, %v3092
    %v3232 = vpop.permute.xlu0 %3231
    %3235 = vset.pattern.permute.xlu0 0
    %3236 = vperm.xlu0 %3235, %v3093
    %v3237 = vpop.permute.xlu0 %3236
    %3240 = vset.pattern.permute.xlu0 0
    %3241 = vperm.xlu0 %3240, %v3094
    %v3242 = vpop.permute.xlu0 %3241
    %3245 = vset.pattern.permute.xlu0 0
    %3246 = vperm.xlu0 %3245, %v3095
    %v3247 = vpop.permute.xlu0 %3246
    %3250 = vset.pattern.permute.xlu0 0
    %3251 = vperm.xlu0 %3250, %v3096
    %v3252 = vpop.permute.xlu0 %3251
    %3255 = vset.pattern.permute.xlu0 0
    %3256 = vperm.xlu0 %3255, %v3097
    %v3257 = vpop.permute.xlu0 %3256
    %3260 = vset.pattern.permute.xlu0 0
    %3261 = vperm.xlu0 %3260, %v3098
    %v3262 = vpop.permute.xlu0 %3261
    %3265 = vset.pattern.permute.xlu0 0
    %3266 = vperm.xlu0 %3265, %v3099
    %v3267 = vpop.permute.xlu0 %3266
    %3270 = vset.pattern.permute.xlu0 0
    %3271 = vperm.xlu0 %3270, %v3100
    %v3272 = vpop.permute.xlu0 %3271
    %3275 = vset.pattern.permute.xlu0 0
    %3276 = vperm.xlu0 %3275, %v3101
    %v3277 = vpop.permute.xlu0 %3276
    %3280 = vset.pattern.permute.xlu0 0
    %3281 = vperm.xlu0 %3280, %v3102
    %v3282 = vpop.permute.xlu0 %3281
    %3285 = vset.pattern.permute.xlu0 0
    %3286 = vperm.xlu0 %3285, %v3103
    %v3287 = vpop.permute.xlu0 %3286
    %3290 = vset.pattern.permute.xlu0 0
    %3291 = vperm.xlu0 %3290, %v3104
    %v3292 = vpop.permute.xlu0 %3291
    %3295 = vset.pattern.permute.xlu0 0
    %3296 = vperm.xlu0 %3295, %v3105
    %v3297 = vpop.permute.xlu0 %3296
    %3300 = vset.pattern.permute.xlu0 0
    %3301 = vperm.xlu0 %3300, %v3106
    %v3302 = vpop.permute.xlu0 %3301
    %3305 = vset.pattern.permute.xlu0 0
    %3306 = vperm.xlu0 %3305, %v3107
    %v3307 = vpop.permute.xlu0 %3306
    %3310 = vset.pattern.permute.xlu0 0
    %3311 = vperm.xlu0 %3310, %v3108
    %v3312 = vpop.permute.xlu0 %3311
    %3315 = vset.pattern.permute.xlu0 0
    %3316 = vperm.xlu0 %3315, %v3109
    %v3317 = vpop.permute.xlu0 %3316
    %3320 = vset.pattern.permute.xlu0 0
    %3321 = vperm.xlu0 %3320, %v3110
    %v3322 = vpop.permute.xlu0 %3321
    %3325 = vset.pattern.permute.xlu0 0
    %3326 = vperm.xlu0 %3325, %v3111
    %v3327 = vpop.permute.xlu0 %3326
    %3330 = vset.pattern.permute.xlu0 0
    %3331 = vperm.xlu0 %3330, %v3112
    %v3332 = vpop.permute.xlu0 %3331
    %3335 = vset.pattern.permute.xlu0 0
    %3336 = vperm.xlu0 %3335, %v3113
    %v3337 = vpop.permute.xlu0 %3336
    %3340 = vset.pattern.permute.xlu0 0
    %3341 = vperm.xlu0 %3340, %v3114
    %v3342 = vpop.permute.xlu0 %3341
    %3345 = vset.pattern.permute.xlu0 0
    %3346 = vperm.xlu0 %3345, %v3115
    %v3347 = vpop.permute.xlu0 %3346
    %3350 = vset.pattern.permute.xlu0 0
    %3351 = vperm.xlu0 %3350, %v3116
    %v3352 = vpop.permute.xlu0 %3351
    %3355 = vset.pattern.permute.xlu0 0
    %3356 = vperm.xlu0 %3355, %v3117
    %v3357 = vpop.permute.xlu0 %3356
    %3360 = vset.pattern.permute.xlu0 0
    %3361 = vperm.xlu0 %3360, %v3118
    %v3362 = vpop.permute.xlu0 %3361
    %3365 = vset.pattern.permute.xlu0 0
    %3366 = vperm.xlu0 %3365, %v3119
    %v3367 = vpop.permute.xlu0 %3366
    %3370 = vset.pattern.permute.xlu0 0
    %3371 = vperm.xlu0 %3370, %v3120
    %v3372 = vpop.permute.xlu0 %3371
    %3375 = vset.pattern.permute.xlu0 0
    %3376 = vperm.xlu0 %3375, %v3121
    %v3377 = vpop.permute.xlu0 %3376
    %3380 = vset.pattern.permute.xlu0 0
    %3381 = vperm.xlu0 %3380, %v3122
    %v3382 = vpop.permute.xlu0 %3381
    %3385 = vset.pattern.permute.xlu0 0
    %3386 = vperm.xlu0 %3385, %v3123
    %v3387 = vpop.permute.xlu0 %3386
    %3390 = vset.pattern.permute.xlu0 0
    %3391 = vperm.xlu0 %3390, %v3124
    %v3392 = vpop.permute.xlu0 %3391
    %3395 = vset.pattern.permute.xlu0 0
    %3396 = vperm.xlu0 %3395, %v3125
    %v3397 = vpop.permute.xlu0 %3396
    %3400 = vset.pattern.permute.xlu0 0
    %3401 = vperm.xlu0 %3400, %v3126
    %v3402 = vpop.permute.xlu0 %3401
    %3405 = vset.pattern.permute.xlu0 0
    %3406 = vperm.xlu0 %3405, %v3127
    %v3407 = vpop.permute.xlu0 %3406
    %3410 = vset.pattern.permute.xlu0 0
    %3411 = vperm.xlu0 %3410, %v3128
    %v3412 = vpop.permute.xlu0 %3411
    %3415 = vset.pattern.permute.xlu0 0
    %3416 = vperm.xlu0 %3415, %v3129
    %v3417 = vpop.permute.xlu0 %3416
    %3420 = vset.pattern.permute.xlu0 0
    %3421 = vperm.xlu0 %3420, %v3130
    %v3422 = vpop.permute.xlu0 %3421
    %3425 = vset.pattern.permute.xlu0 0
    %3426 = vperm.xlu0 %3425, %v3131
    %v3427 = vpop.permute.xlu0 %3426
    %3430 = vset.pattern.permute.xlu0 0
    %3431 = vperm.xlu0 %3430, %v3132
    %v3432 = vpop.permute.xlu0 %3431
    %3435 = vset.pattern.permute.xlu0 0
    %3436 = vperm.xlu0 %3435, %v3133
    %v3437 = vpop.permute.xlu0 %3436
    %3440 = vset.pattern.permute.xlu0 0
    %3441 = vperm.xlu0 %3440, %v3134
    %v3442 = vpop.permute.xlu0 %3441
    %3445 = vset.pattern.permute.xlu0 0
    %3446 = vperm.xlu0 %3445, %v3135
    %v3447 = vpop.permute.xlu0 %3446
    %3450 = vset.pattern.permute.xlu0 0
    %3451 = vperm.xlu0 %3450, %v3136
    %v3452 = vpop.permute.xlu0 %3451
    %3455 = vset.pattern.permute.xlu0 0
    %3456 = vperm.xlu0 %3455, %v3137
    %v3457 = vpop.permute.xlu0 %3456
    %v3459 = vlaneseq
    %v3460 = vshrl.u32 %v3459, 7
    %v3461 = vsub.s32 0, %v3460
    %v3462 = vrot.slane %v3138, %v3461
    %v3463 = vmul.f32 %v3142, %v3462
    %v3464 = vmul.f32 %v3147, %v3462
    %v3465 = vmul.f32 %v3152, %v3462
    %v3466 = vmul.f32 %v3157, %v3462
    %v3467 = vmul.f32 %v3162, %v3462
    %v3468 = vmul.f32 %v3167, %v3462
    %v3469 = vmul.f32 %v3172, %v3462
    %v3470 = vmul.f32 %v3177, %v3462
    %v3471 = vmul.f32 %v3182, %v3462
    %v3472 = vmul.f32 %v3187, %v3462
    %v3473 = vmul.f32 %v3192, %v3462
    %v3474 = vmul.f32 %v3197, %v3462
    %v3475 = vmul.f32 %v3202, %v3462
    %v3476 = vmul.f32 %v3207, %v3462
    %v3477 = vmul.f32 %v3212, %v3462
    %v3478 = vmul.f32 %v3217, %v3462
    %v3479 = vmul.f32 %v3222, %v3462
    %v3480 = vmul.f32 %v3227, %v3462
    %v3481 = vmul.f32 %v3232, %v3462
    %v3482 = vmul.f32 %v3237, %v3462
    %v3483 = vmul.f32 %v3242, %v3462
    %v3484 = vmul.f32 %v3247, %v3462
    %v3485 = vmul.f32 %v3252, %v3462
    %v3486 = vmul.f32 %v3257, %v3462
    %v3487 = vmul.f32 %v3262, %v3462
    %v3488 = vmul.f32 %v3267, %v3462
    %v3489 = vmul.f32 %v3272, %v3462
    %v3490 = vmul.f32 %v3277, %v3462
    %v3491 = vmul.f32 %v3282, %v3462
    %v3492 = vmul.f32 %v3287, %v3462
    %v3493 = vmul.f32 %v3292, %v3462
    %v3494 = vmul.f32 %v3297, %v3462
    %v3495 = vmul.f32 %v3302, %v3462
    %v3496 = vmul.f32 %v3307, %v3462
    %v3497 = vmul.f32 %v3312, %v3462
    %v3498 = vmul.f32 %v3317, %v3462
    %v3499 = vmul.f32 %v3322, %v3462
    %v3500 = vmul.f32 %v3327, %v3462
    %v3501 = vmul.f32 %v3332, %v3462
    %v3502 = vmul.f32 %v3337, %v3462
    %v3503 = vmul.f32 %v3342, %v3462
    %v3504 = vmul.f32 %v3347, %v3462
    %v3505 = vmul.f32 %v3352, %v3462
    %v3506 = vmul.f32 %v3357, %v3462
    %v3507 = vmul.f32 %v3362, %v3462
    %v3508 = vmul.f32 %v3367, %v3462
    %v3509 = vmul.f32 %v3372, %v3462
    %v3510 = vmul.f32 %v3377, %v3462
    %v3511 = vmul.f32 %v3382, %v3462
    %v3512 = vmul.f32 %v3387, %v3462
    %v3513 = vmul.f32 %v3392, %v3462
    %v3514 = vmul.f32 %v3397, %v3462
    %v3515 = vmul.f32 %v3402, %v3462
    %v3516 = vmul.f32 %v3407, %v3462
    %v3517 = vmul.f32 %v3412, %v3462
    %v3518 = vmul.f32 %v3417, %v3462
    %v3519 = vmul.f32 %v3422, %v3462
    %v3520 = vmul.f32 %v3427, %v3462
    %v3521 = vmul.f32 %v3432, %v3462
    %v3522 = vmul.f32 %v3437, %v3462
    %v3523 = vmul.f32 %v3442, %v3462
    %v3524 = vmul.f32 %v3447, %v3462
    %v3525 = vmul.f32 %v3452, %v3462
    %v3526 = vmul.f32 %v3457, %v3462
    %v3527 = vadd.f32 %v3009, %v3463
    %v3528 = vadd.f32 %v3010, %v3464
    %v3529 = vadd.f32 %v3011, %v3465
    %v3530 = vadd.f32 %v3012, %v3466
    %v3531 = vadd.f32 %v3013, %v3467
    %v3532 = vadd.f32 %v3014, %v3468
    %v3533 = vadd.f32 %v3015, %v3469
    %v3534 = vadd.f32 %v3016, %v3470
    %v3535 = vadd.f32 %v3017, %v3471
    %v3536 = vadd.f32 %v3018, %v3472
    %v3537 = vadd.f32 %v3019, %v3473
    %v3538 = vadd.f32 %v3020, %v3474
    %v3539 = vadd.f32 %v3021, %v3475
    %v3540 = vadd.f32 %v3022, %v3476
    %v3541 = vadd.f32 %v3023, %v3477
    %v3542 = vadd.f32 %v3024, %v3478
    %v3543 = vadd.f32 %v3025, %v3479
    %v3544 = vadd.f32 %v3026, %v3480
    %v3545 = vadd.f32 %v3027, %v3481
    %v3546 = vadd.f32 %v3028, %v3482
    %v3547 = vadd.f32 %v3029, %v3483
    %v3548 = vadd.f32 %v3030, %v3484
    %v3549 = vadd.f32 %v3031, %v3485
    %v3550 = vadd.f32 %v3032, %v3486
    %v3551 = vadd.f32 %v3033, %v3487
    %v3552 = vadd.f32 %v3034, %v3488
    %v3553 = vadd.f32 %v3035, %v3489
    %v3554 = vadd.f32 %v3036, %v3490
    %v3555 = vadd.f32 %v3037, %v3491
    %v3556 = vadd.f32 %v3038, %v3492
    %v3557 = vadd.f32 %v3039, %v3493
    %v3558 = vadd.f32 %v3040, %v3494
    %v3559 = vadd.f32 %v3041, %v3495
    %v3560 = vadd.f32 %v3042, %v3496
    %v3561 = vadd.f32 %v3043, %v3497
    %v3562 = vadd.f32 %v3044, %v3498
    %v3563 = vadd.f32 %v3045, %v3499
    %v3564 = vadd.f32 %v3046, %v3500
    %v3565 = vadd.f32 %v3047, %v3501
    %v3566 = vadd.f32 %v3048, %v3502
    %v3567 = vadd.f32 %v3049, %v3503
    %v3568 = vadd.f32 %v3050, %v3504
    %v3569 = vadd.f32 %v3051, %v3505
    %v3570 = vadd.f32 %v3052, %v3506
    %v3571 = vadd.f32 %v3053, %v3507
    %v3572 = vadd.f32 %v3054, %v3508
    %v3573 = vadd.f32 %v3055, %v3509
    %v3574 = vadd.f32 %v3056, %v3510
    %v3575 = vadd.f32 %v3057, %v3511
    %v3576 = vadd.f32 %v3058, %v3512
    %v3577 = vadd.f32 %v3059, %v3513
    %v3578 = vadd.f32 %v3060, %v3514
    %v3579 = vadd.f32 %v3061, %v3515
    %v3580 = vadd.f32 %v3062, %v3516
    %v3581 = vadd.f32 %v3063, %v3517
    %v3582 = vadd.f32 %v3064, %v3518
    %v3583 = vadd.f32 %v3065, %v3519
    %v3584 = vadd.f32 %v3066, %v3520
    %v3585 = vadd.f32 %v3067, %v3521
    %v3586 = vadd.f32 %v3068, %v3522
    %v3587 = vadd.f32 %v3069, %v3523
    %v3588 = vadd.f32 %v3070, %v3524
    %v3589 = vadd.f32 %v3071, %v3525
    %v3590 = vadd.f32 %v3072, %v3526
    %v3591 = vld [vmem:[%s3073 + $0x1] sm:$0xff]
    %v3592 = vld [vmem:[%s3073 + $0x9] sm:$0xff]
    %v3593 = vld [vmem:[%s3073 + $0x19] sm:$0xff]
    %v3594 = vld [vmem:[%s3073 + $0x21] sm:$0xff]
    %v3595 = vld [vmem:[%s3073 + $0x31] sm:$0xff]
    %v3596 = vld [vmem:[%s3073 + $0x39] sm:$0xff]
    %v3597 = vld [vmem:[%s3073 + $0x49] sm:$0xff]
    %v3598 = vld [vmem:[%s3073 + $0x51] sm:$0xff]
    %v3599 = vld [vmem:[%s3073 + $0x61] sm:$0xff]
    %v3600 = vld [vmem:[%s3073 + $0x69] sm:$0xff]
    %v3601 = vld [vmem:[%s3073 + $0x79] sm:$0xff]
    %v3602 = vld [vmem:[%s3073 + $0x81] sm:$0xff]
    %v3603 = vld [vmem:[%s3073 + $0x91] sm:$0xff]
    %v3604 = vld [vmem:[%s3073 + $0x99] sm:$0xff]
    %v3605 = vld [vmem:[%s3073 + $0xa9] sm:$0xff]
    %v3606 = vld [vmem:[%s3073 + $0xb1] sm:$0xff]
    %v3607 = vld [vmem:[%s3073 + $0xc1] sm:$0xff]
    %v3608 = vld [vmem:[%s3073 + $0xc9] sm:$0xff]
    %v3609 = vld [vmem:[%s3073 + $0xd9] sm:$0xff]
    %v3610 = vld [vmem:[%s3073 + $0xe1] sm:$0xff]
    %v3611 = vld [vmem:[%s3073 + $0xf1] sm:$0xff]
    %v3612 = vld [vmem:[%s3073 + $0xf9] sm:$0xff]
    %v3613 = vld [vmem:[%s3073 + $0x109] sm:$0xff]
    %v3614 = vld [vmem:[%s3073 + $0x111] sm:$0xff]
    %v3615 = vld [vmem:[%s3073 + $0x121] sm:$0xff]
    %v3616 = vld [vmem:[%s3073 + $0x129] sm:$0xff]
    %v3617 = vld [vmem:[%s3073 + $0x139] sm:$0xff]
    %v3618 = vld [vmem:[%s3073 + $0x141] sm:$0xff]
    %v3619 = vld [vmem:[%s3073 + $0x151] sm:$0xff]
    %v3620 = vld [vmem:[%s3073 + $0x159] sm:$0xff]
    %v3621 = vld [vmem:[%s3073 + $0x169] sm:$0xff]
    %v3622 = vld [vmem:[%s3073 + $0x171] sm:$0xff]
    %v3623 = vld [vmem:[%s3073 + $0x1b1] sm:$0xff]
    %v3624 = vld [vmem:[%s3073 + $0x1b9] sm:$0xff]
    %v3625 = vld [vmem:[%s3073 + $0x1c9] sm:$0xff]
    %v3626 = vld [vmem:[%s3073 + $0x1d1] sm:$0xff]
    %v3627 = vld [vmem:[%s3073 + $0x1e1] sm:$0xff]
    %v3628 = vld [vmem:[%s3073 + $0x1e9] sm:$0xff]
    %v3629 = vld [vmem:[%s3073 + $0x1f9] sm:$0xff]
    %v3630 = vld [vmem:[%s3073 + $0x201] sm:$0xff]
    %v3631 = vld [vmem:[%s3073 + $0x211] sm:$0xff]
    %v3632 = vld [vmem:[%s3073 + $0x219] sm:$0xff]
    %v3633 = vld [vmem:[%s3073 + $0x229] sm:$0xff]
    %v3634 = vld [vmem:[%s3073 + $0x231] sm:$0xff]
    %v3635 = vld [vmem:[%s3073 + $0x241] sm:$0xff]
    %v3636 = vld [vmem:[%s3073 + $0x249] sm:$0xff]
    %v3637 = vld [vmem:[%s3073 + $0x259] sm:$0xff]
    %v3638 = vld [vmem:[%s3073 + $0x261] sm:$0xff]
    %v3639 = vld [vmem:[%s3073 + $0x271] sm:$0xff]
    %v3640 = vld [vmem:[%s3073 + $0x279] sm:$0xff]
    %v3641 = vld [vmem:[%s3073 + $0x289] sm:$0xff]
    %v3642 = vld [vmem:[%s3073 + $0x291] sm:$0xff]
    %v3643 = vld [vmem:[%s3073 + $0x2a1] sm:$0xff]
    %v3644 = vld [vmem:[%s3073 + $0x2a9] sm:$0xff]
    %v3645 = vld [vmem:[%s3073 + $0x2b9] sm:$0xff]
    %v3646 = vld [vmem:[%s3073 + $0x2c1] sm:$0xff]
    %v3647 = vld [vmem:[%s3073 + $0x2d1] sm:$0xff]
    %v3648 = vld [vmem:[%s3073 + $0x2d9] sm:$0xff]
    %v3649 = vld [vmem:[%s3073 + $0x2e9] sm:$0xff]
    %v3650 = vld [vmem:[%s3073 + $0x2f1] sm:$0xff]
    %v3651 = vld [vmem:[%s3073 + $0x301] sm:$0xff]
    %v3652 = vld [vmem:[%s3073 + $0x309] sm:$0xff]
    %v3653 = vld [vmem:[%s3073 + $0x319] sm:$0xff]
    %v3654 = vld [vmem:[%s3073 + $0x321] sm:$0xff]
    %v3655 = vld [vmem:[%s1 + $0x7] sm:$0x1]
    %3657 = vset.pattern.permute.xlu0 0
    %3658 = vperm.xlu0 %3657, %v3591
    %v3659 = vpop.permute.xlu0 %3658
    %3662 = vset.pattern.permute.xlu0 0
    %3663 = vperm.xlu0 %3662, %v3592
    %v3664 = vpop.permute.xlu0 %3663
    %3667 = vset.pattern.permute.xlu0 0
    %3668 = vperm.xlu0 %3667, %v3593
    %v3669 = vpop.permute.xlu0 %3668
    %3672 = vset.pattern.permute.xlu0 0
    %3673 = vperm.xlu0 %3672, %v3594
    %v3674 = vpop.permute.xlu0 %3673
    %3677 = vset.pattern.permute.xlu0 0
    %3678 = vperm.xlu0 %3677, %v3595
    %v3679 = vpop.permute.xlu0 %3678
    %3682 = vset.pattern.permute.xlu0 0
    %3683 = vperm.xlu0 %3682, %v3596
    %v3684 = vpop.permute.xlu0 %3683
    %3687 = vset.pattern.permute.xlu0 0
    %3688 = vperm.xlu0 %3687, %v3597
    %v3689 = vpop.permute.xlu0 %3688
    %3692 = vset.pattern.permute.xlu0 0
    %3693 = vperm.xlu0 %3692, %v3598
    %v3694 = vpop.permute.xlu0 %3693
    %3697 = vset.pattern.permute.xlu0 0
    %3698 = vperm.xlu0 %3697, %v3599
    %v3699 = vpop.permute.xlu0 %3698
    %3702 = vset.pattern.permute.xlu0 0
    %3703 = vperm.xlu0 %3702, %v3600
    %v3704 = vpop.permute.xlu0 %3703
    %3707 = vset.pattern.permute.xlu0 0
    %3708 = vperm.xlu0 %3707, %v3601
    %v3709 = vpop.permute.xlu0 %3708
    %3712 = vset.pattern.permute.xlu0 0
    %3713 = vperm.xlu0 %3712, %v3602
    %v3714 = vpop.permute.xlu0 %3713
    %3717 = vset.pattern.permute.xlu0 0
    %3718 = vperm.xlu0 %3717, %v3603
    %v3719 = vpop.permute.xlu0 %3718
    %3722 = vset.pattern.permute.xlu0 0
    %3723 = vperm.xlu0 %3722, %v3604
    %v3724 = vpop.permute.xlu0 %3723
    %3727 = vset.pattern.permute.xlu0 0
    %3728 = vperm.xlu0 %3727, %v3605
    %v3729 = vpop.permute.xlu0 %3728
    %3732 = vset.pattern.permute.xlu0 0
    %3733 = vperm.xlu0 %3732, %v3606
    %v3734 = vpop.permute.xlu0 %3733
    %3737 = vset.pattern.permute.xlu0 0
    %3738 = vperm.xlu0 %3737, %v3607
    %v3739 = vpop.permute.xlu0 %3738
    %3742 = vset.pattern.permute.xlu0 0
    %3743 = vperm.xlu0 %3742, %v3608
    %v3744 = vpop.permute.xlu0 %3743
    %3747 = vset.pattern.permute.xlu0 0
    %3748 = vperm.xlu0 %3747, %v3609
    %v3749 = vpop.permute.xlu0 %3748
    %3752 = vset.pattern.permute.xlu0 0
    %3753 = vperm.xlu0 %3752, %v3610
    %v3754 = vpop.permute.xlu0 %3753
    %3757 = vset.pattern.permute.xlu0 0
    %3758 = vperm.xlu0 %3757, %v3611
    %v3759 = vpop.permute.xlu0 %3758
    %3762 = vset.pattern.permute.xlu0 0
    %3763 = vperm.xlu0 %3762, %v3612
    %v3764 = vpop.permute.xlu0 %3763
    %3767 = vset.pattern.permute.xlu0 0
    %3768 = vperm.xlu0 %3767, %v3613
    %v3769 = vpop.permute.xlu0 %3768
    %3772 = vset.pattern.permute.xlu0 0
    %3773 = vperm.xlu0 %3772, %v3614
    %v3774 = vpop.permute.xlu0 %3773
    %3777 = vset.pattern.permute.xlu0 0
    %3778 = vperm.xlu0 %3777, %v3615
    %v3779 = vpop.permute.xlu0 %3778
    %3782 = vset.pattern.permute.xlu0 0
    %3783 = vperm.xlu0 %3782, %v3616
    %v3784 = vpop.permute.xlu0 %3783
    %3787 = vset.pattern.permute.xlu0 0
    %3788 = vperm.xlu0 %3787, %v3617
    %v3789 = vpop.permute.xlu0 %3788
    %3792 = vset.pattern.permute.xlu0 0
    %3793 = vperm.xlu0 %3792, %v3618
    %v3794 = vpop.permute.xlu0 %3793
    %3797 = vset.pattern.permute.xlu0 0
    %3798 = vperm.xlu0 %3797, %v3619
    %v3799 = vpop.permute.xlu0 %3798
    %3802 = vset.pattern.permute.xlu0 0
    %3803 = vperm.xlu0 %3802, %v3620
    %v3804 = vpop.permute.xlu0 %3803
    %3807 = vset.pattern.permute.xlu0 0
    %3808 = vperm.xlu0 %3807, %v3621
    %v3809 = vpop.permute.xlu0 %3808
    %3812 = vset.pattern.permute.xlu0 0
    %3813 = vperm.xlu0 %3812, %v3622
    %v3814 = vpop.permute.xlu0 %3813
    %3817 = vset.pattern.permute.xlu0 0
    %3818 = vperm.xlu0 %3817, %v3623
    %v3819 = vpop.permute.xlu0 %3818
    %3822 = vset.pattern.permute.xlu0 0
    %3823 = vperm.xlu0 %3822, %v3624
    %v3824 = vpop.permute.xlu0 %3823
    %3827 = vset.pattern.permute.xlu0 0
    %3828 = vperm.xlu0 %3827, %v3625
    %v3829 = vpop.permute.xlu0 %3828
    %3832 = vset.pattern.permute.xlu0 0
    %3833 = vperm.xlu0 %3832, %v3626
    %v3834 = vpop.permute.xlu0 %3833
    %3837 = vset.pattern.permute.xlu0 0
    %3838 = vperm.xlu0 %3837, %v3627
    %v3839 = vpop.permute.xlu0 %3838
    %3842 = vset.pattern.permute.xlu0 0
    %3843 = vperm.xlu0 %3842, %v3628
    %v3844 = vpop.permute.xlu0 %3843
    %3847 = vset.pattern.permute.xlu0 0
    %3848 = vperm.xlu0 %3847, %v3629
    %v3849 = vpop.permute.xlu0 %3848
    %3852 = vset.pattern.permute.xlu0 0
    %3853 = vperm.xlu0 %3852, %v3630
    %v3854 = vpop.permute.xlu0 %3853
    %3857 = vset.pattern.permute.xlu0 0
    %3858 = vperm.xlu0 %3857, %v3631
    %v3859 = vpop.permute.xlu0 %3858
    %3862 = vset.pattern.permute.xlu0 0
    %3863 = vperm.xlu0 %3862, %v3632
    %v3864 = vpop.permute.xlu0 %3863
    %3867 = vset.pattern.permute.xlu0 0
    %3868 = vperm.xlu0 %3867, %v3633
    %v3869 = vpop.permute.xlu0 %3868
    %3872 = vset.pattern.permute.xlu0 0
    %3873 = vperm.xlu0 %3872, %v3634
    %v3874 = vpop.permute.xlu0 %3873
    %3877 = vset.pattern.permute.xlu0 0
    %3878 = vperm.xlu0 %3877, %v3635
    %v3879 = vpop.permute.xlu0 %3878
    %3882 = vset.pattern.permute.xlu0 0
    %3883 = vperm.xlu0 %3882, %v3636
    %v3884 = vpop.permute.xlu0 %3883
    %3887 = vset.pattern.permute.xlu0 0
    %3888 = vperm.xlu0 %3887, %v3637
    %v3889 = vpop.permute.xlu0 %3888
    %3892 = vset.pattern.permute.xlu0 0
    %3893 = vperm.xlu0 %3892, %v3638
    %v3894 = vpop.permute.xlu0 %3893
    %3897 = vset.pattern.permute.xlu0 0
    %3898 = vperm.xlu0 %3897, %v3639
    %v3899 = vpop.permute.xlu0 %3898
    %3902 = vset.pattern.permute.xlu0 0
    %3903 = vperm.xlu0 %3902, %v3640
    %v3904 = vpop.permute.xlu0 %3903
    %3907 = vset.pattern.permute.xlu0 0
    %3908 = vperm.xlu0 %3907, %v3641
    %v3909 = vpop.permute.xlu0 %3908
    %3912 = vset.pattern.permute.xlu0 0
    %3913 = vperm.xlu0 %3912, %v3642
    %v3914 = vpop.permute.xlu0 %3913
    %3917 = vset.pattern.permute.xlu0 0
    %3918 = vperm.xlu0 %3917, %v3643
    %v3919 = vpop.permute.xlu0 %3918
    %3922 = vset.pattern.permute.xlu0 0
    %3923 = vperm.xlu0 %3922, %v3644
    %v3924 = vpop.permute.xlu0 %3923
    %3927 = vset.pattern.permute.xlu0 0
    %3928 = vperm.xlu0 %3927, %v3645
    %v3929 = vpop.permute.xlu0 %3928
    %3932 = vset.pattern.permute.xlu0 0
    %3933 = vperm.xlu0 %3932, %v3646
    %v3934 = vpop.permute.xlu0 %3933
    %3937 = vset.pattern.permute.xlu0 0
    %3938 = vperm.xlu0 %3937, %v3647
    %v3939 = vpop.permute.xlu0 %3938
    %3942 = vset.pattern.permute.xlu0 0
    %3943 = vperm.xlu0 %3942, %v3648
    %v3944 = vpop.permute.xlu0 %3943
    %3947 = vset.pattern.permute.xlu0 0
    %3948 = vperm.xlu0 %3947, %v3649
    %v3949 = vpop.permute.xlu0 %3948
    %3952 = vset.pattern.permute.xlu0 0
    %3953 = vperm.xlu0 %3952, %v3650
    %v3954 = vpop.permute.xlu0 %3953
    %3957 = vset.pattern.permute.xlu0 0
    %3958 = vperm.xlu0 %3957, %v3651
    %v3959 = vpop.permute.xlu0 %3958
    %3962 = vset.pattern.permute.xlu0 0
    %3963 = vperm.xlu0 %3962, %v3652
    %v3964 = vpop.permute.xlu0 %3963
    %3967 = vset.pattern.permute.xlu0 0
    %3968 = vperm.xlu0 %3967, %v3653
    %v3969 = vpop.permute.xlu0 %3968
    %3972 = vset.pattern.permute.xlu0 0
    %3973 = vperm.xlu0 %3972, %v3654
    %v3974 = vpop.permute.xlu0 %3973
    %v3976 = vlaneseq
    %v3977 = vshrl.u32 %v3976, 7
    %v3978 = vsub.s32 0, %v3977
    %v3979 = vrot.slane %v3655, %v3978
    %v3980 = vmul.f32 %v3659, %v3979
    %v3981 = vmul.f32 %v3664, %v3979
    %v3982 = vmul.f32 %v3669, %v3979
    %v3983 = vmul.f32 %v3674, %v3979
    %v3984 = vmul.f32 %v3679, %v3979
    %v3985 = vmul.f32 %v3684, %v3979
    %v3986 = vmul.f32 %v3689, %v3979
    %v3987 = vmul.f32 %v3694, %v3979
    %v3988 = vmul.f32 %v3699, %v3979
    %v3989 = vmul.f32 %v3704, %v3979
    %v3990 = vmul.f32 %v3709, %v3979
    %v3991 = vmul.f32 %v3714, %v3979
    %v3992 = vmul.f32 %v3719, %v3979
    %v3993 = vmul.f32 %v3724, %v3979
    %v3994 = vmul.f32 %v3729, %v3979
    %v3995 = vmul.f32 %v3734, %v3979
    %v3996 = vmul.f32 %v3739, %v3979
    %v3997 = vmul.f32 %v3744, %v3979
    %v3998 = vmul.f32 %v3749, %v3979
    %v3999 = vmul.f32 %v3754, %v3979
    %v4000 = vmul.f32 %v3759, %v3979
    %v4001 = vmul.f32 %v3764, %v3979
    %v4002 = vmul.f32 %v3769, %v3979
    %v4003 = vmul.f32 %v3774, %v3979
    %v4004 = vmul.f32 %v3779, %v3979
    %v4005 = vmul.f32 %v3784, %v3979
    %v4006 = vmul.f32 %v3789, %v3979
    %v4007 = vmul.f32 %v3794, %v3979
    %v4008 = vmul.f32 %v3799, %v3979
    %v4009 = vmul.f32 %v3804, %v3979
    %v4010 = vmul.f32 %v3809, %v3979
    %v4011 = vmul.f32 %v3814, %v3979
    %v4012 = vmul.f32 %v3819, %v3979
    %v4013 = vmul.f32 %v3824, %v3979
    %v4014 = vmul.f32 %v3829, %v3979
    %v4015 = vmul.f32 %v3834, %v3979
    %v4016 = vmul.f32 %v3839, %v3979
    %v4017 = vmul.f32 %v3844, %v3979
    %v4018 = vmul.f32 %v3849, %v3979
    %v4019 = vmul.f32 %v3854, %v3979
    %v4020 = vmul.f32 %v3859, %v3979
    %v4021 = vmul.f32 %v3864, %v3979
    %v4022 = vmul.f32 %v3869, %v3979
    %v4023 = vmul.f32 %v3874, %v3979
    %v4024 = vmul.f32 %v3879, %v3979
    %v4025 = vmul.f32 %v3884, %v3979
    %v4026 = vmul.f32 %v3889, %v3979
    %v4027 = vmul.f32 %v3894, %v3979
    %v4028 = vmul.f32 %v3899, %v3979
    %v4029 = vmul.f32 %v3904, %v3979
    %v4030 = vmul.f32 %v3909, %v3979
    %v4031 = vmul.f32 %v3914, %v3979
    %v4032 = vmul.f32 %v3919, %v3979
    %v4033 = vmul.f32 %v3924, %v3979
    %v4034 = vmul.f32 %v3929, %v3979
    %v4035 = vmul.f32 %v3934, %v3979
    %v4036 = vmul.f32 %v3939, %v3979
    %v4037 = vmul.f32 %v3944, %v3979
    %v4038 = vmul.f32 %v3949, %v3979
    %v4039 = vmul.f32 %v3954, %v3979
    %v4040 = vmul.f32 %v3959, %v3979
    %v4041 = vmul.f32 %v3964, %v3979
    %v4042 = vmul.f32 %v3969, %v3979
    %v4043 = vmul.f32 %v3974, %v3979
    %v4044 = vadd.f32 %v3527, %v3980
    %v4045 = vadd.f32 %v3528, %v3981
    %v4046 = vadd.f32 %v3529, %v3982
    %v4047 = vadd.f32 %v3530, %v3983
    %v4048 = vadd.f32 %v3531, %v3984
    %v4049 = vadd.f32 %v3532, %v3985
    %v4050 = vadd.f32 %v3533, %v3986
    %v4051 = vadd.f32 %v3534, %v3987
    %v4052 = vadd.f32 %v3535, %v3988
    %v4053 = vadd.f32 %v3536, %v3989
    %v4054 = vadd.f32 %v3537, %v3990
    %v4055 = vadd.f32 %v3538, %v3991
    %v4056 = vadd.f32 %v3539, %v3992
    %v4057 = vadd.f32 %v3540, %v3993
    %v4058 = vadd.f32 %v3541, %v3994
    %v4059 = vadd.f32 %v3542, %v3995
    %v4060 = vadd.f32 %v3543, %v3996
    %v4061 = vadd.f32 %v3544, %v3997
    %v4062 = vadd.f32 %v3545, %v3998
    %v4063 = vadd.f32 %v3546, %v3999
    %v4064 = vadd.f32 %v3547, %v4000
    %v4065 = vadd.f32 %v3548, %v4001
    %v4066 = vadd.f32 %v3549, %v4002
    %v4067 = vadd.f32 %v3550, %v4003
    %v4068 = vadd.f32 %v3551, %v4004
    %v4069 = vadd.f32 %v3552, %v4005
    %v4070 = vadd.f32 %v3553, %v4006
    %v4071 = vadd.f32 %v3554, %v4007
    %v4072 = vadd.f32 %v3555, %v4008
    %v4073 = vadd.f32 %v3556, %v4009
    %v4074 = vadd.f32 %v3557, %v4010
    %v4075 = vadd.f32 %v3558, %v4011
    %v4076 = vadd.f32 %v3559, %v4012
    %v4077 = vadd.f32 %v3560, %v4013
    %v4078 = vadd.f32 %v3561, %v4014
    %v4079 = vadd.f32 %v3562, %v4015
    %v4080 = vadd.f32 %v3563, %v4016
    %v4081 = vadd.f32 %v3564, %v4017
    %v4082 = vadd.f32 %v3565, %v4018
    %v4083 = vadd.f32 %v3566, %v4019
    %v4084 = vadd.f32 %v3567, %v4020
    %v4085 = vadd.f32 %v3568, %v4021
    %v4086 = vadd.f32 %v3569, %v4022
    %v4087 = vadd.f32 %v3570, %v4023
    %v4088 = vadd.f32 %v3571, %v4024
    %v4089 = vadd.f32 %v3572, %v4025
    %v4090 = vadd.f32 %v3573, %v4026
    %v4091 = vadd.f32 %v3574, %v4027
    %v4092 = vadd.f32 %v3575, %v4028
    %v4093 = vadd.f32 %v3576, %v4029
    %v4094 = vadd.f32 %v3577, %v4030
    %v4095 = vadd.f32 %v3578, %v4031
    %v4096 = vadd.f32 %v3579, %v4032
    %v4097 = vadd.f32 %v3580, %v4033
    %v4098 = vadd.f32 %v3581, %v4034
    %v4099 = vadd.f32 %v3582, %v4035
    %v4100 = vadd.f32 %v3583, %v4036
    %v4101 = vadd.f32 %v3584, %v4037
    %v4102 = vadd.f32 %v3585, %v4038
    %v4103 = vadd.f32 %v3586, %v4039
    %v4104 = vadd.f32 %v3587, %v4040
    %v4105 = vadd.f32 %v3588, %v4041
    %v4106 = vadd.f32 %v3589, %v4042
    %v4107 = vadd.f32 %v3590, %v4043
    %v4108 = vld [vmem:[%s3073 + $0x2] sm:$0xff]
    %v4109 = vld [vmem:[%s3073 + $0xa] sm:$0xff]
    %v4110 = vld [vmem:[%s3073 + $0x1a] sm:$0xff]
    %v4111 = vld [vmem:[%s3073 + $0x22] sm:$0xff]
    %v4112 = vld [vmem:[%s3073 + $0x32] sm:$0xff]
    %v4113 = vld [vmem:[%s3073 + $0x3a] sm:$0xff]
    %v4114 = vld [vmem:[%s3073 + $0x4a] sm:$0xff]
    %v4115 = vld [vmem:[%s3073 + $0x52] sm:$0xff]
    %v4116 = vld [vmem:[%s3073 + $0x62] sm:$0xff]
    %v4117 = vld [vmem:[%s3073 + $0x6a] sm:$0xff]
    %v4118 = vld [vmem:[%s3073 + $0x7a] sm:$0xff]
    %v4119 = vld [vmem:[%s3073 + $0x82] sm:$0xff]
    %v4120 = vld [vmem:[%s3073 + $0x92] sm:$0xff]
    %v4121 = vld [vmem:[%s3073 + $0x9a] sm:$0xff]
    %v4122 = vld [vmem:[%s3073 + $0xaa] sm:$0xff]
    %v4123 = vld [vmem:[%s3073 + $0xb2] sm:$0xff]
    %v4124 = vld [vmem:[%s3073 + $0xc2] sm:$0xff]
    %v4125 = vld [vmem:[%s3073 + $0xca] sm:$0xff]
    %v4126 = vld [vmem:[%s3073 + $0xda] sm:$0xff]
    %v4127 = vld [vmem:[%s3073 + $0xe2] sm:$0xff]
    %v4128 = vld [vmem:[%s3073 + $0xf2] sm:$0xff]
    %v4129 = vld [vmem:[%s3073 + $0xfa] sm:$0xff]
    %v4130 = vld [vmem:[%s3073 + $0x10a] sm:$0xff]
    %v4131 = vld [vmem:[%s3073 + $0x112] sm:$0xff]
    %v4132 = vld [vmem:[%s3073 + $0x122] sm:$0xff]
    %v4133 = vld [vmem:[%s3073 + $0x12a] sm:$0xff]
    %v4134 = vld [vmem:[%s3073 + $0x13a] sm:$0xff]
    %v4135 = vld [vmem:[%s3073 + $0x142] sm:$0xff]
    %v4136 = vld [vmem:[%s3073 + $0x152] sm:$0xff]
    %v4137 = vld [vmem:[%s3073 + $0x15a] sm:$0xff]
    %v4138 = vld [vmem:[%s3073 + $0x16a] sm:$0xff]
    %v4139 = vld [vmem:[%s3073 + $0x172] sm:$0xff]
    %v4140 = vld [vmem:[%s3073 + $0x1b2] sm:$0xff]
    %v4141 = vld [vmem:[%s3073 + $0x1ba] sm:$0xff]
    %v4142 = vld [vmem:[%s3073 + $0x1ca] sm:$0xff]
    %v4143 = vld [vmem:[%s3073 + $0x1d2] sm:$0xff]
    %v4144 = vld [vmem:[%s3073 + $0x1e2] sm:$0xff]
    %v4145 = vld [vmem:[%s3073 + $0x1ea] sm:$0xff]
    %v4146 = vld [vmem:[%s3073 + $0x1fa] sm:$0xff]
    %v4147 = vld [vmem:[%s3073 + $0x202] sm:$0xff]
    %v4148 = vld [vmem:[%s3073 + $0x212] sm:$0xff]
    %v4149 = vld [vmem:[%s3073 + $0x21a] sm:$0xff]
    %v4150 = vld [vmem:[%s3073 + $0x22a] sm:$0xff]
    %v4151 = vld [vmem:[%s3073 + $0x232] sm:$0xff]
    %v4152 = vld [vmem:[%s3073 + $0x242] sm:$0xff]
    %v4153 = vld [vmem:[%s3073 + $0x24a] sm:$0xff]
    %v4154 = vld [vmem:[%s3073 + $0x25a] sm:$0xff]
    %v4155 = vld [vmem:[%s3073 + $0x262] sm:$0xff]
    %v4156 = vld [vmem:[%s3073 + $0x272] sm:$0xff]
    %v4157 = vld [vmem:[%s3073 + $0x27a] sm:$0xff]
    %v4158 = vld [vmem:[%s3073 + $0x28a] sm:$0xff]
    %v4159 = vld [vmem:[%s3073 + $0x292] sm:$0xff]
    %v4160 = vld [vmem:[%s3073 + $0x2a2] sm:$0xff]
    %v4161 = vld [vmem:[%s3073 + $0x2aa] sm:$0xff]
    %v4162 = vld [vmem:[%s3073 + $0x2ba] sm:$0xff]
    %v4163 = vld [vmem:[%s3073 + $0x2c2] sm:$0xff]
    %v4164 = vld [vmem:[%s3073 + $0x2d2] sm:$0xff]
    %v4165 = vld [vmem:[%s3073 + $0x2da] sm:$0xff]
    %v4166 = vld [vmem:[%s3073 + $0x2ea] sm:$0xff]
    %v4167 = vld [vmem:[%s3073 + $0x2f2] sm:$0xff]
    %v4168 = vld [vmem:[%s3073 + $0x302] sm:$0xff]
    %v4169 = vld [vmem:[%s3073 + $0x30a] sm:$0xff]
    %v4170 = vld [vmem:[%s3073 + $0x31a] sm:$0xff]
    %v4171 = vld [vmem:[%s3073 + $0x322] sm:$0xff]
    %v4172 = vld [vmem:[%s1 + $0x8] sm:$0x1]
    %4174 = vset.pattern.permute.xlu0 0
    %4175 = vperm.xlu0 %4174, %v4108
    %v4176 = vpop.permute.xlu0 %4175
    %4179 = vset.pattern.permute.xlu0 0
    %4180 = vperm.xlu0 %4179, %v4109
    %v4181 = vpop.permute.xlu0 %4180
    %4184 = vset.pattern.permute.xlu0 0
    %4185 = vperm.xlu0 %4184, %v4110
    %v4186 = vpop.permute.xlu0 %4185
    %4189 = vset.pattern.permute.xlu0 0
    %4190 = vperm.xlu0 %4189, %v4111
    %v4191 = vpop.permute.xlu0 %4190
    %4194 = vset.pattern.permute.xlu0 0
    %4195 = vperm.xlu0 %4194, %v4112
    %v4196 = vpop.permute.xlu0 %4195
    %4199 = vset.pattern.permute.xlu0 0
    %4200 = vperm.xlu0 %4199, %v4113
    %v4201 = vpop.permute.xlu0 %4200
    %4204 = vset.pattern.permute.xlu0 0
    %4205 = vperm.xlu0 %4204, %v4114
    %v4206 = vpop.permute.xlu0 %4205
    %4209 = vset.pattern.permute.xlu0 0
    %4210 = vperm.xlu0 %4209, %v4115
    %v4211 = vpop.permute.xlu0 %4210
    %4214 = vset.pattern.permute.xlu0 0
    %4215 = vperm.xlu0 %4214, %v4116
    %v4216 = vpop.permute.xlu0 %4215
    %4219 = vset.pattern.permute.xlu0 0
    %4220 = vperm.xlu0 %4219, %v4117
    %v4221 = vpop.permute.xlu0 %4220
    %4224 = vset.pattern.permute.xlu0 0
    %4225 = vperm.xlu0 %4224, %v4118
    %v4226 = vpop.permute.xlu0 %4225
    %4229 = vset.pattern.permute.xlu0 0
    %4230 = vperm.xlu0 %4229, %v4119
    %v4231 = vpop.permute.xlu0 %4230
    %4234 = vset.pattern.permute.xlu0 0
    %4235 = vperm.xlu0 %4234, %v4120
    %v4236 = vpop.permute.xlu0 %4235
    %4239 = vset.pattern.permute.xlu0 0
    %4240 = vperm.xlu0 %4239, %v4121
    %v4241 = vpop.permute.xlu0 %4240
    %4244 = vset.pattern.permute.xlu0 0
    %4245 = vperm.xlu0 %4244, %v4122
    %v4246 = vpop.permute.xlu0 %4245
    %4249 = vset.pattern.permute.xlu0 0
    %4250 = vperm.xlu0 %4249, %v4123
    %v4251 = vpop.permute.xlu0 %4250
    %4254 = vset.pattern.permute.xlu0 0
    %4255 = vperm.xlu0 %4254, %v4124
    %v4256 = vpop.permute.xlu0 %4255
    %4259 = vset.pattern.permute.xlu0 0
    %4260 = vperm.xlu0 %4259, %v4125
    %v4261 = vpop.permute.xlu0 %4260
    %4264 = vset.pattern.permute.xlu0 0
    %4265 = vperm.xlu0 %4264, %v4126
    %v4266 = vpop.permute.xlu0 %4265
    %4269 = vset.pattern.permute.xlu0 0
    %4270 = vperm.xlu0 %4269, %v4127
    %v4271 = vpop.permute.xlu0 %4270
    %4274 = vset.pattern.permute.xlu0 0
    %4275 = vperm.xlu0 %4274, %v4128
    %v4276 = vpop.permute.xlu0 %4275
    %4279 = vset.pattern.permute.xlu0 0
    %4280 = vperm.xlu0 %4279, %v4129
    %v4281 = vpop.permute.xlu0 %4280
    %4284 = vset.pattern.permute.xlu0 0
    %4285 = vperm.xlu0 %4284, %v4130
    %v4286 = vpop.permute.xlu0 %4285
    %4289 = vset.pattern.permute.xlu0 0
    %4290 = vperm.xlu0 %4289, %v4131
    %v4291 = vpop.permute.xlu0 %4290
    %4294 = vset.pattern.permute.xlu0 0
    %4295 = vperm.xlu0 %4294, %v4132
    %v4296 = vpop.permute.xlu0 %4295
    %4299 = vset.pattern.permute.xlu0 0
    %4300 = vperm.xlu0 %4299, %v4133
    %v4301 = vpop.permute.xlu0 %4300
    %4304 = vset.pattern.permute.xlu0 0
    %4305 = vperm.xlu0 %4304, %v4134
    %v4306 = vpop.permute.xlu0 %4305
    %4309 = vset.pattern.permute.xlu0 0
    %4310 = vperm.xlu0 %4309, %v4135
    %v4311 = vpop.permute.xlu0 %4310
    %4314 = vset.pattern.permute.xlu0 0
    %4315 = vperm.xlu0 %4314, %v4136
    %v4316 = vpop.permute.xlu0 %4315
    %4319 = vset.pattern.permute.xlu0 0
    %4320 = vperm.xlu0 %4319, %v4137
    %v4321 = vpop.permute.xlu0 %4320
    %4324 = vset.pattern.permute.xlu0 0
    %4325 = vperm.xlu0 %4324, %v4138
    %v4326 = vpop.permute.xlu0 %4325
    %4329 = vset.pattern.permute.xlu0 0
    %4330 = vperm.xlu0 %4329, %v4139
    %v4331 = vpop.permute.xlu0 %4330
    %4334 = vset.pattern.permute.xlu0 0
    %4335 = vperm.xlu0 %4334, %v4140
    %v4336 = vpop.permute.xlu0 %4335
    %4339 = vset.pattern.permute.xlu0 0
    %4340 = vperm.xlu0 %4339, %v4141
    %v4341 = vpop.permute.xlu0 %4340
    %4344 = vset.pattern.permute.xlu0 0
    %4345 = vperm.xlu0 %4344, %v4142
    %v4346 = vpop.permute.xlu0 %4345
    %4349 = vset.pattern.permute.xlu0 0
    %4350 = vperm.xlu0 %4349, %v4143
    %v4351 = vpop.permute.xlu0 %4350
    %4354 = vset.pattern.permute.xlu0 0
    %4355 = vperm.xlu0 %4354, %v4144
    %v4356 = vpop.permute.xlu0 %4355
    %4359 = vset.pattern.permute.xlu0 0
    %4360 = vperm.xlu0 %4359, %v4145
    %v4361 = vpop.permute.xlu0 %4360
    %4364 = vset.pattern.permute.xlu0 0
    %4365 = vperm.xlu0 %4364, %v4146
    %v4366 = vpop.permute.xlu0 %4365
    %4369 = vset.pattern.permute.xlu0 0
    %4370 = vperm.xlu0 %4369, %v4147
    %v4371 = vpop.permute.xlu0 %4370
    %4374 = vset.pattern.permute.xlu0 0
    %4375 = vperm.xlu0 %4374, %v4148
    %v4376 = vpop.permute.xlu0 %4375
    %4379 = vset.pattern.permute.xlu0 0
    %4380 = vperm.xlu0 %4379, %v4149
    %v4381 = vpop.permute.xlu0 %4380
    %4384 = vset.pattern.permute.xlu0 0
    %4385 = vperm.xlu0 %4384, %v4150
    %v4386 = vpop.permute.xlu0 %4385
    %4389 = vset.pattern.permute.xlu0 0
    %4390 = vperm.xlu0 %4389, %v4151
    %v4391 = vpop.permute.xlu0 %4390
    %4394 = vset.pattern.permute.xlu0 0
    %4395 = vperm.xlu0 %4394, %v4152
    %v4396 = vpop.permute.xlu0 %4395
    %4399 = vset.pattern.permute.xlu0 0
    %4400 = vperm.xlu0 %4399, %v4153
    %v4401 = vpop.permute.xlu0 %4400
    %4404 = vset.pattern.permute.xlu0 0
    %4405 = vperm.xlu0 %4404, %v4154
    %v4406 = vpop.permute.xlu0 %4405
    %4409 = vset.pattern.permute.xlu0 0
    %4410 = vperm.xlu0 %4409, %v4155
    %v4411 = vpop.permute.xlu0 %4410
    %4414 = vset.pattern.permute.xlu0 0
    %4415 = vperm.xlu0 %4414, %v4156
    %v4416 = vpop.permute.xlu0 %4415
    %4419 = vset.pattern.permute.xlu0 0
    %4420 = vperm.xlu0 %4419, %v4157
    %v4421 = vpop.permute.xlu0 %4420
    %4424 = vset.pattern.permute.xlu0 0
    %4425 = vperm.xlu0 %4424, %v4158
    %v4426 = vpop.permute.xlu0 %4425
    %4429 = vset.pattern.permute.xlu0 0
    %4430 = vperm.xlu0 %4429, %v4159
    %v4431 = vpop.permute.xlu0 %4430
    %4434 = vset.pattern.permute.xlu0 0
    %4435 = vperm.xlu0 %4434, %v4160
    %v4436 = vpop.permute.xlu0 %4435
    %4439 = vset.pattern.permute.xlu0 0
    %4440 = vperm.xlu0 %4439, %v4161
    %v4441 = vpop.permute.xlu0 %4440
    %4444 = vset.pattern.permute.xlu0 0
    %4445 = vperm.xlu0 %4444, %v4162
    %v4446 = vpop.permute.xlu0 %4445
    %4449 = vset.pattern.permute.xlu0 0
    %4450 = vperm.xlu0 %4449, %v4163
    %v4451 = vpop.permute.xlu0 %4450
    %4454 = vset.pattern.permute.xlu0 0
    %4455 = vperm.xlu0 %4454, %v4164
    %v4456 = vpop.permute.xlu0 %4455
    %4459 = vset.pattern.permute.xlu0 0
    %4460 = vperm.xlu0 %4459, %v4165
    %v4461 = vpop.permute.xlu0 %4460
    %4464 = vset.pattern.permute.xlu0 0
    %4465 = vperm.xlu0 %4464, %v4166
    %v4466 = vpop.permute.xlu0 %4465
    %4469 = vset.pattern.permute.xlu0 0
    %4470 = vperm.xlu0 %4469, %v4167
    %v4471 = vpop.permute.xlu0 %4470
    %4474 = vset.pattern.permute.xlu0 0
    %4475 = vperm.xlu0 %4474, %v4168
    %v4476 = vpop.permute.xlu0 %4475
    %4479 = vset.pattern.permute.xlu0 0
    %4480 = vperm.xlu0 %4479, %v4169
    %v4481 = vpop.permute.xlu0 %4480
    %4484 = vset.pattern.permute.xlu0 0
    %4485 = vperm.xlu0 %4484, %v4170
    %v4486 = vpop.permute.xlu0 %4485
    %4489 = vset.pattern.permute.xlu0 0
    %4490 = vperm.xlu0 %4489, %v4171
    %v4491 = vpop.permute.xlu0 %4490
    %v4493 = vlaneseq
    %v4494 = vshrl.u32 %v4493, 7
    %v4495 = vsub.s32 0, %v4494
    %v4496 = vrot.slane %v4172, %v4495
    %v4497 = vmul.f32 %v4176, %v4496
    %v4498 = vmul.f32 %v4181, %v4496
    %v4499 = vmul.f32 %v4186, %v4496
    %v4500 = vmul.f32 %v4191, %v4496
    %v4501 = vmul.f32 %v4196, %v4496
    %v4502 = vmul.f32 %v4201, %v4496
    %v4503 = vmul.f32 %v4206, %v4496
    %v4504 = vmul.f32 %v4211, %v4496
    %v4505 = vmul.f32 %v4216, %v4496
    %v4506 = vmul.f32 %v4221, %v4496
    %v4507 = vmul.f32 %v4226, %v4496
    %v4508 = vmul.f32 %v4231, %v4496
    %v4509 = vmul.f32 %v4236, %v4496
    %v4510 = vmul.f32 %v4241, %v4496
    %v4511 = vmul.f32 %v4246, %v4496
    %v4512 = vmul.f32 %v4251, %v4496
    %v4513 = vmul.f32 %v4256, %v4496
    %v4514 = vmul.f32 %v4261, %v4496
    %v4515 = vmul.f32 %v4266, %v4496
    %v4516 = vmul.f32 %v4271, %v4496
    %v4517 = vmul.f32 %v4276, %v4496
    %v4518 = vmul.f32 %v4281, %v4496
    %v4519 = vmul.f32 %v4286, %v4496
    %v4520 = vmul.f32 %v4291, %v4496
    %v4521 = vmul.f32 %v4296, %v4496
    %v4522 = vmul.f32 %v4301, %v4496
    %v4523 = vmul.f32 %v4306, %v4496
    %v4524 = vmul.f32 %v4311, %v4496
    %v4525 = vmul.f32 %v4316, %v4496
    %v4526 = vmul.f32 %v4321, %v4496
    %v4527 = vmul.f32 %v4326, %v4496
    %v4528 = vmul.f32 %v4331, %v4496
    %v4529 = vmul.f32 %v4336, %v4496
    %v4530 = vmul.f32 %v4341, %v4496
    %v4531 = vmul.f32 %v4346, %v4496
    %v4532 = vmul.f32 %v4351, %v4496
    %v4533 = vmul.f32 %v4356, %v4496
    %v4534 = vmul.f32 %v4361, %v4496
    %v4535 = vmul.f32 %v4366, %v4496
    %v4536 = vmul.f32 %v4371, %v4496
    %v4537 = vmul.f32 %v4376, %v4496
    %v4538 = vmul.f32 %v4381, %v4496
    %v4539 = vmul.f32 %v4386, %v4496
    %v4540 = vmul.f32 %v4391, %v4496
    %v4541 = vmul.f32 %v4396, %v4496
    %v4542 = vmul.f32 %v4401, %v4496
    %v4543 = vmul.f32 %v4406, %v4496
    %v4544 = vmul.f32 %v4411, %v4496
    %v4545 = vmul.f32 %v4416, %v4496
    %v4546 = vmul.f32 %v4421, %v4496
    %v4547 = vmul.f32 %v4426, %v4496
    %v4548 = vmul.f32 %v4431, %v4496
    %v4549 = vmul.f32 %v4436, %v4496
    %v4550 = vmul.f32 %v4441, %v4496
    %v4551 = vmul.f32 %v4446, %v4496
    %v4552 = vmul.f32 %v4451, %v4496
    %v4553 = vmul.f32 %v4456, %v4496
    %v4554 = vmul.f32 %v4461, %v4496
    %v4555 = vmul.f32 %v4466, %v4496
    %v4556 = vmul.f32 %v4471, %v4496
    %v4557 = vmul.f32 %v4476, %v4496
    %v4558 = vmul.f32 %v4481, %v4496
    %v4559 = vmul.f32 %v4486, %v4496
    %v4560 = vmul.f32 %v4491, %v4496
    %v4561 = vadd.f32 %v4044, %v4497
    %v4562 = vadd.f32 %v4045, %v4498
    %v4563 = vadd.f32 %v4046, %v4499
    %v4564 = vadd.f32 %v4047, %v4500
    %v4565 = vadd.f32 %v4048, %v4501
    %v4566 = vadd.f32 %v4049, %v4502
    %v4567 = vadd.f32 %v4050, %v4503
    %v4568 = vadd.f32 %v4051, %v4504
    %v4569 = vadd.f32 %v4052, %v4505
    %v4570 = vadd.f32 %v4053, %v4506
    %v4571 = vadd.f32 %v4054, %v4507
    %v4572 = vadd.f32 %v4055, %v4508
    %v4573 = vadd.f32 %v4056, %v4509
    %v4574 = vadd.f32 %v4057, %v4510
    %v4575 = vadd.f32 %v4058, %v4511
    %v4576 = vadd.f32 %v4059, %v4512
    %v4577 = vadd.f32 %v4060, %v4513
    %v4578 = vadd.f32 %v4061, %v4514
    %v4579 = vadd.f32 %v4062, %v4515
    %v4580 = vadd.f32 %v4063, %v4516
    %v4581 = vadd.f32 %v4064, %v4517
    %v4582 = vadd.f32 %v4065, %v4518
    %v4583 = vadd.f32 %v4066, %v4519
    %v4584 = vadd.f32 %v4067, %v4520
    %v4585 = vadd.f32 %v4068, %v4521
    %v4586 = vadd.f32 %v4069, %v4522
    %v4587 = vadd.f32 %v4070, %v4523
    %v4588 = vadd.f32 %v4071, %v4524
    %v4589 = vadd.f32 %v4072, %v4525
    %v4590 = vadd.f32 %v4073, %v4526
    %v4591 = vadd.f32 %v4074, %v4527
    %v4592 = vadd.f32 %v4075, %v4528
    %v4593 = vadd.f32 %v4076, %v4529
    %v4594 = vadd.f32 %v4077, %v4530
    %v4595 = vadd.f32 %v4078, %v4531
    %v4596 = vadd.f32 %v4079, %v4532
    %v4597 = vadd.f32 %v4080, %v4533
    %v4598 = vadd.f32 %v4081, %v4534
    %v4599 = vadd.f32 %v4082, %v4535
    %v4600 = vadd.f32 %v4083, %v4536
    %v4601 = vadd.f32 %v4084, %v4537
    %v4602 = vadd.f32 %v4085, %v4538
    %v4603 = vadd.f32 %v4086, %v4539
    %v4604 = vadd.f32 %v4087, %v4540
    %v4605 = vadd.f32 %v4088, %v4541
    %v4606 = vadd.f32 %v4089, %v4542
    %v4607 = vadd.f32 %v4090, %v4543
    %v4608 = vadd.f32 %v4091, %v4544
    %v4609 = vadd.f32 %v4092, %v4545
    %v4610 = vadd.f32 %v4093, %v4546
    %v4611 = vadd.f32 %v4094, %v4547
    %v4612 = vadd.f32 %v4095, %v4548
    %v4613 = vadd.f32 %v4096, %v4549
    %v4614 = vadd.f32 %v4097, %v4550
    %v4615 = vadd.f32 %v4098, %v4551
    %v4616 = vadd.f32 %v4099, %v4552
    %v4617 = vadd.f32 %v4100, %v4553
    %v4618 = vadd.f32 %v4101, %v4554
    %v4619 = vadd.f32 %v4102, %v4555
    %v4620 = vadd.f32 %v4103, %v4556
    %v4621 = vadd.f32 %v4104, %v4557
    %v4622 = vadd.f32 %v4105, %v4558
    %v4623 = vadd.f32 %v4106, %v4559
    %v4624 = vadd.f32 %v4107, %v4560
    %v4625 = vld [vmem:[%s2] sm:$0x1]
    %v4627 = vlaneseq
    %v4628 = vshrl.u32 %v4627, 7
    %v4629 = vsub.s32 0, %v4628
    %v4630 = vrot.slane %v4625, %v4629
    %v4632 = vadd.f32 %v4561, %v4630
    %v4633 = vadd.f32 %v4562, %v4630
    %v4634 = vadd.f32 %v4563, %v4630
    %v4635 = vadd.f32 %v4564, %v4630
    %v4636 = vadd.f32 %v4565, %v4630
    %v4637 = vadd.f32 %v4566, %v4630
    %v4638 = vadd.f32 %v4567, %v4630
    %v4639 = vadd.f32 %v4568, %v4630
    %v4640 = vadd.f32 %v4569, %v4630
    %v4641 = vadd.f32 %v4570, %v4630
    %v4642 = vadd.f32 %v4571, %v4630
    %v4643 = vadd.f32 %v4572, %v4630
    %v4644 = vadd.f32 %v4573, %v4630
    %v4645 = vadd.f32 %v4574, %v4630
    %v4646 = vadd.f32 %v4575, %v4630
    %v4647 = vadd.f32 %v4576, %v4630
    %v4648 = vadd.f32 %v4577, %v4630
    %v4649 = vadd.f32 %v4578, %v4630
    %v4650 = vadd.f32 %v4579, %v4630
    %v4651 = vadd.f32 %v4580, %v4630
    %v4652 = vadd.f32 %v4581, %v4630
    %v4653 = vadd.f32 %v4582, %v4630
    %v4654 = vadd.f32 %v4583, %v4630
    %v4655 = vadd.f32 %v4584, %v4630
    %v4656 = vadd.f32 %v4585, %v4630
    %v4657 = vadd.f32 %v4586, %v4630
    %v4658 = vadd.f32 %v4587, %v4630
    %v4659 = vadd.f32 %v4588, %v4630
    %v4660 = vadd.f32 %v4589, %v4630
    %v4661 = vadd.f32 %v4590, %v4630
    %v4662 = vadd.f32 %v4591, %v4630
    %v4663 = vadd.f32 %v4592, %v4630
    %v4664 = vadd.f32 %v4593, %v4630
    %v4665 = vadd.f32 %v4594, %v4630
    %v4666 = vadd.f32 %v4595, %v4630
    %v4667 = vadd.f32 %v4596, %v4630
    %v4668 = vadd.f32 %v4597, %v4630
    %v4669 = vadd.f32 %v4598, %v4630
    %v4670 = vadd.f32 %v4599, %v4630
    %v4671 = vadd.f32 %v4600, %v4630
    %v4672 = vadd.f32 %v4601, %v4630
    %v4673 = vadd.f32 %v4602, %v4630
    %v4674 = vadd.f32 %v4603, %v4630
    %v4675 = vadd.f32 %v4604, %v4630
    %v4676 = vadd.f32 %v4605, %v4630
    %v4677 = vadd.f32 %v4606, %v4630
    %v4678 = vadd.f32 %v4607, %v4630
    %v4679 = vadd.f32 %v4608, %v4630
    %v4680 = vadd.f32 %v4609, %v4630
    %v4681 = vadd.f32 %v4610, %v4630
    %v4682 = vadd.f32 %v4611, %v4630
    %v4683 = vadd.f32 %v4612, %v4630
    %v4684 = vadd.f32 %v4613, %v4630
    %v4685 = vadd.f32 %v4614, %v4630
    %v4686 = vadd.f32 %v4615, %v4630
    %v4687 = vadd.f32 %v4616, %v4630
    %v4688 = vadd.f32 %v4617, %v4630
    %v4689 = vadd.f32 %v4618, %v4630
    %v4690 = vadd.f32 %v4619, %v4630
    %v4691 = vadd.f32 %v4620, %v4630
    %v4692 = vadd.f32 %v4621, %v4630
    %v4693 = vadd.f32 %v4622, %v4630
    %v4694 = vadd.f32 %v4623, %v4630
    %v4695 = vadd.f32 %v4624, %v4630
    %v4696 = vmax.f32 %v4632, 0.0
    %v4697 = vmax.f32 %v4633, 0.0
    %v4698 = vmax.f32 %v4634, 0.0
    %v4699 = vmax.f32 %v4635, 0.0
    %v4700 = vmax.f32 %v4636, 0.0
    %v4701 = vmax.f32 %v4637, 0.0
    %v4702 = vmax.f32 %v4638, 0.0
    %v4703 = vmax.f32 %v4639, 0.0
    %v4704 = vmax.f32 %v4640, 0.0
    %v4705 = vmax.f32 %v4641, 0.0
    %v4706 = vmax.f32 %v4642, 0.0
    %v4707 = vmax.f32 %v4643, 0.0
    %v4708 = vmax.f32 %v4644, 0.0
    %v4709 = vmax.f32 %v4645, 0.0
    %v4710 = vmax.f32 %v4646, 0.0
    %v4711 = vmax.f32 %v4647, 0.0
    %v4712 = vmax.f32 %v4648, 0.0
    %v4713 = vmax.f32 %v4649, 0.0
    %v4714 = vmax.f32 %v4650, 0.0
    %v4715 = vmax.f32 %v4651, 0.0
    %v4716 = vmax.f32 %v4652, 0.0
    %v4717 = vmax.f32 %v4653, 0.0
    %v4718 = vmax.f32 %v4654, 0.0
    %v4719 = vmax.f32 %v4655, 0.0
    %v4720 = vmax.f32 %v4656, 0.0
    %v4721 = vmax.f32 %v4657, 0.0
    %v4722 = vmax.f32 %v4658, 0.0
    %v4723 = vmax.f32 %v4659, 0.0
    %v4724 = vmax.f32 %v4660, 0.0
    %v4725 = vmax.f32 %v4661, 0.0
    %v4726 = vmax.f32 %v4662, 0.0
    %v4727 = vmax.f32 %v4663, 0.0
    %v4728 = vmax.f32 %v4664, 0.0
    %v4729 = vmax.f32 %v4665, 0.0
    %v4730 = vmax.f32 %v4666, 0.0
    %v4731 = vmax.f32 %v4667, 0.0
    %v4732 = vmax.f32 %v4668, 0.0
    %v4733 = vmax.f32 %v4669, 0.0
    %v4734 = vmax.f32 %v4670, 0.0
    %v4735 = vmax.f32 %v4671, 0.0
    %v4736 = vmax.f32 %v4672, 0.0
    %v4737 = vmax.f32 %v4673, 0.0
    %v4738 = vmax.f32 %v4674, 0.0
    %v4739 = vmax.f32 %v4675, 0.0
    %v4740 = vmax.f32 %v4676, 0.0
    %v4741 = vmax.f32 %v4677, 0.0
    %v4742 = vmax.f32 %v4678, 0.0
    %v4743 = vmax.f32 %v4679, 0.0
    %v4744 = vmax.f32 %v4680, 0.0
    %v4745 = vmax.f32 %v4681, 0.0
    %v4746 = vmax.f32 %v4682, 0.0
    %v4747 = vmax.f32 %v4683, 0.0
    %v4748 = vmax.f32 %v4684, 0.0
    %v4749 = vmax.f32 %v4685, 0.0
    %v4750 = vmax.f32 %v4686, 0.0
    %v4751 = vmax.f32 %v4687, 0.0
    %v4752 = vmax.f32 %v4688, 0.0
    %v4753 = vmax.f32 %v4689, 0.0
    %v4754 = vmax.f32 %v4690, 0.0
    %v4755 = vmax.f32 %v4691, 0.0
    %v4756 = vmax.f32 %v4692, 0.0
    %v4757 = vmax.f32 %v4693, 0.0
    %v4758 = vmax.f32 %v4694, 0.0
    %v4759 = vmax.f32 %v4695, 0.0
    %v4760 = vmax.f32 %v4696, %v4698
    %v4761 = vmax.f32 %v4697, %v4699
    %v4762 = vmax.f32 %v4700, %v4702
    %v4763 = vmax.f32 %v4701, %v4703
    %v4764 = vmax.f32 %v4704, %v4706
    %v4765 = vmax.f32 %v4705, %v4707
    %v4766 = vmax.f32 %v4708, %v4710
    %v4767 = vmax.f32 %v4709, %v4711
    %v4768 = vmax.f32 %v4712, %v4714
    %v4769 = vmax.f32 %v4713, %v4715
    %v4770 = vmax.f32 %v4716, %v4718
    %v4771 = vmax.f32 %v4717, %v4719
    %v4772 = vmax.f32 %v4720, %v4722
    %v4773 = vmax.f32 %v4721, %v4723
    %v4774 = vmax.f32 %v4724, %v4726
    %v4775 = vmax.f32 %v4725, %v4727
    %v4776 = vmax.f32 %v4728, %v4730
    %v4777 = vmax.f32 %v4729, %v4731
    %v4778 = vmax.f32 %v4732, %v4734
    %v4779 = vmax.f32 %v4733, %v4735
    %v4780 = vmax.f32 %v4736, %v4738
    %v4781 = vmax.f32 %v4737, %v4739
    %v4782 = vmax.f32 %v4740, %v4742
    %v4783 = vmax.f32 %v4741, %v4743
    %v4784 = vmax.f32 %v4744, %v4746
    %v4785 = vmax.f32 %v4745, %v4747
    %v4786 = vmax.f32 %v4748, %v4750
    %v4787 = vmax.f32 %v4749, %v4751
    %v4788 = vmax.f32 %v4752, %v4754
    %v4789 = vmax.f32 %v4753, %v4755
    %v4790 = vmax.f32 %v4756, %v4758
    %v4791 = vmax.f32 %v4757, %v4759
    %v4824 = vcombine.high %v4760, %v4760
    %v4826 = vunpack.c.l.s4 1983009808
    %v4827 = vunpack.c.0.s8 %v4826
    %v4828 = vlaneseq
    %v4829 = vshrl.u32 %v4828, 7
    %v4830 = vsub.s32 %v4827, %v4829
    %v4831 = vrot.slane %v4760, %v4830
    %v4833 = vunpack.c.l.s4 1983009808
    %v4834 = vunpack.c.0.s8 %v4833
    %v4835 = vlaneseq
    %v4836 = vshrl.u32 %v4835, 7
    %v4837 = vsub.s32 %v4834, %v4836
    %v4838 = vrot.slane %v4824, %v4837
    %v4839 = vcombine.high %v4831, %v4831
    %v4840 = vcombine.high %v4838, %v4838
    %v4841 = vcombine.high %v4761, %v4761
    %v4843 = vunpack.c.l.s4 1983009808
    %v4844 = vunpack.c.0.s8 %v4843
    %v4845 = vlaneseq
    %v4846 = vshrl.u32 %v4845, 7
    %v4847 = vsub.s32 %v4844, %v4846
    %v4848 = vrot.slane %v4761, %v4847
    %v4850 = vunpack.c.l.s4 1983009808
    %v4851 = vunpack.c.0.s8 %v4850
    %v4852 = vlaneseq
    %v4853 = vshrl.u32 %v4852, 7
    %v4854 = vsub.s32 %v4851, %v4853
    %v4855 = vrot.slane %v4841, %v4854
    %v4856 = vcombine.high %v4848, %v4848
    %v4857 = vcombine.high %v4855, %v4855
    %v4858 = vcombine.high %v4762, %v4762
    %v4860 = vunpack.c.l.s4 1983009808
    %v4861 = vunpack.c.0.s8 %v4860
    %v4862 = vlaneseq
    %v4863 = vshrl.u32 %v4862, 7
    %v4864 = vsub.s32 %v4861, %v4863
    %v4865 = vrot.slane %v4762, %v4864
    %v4867 = vunpack.c.l.s4 1983009808
    %v4868 = vunpack.c.0.s8 %v4867
    %v4869 = vlaneseq
    %v4870 = vshrl.u32 %v4869, 7
    %v4871 = vsub.s32 %v4868, %v4870
    %v4872 = vrot.slane %v4858, %v4871
    %v4873 = vcombine.high %v4865, %v4865
    %v4874 = vcombine.high %v4872, %v4872
    %v4875 = vcombine.high %v4763, %v4763
    %v4877 = vunpack.c.l.s4 1983009808
    %v4878 = vunpack.c.0.s8 %v4877
    %v4879 = vlaneseq
    %v4880 = vshrl.u32 %v4879, 7
    %v4881 = vsub.s32 %v4878, %v4880
    %v4882 = vrot.slane %v4763, %v4881
    %v4884 = vunpack.c.l.s4 1983009808
    %v4885 = vunpack.c.0.s8 %v4884
    %v4886 = vlaneseq
    %v4887 = vshrl.u32 %v4886, 7
    %v4888 = vsub.s32 %v4885, %v4887
    %v4889 = vrot.slane %v4875, %v4888
    %v4890 = vcombine.high %v4882, %v4882
    %v4891 = vcombine.high %v4889, %v4889
    %v4892 = vcombine.high %v4764, %v4764
    %v4894 = vunpack.c.l.s4 1983009808
    %v4895 = vunpack.c.0.s8 %v4894
    %v4896 = vlaneseq
    %v4897 = vshrl.u32 %v4896, 7
    %v4898 = vsub.s32 %v4895, %v4897
    %v4899 = vrot.slane %v4764, %v4898
    %v4901 = vunpack.c.l.s4 1983009808
    %v4902 = vunpack.c.0.s8 %v4901
    %v4903 = vlaneseq
    %v4904 = vshrl.u32 %v4903, 7
    %v4905 = vsub.s32 %v4902, %v4904
    %v4906 = vrot.slane %v4892, %v4905
    %v4907 = vcombine.high %v4899, %v4899
    %v4908 = vcombine.high %v4906, %v4906
    %v4909 = vcombine.high %v4765, %v4765
    %v4911 = vunpack.c.l.s4 1983009808
    %v4912 = vunpack.c.0.s8 %v4911
    %v4913 = vlaneseq
    %v4914 = vshrl.u32 %v4913, 7
    %v4915 = vsub.s32 %v4912, %v4914
    %v4916 = vrot.slane %v4765, %v4915
    %v4918 = vunpack.c.l.s4 1983009808
    %v4919 = vunpack.c.0.s8 %v4918
    %v4920 = vlaneseq
    %v4921 = vshrl.u32 %v4920, 7
    %v4922 = vsub.s32 %v4919, %v4921
    %v4923 = vrot.slane %v4909, %v4922
    %v4924 = vcombine.high %v4916, %v4916
    %v4925 = vcombine.high %v4923, %v4923
    %v4926 = vcombine.high %v4766, %v4766
    %v4928 = vunpack.c.l.s4 1983009808
    %v4929 = vunpack.c.0.s8 %v4928
    %v4930 = vlaneseq
    %v4931 = vshrl.u32 %v4930, 7
    %v4932 = vsub.s32 %v4929, %v4931
    %v4933 = vrot.slane %v4766, %v4932
    %v4935 = vunpack.c.l.s4 1983009808
    %v4936 = vunpack.c.0.s8 %v4935
    %v4937 = vlaneseq
    %v4938 = vshrl.u32 %v4937, 7
    %v4939 = vsub.s32 %v4936, %v4938
    %v4940 = vrot.slane %v4926, %v4939
    %v4941 = vcombine.high %v4933, %v4933
    %v4942 = vcombine.high %v4940, %v4940
    %v4943 = vcombine.high %v4767, %v4767
    %v4945 = vunpack.c.l.s4 1983009808
    %v4946 = vunpack.c.0.s8 %v4945
    %v4947 = vlaneseq
    %v4948 = vshrl.u32 %v4947, 7
    %v4949 = vsub.s32 %v4946, %v4948
    %v4950 = vrot.slane %v4767, %v4949
    %v4952 = vunpack.c.l.s4 1983009808
    %v4953 = vunpack.c.0.s8 %v4952
    %v4954 = vlaneseq
    %v4955 = vshrl.u32 %v4954, 7
    %v4956 = vsub.s32 %v4953, %v4955
    %v4957 = vrot.slane %v4943, %v4956
    %v4958 = vcombine.high %v4950, %v4950
    %v4959 = vcombine.high %v4957, %v4957
    %v4960 = vcombine.high %v4768, %v4768
    %v4962 = vunpack.c.l.s4 1983009808
    %v4963 = vunpack.c.0.s8 %v4962
    %v4964 = vlaneseq
    %v4965 = vshrl.u32 %v4964, 7
    %v4966 = vsub.s32 %v4963, %v4965
    %v4967 = vrot.slane %v4768, %v4966
    %v4969 = vunpack.c.l.s4 1983009808
    %v4970 = vunpack.c.0.s8 %v4969
    %v4971 = vlaneseq
    %v4972 = vshrl.u32 %v4971, 7
    %v4973 = vsub.s32 %v4970, %v4972
    %v4974 = vrot.slane %v4960, %v4973
    %v4975 = vcombine.high %v4967, %v4967
    %v4976 = vcombine.high %v4974, %v4974
    %v4977 = vcombine.high %v4769, %v4769
    %v4979 = vunpack.c.l.s4 1983009808
    %v4980 = vunpack.c.0.s8 %v4979
    %v4981 = vlaneseq
    %v4982 = vshrl.u32 %v4981, 7
    %v4983 = vsub.s32 %v4980, %v4982
    %v4984 = vrot.slane %v4769, %v4983
    %v4986 = vunpack.c.l.s4 1983009808
    %v4987 = vunpack.c.0.s8 %v4986
    %v4988 = vlaneseq
    %v4989 = vshrl.u32 %v4988, 7
    %v4990 = vsub.s32 %v4987, %v4989
    %v4991 = vrot.slane %v4977, %v4990
    %v4992 = vcombine.high %v4984, %v4984
    %v4993 = vcombine.high %v4991, %v4991
    %v4994 = vcombine.high %v4770, %v4770
    %v4996 = vunpack.c.l.s4 1983009808
    %v4997 = vunpack.c.0.s8 %v4996
    %v4998 = vlaneseq
    %v4999 = vshrl.u32 %v4998, 7
    %v5000 = vsub.s32 %v4997, %v4999
    %v5001 = vrot.slane %v4770, %v5000
    %v5003 = vunpack.c.l.s4 1983009808
    %v5004 = vunpack.c.0.s8 %v5003
    %v5005 = vlaneseq
    %v5006 = vshrl.u32 %v5005, 7
    %v5007 = vsub.s32 %v5004, %v5006
    %v5008 = vrot.slane %v4994, %v5007
    %v5009 = vcombine.high %v5001, %v5001
    %v5010 = vcombine.high %v5008, %v5008
    %v5011 = vcombine.high %v4771, %v4771
    %v5013 = vunpack.c.l.s4 1983009808
    %v5014 = vunpack.c.0.s8 %v5013
    %v5015 = vlaneseq
    %v5016 = vshrl.u32 %v5015, 7
    %v5017 = vsub.s32 %v5014, %v5016
    %v5018 = vrot.slane %v4771, %v5017
    %v5020 = vunpack.c.l.s4 1983009808
    %v5021 = vunpack.c.0.s8 %v5020
    %v5022 = vlaneseq
    %v5023 = vshrl.u32 %v5022, 7
    %v5024 = vsub.s32 %v5021, %v5023
    %v5025 = vrot.slane %v5011, %v5024
    %v5026 = vcombine.high %v5018, %v5018
    %v5027 = vcombine.high %v5025, %v5025
    %v5028 = vcombine.high %v4772, %v4772
    %v5030 = vunpack.c.l.s4 1983009808
    %v5031 = vunpack.c.0.s8 %v5030
    %v5032 = vlaneseq
    %v5033 = vshrl.u32 %v5032, 7
    %v5034 = vsub.s32 %v5031, %v5033
    %v5035 = vrot.slane %v4772, %v5034
    %v5037 = vunpack.c.l.s4 1983009808
    %v5038 = vunpack.c.0.s8 %v5037
    %v5039 = vlaneseq
    %v5040 = vshrl.u32 %v5039, 7
    %v5041 = vsub.s32 %v5038, %v5040
    %v5042 = vrot.slane %v5028, %v5041
    %v5043 = vcombine.high %v5035, %v5035
    %v5044 = vcombine.high %v5042, %v5042
    %v5045 = vcombine.high %v4773, %v4773
    %v5047 = vunpack.c.l.s4 1983009808
    %v5048 = vunpack.c.0.s8 %v5047
    %v5049 = vlaneseq
    %v5050 = vshrl.u32 %v5049, 7
    %v5051 = vsub.s32 %v5048, %v5050
    %v5052 = vrot.slane %v4773, %v5051
    %v5054 = vunpack.c.l.s4 1983009808
    %v5055 = vunpack.c.0.s8 %v5054
    %v5056 = vlaneseq
    %v5057 = vshrl.u32 %v5056, 7
    %v5058 = vsub.s32 %v5055, %v5057
    %v5059 = vrot.slane %v5045, %v5058
    %v5060 = vcombine.high %v5052, %v5052
    %v5061 = vcombine.high %v5059, %v5059
    %v5062 = vcombine.high %v4774, %v4774
    %v5064 = vunpack.c.l.s4 1983009808
    %v5065 = vunpack.c.0.s8 %v5064
    %v5066 = vlaneseq
    %v5067 = vshrl.u32 %v5066, 7
    %v5068 = vsub.s32 %v5065, %v5067
    %v5069 = vrot.slane %v4774, %v5068
    %v5071 = vunpack.c.l.s4 1983009808
    %v5072 = vunpack.c.0.s8 %v5071
    %v5073 = vlaneseq
    %v5074 = vshrl.u32 %v5073, 7
    %v5075 = vsub.s32 %v5072, %v5074
    %v5076 = vrot.slane %v5062, %v5075
    %v5077 = vcombine.high %v5069, %v5069
    %v5078 = vcombine.high %v5076, %v5076
    %v5079 = vcombine.high %v4775, %v4775
    %v5081 = vunpack.c.l.s4 1983009808
    %v5082 = vunpack.c.0.s8 %v5081
    %v5083 = vlaneseq
    %v5084 = vshrl.u32 %v5083, 7
    %v5085 = vsub.s32 %v5082, %v5084
    %v5086 = vrot.slane %v4775, %v5085
    %v5088 = vunpack.c.l.s4 1983009808
    %v5089 = vunpack.c.0.s8 %v5088
    %v5090 = vlaneseq
    %v5091 = vshrl.u32 %v5090, 7
    %v5092 = vsub.s32 %v5089, %v5091
    %v5093 = vrot.slane %v5079, %v5092
    %v5094 = vcombine.high %v5086, %v5086
    %v5095 = vcombine.high %v5093, %v5093
    %v5096 = vcombine.high %v4776, %v4776
    %v5098 = vunpack.c.l.s4 1983009808
    %v5099 = vunpack.c.0.s8 %v5098
    %v5100 = vlaneseq
    %v5101 = vshrl.u32 %v5100, 7
    %v5102 = vsub.s32 %v5099, %v5101
    %v5103 = vrot.slane %v4776, %v5102
    %v5105 = vunpack.c.l.s4 1983009808
    %v5106 = vunpack.c.0.s8 %v5105
    %v5107 = vlaneseq
    %v5108 = vshrl.u32 %v5107, 7
    %v5109 = vsub.s32 %v5106, %v5108
    %v5110 = vrot.slane %v5096, %v5109
    %v5111 = vcombine.high %v5103, %v5103
    %v5112 = vcombine.high %v5110, %v5110
    %v5113 = vcombine.high %v4777, %v4777
    %v5115 = vunpack.c.l.s4 1983009808
    %v5116 = vunpack.c.0.s8 %v5115
    %v5117 = vlaneseq
    %v5118 = vshrl.u32 %v5117, 7
    %v5119 = vsub.s32 %v5116, %v5118
    %v5120 = vrot.slane %v4777, %v5119
    %v5122 = vunpack.c.l.s4 1983009808
    %v5123 = vunpack.c.0.s8 %v5122
    %v5124 = vlaneseq
    %v5125 = vshrl.u32 %v5124, 7
    %v5126 = vsub.s32 %v5123, %v5125
    %v5127 = vrot.slane %v5113, %v5126
    %v5128 = vcombine.high %v5120, %v5120
    %v5129 = vcombine.high %v5127, %v5127
    %v5130 = vcombine.high %v4778, %v4778
    %v5132 = vunpack.c.l.s4 1983009808
    %v5133 = vunpack.c.0.s8 %v5132
    %v5134 = vlaneseq
    %v5135 = vshrl.u32 %v5134, 7
    %v5136 = vsub.s32 %v5133, %v5135
    %v5137 = vrot.slane %v4778, %v5136
    %v5139 = vunpack.c.l.s4 1983009808
    %v5140 = vunpack.c.0.s8 %v5139
    %v5141 = vlaneseq
    %v5142 = vshrl.u32 %v5141, 7
    %v5143 = vsub.s32 %v5140, %v5142
    %v5144 = vrot.slane %v5130, %v5143
    %v5145 = vcombine.high %v5137, %v5137
    %v5146 = vcombine.high %v5144, %v5144
    %v5147 = vcombine.high %v4779, %v4779
    %v5149 = vunpack.c.l.s4 1983009808
    %v5150 = vunpack.c.0.s8 %v5149
    %v5151 = vlaneseq
    %v5152 = vshrl.u32 %v5151, 7
    %v5153 = vsub.s32 %v5150, %v5152
    %v5154 = vrot.slane %v4779, %v5153
    %v5156 = vunpack.c.l.s4 1983009808
    %v5157 = vunpack.c.0.s8 %v5156
    %v5158 = vlaneseq
    %v5159 = vshrl.u32 %v5158, 7
    %v5160 = vsub.s32 %v5157, %v5159
    %v5161 = vrot.slane %v5147, %v5160
    %v5162 = vcombine.high %v5154, %v5154
    %v5163 = vcombine.high %v5161, %v5161
    %v5164 = vcombine.high %v4780, %v4780
    %v5166 = vunpack.c.l.s4 1983009808
    %v5167 = vunpack.c.0.s8 %v5166
    %v5168 = vlaneseq
    %v5169 = vshrl.u32 %v5168, 7
    %v5170 = vsub.s32 %v5167, %v5169
    %v5171 = vrot.slane %v4780, %v5170
    %v5173 = vunpack.c.l.s4 1983009808
    %v5174 = vunpack.c.0.s8 %v5173
    %v5175 = vlaneseq
    %v5176 = vshrl.u32 %v5175, 7
    %v5177 = vsub.s32 %v5174, %v5176
    %v5178 = vrot.slane %v5164, %v5177
    %v5179 = vcombine.high %v5171, %v5171
    %v5180 = vcombine.high %v5178, %v5178
    %v5181 = vcombine.high %v4781, %v4781
    %v5183 = vunpack.c.l.s4 1983009808
    %v5184 = vunpack.c.0.s8 %v5183
    %v5185 = vlaneseq
    %v5186 = vshrl.u32 %v5185, 7
    %v5187 = vsub.s32 %v5184, %v5186
    %v5188 = vrot.slane %v4781, %v5187
    %v5190 = vunpack.c.l.s4 1983009808
    %v5191 = vunpack.c.0.s8 %v5190
    %v5192 = vlaneseq
    %v5193 = vshrl.u32 %v5192, 7
    %v5194 = vsub.s32 %v5191, %v5193
    %v5195 = vrot.slane %v5181, %v5194
    %v5196 = vcombine.high %v5188, %v5188
    %v5197 = vcombine.high %v5195, %v5195
    %v5198 = vcombine.high %v4782, %v4782
    %v5200 = vunpack.c.l.s4 1983009808
    %v5201 = vunpack.c.0.s8 %v5200
    %v5202 = vlaneseq
    %v5203 = vshrl.u32 %v5202, 7
    %v5204 = vsub.s32 %v5201, %v5203
    %v5205 = vrot.slane %v4782, %v5204
    %v5207 = vunpack.c.l.s4 1983009808
    %v5208 = vunpack.c.0.s8 %v5207
    %v5209 = vlaneseq
    %v5210 = vshrl.u32 %v5209, 7
    %v5211 = vsub.s32 %v5208, %v5210
    %v5212 = vrot.slane %v5198, %v5211
    %v5213 = vcombine.high %v5205, %v5205
    %v5214 = vcombine.high %v5212, %v5212
    %v5215 = vcombine.high %v4783, %v4783
    %v5217 = vunpack.c.l.s4 1983009808
    %v5218 = vunpack.c.0.s8 %v5217
    %v5219 = vlaneseq
    %v5220 = vshrl.u32 %v5219, 7
    %v5221 = vsub.s32 %v5218, %v5220
    %v5222 = vrot.slane %v4783, %v5221
    %v5224 = vunpack.c.l.s4 1983009808
    %v5225 = vunpack.c.0.s8 %v5224
    %v5226 = vlaneseq
    %v5227 = vshrl.u32 %v5226, 7
    %v5228 = vsub.s32 %v5225, %v5227
    %v5229 = vrot.slane %v5215, %v5228
    %v5230 = vcombine.high %v5222, %v5222
    %v5231 = vcombine.high %v5229, %v5229
    %v5232 = vcombine.high %v4784, %v4784
    %v5234 = vunpack.c.l.s4 1983009808
    %v5235 = vunpack.c.0.s8 %v5234
    %v5236 = vlaneseq
    %v5237 = vshrl.u32 %v5236, 7
    %v5238 = vsub.s32 %v5235, %v5237
    %v5239 = vrot.slane %v4784, %v5238
    %v5241 = vunpack.c.l.s4 1983009808
    %v5242 = vunpack.c.0.s8 %v5241
    %v5243 = vlaneseq
    %v5244 = vshrl.u32 %v5243, 7
    %v5245 = vsub.s32 %v5242, %v5244
    %v5246 = vrot.slane %v5232, %v5245
    %v5247 = vcombine.high %v5239, %v5239
    %v5248 = vcombine.high %v5246, %v5246
    %v5249 = vcombine.high %v4785, %v4785
    %v5251 = vunpack.c.l.s4 1983009808
    %v5252 = vunpack.c.0.s8 %v5251
    %v5253 = vlaneseq
    %v5254 = vshrl.u32 %v5253, 7
    %v5255 = vsub.s32 %v5252, %v5254
    %v5256 = vrot.slane %v4785, %v5255
    %v5258 = vunpack.c.l.s4 1983009808
    %v5259 = vunpack.c.0.s8 %v5258
    %v5260 = vlaneseq
    %v5261 = vshrl.u32 %v5260, 7
    %v5262 = vsub.s32 %v5259, %v5261
    %v5263 = vrot.slane %v5249, %v5262
    %v5264 = vcombine.high %v5256, %v5256
    %v5265 = vcombine.high %v5263, %v5263
    %v5266 = vcombine.high %v4786, %v4786
    %v5268 = vunpack.c.l.s4 1983009808
    %v5269 = vunpack.c.0.s8 %v5268
    %v5270 = vlaneseq
    %v5271 = vshrl.u32 %v5270, 7
    %v5272 = vsub.s32 %v5269, %v5271
    %v5273 = vrot.slane %v4786, %v5272
    %v5275 = vunpack.c.l.s4 1983009808
    %v5276 = vunpack.c.0.s8 %v5275
    %v5277 = vlaneseq
    %v5278 = vshrl.u32 %v5277, 7
    %v5279 = vsub.s32 %v5276, %v5278
    %v5280 = vrot.slane %v5266, %v5279
    %v5281 = vcombine.high %v5273, %v5273
    %v5282 = vcombine.high %v5280, %v5280
    %v5283 = vcombine.high %v4787, %v4787
    %v5285 = vunpack.c.l.s4 1983009808
    %v5286 = vunpack.c.0.s8 %v5285
    %v5287 = vlaneseq
    %v5288 = vshrl.u32 %v5287, 7
    %v5289 = vsub.s32 %v5286, %v5288
    %v5290 = vrot.slane %v4787, %v5289
    %v5292 = vunpack.c.l.s4 1983009808
    %v5293 = vunpack.c.0.s8 %v5292
    %v5294 = vlaneseq
    %v5295 = vshrl.u32 %v5294, 7
    %v5296 = vsub.s32 %v5293, %v5295
    %v5297 = vrot.slane %v5283, %v5296
    %v5298 = vcombine.high %v5290, %v5290
    %v5299 = vcombine.high %v5297, %v5297
    %v5300 = vcombine.high %v4788, %v4788
    %v5302 = vunpack.c.l.s4 1983009808
    %v5303 = vunpack.c.0.s8 %v5302
    %v5304 = vlaneseq
    %v5305 = vshrl.u32 %v5304, 7
    %v5306 = vsub.s32 %v5303, %v5305
    %v5307 = vrot.slane %v4788, %v5306
    %v5309 = vunpack.c.l.s4 1983009808
    %v5310 = vunpack.c.0.s8 %v5309
    %v5311 = vlaneseq
    %v5312 = vshrl.u32 %v5311, 7
    %v5313 = vsub.s32 %v5310, %v5312
    %v5314 = vrot.slane %v5300, %v5313
    %v5315 = vcombine.high %v5307, %v5307
    %v5316 = vcombine.high %v5314, %v5314
    %v5317 = vcombine.high %v4789, %v4789
    %v5319 = vunpack.c.l.s4 1983009808
    %v5320 = vunpack.c.0.s8 %v5319
    %v5321 = vlaneseq
    %v5322 = vshrl.u32 %v5321, 7
    %v5323 = vsub.s32 %v5320, %v5322
    %v5324 = vrot.slane %v4789, %v5323
    %v5326 = vunpack.c.l.s4 1983009808
    %v5327 = vunpack.c.0.s8 %v5326
    %v5328 = vlaneseq
    %v5329 = vshrl.u32 %v5328, 7
    %v5330 = vsub.s32 %v5327, %v5329
    %v5331 = vrot.slane %v5317, %v5330
    %v5332 = vcombine.high %v5324, %v5324
    %v5333 = vcombine.high %v5331, %v5331
    %v5334 = vcombine.high %v4790, %v4790
    %v5336 = vunpack.c.l.s4 1983009808
    %v5337 = vunpack.c.0.s8 %v5336
    %v5338 = vlaneseq
    %v5339 = vshrl.u32 %v5338, 7
    %v5340 = vsub.s32 %v5337, %v5339
    %v5341 = vrot.slane %v4790, %v5340
    %v5343 = vunpack.c.l.s4 1983009808
    %v5344 = vunpack.c.0.s8 %v5343
    %v5345 = vlaneseq
    %v5346 = vshrl.u32 %v5345, 7
    %v5347 = vsub.s32 %v5344, %v5346
    %v5348 = vrot.slane %v5334, %v5347
    %v5349 = vcombine.high %v5341, %v5341
    %v5350 = vcombine.high %v5348, %v5348
    %v5351 = vcombine.high %v4791, %v4791
    %v5353 = vunpack.c.l.s4 1983009808
    %v5354 = vunpack.c.0.s8 %v5353
    %v5355 = vlaneseq
    %v5356 = vshrl.u32 %v5355, 7
    %v5357 = vsub.s32 %v5354, %v5356
    %v5358 = vrot.slane %v4791, %v5357
    %v5360 = vunpack.c.l.s4 1983009808
    %v5361 = vunpack.c.0.s8 %v5360
    %v5362 = vlaneseq
    %v5363 = vshrl.u32 %v5362, 7
    %v5364 = vsub.s32 %v5361, %v5363
    %v5365 = vrot.slane %v5351, %v5364
    %v5366 = vcombine.high %v5358, %v5358
    %v5367 = vcombine.high %v5365, %v5365
    %v5496 = vrot.slane %v4831, 7
    %v5497 = vrot.slane %v5496, 2
    %v5498 = vrot.slane %v4839, 7
    %v5499 = vrot.slane %v5498, 2
    %v5500 = vrot.slane %v4838, 7
    %v5501 = vrot.slane %v5500, 2
    %v5502 = vrot.slane %v4840, 7
    %v5503 = vrot.slane %v5502, 2
    %v5504 = vrot.slane %v4848, 7
    %v5505 = vrot.slane %v5504, 2
    %v5506 = vrot.slane %v4856, 7
    %v5507 = vrot.slane %v5506, 2
    %v5508 = vrot.slane %v4855, 7
    %v5509 = vrot.slane %v5508, 2
    %v5510 = vrot.slane %v4857, 7
    %v5511 = vrot.slane %v5510, 2
    %v5512 = vrot.slane %v4865, 7
    %v5513 = vrot.slane %v5512, 2
    %v5514 = vrot.slane %v4873, 7
    %v5515 = vrot.slane %v5514, 2
    %v5516 = vrot.slane %v4872, 7
    %v5517 = vrot.slane %v5516, 2
    %v5518 = vrot.slane %v4874, 7
    %v5519 = vrot.slane %v5518, 2
    %v5520 = vrot.slane %v4882, 7
    %v5521 = vrot.slane %v5520, 2
    %v5522 = vrot.slane %v4890, 7
    %v5523 = vrot.slane %v5522, 2
    %v5524 = vrot.slane %v4889, 7
    %v5525 = vrot.slane %v5524, 2
    %v5526 = vrot.slane %v4891, 7
    %v5527 = vrot.slane %v5526, 2
    %v5528 = vrot.slane %v4899, 7
    %v5529 = vrot.slane %v5528, 2
    %v5530 = vrot.slane %v4907, 7
    %v5531 = vrot.slane %v5530, 2
    %v5532 = vrot.slane %v4906, 7
    %v5533 = vrot.slane %v5532, 2
    %v5534 = vrot.slane %v4908, 7
    %v5535 = vrot.slane %v5534, 2
    %v5536 = vrot.slane %v4916, 7
    %v5537 = vrot.slane %v5536, 2
    %v5538 = vrot.slane %v4924, 7
    %v5539 = vrot.slane %v5538, 2
    %v5540 = vrot.slane %v4923, 7
    %v5541 = vrot.slane %v5540, 2
    %v5542 = vrot.slane %v4925, 7
    %v5543 = vrot.slane %v5542, 2
    %v5544 = vrot.slane %v4933, 7
    %v5545 = vrot.slane %v5544, 2
    %v5546 = vrot.slane %v4941, 7
    %v5547 = vrot.slane %v5546, 2
    %v5548 = vrot.slane %v4940, 7
    %v5549 = vrot.slane %v5548, 2
    %v5550 = vrot.slane %v4942, 7
    %v5551 = vrot.slane %v5550, 2
    %v5552 = vrot.slane %v4950, 7
    %v5553 = vrot.slane %v5552, 2
    %v5554 = vrot.slane %v4958, 7
    %v5555 = vrot.slane %v5554, 2
    %v5556 = vrot.slane %v4957, 7
    %v5557 = vrot.slane %v5556, 2
    %v5558 = vrot.slane %v4959, 7
    %v5559 = vrot.slane %v5558, 2
    %v5560 = vrot.slane %v4967, 7
    %v5561 = vrot.slane %v5560, 2
    %v5562 = vrot.slane %v4975, 7
    %v5563 = vrot.slane %v5562, 2
    %v5564 = vrot.slane %v4974, 7
    %v5565 = vrot.slane %v5564, 2
    %v5566 = vrot.slane %v4976, 7
    %v5567 = vrot.slane %v5566, 2
    %v5568 = vrot.slane %v4984, 7
    %v5569 = vrot.slane %v5568, 2
    %v5570 = vrot.slane %v4992, 7
    %v5571 = vrot.slane %v5570, 2
    %v5572 = vrot.slane %v4991, 7
    %v5573 = vrot.slane %v5572, 2
    %v5574 = vrot.slane %v4993, 7
    %v5575 = vrot.slane %v5574, 2
    %v5576 = vrot.slane %v5001, 7
    %v5577 = vrot.slane %v5576, 2
    %v5578 = vrot.slane %v5009, 7
    %v5579 = vrot.slane %v5578, 2
    %v5580 = vrot.slane %v5008, 7
    %v5581 = vrot.slane %v5580, 2
    %v5582 = vrot.slane %v5010, 7
    %v5583 = vrot.slane %v5582, 2
    %v5584 = vrot.slane %v5018, 7
    %v5585 = vrot.slane %v5584, 2
    %v5586 = vrot.slane %v5026, 7
    %v5587 = vrot.slane %v5586, 2
    %v5588 = vrot.slane %v5025, 7
    %v5589 = vrot.slane %v5588, 2
    %v5590 = vrot.slane %v5027, 7
    %v5591 = vrot.slane %v5590, 2
    %v5592 = vrot.slane %v5035, 7
    %v5593 = vrot.slane %v5592, 2
    %v5594 = vrot.slane %v5043, 7
    %v5595 = vrot.slane %v5594, 2
    %v5596 = vrot.slane %v5042, 7
    %v5597 = vrot.slane %v5596, 2
    %v5598 = vrot.slane %v5044, 7
    %v5599 = vrot.slane %v5598, 2
    %v5600 = vrot.slane %v5052, 7
    %v5601 = vrot.slane %v5600, 2
    %v5602 = vrot.slane %v5060, 7
    %v5603 = vrot.slane %v5602, 2
    %v5604 = vrot.slane %v5059, 7
    %v5605 = vrot.slane %v5604, 2
    %v5606 = vrot.slane %v5061, 7
    %v5607 = vrot.slane %v5606, 2
    %v5608 = vrot.slane %v5069, 7
    %v5609 = vrot.slane %v5608, 2
    %v5610 = vrot.slane %v5077, 7
    %v5611 = vrot.slane %v5610, 2
    %v5612 = vrot.slane %v5076, 7
    %v5613 = vrot.slane %v5612, 2
    %v5614 = vrot.slane %v5078, 7
    %v5615 = vrot.slane %v5614, 2
    %v5616 = vrot.slane %v5086, 7
    %v5617 = vrot.slane %v5616, 2
    %v5618 = vrot.slane %v5094, 7
    %v5619 = vrot.slane %v5618, 2
    %v5620 = vrot.slane %v5093, 7
    %v5621 = vrot.slane %v5620, 2
    %v5622 = vrot.slane %v5095, 7
    %v5623 = vrot.slane %v5622, 2
    %v5624 = vrot.slane %v5103, 7
    %v5625 = vrot.slane %v5624, 2
    %v5626 = vrot.slane %v5111, 7
    %v5627 = vrot.slane %v5626, 2
    %v5628 = vrot.slane %v5110, 7
    %v5629 = vrot.slane %v5628, 2
    %v5630 = vrot.slane %v5112, 7
    %v5631 = vrot.slane %v5630, 2
    %v5632 = vrot.slane %v5120, 7
    %v5633 = vrot.slane %v5632, 2
    %v5634 = vrot.slane %v5128, 7
    %v5635 = vrot.slane %v5634, 2
    %v5636 = vrot.slane %v5127, 7
    %v5637 = vrot.slane %v5636, 2
    %v5638 = vrot.slane %v5129, 7
    %v5639 = vrot.slane %v5638, 2
    %v5640 = vrot.slane %v5137, 7
    %v5641 = vrot.slane %v5640, 2
    %v5642 = vrot.slane %v5145, 7
    %v5643 = vrot.slane %v5642, 2
    %v5644 = vrot.slane %v5144, 7
    %v5645 = vrot.slane %v5644, 2
    %v5646 = vrot.slane %v5146, 7
    %v5647 = vrot.slane %v5646, 2
    %v5648 = vrot.slane %v5154, 7
    %v5649 = vrot.slane %v5648, 2
    %v5650 = vrot.slane %v5162, 7
    %v5651 = vrot.slane %v5650, 2
    %v5652 = vrot.slane %v5161, 7
    %v5653 = vrot.slane %v5652, 2
    %v5654 = vrot.slane %v5163, 7
    %v5655 = vrot.slane %v5654, 2
    %v5656 = vrot.slane %v5171, 7
    %v5657 = vrot.slane %v5656, 2
    %v5658 = vrot.slane %v5179, 7
    %v5659 = vrot.slane %v5658, 2
    %v5660 = vrot.slane %v5178, 7
    %v5661 = vrot.slane %v5660, 2
    %v5662 = vrot.slane %v5180, 7
    %v5663 = vrot.slane %v5662, 2
    %v5664 = vrot.slane %v5188, 7
    %v5665 = vrot.slane %v5664, 2
    %v5666 = vrot.slane %v5196, 7
    %v5667 = vrot.slane %v5666, 2
    %v5668 = vrot.slane %v5195, 7
    %v5669 = vrot.slane %v5668, 2
    %v5670 = vrot.slane %v5197, 7
    %v5671 = vrot.slane %v5670, 2
    %v5672 = vrot.slane %v5205, 7
    %v5673 = vrot.slane %v5672, 2
    %v5674 = vrot.slane %v5213, 7
    %v5675 = vrot.slane %v5674, 2
    %v5676 = vrot.slane %v5212, 7
    %v5677 = vrot.slane %v5676, 2
    %v5678 = vrot.slane %v5214, 7
    %v5679 = vrot.slane %v5678, 2
    %v5680 = vrot.slane %v5222, 7
    %v5681 = vrot.slane %v5680, 2
    %v5682 = vrot.slane %v5230, 7
    %v5683 = vrot.slane %v5682, 2
    %v5684 = vrot.slane %v5229, 7
    %v5685 = vrot.slane %v5684, 2
    %v5686 = vrot.slane %v5231, 7
    %v5687 = vrot.slane %v5686, 2
    %v5688 = vrot.slane %v5239, 7
    %v5689 = vrot.slane %v5688, 2
    %v5690 = vrot.slane %v5247, 7
    %v5691 = vrot.slane %v5690, 2
    %v5692 = vrot.slane %v5246, 7
    %v5693 = vrot.slane %v5692, 2
    %v5694 = vrot.slane %v5248, 7
    %v5695 = vrot.slane %v5694, 2
    %v5696 = vrot.slane %v5256, 7
    %v5697 = vrot.slane %v5696, 2
    %v5698 = vrot.slane %v5264, 7
    %v5699 = vrot.slane %v5698, 2
    %v5700 = vrot.slane %v5263, 7
    %v5701 = vrot.slane %v5700, 2
    %v5702 = vrot.slane %v5265, 7
    %v5703 = vrot.slane %v5702, 2
    %v5704 = vrot.slane %v5273, 7
    %v5705 = vrot.slane %v5704, 2
    %v5706 = vrot.slane %v5281, 7
    %v5707 = vrot.slane %v5706, 2
    %v5708 = vrot.slane %v5280, 7
    %v5709 = vrot.slane %v5708, 2
    %v5710 = vrot.slane %v5282, 7
    %v5711 = vrot.slane %v5710, 2
    %v5712 = vrot.slane %v5290, 7
    %v5713 = vrot.slane %v5712, 2
    %v5714 = vrot.slane %v5298, 7
    %v5715 = vrot.slane %v5714, 2
    %v5716 = vrot.slane %v5297, 7
    %v5717 = vrot.slane %v5716, 2
    %v5718 = vrot.slane %v5299, 7
    %v5719 = vrot.slane %v5718, 2
    %v5720 = vrot.slane %v5307, 7
    %v5721 = vrot.slane %v5720, 2
    %v5722 = vrot.slane %v5315, 7
    %v5723 = vrot.slane %v5722, 2
    %v5724 = vrot.slane %v5314, 7
    %v5725 = vrot.slane %v5724, 2
    %v5726 = vrot.slane %v5316, 7
    %v5727 = vrot.slane %v5726, 2
    %v5728 = vrot.slane %v5324, 7
    %v5729 = vrot.slane %v5728, 2
    %v5730 = vrot.slane %v5332, 7
    %v5731 = vrot.slane %v5730, 2
    %v5732 = vrot.slane %v5331, 7
    %v5733 = vrot.slane %v5732, 2
    %v5734 = vrot.slane %v5333, 7
    %v5735 = vrot.slane %v5734, 2
    %v5736 = vrot.slane %v5341, 7
    %v5737 = vrot.slane %v5736, 2
    %v5738 = vrot.slane %v5349, 7
    %v5739 = vrot.slane %v5738, 2
    %v5740 = vrot.slane %v5348, 7
    %v5741 = vrot.slane %v5740, 2
    %v5742 = vrot.slane %v5350, 7
    %v5743 = vrot.slane %v5742, 2
    %v5744 = vrot.slane %v5358, 7
    %v5745 = vrot.slane %v5744, 2
    %v5746 = vrot.slane %v5366, 7
    %v5747 = vrot.slane %v5746, 2
    %v5748 = vrot.slane %v5365, 7
    %v5749 = vrot.slane %v5748, 2
    %v5750 = vrot.slane %v5367, 7
    %v5751 = vrot.slane %v5750, 2
    %v5880 = vmax.f32 %v4831, %v5497
    %v5881 = vmax.f32 %v4839, %v5499
    %v5882 = vmax.f32 %v4838, %v5501
    %v5883 = vmax.f32 %v4840, %v5503
    %v5884 = vmax.f32 %v4848, %v5505
    %v5885 = vmax.f32 %v4856, %v5507
    %v5886 = vmax.f32 %v4855, %v5509
    %v5887 = vmax.f32 %v4857, %v5511
    %v5888 = vmax.f32 %v4865, %v5513
    %v5889 = vmax.f32 %v4873, %v5515
    %v5890 = vmax.f32 %v4872, %v5517
    %v5891 = vmax.f32 %v4874, %v5519
    %v5892 = vmax.f32 %v4882, %v5521
    %v5893 = vmax.f32 %v4890, %v5523
    %v5894 = vmax.f32 %v4889, %v5525
    %v5895 = vmax.f32 %v4891, %v5527
    %v5896 = vmax.f32 %v4899, %v5529
    %v5897 = vmax.f32 %v4907, %v5531
    %v5898 = vmax.f32 %v4906, %v5533
    %v5899 = vmax.f32 %v4908, %v5535
    %v5900 = vmax.f32 %v4916, %v5537
    %v5901 = vmax.f32 %v4924, %v5539
    %v5902 = vmax.f32 %v4923, %v5541
    %v5903 = vmax.f32 %v4925, %v5543
    %v5904 = vmax.f32 %v4933, %v5545
    %v5905 = vmax.f32 %v4941, %v5547
    %v5906 = vmax.f32 %v4940, %v5549
    %v5907 = vmax.f32 %v4942, %v5551
    %v5908 = vmax.f32 %v4950, %v5553
    %v5909 = vmax.f32 %v4958, %v5555
    %v5910 = vmax.f32 %v4957, %v5557
    %v5911 = vmax.f32 %v4959, %v5559
    %v5912 = vmax.f32 %v4967, %v5561
    %v5913 = vmax.f32 %v4975, %v5563
    %v5914 = vmax.f32 %v4974, %v5565
    %v5915 = vmax.f32 %v4976, %v5567
    %v5916 = vmax.f32 %v4984, %v5569
    %v5917 = vmax.f32 %v4992, %v5571
    %v5918 = vmax.f32 %v4991, %v5573
    %v5919 = vmax.f32 %v4993, %v5575
    %v5920 = vmax.f32 %v5001, %v5577
    %v5921 = vmax.f32 %v5009, %v5579
    %v5922 = vmax.f32 %v5008, %v5581
    %v5923 = vmax.f32 %v5010, %v5583
    %v5924 = vmax.f32 %v5018, %v5585
    %v5925 = vmax.f32 %v5026, %v5587
    %v5926 = vmax.f32 %v5025, %v5589
    %v5927 = vmax.f32 %v5027, %v5591
    %v5928 = vmax.f32 %v5035, %v5593
    %v5929 = vmax.f32 %v5043, %v5595
    %v5930 = vmax.f32 %v5042, %v5597
    %v5931 = vmax.f32 %v5044, %v5599
    %v5932 = vmax.f32 %v5052, %v5601
    %v5933 = vmax.f32 %v5060, %v5603
    %v5934 = vmax.f32 %v5059, %v5605
    %v5935 = vmax.f32 %v5061, %v5607
    %v5936 = vmax.f32 %v5069, %v5609
    %v5937 = vmax.f32 %v5077, %v5611
    %v5938 = vmax.f32 %v5076, %v5613
    %v5939 = vmax.f32 %v5078, %v5615
    %v5940 = vmax.f32 %v5086, %v5617
    %v5941 = vmax.f32 %v5094, %v5619
    %v5942 = vmax.f32 %v5093, %v5621
    %v5943 = vmax.f32 %v5095, %v5623
    %v5944 = vmax.f32 %v5103, %v5625
    %v5945 = vmax.f32 %v5111, %v5627
    %v5946 = vmax.f32 %v5110, %v5629
    %v5947 = vmax.f32 %v5112, %v5631
    %v5948 = vmax.f32 %v5120, %v5633
    %v5949 = vmax.f32 %v5128, %v5635
    %v5950 = vmax.f32 %v5127, %v5637
    %v5951 = vmax.f32 %v5129, %v5639
    %v5952 = vmax.f32 %v5137, %v5641
    %v5953 = vmax.f32 %v5145, %v5643
    %v5954 = vmax.f32 %v5144, %v5645
    %v5955 = vmax.f32 %v5146, %v5647
    %v5956 = vmax.f32 %v5154, %v5649
    %v5957 = vmax.f32 %v5162, %v5651
    %v5958 = vmax.f32 %v5161, %v5653
    %v5959 = vmax.f32 %v5163, %v5655
    %v5960 = vmax.f32 %v5171, %v5657
    %v5961 = vmax.f32 %v5179, %v5659
    %v5962 = vmax.f32 %v5178, %v5661
    %v5963 = vmax.f32 %v5180, %v5663
    %v5964 = vmax.f32 %v5188, %v5665
    %v5965 = vmax.f32 %v5196, %v5667
    %v5966 = vmax.f32 %v5195, %v5669
    %v5967 = vmax.f32 %v5197, %v5671
    %v5968 = vmax.f32 %v5205, %v5673
    %v5969 = vmax.f32 %v5213, %v5675
    %v5970 = vmax.f32 %v5212, %v5677
    %v5971 = vmax.f32 %v5214, %v5679
    %v5972 = vmax.f32 %v5222, %v5681
    %v5973 = vmax.f32 %v5230, %v5683
    %v5974 = vmax.f32 %v5229, %v5685
    %v5975 = vmax.f32 %v5231, %v5687
    %v5976 = vmax.f32 %v5239, %v5689
    %v5977 = vmax.f32 %v5247, %v5691
    %v5978 = vmax.f32 %v5246, %v5693
    %v5979 = vmax.f32 %v5248, %v5695
    %v5980 = vmax.f32 %v5256, %v5697
    %v5981 = vmax.f32 %v5264, %v5699
    %v5982 = vmax.f32 %v5263, %v5701
    %v5983 = vmax.f32 %v5265, %v5703
    %v5984 = vmax.f32 %v5273, %v5705
    %v5985 = vmax.f32 %v5281, %v5707
    %v5986 = vmax.f32 %v5280, %v5709
    %v5987 = vmax.f32 %v5282, %v5711
    %v5988 = vmax.f32 %v5290, %v5713
    %v5989 = vmax.f32 %v5298, %v5715
    %v5990 = vmax.f32 %v5297, %v5717
    %v5991 = vmax.f32 %v5299, %v5719
    %v5992 = vmax.f32 %v5307, %v5721
    %v5993 = vmax.f32 %v5315, %v5723
    %v5994 = vmax.f32 %v5314, %v5725
    %v5995 = vmax.f32 %v5316, %v5727
    %v5996 = vmax.f32 %v5324, %v5729
    %v5997 = vmax.f32 %v5332, %v5731
    %v5998 = vmax.f32 %v5331, %v5733
    %v5999 = vmax.f32 %v5333, %v5735
    %v6000 = vmax.f32 %v5341, %v5737
    %v6001 = vmax.f32 %v5349, %v5739
    %v6002 = vmax.f32 %v5348, %v5741
    %v6003 = vmax.f32 %v5350, %v5743
    %v6004 = vmax.f32 %v5358, %v5745
    %v6005 = vmax.f32 %v5366, %v5747
    %v6006 = vmax.f32 %v5365, %v5749
    %v6007 = vmax.f32 %v5367, %v5751
    %vm6008 = vcmask 130048
    %6009 = vst.msk [vmem:[#allocation2] sm:$0xff] %vm6008, 0.0
    %vm6010 = vcmask 123904
    %6011 = vst.msk [vmem:[#allocation2 + $0x8] sm:$0x3] %vm6010, 0.0
    %6012 = vst.msk [vmem:[#allocation2 + $0x10] sm:$0xff] %vm6008, 0.0
    %6013 = vst.msk [vmem:[#allocation2 + $0x18] sm:$0x3] %vm6010, 0.0
    %6014 = vst.msk [vmem:[#allocation2 + $0x20] sm:$0xff] %vm6008, 0.0
    %6015 = vst.msk [vmem:[#allocation2 + $0x28] sm:$0x3] %vm6010, 0.0
    %6016 = vst.msk [vmem:[#allocation2 + $0x30] sm:$0xff] %vm6008, 0.0
    %6017 = vst.msk [vmem:[#allocation2 + $0x38] sm:$0x3] %vm6010, 0.0
    %6018 = vst.msk [vmem:[#allocation2 + $0x40] sm:$0xff] %vm6008, 0.0
    %6019 = vst.msk [vmem:[#allocation2 + $0x48] sm:$0x3] %vm6010, 0.0
    %6020 = vst.msk [vmem:[#allocation2 + $0x50] sm:$0xff] %vm6008, 0.0
    %6021 = vst.msk [vmem:[#allocation2 + $0x58] sm:$0x3] %vm6010, 0.0
    %6022 = vst.msk [vmem:[#allocation2 + $0x60] sm:$0xff] %vm6008, 0.0
    %6023 = vst.msk [vmem:[#allocation2 + $0x68] sm:$0x3] %vm6010, 0.0
    %6024 = vst.msk [vmem:[#allocation2 + $0x70] sm:$0xff] %vm6008, 0.0
    %6025 = vst.msk [vmem:[#allocation2 + $0x78] sm:$0x3] %vm6010, 0.0
    %6026 = vst.msk [vmem:[#allocation2 + $0x80] sm:$0xff] %vm6008, 0.0
    %6027 = vst.msk [vmem:[#allocation2 + $0x88] sm:$0x3] %vm6010, 0.0
    %6028 = vst.msk [vmem:[#allocation2 + $0x90] sm:$0xff] %vm6008, 0.0
    %6029 = vst.msk [vmem:[#allocation2 + $0x98] sm:$0x3] %vm6010, 0.0
    %6030 = vst.msk [vmem:[#allocation2 + $0xa0] sm:$0xff] %vm6008, 0.0
    %6031 = vst.msk [vmem:[#allocation2 + $0xa8] sm:$0x3] %vm6010, 0.0
    %6032 = vst.msk [vmem:[#allocation2 + $0xb0] sm:$0xff] %vm6008, 0.0
    %6033 = vst.msk [vmem:[#allocation2 + $0xb8] sm:$0x3] %vm6010, 0.0
    %6034 = vst.msk [vmem:[#allocation2 + $0xc0] sm:$0xff] %vm6008, 0.0
    %6035 = vst.msk [vmem:[#allocation2 + $0xc8] sm:$0x3] %vm6010, 0.0
    %6036 = vst.msk [vmem:[#allocation2 + $0xd0] sm:$0xff] %vm6008, 0.0
    %6037 = vst.msk [vmem:[#allocation2 + $0xd8] sm:$0x3] %vm6010, 0.0
    %6038 = vst.msk [vmem:[#allocation2 + $0xe0] sm:$0xff] %vm6008, 0.0
    %6039 = vst.msk [vmem:[#allocation2 + $0xe8] sm:$0x3] %vm6010, 0.0
    %6040 = vst.msk [vmem:[#allocation2 + $0xf0] sm:$0xff] %vm6008, 0.0
    %6041 = vst.msk [vmem:[#allocation2 + $0xf8] sm:$0x3] %vm6010, 0.0
    %6042 = vst.msk [vmem:[#allocation2 + $0x100] sm:$0xff] %vm6008, 0.0
    %6043 = vst.msk [vmem:[#allocation2 + $0x108] sm:$0x3] %vm6010, 0.0
    %6044 = vst.msk [vmem:[#allocation2 + $0x110] sm:$0xff] %vm6008, 0.0
    %6045 = vst.msk [vmem:[#allocation2 + $0x118] sm:$0x3] %vm6010, 0.0
    %6046 = vst.msk [vmem:[#allocation2 + $0x120] sm:$0xff] %vm6008, 0.0
    %6047 = vst.msk [vmem:[#allocation2 + $0x128] sm:$0x3] %vm6010, 0.0
    %6048 = vst.msk [vmem:[#allocation2 + $0x130] sm:$0xff] %vm6008, 0.0
    %6049 = vst.msk [vmem:[#allocation2 + $0x138] sm:$0x3] %vm6010, 0.0
    %v6178 = vlaneseq
    %v6179 = vshrl.u32 %v6178, 7
    %v6180 = vsub.s32 0, %v6179
    %v6181 = vrot.slane %v5880, %v6180
    %v6182 = vlaneseq
    %v6183 = vshrl.u32 %v6182, 7
    %v6184 = vsub.s32 0, %v6183
    %v6185 = vrot.slane %v5881, %v6184
    %v6186 = vlaneseq
    %v6187 = vshrl.u32 %v6186, 7
    %v6188 = vsub.s32 0, %v6187
    %v6189 = vrot.slane %v5882, %v6188
    %v6190 = vlaneseq
    %v6191 = vshrl.u32 %v6190, 7
    %v6192 = vsub.s32 0, %v6191
    %v6193 = vrot.slane %v5883, %v6192
    %v6194 = vlaneseq
    %v6195 = vshrl.u32 %v6194, 7
    %v6196 = vsub.s32 0, %v6195
    %v6197 = vrot.slane %v5884, %v6196
    %v6198 = vlaneseq
    %v6199 = vshrl.u32 %v6198, 7
    %v6200 = vsub.s32 0, %v6199
    %v6201 = vrot.slane %v5885, %v6200
    %v6202 = vlaneseq
    %v6203 = vshrl.u32 %v6202, 7
    %v6204 = vsub.s32 0, %v6203
    %v6205 = vrot.slane %v5886, %v6204
    %v6206 = vlaneseq
    %v6207 = vshrl.u32 %v6206, 7
    %v6208 = vsub.s32 0, %v6207
    %v6209 = vrot.slane %v5887, %v6208
    %v6210 = vlaneseq
    %v6211 = vshrl.u32 %v6210, 7
    %v6212 = vsub.s32 0, %v6211
    %v6213 = vrot.slane %v5888, %v6212
    %v6214 = vlaneseq
    %v6215 = vshrl.u32 %v6214, 7
    %v6216 = vsub.s32 0, %v6215
    %v6217 = vrot.slane %v5889, %v6216
    %v6218 = vlaneseq
    %v6219 = vshrl.u32 %v6218, 7
    %v6220 = vsub.s32 0, %v6219
    %v6221 = vrot.slane %v5890, %v6220
    %v6222 = vlaneseq
    %v6223 = vshrl.u32 %v6222, 7
    %v6224 = vsub.s32 0, %v6223
    %v6225 = vrot.slane %v5891, %v6224
    %v6226 = vlaneseq
    %v6227 = vshrl.u32 %v6226, 7
    %v6228 = vsub.s32 0, %v6227
    %v6229 = vrot.slane %v5892, %v6228
    %v6230 = vlaneseq
    %v6231 = vshrl.u32 %v6230, 7
    %v6232 = vsub.s32 0, %v6231
    %v6233 = vrot.slane %v5893, %v6232
    %v6234 = vlaneseq
    %v6235 = vshrl.u32 %v6234, 7
    %v6236 = vsub.s32 0, %v6235
    %v6237 = vrot.slane %v5894, %v6236
    %v6238 = vlaneseq
    %v6239 = vshrl.u32 %v6238, 7
    %v6240 = vsub.s32 0, %v6239
    %v6241 = vrot.slane %v5895, %v6240
    %v6242 = vlaneseq
    %v6243 = vshrl.u32 %v6242, 7
    %v6244 = vsub.s32 0, %v6243
    %v6245 = vrot.slane %v5896, %v6244
    %v6246 = vlaneseq
    %v6247 = vshrl.u32 %v6246, 7
    %v6248 = vsub.s32 0, %v6247
    %v6249 = vrot.slane %v5897, %v6248
    %v6250 = vlaneseq
    %v6251 = vshrl.u32 %v6250, 7
    %v6252 = vsub.s32 0, %v6251
    %v6253 = vrot.slane %v5898, %v6252
    %v6254 = vlaneseq
    %v6255 = vshrl.u32 %v6254, 7
    %v6256 = vsub.s32 0, %v6255
    %v6257 = vrot.slane %v5899, %v6256
    %v6258 = vlaneseq
    %v6259 = vshrl.u32 %v6258, 7
    %v6260 = vsub.s32 0, %v6259
    %v6261 = vrot.slane %v5900, %v6260
    %v6262 = vlaneseq
    %v6263 = vshrl.u32 %v6262, 7
    %v6264 = vsub.s32 0, %v6263
    %v6265 = vrot.slane %v5901, %v6264
    %v6266 = vlaneseq
    %v6267 = vshrl.u32 %v6266, 7
    %v6268 = vsub.s32 0, %v6267
    %v6269 = vrot.slane %v5902, %v6268
    %v6270 = vlaneseq
    %v6271 = vshrl.u32 %v6270, 7
    %v6272 = vsub.s32 0, %v6271
    %v6273 = vrot.slane %v5903, %v6272
    %v6274 = vlaneseq
    %v6275 = vshrl.u32 %v6274, 7
    %v6276 = vsub.s32 0, %v6275
    %v6277 = vrot.slane %v5904, %v6276
    %v6278 = vlaneseq
    %v6279 = vshrl.u32 %v6278, 7
    %v6280 = vsub.s32 0, %v6279
    %v6281 = vrot.slane %v5905, %v6280
    %v6282 = vlaneseq
    %v6283 = vshrl.u32 %v6282, 7
    %v6284 = vsub.s32 0, %v6283
    %v6285 = vrot.slane %v5906, %v6284
    %v6286 = vlaneseq
    %v6287 = vshrl.u32 %v6286, 7
    %v6288 = vsub.s32 0, %v6287
    %v6289 = vrot.slane %v5907, %v6288
    %v6290 = vlaneseq
    %v6291 = vshrl.u32 %v6290, 7
    %v6292 = vsub.s32 0, %v6291
    %v6293 = vrot.slane %v5908, %v6292
    %v6294 = vlaneseq
    %v6295 = vshrl.u32 %v6294, 7
    %v6296 = vsub.s32 0, %v6295
    %v6297 = vrot.slane %v5909, %v6296
    %v6298 = vlaneseq
    %v6299 = vshrl.u32 %v6298, 7
    %v6300 = vsub.s32 0, %v6299
    %v6301 = vrot.slane %v5910, %v6300
    %v6302 = vlaneseq
    %v6303 = vshrl.u32 %v6302, 7
    %v6304 = vsub.s32 0, %v6303
    %v6305 = vrot.slane %v5911, %v6304
    %v6306 = vlaneseq
    %v6307 = vshrl.u32 %v6306, 7
    %v6308 = vsub.s32 0, %v6307
    %v6309 = vrot.slane %v5912, %v6308
    %v6310 = vlaneseq
    %v6311 = vshrl.u32 %v6310, 7
    %v6312 = vsub.s32 0, %v6311
    %v6313 = vrot.slane %v5913, %v6312
    %v6314 = vlaneseq
    %v6315 = vshrl.u32 %v6314, 7
    %v6316 = vsub.s32 0, %v6315
    %v6317 = vrot.slane %v5914, %v6316
    %v6318 = vlaneseq
    %v6319 = vshrl.u32 %v6318, 7
    %v6320 = vsub.s32 0, %v6319
    %v6321 = vrot.slane %v5915, %v6320
    %v6322 = vlaneseq
    %v6323 = vshrl.u32 %v6322, 7
    %v6324 = vsub.s32 0, %v6323
    %v6325 = vrot.slane %v5916, %v6324
    %v6326 = vlaneseq
    %v6327 = vshrl.u32 %v6326, 7
    %v6328 = vsub.s32 0, %v6327
    %v6329 = vrot.slane %v5917, %v6328
    %v6330 = vlaneseq
    %v6331 = vshrl.u32 %v6330, 7
    %v6332 = vsub.s32 0, %v6331
    %v6333 = vrot.slane %v5918, %v6332
    %v6334 = vlaneseq
    %v6335 = vshrl.u32 %v6334, 7
    %v6336 = vsub.s32 0, %v6335
    %v6337 = vrot.slane %v5919, %v6336
    %v6338 = vlaneseq
    %v6339 = vshrl.u32 %v6338, 7
    %v6340 = vsub.s32 0, %v6339
    %v6341 = vrot.slane %v5920, %v6340
    %v6342 = vlaneseq
    %v6343 = vshrl.u32 %v6342, 7
    %v6344 = vsub.s32 0, %v6343
    %v6345 = vrot.slane %v5921, %v6344
    %v6346 = vlaneseq
    %v6347 = vshrl.u32 %v6346, 7
    %v6348 = vsub.s32 0, %v6347
    %v6349 = vrot.slane %v5922, %v6348
    %v6350 = vlaneseq
    %v6351 = vshrl.u32 %v6350, 7
    %v6352 = vsub.s32 0, %v6351
    %v6353 = vrot.slane %v5923, %v6352
    %v6354 = vlaneseq
    %v6355 = vshrl.u32 %v6354, 7
    %v6356 = vsub.s32 0, %v6355
    %v6357 = vrot.slane %v5924, %v6356
    %v6358 = vlaneseq
    %v6359 = vshrl.u32 %v6358, 7
    %v6360 = vsub.s32 0, %v6359
    %v6361 = vrot.slane %v5925, %v6360
    %v6362 = vlaneseq
    %v6363 = vshrl.u32 %v6362, 7
    %v6364 = vsub.s32 0, %v6363
    %v6365 = vrot.slane %v5926, %v6364
    %v6366 = vlaneseq
    %v6367 = vshrl.u32 %v6366, 7
    %v6368 = vsub.s32 0, %v6367
    %v6369 = vrot.slane %v5927, %v6368
    %v6370 = vlaneseq
    %v6371 = vshrl.u32 %v6370, 7
    %v6372 = vsub.s32 0, %v6371
    %v6373 = vrot.slane %v5928, %v6372
    %v6374 = vlaneseq
    %v6375 = vshrl.u32 %v6374, 7
    %v6376 = vsub.s32 0, %v6375
    %v6377 = vrot.slane %v5929, %v6376
    %v6378 = vlaneseq
    %v6379 = vshrl.u32 %v6378, 7
    %v6380 = vsub.s32 0, %v6379
    %v6381 = vrot.slane %v5930, %v6380
    %v6382 = vlaneseq
    %v6383 = vshrl.u32 %v6382, 7
    %v6384 = vsub.s32 0, %v6383
    %v6385 = vrot.slane %v5931, %v6384
    %v6386 = vlaneseq
    %v6387 = vshrl.u32 %v6386, 7
    %v6388 = vsub.s32 0, %v6387
    %v6389 = vrot.slane %v5932, %v6388
    %v6390 = vlaneseq
    %v6391 = vshrl.u32 %v6390, 7
    %v6392 = vsub.s32 0, %v6391
    %v6393 = vrot.slane %v5933, %v6392
    %v6394 = vlaneseq
    %v6395 = vshrl.u32 %v6394, 7
    %v6396 = vsub.s32 0, %v6395
    %v6397 = vrot.slane %v5934, %v6396
    %v6398 = vlaneseq
    %v6399 = vshrl.u32 %v6398, 7
    %v6400 = vsub.s32 0, %v6399
    %v6401 = vrot.slane %v5935, %v6400
    %v6402 = vlaneseq
    %v6403 = vshrl.u32 %v6402, 7
    %v6404 = vsub.s32 0, %v6403
    %v6405 = vrot.slane %v5936, %v6404
    %v6406 = vlaneseq
    %v6407 = vshrl.u32 %v6406, 7
    %v6408 = vsub.s32 0, %v6407
    %v6409 = vrot.slane %v5937, %v6408
    %v6410 = vlaneseq
    %v6411 = vshrl.u32 %v6410, 7
    %v6412 = vsub.s32 0, %v6411
    %v6413 = vrot.slane %v5938, %v6412
    %v6414 = vlaneseq
    %v6415 = vshrl.u32 %v6414, 7
    %v6416 = vsub.s32 0, %v6415
    %v6417 = vrot.slane %v5939, %v6416
    %v6418 = vlaneseq
    %v6419 = vshrl.u32 %v6418, 7
    %v6420 = vsub.s32 0, %v6419
    %v6421 = vrot.slane %v5940, %v6420
    %v6422 = vlaneseq
    %v6423 = vshrl.u32 %v6422, 7
    %v6424 = vsub.s32 0, %v6423
    %v6425 = vrot.slane %v5941, %v6424
    %v6426 = vlaneseq
    %v6427 = vshrl.u32 %v6426, 7
    %v6428 = vsub.s32 0, %v6427
    %v6429 = vrot.slane %v5942, %v6428
    %v6430 = vlaneseq
    %v6431 = vshrl.u32 %v6430, 7
    %v6432 = vsub.s32 0, %v6431
    %v6433 = vrot.slane %v5943, %v6432
    %v6434 = vlaneseq
    %v6435 = vshrl.u32 %v6434, 7
    %v6436 = vsub.s32 0, %v6435
    %v6437 = vrot.slane %v5944, %v6436
    %v6438 = vlaneseq
    %v6439 = vshrl.u32 %v6438, 7
    %v6440 = vsub.s32 0, %v6439
    %v6441 = vrot.slane %v5945, %v6440
    %v6442 = vlaneseq
    %v6443 = vshrl.u32 %v6442, 7
    %v6444 = vsub.s32 0, %v6443
    %v6445 = vrot.slane %v5946, %v6444
    %v6446 = vlaneseq
    %v6447 = vshrl.u32 %v6446, 7
    %v6448 = vsub.s32 0, %v6447
    %v6449 = vrot.slane %v5947, %v6448
    %v6450 = vlaneseq
    %v6451 = vshrl.u32 %v6450, 7
    %v6452 = vsub.s32 0, %v6451
    %v6453 = vrot.slane %v5948, %v6452
    %v6454 = vlaneseq
    %v6455 = vshrl.u32 %v6454, 7
    %v6456 = vsub.s32 0, %v6455
    %v6457 = vrot.slane %v5949, %v6456
    %v6458 = vlaneseq
    %v6459 = vshrl.u32 %v6458, 7
    %v6460 = vsub.s32 0, %v6459
    %v6461 = vrot.slane %v5950, %v6460
    %v6462 = vlaneseq
    %v6463 = vshrl.u32 %v6462, 7
    %v6464 = vsub.s32 0, %v6463
    %v6465 = vrot.slane %v5951, %v6464
    %v6466 = vlaneseq
    %v6467 = vshrl.u32 %v6466, 7
    %v6468 = vsub.s32 0, %v6467
    %v6469 = vrot.slane %v5952, %v6468
    %v6470 = vlaneseq
    %v6471 = vshrl.u32 %v6470, 7
    %v6472 = vsub.s32 0, %v6471
    %v6473 = vrot.slane %v5953, %v6472
    %v6474 = vlaneseq
    %v6475 = vshrl.u32 %v6474, 7
    %v6476 = vsub.s32 0, %v6475
    %v6477 = vrot.slane %v5954, %v6476
    %v6478 = vlaneseq
    %v6479 = vshrl.u32 %v6478, 7
    %v6480 = vsub.s32 0, %v6479
    %v6481 = vrot.slane %v5955, %v6480
    %v6482 = vlaneseq
    %v6483 = vshrl.u32 %v6482, 7
    %v6484 = vsub.s32 0, %v6483
    %v6485 = vrot.slane %v5956, %v6484
    %v6486 = vlaneseq
    %v6487 = vshrl.u32 %v6486, 7
    %v6488 = vsub.s32 0, %v6487
    %v6489 = vrot.slane %v5957, %v6488
    %v6490 = vlaneseq
    %v6491 = vshrl.u32 %v6490, 7
    %v6492 = vsub.s32 0, %v6491
    %v6493 = vrot.slane %v5958, %v6492
    %v6494 = vlaneseq
    %v6495 = vshrl.u32 %v6494, 7
    %v6496 = vsub.s32 0, %v6495
    %v6497 = vrot.slane %v5959, %v6496
    %v6498 = vlaneseq
    %v6499 = vshrl.u32 %v6498, 7
    %v6500 = vsub.s32 0, %v6499
    %v6501 = vrot.slane %v5960, %v6500
    %v6502 = vlaneseq
    %v6503 = vshrl.u32 %v6502, 7
    %v6504 = vsub.s32 0, %v6503
    %v6505 = vrot.slane %v5961, %v6504
    %v6506 = vlaneseq
    %v6507 = vshrl.u32 %v6506, 7
    %v6508 = vsub.s32 0, %v6507
    %v6509 = vrot.slane %v5962, %v6508
    %v6510 = vlaneseq
    %v6511 = vshrl.u32 %v6510, 7
    %v6512 = vsub.s32 0, %v6511
    %v6513 = vrot.slane %v5963, %v6512
    %v6514 = vlaneseq
    %v6515 = vshrl.u32 %v6514, 7
    %v6516 = vsub.s32 0, %v6515
    %v6517 = vrot.slane %v5964, %v6516
    %v6518 = vlaneseq
    %v6519 = vshrl.u32 %v6518, 7
    %v6520 = vsub.s32 0, %v6519
    %v6521 = vrot.slane %v5965, %v6520
    %v6522 = vlaneseq
    %v6523 = vshrl.u32 %v6522, 7
    %v6524 = vsub.s32 0, %v6523
    %v6525 = vrot.slane %v5966, %v6524
    %v6526 = vlaneseq
    %v6527 = vshrl.u32 %v6526, 7
    %v6528 = vsub.s32 0, %v6527
    %v6529 = vrot.slane %v5967, %v6528
    %v6530 = vlaneseq
    %v6531 = vshrl.u32 %v6530, 7
    %v6532 = vsub.s32 0, %v6531
    %v6533 = vrot.slane %v5968, %v6532
    %v6534 = vlaneseq
    %v6535 = vshrl.u32 %v6534, 7
    %v6536 = vsub.s32 0, %v6535
    %v6537 = vrot.slane %v5969, %v6536
    %v6538 = vlaneseq
    %v6539 = vshrl.u32 %v6538, 7
    %v6540 = vsub.s32 0, %v6539
    %v6541 = vrot.slane %v5970, %v6540
    %v6542 = vlaneseq
    %v6543 = vshrl.u32 %v6542, 7
    %v6544 = vsub.s32 0, %v6543
    %v6545 = vrot.slane %v5971, %v6544
    %v6546 = vlaneseq
    %v6547 = vshrl.u32 %v6546, 7
    %v6548 = vsub.s32 0, %v6547
    %v6549 = vrot.slane %v5972, %v6548
    %v6550 = vlaneseq
    %v6551 = vshrl.u32 %v6550, 7
    %v6552 = vsub.s32 0, %v6551
    %v6553 = vrot.slane %v5973, %v6552
    %v6554 = vlaneseq
    %v6555 = vshrl.u32 %v6554, 7
    %v6556 = vsub.s32 0, %v6555
    %v6557 = vrot.slane %v5974, %v6556
    %v6558 = vlaneseq
    %v6559 = vshrl.u32 %v6558, 7
    %v6560 = vsub.s32 0, %v6559
    %v6561 = vrot.slane %v5975, %v6560
    %v6562 = vlaneseq
    %v6563 = vshrl.u32 %v6562, 7
    %v6564 = vsub.s32 0, %v6563
    %v6565 = vrot.slane %v5976, %v6564
    %v6566 = vlaneseq
    %v6567 = vshrl.u32 %v6566, 7
    %v6568 = vsub.s32 0, %v6567
    %v6569 = vrot.slane %v5977, %v6568
    %v6570 = vlaneseq
    %v6571 = vshrl.u32 %v6570, 7
    %v6572 = vsub.s32 0, %v6571
    %v6573 = vrot.slane %v5978, %v6572
    %v6574 = vlaneseq
    %v6575 = vshrl.u32 %v6574, 7
    %v6576 = vsub.s32 0, %v6575
    %v6577 = vrot.slane %v5979, %v6576
    %v6578 = vlaneseq
    %v6579 = vshrl.u32 %v6578, 7
    %v6580 = vsub.s32 0, %v6579
    %v6581 = vrot.slane %v5980, %v6580
    %v6582 = vlaneseq
    %v6583 = vshrl.u32 %v6582, 7
    %v6584 = vsub.s32 0, %v6583
    %v6585 = vrot.slane %v5981, %v6584
    %v6586 = vlaneseq
    %v6587 = vshrl.u32 %v6586, 7
    %v6588 = vsub.s32 0, %v6587
    %v6589 = vrot.slane %v5982, %v6588
    %v6590 = vlaneseq
    %v6591 = vshrl.u32 %v6590, 7
    %v6592 = vsub.s32 0, %v6591
    %v6593 = vrot.slane %v5983, %v6592
    %v6594 = vlaneseq
    %v6595 = vshrl.u32 %v6594, 7
    %v6596 = vsub.s32 0, %v6595
    %v6597 = vrot.slane %v5984, %v6596
    %v6598 = vlaneseq
    %v6599 = vshrl.u32 %v6598, 7
    %v6600 = vsub.s32 0, %v6599
    %v6601 = vrot.slane %v5985, %v6600
    %v6602 = vlaneseq
    %v6603 = vshrl.u32 %v6602, 7
    %v6604 = vsub.s32 0, %v6603
    %v6605 = vrot.slane %v5986, %v6604
    %v6606 = vlaneseq
    %v6607 = vshrl.u32 %v6606, 7
    %v6608 = vsub.s32 0, %v6607
    %v6609 = vrot.slane %v5987, %v6608
    %v6610 = vlaneseq
    %v6611 = vshrl.u32 %v6610, 7
    %v6612 = vsub.s32 0, %v6611
    %v6613 = vrot.slane %v5988, %v6612
    %v6614 = vlaneseq
    %v6615 = vshrl.u32 %v6614, 7
    %v6616 = vsub.s32 0, %v6615
    %v6617 = vrot.slane %v5989, %v6616
    %v6618 = vlaneseq
    %v6619 = vshrl.u32 %v6618, 7
    %v6620 = vsub.s32 0, %v6619
    %v6621 = vrot.slane %v5990, %v6620
    %v6622 = vlaneseq
    %v6623 = vshrl.u32 %v6622, 7
    %v6624 = vsub.s32 0, %v6623
    %v6625 = vrot.slane %v5991, %v6624
    %v6626 = vlaneseq
    %v6627 = vshrl.u32 %v6626, 7
    %v6628 = vsub.s32 0, %v6627
    %v6629 = vrot.slane %v5992, %v6628
    %v6630 = vlaneseq
    %v6631 = vshrl.u32 %v6630, 7
    %v6632 = vsub.s32 0, %v6631
    %v6633 = vrot.slane %v5993, %v6632
    %v6634 = vlaneseq
    %v6635 = vshrl.u32 %v6634, 7
    %v6636 = vsub.s32 0, %v6635
    %v6637 = vrot.slane %v5994, %v6636
    %v6638 = vlaneseq
    %v6639 = vshrl.u32 %v6638, 7
    %v6640 = vsub.s32 0, %v6639
    %v6641 = vrot.slane %v5995, %v6640
    %v6642 = vlaneseq
    %v6643 = vshrl.u32 %v6642, 7
    %v6644 = vsub.s32 0, %v6643
    %v6645 = vrot.slane %v5996, %v6644
    %v6646 = vlaneseq
    %v6647 = vshrl.u32 %v6646, 7
    %v6648 = vsub.s32 0, %v6647
    %v6649 = vrot.slane %v5997, %v6648
    %v6650 = vlaneseq
    %v6651 = vshrl.u32 %v6650, 7
    %v6652 = vsub.s32 0, %v6651
    %v6653 = vrot.slane %v5998, %v6652
    %v6654 = vlaneseq
    %v6655 = vshrl.u32 %v6654, 7
    %v6656 = vsub.s32 0, %v6655
    %v6657 = vrot.slane %v5999, %v6656
    %v6658 = vlaneseq
    %v6659 = vshrl.u32 %v6658, 7
    %v6660 = vsub.s32 0, %v6659
    %v6661 = vrot.slane %v6000, %v6660
    %v6662 = vlaneseq
    %v6663 = vshrl.u32 %v6662, 7
    %v6664 = vsub.s32 0, %v6663
    %v6665 = vrot.slane %v6001, %v6664
    %v6666 = vlaneseq
    %v6667 = vshrl.u32 %v6666, 7
    %v6668 = vsub.s32 0, %v6667
    %v6669 = vrot.slane %v6002, %v6668
    %v6670 = vlaneseq
    %v6671 = vshrl.u32 %v6670, 7
    %v6672 = vsub.s32 0, %v6671
    %v6673 = vrot.slane %v6003, %v6672
    %v6674 = vlaneseq
    %v6675 = vshrl.u32 %v6674, 7
    %v6676 = vsub.s32 0, %v6675
    %v6677 = vrot.slane %v6004, %v6676
    %v6678 = vlaneseq
    %v6679 = vshrl.u32 %v6678, 7
    %v6680 = vsub.s32 0, %v6679
    %v6681 = vrot.slane %v6005, %v6680
    %v6682 = vlaneseq
    %v6683 = vshrl.u32 %v6682, 7
    %v6684 = vsub.s32 0, %v6683
    %v6685 = vrot.slane %v6006, %v6684
    %v6686 = vlaneseq
    %v6687 = vshrl.u32 %v6686, 7
    %v6688 = vsub.s32 0, %v6687
    %v6689 = vrot.slane %v6007, %v6688
    %vm6690 = vcmask 1041409
    %v6691 = vsel %vm6690, %v6185, %v6181
    %vm6692 = vcmask 1042434
    %v6693 = vsel %vm6692, %v6189, %v6691
    %vm6694 = vcmask 1043459
    %v6695 = vsel %vm6694, %v6193, %v6693
    %vm6696 = vcmask 1044484
    %v6697 = vsel %vm6696, %v6197, %v6695
    %vm6698 = vcmask 1045509
    %v6699 = vsel %vm6698, %v6201, %v6697
    %vm6700 = vcmask 1046534
    %v6701 = vsel %vm6700, %v6205, %v6699
    %vm6702 = vcmask 1047559
    %v6703 = vsel %vm6702, %v6209, %v6701
    %v6704 = vsel %vm6690, %v6217, %v6213
    %v6705 = vsel %vm6692, %v6221, %v6704
    %v6706 = vsel %vm6694, %v6225, %v6705
    %v6707 = vsel %vm6696, %v6229, %v6706
    %v6708 = vsel %vm6698, %v6233, %v6707
    %v6709 = vsel %vm6700, %v6237, %v6708
    %v6710 = vsel %vm6702, %v6241, %v6709
    %v6711 = vsel %vm6690, %v6249, %v6245
    %v6712 = vsel %vm6692, %v6253, %v6711
    %v6713 = vsel %vm6694, %v6257, %v6712
    %v6714 = vsel %vm6696, %v6261, %v6713
    %v6715 = vsel %vm6698, %v6265, %v6714
    %v6716 = vsel %vm6700, %v6269, %v6715
    %v6717 = vsel %vm6702, %v6273, %v6716
    %v6718 = vsel %vm6690, %v6281, %v6277
    %v6719 = vsel %vm6692, %v6285, %v6718
    %v6720 = vsel %vm6694, %v6289, %v6719
    %v6721 = vsel %vm6696, %v6293, %v6720
    %v6722 = vsel %vm6698, %v6297, %v6721
    %v6723 = vsel %vm6700, %v6301, %v6722
    %v6724 = vsel %vm6702, %v6305, %v6723
    %v6725 = vsel %vm6690, %v6313, %v6309
    %v6726 = vsel %vm6692, %v6317, %v6725
    %v6727 = vsel %vm6694, %v6321, %v6726
    %v6728 = vsel %vm6696, %v6325, %v6727
    %v6729 = vsel %vm6698, %v6329, %v6728
    %v6730 = vsel %vm6700, %v6333, %v6729
    %v6731 = vsel %vm6702, %v6337, %v6730
    %v6732 = vsel %vm6690, %v6345, %v6341
    %v6733 = vsel %vm6692, %v6349, %v6732
    %v6734 = vsel %vm6694, %v6353, %v6733
    %v6735 = vsel %vm6696, %v6357, %v6734
    %v6736 = vsel %vm6698, %v6361, %v6735
    %v6737 = vsel %vm6700, %v6365, %v6736
    %v6738 = vsel %vm6702, %v6369, %v6737
    %v6739 = vsel %vm6690, %v6377, %v6373
    %v6740 = vsel %vm6692, %v6381, %v6739
    %v6741 = vsel %vm6694, %v6385, %v6740
    %v6742 = vsel %vm6696, %v6389, %v6741
    %v6743 = vsel %vm6698, %v6393, %v6742
    %v6744 = vsel %vm6700, %v6397, %v6743
    %v6745 = vsel %vm6702, %v6401, %v6744
    %v6746 = vsel %vm6690, %v6409, %v6405
    %v6747 = vsel %vm6692, %v6413, %v6746
    %v6748 = vsel %vm6694, %v6417, %v6747
    %v6749 = vsel %vm6696, %v6421, %v6748
    %v6750 = vsel %vm6698, %v6425, %v6749
    %v6751 = vsel %vm6700, %v6429, %v6750
    %v6752 = vsel %vm6702, %v6433, %v6751
    %v6753 = vsel %vm6690, %v6441, %v6437
    %v6754 = vsel %vm6692, %v6445, %v6753
    %v6755 = vsel %vm6694, %v6449, %v6754
    %v6756 = vsel %vm6696, %v6453, %v6755
    %v6757 = vsel %vm6698, %v6457, %v6756
    %v6758 = vsel %vm6700, %v6461, %v6757
    %v6759 = vsel %vm6702, %v6465, %v6758
    %v6760 = vsel %vm6690, %v6473, %v6469
    %v6761 = vsel %vm6692, %v6477, %v6760
    %v6762 = vsel %vm6694, %v6481, %v6761
    %v6763 = vsel %vm6696, %v6485, %v6762
    %v6764 = vsel %vm6698, %v6489, %v6763
    %v6765 = vsel %vm6700, %v6493, %v6764
    %v6766 = vsel %vm6702, %v6497, %v6765
    %v6767 = vsel %vm6690, %v6505, %v6501
    %v6768 = vsel %vm6692, %v6509, %v6767
    %v6769 = vsel %vm6694, %v6513, %v6768
    %v6770 = vsel %vm6696, %v6517, %v6769
    %v6771 = vsel %vm6698, %v6521, %v6770
    %v6772 = vsel %vm6700, %v6525, %v6771
    %v6773 = vsel %vm6702, %v6529, %v6772
    %v6774 = vsel %vm6690, %v6537, %v6533
    %v6775 = vsel %vm6692, %v6541, %v6774
    %v6776 = vsel %vm6694, %v6545, %v6775
    %v6777 = vsel %vm6696, %v6549, %v6776
    %v6778 = vsel %vm6698, %v6553, %v6777
    %v6779 = vsel %vm6700, %v6557, %v6778
    %v6780 = vsel %vm6702, %v6561, %v6779
    %v6781 = vsel %vm6690, %v6569, %v6565
    %v6782 = vsel %vm6692, %v6573, %v6781
    %v6783 = vsel %vm6694, %v6577, %v6782
    %v6784 = vsel %vm6696, %v6581, %v6783
    %v6785 = vsel %vm6698, %v6585, %v6784
    %v6786 = vsel %vm6700, %v6589, %v6785
    %v6787 = vsel %vm6702, %v6593, %v6786
    %v6788 = vsel %vm6690, %v6601, %v6597
    %v6789 = vsel %vm6692, %v6605, %v6788
    %v6790 = vsel %vm6694, %v6609, %v6789
    %v6791 = vsel %vm6696, %v6613, %v6790
    %v6792 = vsel %vm6698, %v6617, %v6791
    %v6793 = vsel %vm6700, %v6621, %v6792
    %v6794 = vsel %vm6702, %v6625, %v6793
    %v6795 = vsel %vm6690, %v6633, %v6629
    %v6796 = vsel %vm6692, %v6637, %v6795
    %v6797 = vsel %vm6694, %v6641, %v6796
    %v6798 = vsel %vm6696, %v6645, %v6797
    %v6799 = vsel %vm6698, %v6649, %v6798
    %v6800 = vsel %vm6700, %v6653, %v6799
    %v6801 = vsel %vm6702, %v6657, %v6800
    %v6802 = vsel %vm6690, %v6665, %v6661
    %v6803 = vsel %vm6692, %v6669, %v6802
    %v6804 = vsel %vm6694, %v6673, %v6803
    %v6805 = vsel %vm6696, %v6677, %v6804
    %v6806 = vsel %vm6698, %v6681, %v6805
    %v6807 = vsel %vm6700, %v6685, %v6806
    %v6808 = vsel %vm6702, %v6689, %v6807
    %s6825 = scalar_lea.vmem [#allocation2], 16
    %6826 = vst.msk [vmem:[%s6825 + $0x1] sm:$0xff] %vm6008, %v6703
    %6827 = vst.msk [vmem:[%s6825 + $0x11] sm:$0xff] %vm6008, %v6710
    %6828 = vst.msk [vmem:[%s6825 + $0x21] sm:$0xff] %vm6008, %v6717
    %6829 = vst.msk [vmem:[%s6825 + $0x31] sm:$0xff] %vm6008, %v6724
    %6830 = vst.msk [vmem:[%s6825 + $0x41] sm:$0xff] %vm6008, %v6731
    %6831 = vst.msk [vmem:[%s6825 + $0x51] sm:$0xff] %vm6008, %v6738
    %6832 = vst.msk [vmem:[%s6825 + $0x61] sm:$0xff] %vm6008, %v6745
    %6833 = vst.msk [vmem:[%s6825 + $0x71] sm:$0xff] %vm6008, %v6752
    %6834 = vst.msk [vmem:[%s6825 + $0xa1] sm:$0xff] %vm6008, %v6759
    %6835 = vst.msk [vmem:[%s6825 + $0xb1] sm:$0xff] %vm6008, %v6766
    %6836 = vst.msk [vmem:[%s6825 + $0xc1] sm:$0xff] %vm6008, %v6773
    %6837 = vst.msk [vmem:[%s6825 + $0xd1] sm:$0xff] %vm6008, %v6780
    %6838 = vst.msk [vmem:[%s6825 + $0xe1] sm:$0xff] %vm6008, %v6787
    %6839 = vst.msk [vmem:[%s6825 + $0xf1] sm:$0xff] %vm6008, %v6794
    %6840 = vst.msk [vmem:[%s6825 + $0x101] sm:$0xff] %vm6008, %v6801
    %6841 = vst.msk [vmem:[%s6825 + $0x111] sm:$0xff] %vm6008, %v6808
    %v6842 = vld [vmem:[#allocation2] sm:$0xff]
    %v6843 = vld [vmem:[#allocation2 + $0x10] sm:$0xff]
    %v6844 = vld [vmem:[#allocation2 + $0x20] sm:$0xff]
    %v6845 = vld [vmem:[#allocation2 + $0x30] sm:$0xff]
    %v6846 = vld [vmem:[#allocation2 + $0x40] sm:$0xff]
    %v6847 = vld [vmem:[#allocation2 + $0x50] sm:$0xff]
    %v6848 = vld [vmem:[#allocation2 + $0x60] sm:$0xff]
    %v6849 = vld [vmem:[#allocation2 + $0x70] sm:$0xff]
    %v6850 = vld [vmem:[#allocation2 + $0xa0] sm:$0xff]
    %v6851 = vld [vmem:[#allocation2 + $0xb0] sm:$0xff]
    %v6852 = vld [vmem:[#allocation2 + $0xc0] sm:$0xff]
    %v6853 = vld [vmem:[#allocation2 + $0xd0] sm:$0xff]
    %v6854 = vld [vmem:[#allocation2 + $0xe0] sm:$0xff]
    %v6855 = vld [vmem:[#allocation2 + $0xf0] sm:$0xff]
    %v6856 = vld [vmem:[#allocation2 + $0x100] sm:$0xff]
    %v6857 = vld [vmem:[#allocation2 + $0x110] sm:$0xff]
    %v6858 = vpack.c.bf16 %v6843, %v6842
    %v6859 = vpack.c.bf16 %v6845, %v6844
    %v6860 = vpack.c.bf16 %v6847, %v6846
    %v6861 = vpack.c.bf16 %v6849, %v6848
    %v6862 = vpack.c.bf16 %v6851, %v6850
    %v6863 = vpack.c.bf16 %v6853, %v6852
    %v6864 = vpack.c.bf16 %v6855, %v6854
    %v6865 = vpack.c.bf16 %v6857, %v6856
    %v6866 = vld [vmem:[%s3] sm:$0xf]
    %v6867 = vld [vmem:[%s3 + $0x4] sm:$0xf]
    %v6868 = vld [vmem:[#allocation2 + $0x1] sm:$0xff]
    %v6869 = vld [vmem:[#allocation2 + $0x11] sm:$0xff]
    %v6870 = vld [vmem:[#allocation2 + $0x21] sm:$0xff]
    %v6871 = vld [vmem:[#allocation2 + $0x31] sm:$0xff]
    %v6872 = vld [vmem:[#allocation2 + $0x41] sm:$0xff]
    %v6873 = vld [vmem:[#allocation2 + $0x51] sm:$0xff]
    %v6874 = vld [vmem:[#allocation2 + $0x61] sm:$0xff]
    %v6875 = vld [vmem:[#allocation2 + $0x71] sm:$0xff]
    %v6876 = vld [vmem:[#allocation2 + $0xa1] sm:$0xff]
    %v6877 = vld [vmem:[#allocation2 + $0xb1] sm:$0xff]
    %v6878 = vld [vmem:[#allocation2 + $0xc1] sm:$0xff]
    %v6879 = vld [vmem:[#allocation2 + $0xd1] sm:$0xff]
    %v6880 = vld [vmem:[#allocation2 + $0xe1] sm:$0xff]
    %v6881 = vld [vmem:[#allocation2 + $0xf1] sm:$0xff]
    %v6882 = vld [vmem:[#allocation2 + $0x101] sm:$0xff]
    %v6883 = vld [vmem:[#allocation2 + $0x111] sm:$0xff]
    %v6884 = vpack.c.bf16 %v6869, %v6868
    %v6885 = vpack.c.bf16 %v6871, %v6870
    %v6886 = vpack.c.bf16 %v6873, %v6872
    %v6887 = vpack.c.bf16 %v6875, %v6874
    %v6888 = vpack.c.bf16 %v6877, %v6876
    %v6889 = vpack.c.bf16 %v6879, %v6878
    %v6890 = vpack.c.bf16 %v6881, %v6880
    %v6891 = vpack.c.bf16 %v6883, %v6882
    %s6892 = scalar_lea.vmem %s3, 8
    %v6893 = vld [vmem:[%s6892] sm:$0xf]
    %v6894 = vld [vmem:[%s6892 + $0x4] sm:$0xf]
    %v6897 = vunpack.c.l.b16 %v6893
    %v6898 = vunpack.c.l.b16 %v6894
    %v6899 = vpack.c.b16 %v6898, %v6897
    %v6902 = vsel %vm6008, %v6884, 0
    %v6905 = vsel %vm6008, %v6885, 0
    %v6908 = vsel %vm6008, %v6886, 0
    %v6911 = vsel %vm6008, %v6887, 0
    %v6914 = vsel %vm6008, %v6888, 0
    %v6917 = vsel %vm6008, %v6889, 0
    %v6920 = vsel %vm6008, %v6890, 0
    %v6923 = vsel %vm6008, %v6891, 0
    %6925 = vmatprep.subr.bf16.mxu0 0
    %6926 = vmatpush1.bf16.msra.mxu0 %v6899
    %6927 = vmatprep.subr.bf16.mxu0 0
    %6928 = vmatpush1.bf16.msra.mxu0 0
    %6929 = vmatprep.subr.bf16.mxu0 0
    %6930 = vmatpush1.bf16.msra.mxu0 0
    %6931 = vmatprep.subr.bf16.mxu0 0
    %6932 = vmatpush1.bf16.msra.mxu0 0
    %6933 = vmatprep.subr.bf16.mxu0 0
    %6934 = vmatpush1.bf16.msra.mxu0 0
    %6935 = vmatprep.subr.bf16.mxu0 0
    %6936 = vmatpush1.bf16.msra.mxu0 0
    %6937 = vmatprep.subr.bf16.mxu0 0
    %6938 = vmatpush1.bf16.msra.mxu0 0
    %6939 = vmatprep.subr.bf16.mxu0 0
    %6940 = vmatpush1.bf16.msra.mxu0 0
    %6941 = vmatprep.subr.bf16.mxu0 0
    %6942 = vmatpush1.bf16.msra.mxu0 0
    %6943 = vmatprep.subr.bf16.mxu0 0
    %6944 = vmatpush1.bf16.msra.mxu0 0
    %6945 = vmatprep.subr.bf16.mxu0 0
    %6946 = vmatpush1.bf16.msra.mxu0 0
    %6947 = vmatprep.subr.bf16.mxu0 0
    %6948 = vmatpush1.bf16.msra.mxu0 0
    %6949 = vmatprep.subr.bf16.mxu0 0
    %6950 = vmatpush1.bf16.msra.mxu0 0
    %6951 = vmatprep.subr.bf16.mxu0 0
    %6952 = vmatpush1.bf16.msra.mxu0 0
    %6953 = vmatprep.subr.bf16.mxu0 0
    %6954 = vmatpush1.bf16.msra.mxu0 0
    %6955 = vmatprep.subr.bf16.mxu0 0
    %6956 = vmatpush1.bf16.msra.mxu0 0
    %6957 = vmatprep.mubr.bf16.mxu0 0
    %6958 = vmatmul.mubr.bf16.gmra.mrb[0].mxu0 %v6902
    %v6959 = vpop.f32.mrb[0].mxu0
    %v6960 = vadd.f32 0.0, %v6959
    %v6961 = vpop.f32.mrb[0].mxu0
    %v6962 = vpop.f32.mrb[0].mxu0
    %v6963 = vadd.f32 0.0, %v6962
    %v6964 = vpop.f32.mrb[0].mxu0
    %6965 = vmatprep.mubr.bf16.mxu0 0
    %6966 = vmatmul.mubr.bf16.gmra.mrb[0].mxu0 %v6905
    %v6967 = vpop.f32.mrb[0].mxu0
    %v6968 = vadd.f32 0.0, %v6967
    %v6969 = vpop.f32.mrb[0].mxu0
    %v6970 = vpop.f32.mrb[0].mxu0
    %v6971 = vadd.f32 0.0, %v6970
    %v6972 = vpop.f32.mrb[0].mxu0
    %6973 = vmatprep.mubr.bf16.mxu0 0
    %6974 = vmatmul.mubr.bf16.gmra.mrb[0].mxu0 %v6908
    %v6975 = vpop.f32.mrb[0].mxu0
    %v6976 = vadd.f32 0.0, %v6975
    %v6977 = vpop.f32.mrb[0].mxu0
    %v6978 = vpop.f32.mrb[0].mxu0
    %v6979 = vadd.f32 0.0, %v6978
    %v6980 = vpop.f32.mrb[0].mxu0
    %6981 = vmatprep.mubr.bf16.mxu0 0
    %6982 = vmatmul.mubr.bf16.gmra.mrb[0].mxu0 %v6911
    %v6983 = vpop.f32.mrb[0].mxu0
    %v6984 = vadd.f32 0.0, %v6983
    %v6985 = vpop.f32.mrb[0].mxu0
    %v6986 = vpop.f32.mrb[0].mxu0
    %v6987 = vadd.f32 0.0, %v6986
    %v6988 = vpop.f32.mrb[0].mxu0
    %6989 = vmatprep.mubr.bf16.mxu0 0
    %6990 = vmatmul.mubr.bf16.gmra.mrb[0].mxu0 %v6914
    %v6991 = vpop.f32.mrb[0].mxu0
    %v6992 = vadd.f32 0.0, %v6991
    %v6993 = vpop.f32.mrb[0].mxu0
    %v6994 = vpop.f32.mrb[0].mxu0
    %v6995 = vadd.f32 0.0, %v6994
    %v6996 = vpop.f32.mrb[0].mxu0
    %6997 = vmatprep.mubr.bf16.mxu0 0
    %6998 = vmatmul.mubr.bf16.gmra.mrb[0].mxu0 %v6917
    %v6999 = vpop.f32.mrb[0].mxu0
    %v7000 = vadd.f32 0.0, %v6999
    %v7001 = vpop.f32.mrb[0].mxu0
    %v7002 = vpop.f32.mrb[0].mxu0
    %v7003 = vadd.f32 0.0, %v7002
    %v7004 = vpop.f32.mrb[0].mxu0
    %7005 = vmatprep.mubr.bf16.mxu0 0
    %7006 = vmatmul.mubr.bf16.gmra.mrb[0].mxu0 %v6920
    %v7007 = vpop.f32.mrb[0].mxu0
    %v7008 = vadd.f32 0.0, %v7007
    %v7009 = vpop.f32.mrb[0].mxu0
    %v7010 = vpop.f32.mrb[0].mxu0
    %v7011 = vadd.f32 0.0, %v7010
    %v7012 = vpop.f32.mrb[0].mxu0
    %7013 = vmatprep.mubr.bf16.mxu0 0
    %7014 = vmatmul.mubr.bf16.gmra.mrb[0].mxu0 %v6923
    %v7015 = vpop.f32.mrb[0].mxu0
    %v7016 = vadd.f32 0.0, %v7015
    %v7017 = vpop.f32.mrb[0].mxu0
    %v7018 = vpop.f32.mrb[0].mxu0
    %v7019 = vadd.f32 0.0, %v7018
    %v7020 = vpop.f32.mrb[0].mxu0
    %7021 = vdwg.mxu0
    %v7024 = vunpack.c.l.b16 %v6866
    %v7025 = vunpack.c.l.b16 %v6867
    %v7026 = vpack.c.b16 %v7025, %v7024
    %v7029 = vsel %vm6008, %v6858, 0
    %v7032 = vsel %vm6008, %v6859, 0
    %v7035 = vsel %vm6008, %v6860, 0
    %v7038 = vsel %vm6008, %v6861, 0
    %v7041 = vsel %vm6008, %v6862, 0
    %v7044 = vsel %vm6008, %v6863, 0
    %v7047 = vsel %vm6008, %v6864, 0
    %v7050 = vsel %vm6008, %v6865, 0
    %7052 = vmatprep.subr.bf16.mxu0 0
    %7053 = vmatpush1.bf16.msra.mxu0 %v7026
    %7054 = vmatprep.subr.bf16.mxu0 0
    %7055 = vmatpush1.bf16.msra.mxu0 0
    %7056 = vmatprep.subr.bf16.mxu0 0
    %7057 = vmatpush1.bf16.msra.mxu0 0
    %7058 = vmatprep.subr.bf16.mxu0 0
    %7059 = vmatpush1.bf16.msra.mxu0 0
    %7060 = vmatprep.subr.bf16.mxu0 0
    %7061 = vmatpush1.bf16.msra.mxu0 0
    %7062 = vmatprep.subr.bf16.mxu0 0
    %7063 = vmatpush1.bf16.msra.mxu0 0
    %7064 = vmatprep.subr.bf16.mxu0 0
    %7065 = vmatpush1.bf16.msra.mxu0 0
    %7066 = vmatprep.subr.bf16.mxu0 0
    %7067 = vmatpush1.bf16.msra.mxu0 0
    %7068 = vmatprep.subr.bf16.mxu0 0
    %7069 = vmatpush1.bf16.msra.mxu0 0
    %7070 = vmatprep.subr.bf16.mxu0 0
    %7071 = vmatpush1.bf16.msra.mxu0 0
    %7072 = vmatprep.subr.bf16.mxu0 0
    %7073 = vmatpush1.bf16.msra.mxu0 0
    %7074 = vmatprep.subr.bf16.mxu0 0
    %7075 = vmatpush1.bf16.msra.mxu0 0
    %7076 = vmatprep.subr.bf16.mxu0 0
    %7077 = vmatpush1.bf16.msra.mxu0 0
    %7078 = vmatprep.subr.bf16.mxu0 0
    %7079 = vmatpush1.bf16.msra.mxu0 0
    %7080 = vmatprep.subr.bf16.mxu0 0
    %7081 = vmatpush1.bf16.msra.mxu0 0
    %7082 = vmatprep.subr.bf16.mxu0 0
    %7083 = vmatpush1.bf16.msra.mxu0 0
    %7084 = vmatprep.mubr.bf16.mxu0 0
    %7085 = vmatmul.mubr.bf16.gmra.mrb[0].mxu0 %v7029
    %v7086 = vpop.f32.mrb[0].mxu0
    %v7087 = vadd.f32 %v6960, %v7086
    %v7088 = vpop.f32.mrb[0].mxu0
    %v7089 = vpop.f32.mrb[0].mxu0
    %v7090 = vadd.f32 %v6963, %v7089
    %v7091 = vpop.f32.mrb[0].mxu0
    %7092 = vmatprep.mubr.bf16.mxu0 0
    %7093 = vmatmul.mubr.bf16.gmra.mrb[0].mxu0 %v7032
    %v7094 = vpop.f32.mrb[0].mxu0
    %v7095 = vadd.f32 %v6968, %v7094
    %v7096 = vpop.f32.mrb[0].mxu0
    %v7097 = vpop.f32.mrb[0].mxu0
    %v7098 = vadd.f32 %v6971, %v7097
    %v7099 = vpop.f32.mrb[0].mxu0
    %7100 = vmatprep.mubr.bf16.mxu0 0
    %7101 = vmatmul.mubr.bf16.gmra.mrb[0].mxu0 %v7035
    %v7102 = vpop.f32.mrb[0].mxu0
    %v7103 = vadd.f32 %v6976, %v7102
    %v7104 = vpop.f32.mrb[0].mxu0
    %v7105 = vpop.f32.mrb[0].mxu0
    %v7106 = vadd.f32 %v6979, %v7105
    %v7107 = vpop.f32.mrb[0].mxu0
    %7108 = vmatprep.mubr.bf16.mxu0 0
    %7109 = vmatmul.mubr.bf16.gmra.mrb[0].mxu0 %v7038
    %v7110 = vpop.f32.mrb[0].mxu0
    %v7111 = vadd.f32 %v6984, %v7110
    %v7112 = vpop.f32.mrb[0].mxu0
    %v7113 = vpop.f32.mrb[0].mxu0
    %v7114 = vadd.f32 %v6987, %v7113
    %v7115 = vpop.f32.mrb[0].mxu0
    %7116 = vmatprep.mubr.bf16.mxu0 0
    %7117 = vmatmul.mubr.bf16.gmra.mrb[0].mxu0 %v7041
    %v7118 = vpop.f32.mrb[0].mxu0
    %v7119 = vadd.f32 %v6992, %v7118
    %v7120 = vpop.f32.mrb[0].mxu0
    %v7121 = vpop.f32.mrb[0].mxu0
    %v7122 = vadd.f32 %v6995, %v7121
    %v7123 = vpop.f32.mrb[0].mxu0
    %7124 = vmatprep.mubr.bf16.mxu0 0
    %7125 = vmatmul.mubr.bf16.gmra.mrb[0].mxu0 %v7044
    %v7126 = vpop.f32.mrb[0].mxu0
    %v7127 = vadd.f32 %v7000, %v7126
    %v7128 = vpop.f32.mrb[0].mxu0
    %v7129 = vpop.f32.mrb[0].mxu0
    %v7130 = vadd.f32 %v7003, %v7129
    %v7131 = vpop.f32.mrb[0].mxu0
    %7132 = vmatprep.mubr.bf16.mxu0 0
    %7133 = vmatmul.mubr.bf16.gmra.mrb[0].mxu0 %v7047
    %v7134 = vpop.f32.mrb[0].mxu0
    %v7135 = vadd.f32 %v7008, %v7134
    %v7136 = vpop.f32.mrb[0].mxu0
    %v7137 = vpop.f32.mrb[0].mxu0
    %v7138 = vadd.f32 %v7011, %v7137
    %v7139 = vpop.f32.mrb[0].mxu0
    %7140 = vmatprep.mubr.bf16.mxu0 0
    %7141 = vmatmul.mubr.bf16.gmra.mrb[0].mxu0 %v7050
    %v7142 = vpop.f32.mrb[0].mxu0
    %v7143 = vadd.f32 %v7016, %v7142
    %v7144 = vpop.f32.mrb[0].mxu0
    %v7145 = vpop.f32.mrb[0].mxu0
    %v7146 = vadd.f32 %v7019, %v7145
    %v7147 = vpop.f32.mrb[0].mxu0
    %7148 = vdwg.mxu0
    %v7149 = vld [vmem:[#allocation2 + $0x2] sm:$0xff]
    %v7150 = vld [vmem:[#allocation2 + $0x12] sm:$0xff]
    %v7151 = vld [vmem:[#allocation2 + $0x22] sm:$0xff]
    %v7152 = vld [vmem:[#allocation2 + $0x32] sm:$0xff]
    %v7153 = vld [vmem:[#allocation2 + $0x42] sm:$0xff]
    %v7154 = vld [vmem:[#allocation2 + $0x52] sm:$0xff]
    %v7155 = vld [vmem:[#allocation2 + $0x62] sm:$0xff]
    %v7156 = vld [vmem:[#allocation2 + $0x72] sm:$0xff]
    %v7157 = vld [vmem:[#allocation2 + $0xa2] sm:$0xff]
    %v7158 = vld [vmem:[#allocation2 + $0xb2] sm:$0xff]
    %v7159 = vld [vmem:[#allocation2 + $0xc2] sm:$0xff]
    %v7160 = vld [vmem:[#allocation2 + $0xd2] sm:$0xff]
    %v7161 = vld [vmem:[#allocation2 + $0xe2] sm:$0xff]
    %v7162 = vld [vmem:[#allocation2 + $0xf2] sm:$0xff]
    %v7163 = vld [vmem:[#allocation2 + $0x102] sm:$0xff]
    %v7164 = vld [vmem:[#allocation2 + $0x112] sm:$0xff]
    %v7165 = vpack.c.bf16 %v7150, %v7149
    %v7166 = vpack.c.bf16 %v7152, %v7151
    %v7167 = vpack.c.bf16 %v7154, %v7153
    %v7168 = vpack.c.bf16 %v7156, %v7155
    %v7169 = vpack.c.bf16 %v7158, %v7157
    %v7170 = vpack.c.bf16 %v7160, %v7159
    %v7171 = vpack.c.bf16 %v7162, %v7161
    %v7172 = vpack.c.bf16 %v7164, %v7163
    %s7173 = scalar_lea.vmem %s3, 16
    %v7174 = vld [vmem:[%s7173] sm:$0xf]
    %v7175 = vld [vmem:[%s7173 + $0x4] sm:$0xf]
    %v7178 = vunpack.c.l.b16 %v7174
    %v7179 = vunpack.c.l.b16 %v7175
    %v7180 = vpack.c.b16 %v7179, %v7178
    %v7183 = vsel %vm6008, %v7165, 0
    %v7186 = vsel %vm6008, %v7166, 0
    %v7189 = vsel %vm6008, %v7167, 0
    %v7192 = vsel %vm6008, %v7168, 0
    %v7195 = vsel %vm6008, %v7169, 0
    %v7198 = vsel %vm6008, %v7170, 0
    %v7201 = vsel %vm6008, %v7171, 0
    %v7204 = vsel %vm6008, %v7172, 0
    %7206 = vmatprep.subr.bf16.mxu0 0
    %7207 = vmatpush1.bf16.msra.mxu0 %v7180
    %7208 = vmatprep.subr.bf16.mxu0 0
    %7209 = vmatpush1.bf16.msra.mxu0 0
    %7210 = vmatprep.subr.bf16.mxu0 0
    %7211 = vmatpush1.bf16.msra.mxu0 0
    %7212 = vmatprep.subr.bf16.mxu0 0
    %7213 = vmatpush1.bf16.msra.mxu0 0
    %7214 = vmatprep.subr.bf16.mxu0 0
    %7215 = vmatpush1.bf16.msra.mxu0 0
    %7216 = vmatprep.subr.bf16.mxu0 0
    %7217 = vmatpush1.bf16.msra.mxu0 0
    %7218 = vmatprep.subr.bf16.mxu0 0
    %7219 = vmatpush1.bf16.msra.mxu0 0
    %7220 = vmatprep.subr.bf16.mxu0 0
    %7221 = vmatpush1.bf16.msra.mxu0 0
    %7222 = vmatprep.subr.bf16.mxu0 0
    %7223 = vmatpush1.bf16.msra.mxu0 0
    %7224 = vmatprep.subr.bf16.mxu0 0
    %7225 = vmatpush1.bf16.msra.mxu0 0
    %7226 = vmatprep.subr.bf16.mxu0 0
    %7227 = vmatpush1.bf16.msra.mxu0 0
    %7228 = vmatprep.subr.bf16.mxu0 0
    %7229 = vmatpush1.bf16.msra.mxu0 0
    %7230 = vmatprep.subr.bf16.mxu0 0
    %7231 = vmatpush1.bf16.msra.mxu0 0
    %7232 = vmatprep.subr.bf16.mxu0 0
    %7233 = vmatpush1.bf16.msra.mxu0 0
    %7234 = vmatprep.subr.bf16.mxu0 0
    %7235 = vmatpush1.bf16.msra.mxu0 0
    %7236 = vmatprep.subr.bf16.mxu0 0
    %7237 = vmatpush1.bf16.msra.mxu0 0
    %7238 = vmatprep.mubr.bf16.mxu0 0
    %7239 = vmatmul.mubr.bf16.gmra.mrb[0].mxu0 %v7183
    %v7240 = vpop.f32.mrb[0].mxu0
    %v7241 = vadd.f32 0.0, %v7240
    %v7242 = vpop.f32.mrb[0].mxu0
    %v7243 = vpop.f32.mrb[0].mxu0
    %v7244 = vadd.f32 0.0, %v7243
    %v7245 = vpop.f32.mrb[0].mxu0
    %7246 = vmatprep.mubr.bf16.mxu0 0
    %7247 = vmatmul.mubr.bf16.gmra.mrb[0].mxu0 %v7186
    %v7248 = vpop.f32.mrb[0].mxu0
    %v7249 = vadd.f32 0.0, %v7248
    %v7250 = vpop.f32.mrb[0].mxu0
    %v7251 = vpop.f32.mrb[0].mxu0
    %v7252 = vadd.f32 0.0, %v7251
    %v7253 = vpop.f32.mrb[0].mxu0
    %7254 = vmatprep.mubr.bf16.mxu0 0
    %7255 = vmatmul.mubr.bf16.gmra.mrb[0].mxu0 %v7189
    %v7256 = vpop.f32.mrb[0].mxu0
    %v7257 = vadd.f32 0.0, %v7256
    %v7258 = vpop.f32.mrb[0].mxu0
    %v7259 = vpop.f32.mrb[0].mxu0
    %v7260 = vadd.f32 0.0, %v7259
    %v7261 = vpop.f32.mrb[0].mxu0
    %7262 = vmatprep.mubr.bf16.mxu0 0
    %7263 = vmatmul.mubr.bf16.gmra.mrb[0].mxu0 %v7192
    %v7264 = vpop.f32.mrb[0].mxu0
    %v7265 = vadd.f32 0.0, %v7264
    %v7266 = vpop.f32.mrb[0].mxu0
    %v7267 = vpop.f32.mrb[0].mxu0
    %v7268 = vadd.f32 0.0, %v7267
    %v7269 = vpop.f32.mrb[0].mxu0
    %7270 = vmatprep.mubr.bf16.mxu0 0
    %7271 = vmatmul.mubr.bf16.gmra.mrb[0].mxu0 %v7195
    %v7272 = vpop.f32.mrb[0].mxu0
    %v7273 = vadd.f32 0.0, %v7272
    %v7274 = vpop.f32.mrb[0].mxu0
    %v7275 = vpop.f32.mrb[0].mxu0
    %v7276 = vadd.f32 0.0, %v7275
    %v7277 = vpop.f32.mrb[0].mxu0
    %7278 = vmatprep.mubr.bf16.mxu0 0
    %7279 = vmatmul.mubr.bf16.gmra.mrb[0].mxu0 %v7198
    %v7280 = vpop.f32.mrb[0].mxu0
    %v7281 = vadd.f32 0.0, %v7280
    %v7282 = vpop.f32.mrb[0].mxu0
    %v7283 = vpop.f32.mrb[0].mxu0
    %v7284 = vadd.f32 0.0, %v7283
    %v7285 = vpop.f32.mrb[0].mxu0
    %7286 = vmatprep.mubr.bf16.mxu0 0
    %7287 = vmatmul.mubr.bf16.gmra.mrb[0].mxu0 %v7201
    %v7288 = vpop.f32.mrb[0].mxu0
    %v7289 = vadd.f32 0.0, %v7288
    %v7290 = vpop.f32.mrb[0].mxu0
    %v7291 = vpop.f32.mrb[0].mxu0
    %v7292 = vadd.f32 0.0, %v7291
    %v7293 = vpop.f32.mrb[0].mxu0
    %7294 = vmatprep.mubr.bf16.mxu0 0
    %7295 = vmatmul.mubr.bf16.gmra.mrb[0].mxu0 %v7204
    %v7296 = vpop.f32.mrb[0].mxu0
    %v7297 = vadd.f32 0.0, %v7296
    %v7298 = vpop.f32.mrb[0].mxu0
    %v7299 = vpop.f32.mrb[0].mxu0
    %v7300 = vadd.f32 0.0, %v7299
    %v7301 = vpop.f32.mrb[0].mxu0
    %7302 = vdwg.mxu0
    %v7303 = vadd.f32 %v7087, %v7241
    %v7304 = vadd.f32 %v7090, %v7244
    %v7305 = vadd.f32 %v7095, %v7249
    %v7306 = vadd.f32 %v7098, %v7252
    %v7307 = vadd.f32 %v7103, %v7257
    %v7308 = vadd.f32 %v7106, %v7260
    %v7309 = vadd.f32 %v7111, %v7265
    %v7310 = vadd.f32 %v7114, %v7268
    %v7311 = vadd.f32 %v7119, %v7273
    %v7312 = vadd.f32 %v7122, %v7276
    %v7313 = vadd.f32 %v7127, %v7281
    %v7314 = vadd.f32 %v7130, %v7284
    %v7315 = vadd.f32 %v7135, %v7289
    %v7316 = vadd.f32 %v7138, %v7292
    %v7317 = vadd.f32 %v7143, %v7297
    %v7318 = vadd.f32 %v7146, %v7300
    %v7319 = vld [vmem:[%s6825] sm:$0xff]
    %v7320 = vld [vmem:[%s6825 + $0x10] sm:$0xff]
    %v7321 = vld [vmem:[%s6825 + $0x20] sm:$0xff]
    %v7322 = vld [vmem:[%s6825 + $0x30] sm:$0xff]
    %v7323 = vld [vmem:[%s6825 + $0x40] sm:$0xff]
    %v7324 = vld [vmem:[%s6825 + $0x50] sm:$0xff]
    %v7325 = vld [vmem:[%s6825 + $0x60] sm:$0xff]
    %v7326 = vld [vmem:[%s6825 + $0x70] sm:$0xff]
    %v7327 = vld [vmem:[%s6825 + $0xa0] sm:$0xff]
    %v7328 = vld [vmem:[%s6825 + $0xb0] sm:$0xff]
    %v7329 = vld [vmem:[%s6825 + $0xc0] sm:$0xff]
    %v7330 = vld [vmem:[%s6825 + $0xd0] sm:$0xff]
    %v7331 = vld [vmem:[%s6825 + $0xe0] sm:$0xff]
    %v7332 = vld [vmem:[%s6825 + $0xf0] sm:$0xff]
    %v7333 = vld [vmem:[%s6825 + $0x100] sm:$0xff]
    %v7334 = vld [vmem:[%s6825 + $0x110] sm:$0xff]
    %v7335 = vpack.c.bf16 %v7320, %v7319
    %v7336 = vpack.c.bf16 %v7322, %v7321
    %v7337 = vpack.c.bf16 %v7324, %v7323
    %v7338 = vpack.c.bf16 %v7326, %v7325
    %v7339 = vpack.c.bf16 %v7328, %v7327
    %v7340 = vpack.c.bf16 %v7330, %v7329
    %v7341 = vpack.c.bf16 %v7332, %v7331
    %v7342 = vpack.c.bf16 %v7334, %v7333
    %s7343 = scalar_lea.vmem %s3, 24
    %v7344 = vld [vmem:[%s7343] sm:$0xf]
    %v7345 = vld [vmem:[%s7343 + $0x4] sm:$0xf]
    %v7348 = vunpack.c.l.b16 %v7344
    %v7349 = vunpack.c.l.b16 %v7345
    %v7350 = vpack.c.b16 %v7349, %v7348
    %v7353 = vsel %vm6008, %v7335, 0
    %v7356 = vsel %vm6008, %v7336, 0
    %v7359 = vsel %vm6008, %v7337, 0
    %v7362 = vsel %vm6008, %v7338, 0
    %v7365 = vsel %vm6008, %v7339, 0
    %v7368 = vsel %vm6008, %v7340, 0
    %v7371 = vsel %vm6008, %v7341, 0
    %v7374 = vsel %vm6008, %v7342, 0
    %7376 = vmatprep.subr.bf16.mxu0 0
    %7377 = vmatpush1.bf16.msra.mxu0 %v7350
    %7378 = vmatprep.subr.bf16.mxu0 0
    %7379 = vmatpush1.bf16.msra.mxu0 0
    %7380 = vmatprep.subr.bf16.mxu0 0
    %7381 = vmatpush1.bf16.msra.mxu0 0
    %7382 = vmatprep.subr.bf16.mxu0 0
    %7383 = vmatpush1.bf16.msra.mxu0 0
    %7384 = vmatprep.subr.bf16.mxu0 0
    %7385 = vmatpush1.bf16.msra.mxu0 0
    %7386 = vmatprep.subr.bf16.mxu0 0
    %7387 = vmatpush1.bf16.msra.mxu0 0
    %7388 = vmatprep.subr.bf16.mxu0 0
    %7389 = vmatpush1.bf16.msra.mxu0 0
    %7390 = vmatprep.subr.bf16.mxu0 0
    %7391 = vmatpush1.bf16.msra.mxu0 0
    %7392 = vmatprep.subr.bf16.mxu0 0
    %7393 = vmatpush1.bf16.msra.mxu0 0
    %7394 = vmatprep.subr.bf16.mxu0 0
    %7395 = vmatpush1.bf16.msra.mxu0 0
    %7396 = vmatprep.subr.bf16.mxu0 0
    %7397 = vmatpush1.bf16.msra.mxu0 0
    %7398 = vmatprep.subr.bf16.mxu0 0
    %7399 = vmatpush1.bf16.msra.mxu0 0
    %7400 = vmatprep.subr.bf16.mxu0 0
    %7401 = vmatpush1.bf16.msra.mxu0 0
    %7402 = vmatprep.subr.bf16.mxu0 0
    %7403 = vmatpush1.bf16.msra.mxu0 0
    %7404 = vmatprep.subr.bf16.mxu0 0
    %7405 = vmatpush1.bf16.msra.mxu0 0
    %7406 = vmatprep.subr.bf16.mxu0 0
    %7407 = vmatpush1.bf16.msra.mxu0 0
    %7408 = vmatprep.mubr.bf16.mxu0 0
    %7409 = vmatmul.mubr.bf16.gmra.mrb[0].mxu0 %v7353
    %v7410 = vpop.f32.mrb[0].mxu0
    %v7411 = vadd.f32 0.0, %v7410
    %v7412 = vpop.f32.mrb[0].mxu0
    %v7413 = vpop.f32.mrb[0].mxu0
    %v7414 = vadd.f32 0.0, %v7413
    %v7415 = vpop.f32.mrb[0].mxu0
    %7416 = vmatprep.mubr.bf16.mxu0 0
    %7417 = vmatmul.mubr.bf16.gmra.mrb[0].mxu0 %v7356
    %v7418 = vpop.f32.mrb[0].mxu0
    %v7419 = vadd.f32 0.0, %v7418
    %v7420 = vpop.f32.mrb[0].mxu0
    %v7421 = vpop.f32.mrb[0].mxu0
    %v7422 = vadd.f32 0.0, %v7421
    %v7423 = vpop.f32.mrb[0].mxu0
    %7424 = vmatprep.mubr.bf16.mxu0 0
    %7425 = vmatmul.mubr.bf16.gmra.mrb[0].mxu0 %v7359
    %v7426 = vpop.f32.mrb[0].mxu0
    %v7427 = vadd.f32 0.0, %v7426
    %v7428 = vpop.f32.mrb[0].mxu0
    %v7429 = vpop.f32.mrb[0].mxu0
    %v7430 = vadd.f32 0.0, %v7429
    %v7431 = vpop.f32.mrb[0].mxu0
    %7432 = vmatprep.mubr.bf16.mxu0 0
    %7433 = vmatmul.mubr.bf16.gmra.mrb[0].mxu0 %v7362
    %v7434 = vpop.f32.mrb[0].mxu0
    %v7435 = vadd.f32 0.0, %v7434
    %v7436 = vpop.f32.mrb[0].mxu0
    %v7437 = vpop.f32.mrb[0].mxu0
    %v7438 = vadd.f32 0.0, %v7437
    %v7439 = vpop.f32.mrb[0].mxu0
    %7440 = vmatprep.mubr.bf16.mxu0 0
    %7441 = vmatmul.mubr.bf16.gmra.mrb[0].mxu0 %v7365
    %v7442 = vpop.f32.mrb[0].mxu0
    %v7443 = vadd.f32 0.0, %v7442
    %v7444 = vpop.f32.mrb[0].mxu0
    %v7445 = vpop.f32.mrb[0].mxu0
    %v7446 = vadd.f32 0.0, %v7445
    %v7447 = vpop.f32.mrb[0].mxu0
    %7448 = vmatprep.mubr.bf16.mxu0 0
    %7449 = vmatmul.mubr.bf16.gmra.mrb[0].mxu0 %v7368
    %v7450 = vpop.f32.mrb[0].mxu0
    %v7451 = vadd.f32 0.0, %v7450
    %v7452 = vpop.f32.mrb[0].mxu0
    %v7453 = vpop.f32.mrb[0].mxu0
    %v7454 = vadd.f32 0.0, %v7453
    %v7455 = vpop.f32.mrb[0].mxu0
    %7456 = vmatprep.mubr.bf16.mxu0 0
    %7457 = vmatmul.mubr.bf16.gmra.mrb[0].mxu0 %v7371
    %v7458 = vpop.f32.mrb[0].mxu0
    %v7459 = vadd.f32 0.0, %v7458
    %v7460 = vpop.f32.mrb[0].mxu0
    %v7461 = vpop.f32.mrb[0].mxu0
    %v7462 = vadd.f32 0.0, %v7461
    %v7463 = vpop.f32.mrb[0].mxu0
    %7464 = vmatprep.mubr.bf16.mxu0 0
    %7465 = vmatmul.mubr.bf16.gmra.mrb[0].mxu0 %v7374
    %v7466 = vpop.f32.mrb[0].mxu0
    %v7467 = vadd.f32 0.0, %v7466
    %v7468 = vpop.f32.mrb[0].mxu0
    %v7469 = vpop.f32.mrb[0].mxu0
    %v7470 = vadd.f32 0.0, %v7469
    %v7471 = vpop.f32.mrb[0].mxu0
    %7472 = vdwg.mxu0
    %v7473 = vadd.f32 %v7303, %v7411
    %v7474 = vadd.f32 %v7304, %v7414
    %v7475 = vadd.f32 %v7305, %v7419
    %v7476 = vadd.f32 %v7306, %v7422
    %v7477 = vadd.f32 %v7307, %v7427
    %v7478 = vadd.f32 %v7308, %v7430
    %v7479 = vadd.f32 %v7309, %v7435
    %v7480 = vadd.f32 %v7310, %v7438
    %v7481 = vadd.f32 %v7311, %v7443
    %v7482 = vadd.f32 %v7312, %v7446
    %v7483 = vadd.f32 %v7313, %v7451
    %v7484 = vadd.f32 %v7314, %v7454
    %v7485 = vadd.f32 %v7315, %v7459
    %v7486 = vadd.f32 %v7316, %v7462
    %v7487 = vadd.f32 %v7317, %v7467
    %v7488 = vadd.f32 %v7318, %v7470
    %v7489 = vld [vmem:[%s6825 + $0x1] sm:$0xff]
    %v7490 = vld [vmem:[%s6825 + $0x11] sm:$0xff]
    %v7491 = vld [vmem:[%s6825 + $0x21] sm:$0xff]
    %v7492 = vld [vmem:[%s6825 + $0x31] sm:$0xff]
    %v7493 = vld [vmem:[%s6825 + $0x41] sm:$0xff]
    %v7494 = vld [vmem:[%s6825 + $0x51] sm:$0xff]
    %v7495 = vld [vmem:[%s6825 + $0x61] sm:$0xff]
    %v7496 = vld [vmem:[%s6825 + $0x71] sm:$0xff]
    %v7497 = vld [vmem:[%s6825 + $0xa1] sm:$0xff]
    %v7498 = vld [vmem:[%s6825 + $0xb1] sm:$0xff]
    %v7499 = vld [vmem:[%s6825 + $0xc1] sm:$0xff]
    %v7500 = vld [vmem:[%s6825 + $0xd1] sm:$0xff]
    %v7501 = vld [vmem:[%s6825 + $0xe1] sm:$0xff]
    %v7502 = vld [vmem:[%s6825 + $0xf1] sm:$0xff]
    %v7503 = vld [vmem:[%s6825 + $0x101] sm:$0xff]
    %v7504 = vld [vmem:[%s6825 + $0x111] sm:$0xff]
    %v7505 = vpack.c.bf16 %v7490, %v7489
    %v7506 = vpack.c.bf16 %v7492, %v7491
    %v7507 = vpack.c.bf16 %v7494, %v7493
    %v7508 = vpack.c.bf16 %v7496, %v7495
    %v7509 = vpack.c.bf16 %v7498, %v7497
    %v7510 = vpack.c.bf16 %v7500, %v7499
    %v7511 = vpack.c.bf16 %v7502, %v7501
    %v7512 = vpack.c.bf16 %v7504, %v7503
    %s7513 = scalar_lea.vmem %s3, 32
    %v7514 = vld [vmem:[%s7513] sm:$0xf]
    %v7515 = vld [vmem:[%s7513 + $0x4] sm:$0xf]
    %v7518 = vunpack.c.l.b16 %v7514
    %v7519 = vunpack.c.l.b16 %v7515
    %v7520 = vpack.c.b16 %v7519, %v7518
    %v7523 = vsel %vm6008, %v7505, 0
    %v7526 = vsel %vm6008, %v7506, 0
    %v7529 = vsel %vm6008, %v7507, 0
    %v7532 = vsel %vm6008, %v7508, 0
    %v7535 = vsel %vm6008, %v7509, 0
    %v7538 = vsel %vm6008, %v7510, 0
    %v7541 = vsel %vm6008, %v7511, 0
    %v7544 = vsel %vm6008, %v7512, 0
    %7546 = vmatprep.subr.bf16.mxu0 0
    %7547 = vmatpush1.bf16.msra.mxu0 %v7520
    %7548 = vmatprep.subr.bf16.mxu0 0
    %7549 = vmatpush1.bf16.msra.mxu0 0
    %7550 = vmatprep.subr.bf16.mxu0 0
    %7551 = vmatpush1.bf16.msra.mxu0 0
    %7552 = vmatprep.subr.bf16.mxu0 0
    %7553 = vmatpush1.bf16.msra.mxu0 0
    %7554 = vmatprep.subr.bf16.mxu0 0
    %7555 = vmatpush1.bf16.msra.mxu0 0
    %7556 = vmatprep.subr.bf16.mxu0 0
    %7557 = vmatpush1.bf16.msra.mxu0 0
    %7558 = vmatprep.subr.bf16.mxu0 0
    %7559 = vmatpush1.bf16.msra.mxu0 0
    %7560 = vmatprep.subr.bf16.mxu0 0
    %7561 = vmatpush1.bf16.msra.mxu0 0
    %7562 = vmatprep.subr.bf16.mxu0 0
    %7563 = vmatpush1.bf16.msra.mxu0 0
    %7564 = vmatprep.subr.bf16.mxu0 0
    %7565 = vmatpush1.bf16.msra.mxu0 0
    %7566 = vmatprep.subr.bf16.mxu0 0
    %7567 = vmatpush1.bf16.msra.mxu0 0
    %7568 = vmatprep.subr.bf16.mxu0 0
    %7569 = vmatpush1.bf16.msra.mxu0 0
    %7570 = vmatprep.subr.bf16.mxu0 0
    %7571 = vmatpush1.bf16.msra.mxu0 0
    %7572 = vmatprep.subr.bf16.mxu0 0
    %7573 = vmatpush1.bf16.msra.mxu0 0
    %7574 = vmatprep.subr.bf16.mxu0 0
    %7575 = vmatpush1.bf16.msra.mxu0 0
    %7576 = vmatprep.subr.bf16.mxu0 0
    %7577 = vmatpush1.bf16.msra.mxu0 0
    %7578 = vmatprep.mubr.bf16.mxu0 0
    %7579 = vmatmul.mubr.bf16.gmra.mrb[0].mxu0 %v7523
    %v7580 = vpop.f32.mrb[0].mxu0
    %v7581 = vadd.f32 0.0, %v7580
    %v7582 = vpop.f32.mrb[0].mxu0
    %v7583 = vpop.f32.mrb[0].mxu0
    %v7584 = vadd.f32 0.0, %v7583
    %v7585 = vpop.f32.mrb[0].mxu0
    %7586 = vmatprep.mubr.bf16.mxu0 0
    %7587 = vmatmul.mubr.bf16.gmra.mrb[0].mxu0 %v7526
    %v7588 = vpop.f32.mrb[0].mxu0
    %v7589 = vadd.f32 0.0, %v7588
    %v7590 = vpop.f32.mrb[0].mxu0
    %v7591 = vpop.f32.mrb[0].mxu0
    %v7592 = vadd.f32 0.0, %v7591
    %v7593 = vpop.f32.mrb[0].mxu0
    %7594 = vmatprep.mubr.bf16.mxu0 0
    %7595 = vmatmul.mubr.bf16.gmra.mrb[0].mxu0 %v7529
    %v7596 = vpop.f32.mrb[0].mxu0
    %v7597 = vadd.f32 0.0, %v7596
    %v7598 = vpop.f32.mrb[0].mxu0
    %v7599 = vpop.f32.mrb[0].mxu0
    %v7600 = vadd.f32 0.0, %v7599
    %v7601 = vpop.f32.mrb[0].mxu0
    %7602 = vmatprep.mubr.bf16.mxu0 0
    %7603 = vmatmul.mubr.bf16.gmra.mrb[0].mxu0 %v7532
    %v7604 = vpop.f32.mrb[0].mxu0
    %v7605 = vadd.f32 0.0, %v7604
    %v7606 = vpop.f32.mrb[0].mxu0
    %v7607 = vpop.f32.mrb[0].mxu0
    %v7608 = vadd.f32 0.0, %v7607
    %v7609 = vpop.f32.mrb[0].mxu0
    %7610 = vmatprep.mubr.bf16.mxu0 0
    %7611 = vmatmul.mubr.bf16.gmra.mrb[0].mxu0 %v7535
    %v7612 = vpop.f32.mrb[0].mxu0
    %v7613 = vadd.f32 0.0, %v7612
    %v7614 = vpop.f32.mrb[0].mxu0
    %v7615 = vpop.f32.mrb[0].mxu0
    %v7616 = vadd.f32 0.0, %v7615
    %v7617 = vpop.f32.mrb[0].mxu0
    %7618 = vmatprep.mubr.bf16.mxu0 0
    %7619 = vmatmul.mubr.bf16.gmra.mrb[0].mxu0 %v7538
    %v7620 = vpop.f32.mrb[0].mxu0
    %v7621 = vadd.f32 0.0, %v7620
    %v7622 = vpop.f32.mrb[0].mxu0
    %v7623 = vpop.f32.mrb[0].mxu0
    %v7624 = vadd.f32 0.0, %v7623
    %v7625 = vpop.f32.mrb[0].mxu0
    %7626 = vmatprep.mubr.bf16.mxu0 0
    %7627 = vmatmul.mubr.bf16.gmra.mrb[0].mxu0 %v7541
    %v7628 = vpop.f32.mrb[0].mxu0
    %v7629 = vadd.f32 0.0, %v7628
    %v7630 = vpop.f32.mrb[0].mxu0
    %v7631 = vpop.f32.mrb[0].mxu0
    %v7632 = vadd.f32 0.0, %v7631
    %v7633 = vpop.f32.mrb[0].mxu0
    %7634 = vmatprep.mubr.bf16.mxu0 0
    %7635 = vmatmul.mubr.bf16.gmra.mrb[0].mxu0 %v7544
    %v7636 = vpop.f32.mrb[0].mxu0
    %v7637 = vadd.f32 0.0, %v7636
    %v7638 = vpop.f32.mrb[0].mxu0
    %v7639 = vpop.f32.mrb[0].mxu0
    %v7640 = vadd.f32 0.0, %v7639
    %v7641 = vpop.f32.mrb[0].mxu0
    %7642 = vdwg.mxu0
    %v7643 = vadd.f32 %v7473, %v7581
    %v7644 = vadd.f32 %v7474, %v7584
    %v7645 = vadd.f32 %v7475, %v7589
    %v7646 = vadd.f32 %v7476, %v7592
    %v7647 = vadd.f32 %v7477, %v7597
    %v7648 = vadd.f32 %v7478, %v7600
    %v7649 = vadd.f32 %v7479, %v7605
    %v7650 = vadd.f32 %v7480, %v7608
    %v7651 = vadd.f32 %v7481, %v7613
    %v7652 = vadd.f32 %v7482, %v7616
    %v7653 = vadd.f32 %v7483, %v7621
    %v7654 = vadd.f32 %v7484, %v7624
    %v7655 = vadd.f32 %v7485, %v7629
    %v7656 = vadd.f32 %v7486, %v7632
    %v7657 = vadd.f32 %v7487, %v7637
    %v7658 = vadd.f32 %v7488, %v7640
    %v7659 = vld [vmem:[%s6825 + $0x2] sm:$0xff]
    %v7660 = vld [vmem:[%s6825 + $0x12] sm:$0xff]
    %v7661 = vld [vmem:[%s6825 + $0x22] sm:$0xff]
    %v7662 = vld [vmem:[%s6825 + $0x32] sm:$0xff]
    %v7663 = vld [vmem:[%s6825 + $0x42] sm:$0xff]
    %v7664 = vld [vmem:[%s6825 + $0x52] sm:$0xff]
    %v7665 = vld [vmem:[%s6825 + $0x62] sm:$0xff]
    %v7666 = vld [vmem:[%s6825 + $0x72] sm:$0xff]
    %v7667 = vld [vmem:[%s6825 + $0xa2] sm:$0xff]
    %v7668 = vld [vmem:[%s6825 + $0xb2] sm:$0xff]
    %v7669 = vld [vmem:[%s6825 + $0xc2] sm:$0xff]
    %v7670 = vld [vmem:[%s6825 + $0xd2] sm:$0xff]
    %v7671 = vld [vmem:[%s6825 + $0xe2] sm:$0xff]
    %v7672 = vld [vmem:[%s6825 + $0xf2] sm:$0xff]
    %v7673 = vld [vmem:[%s6825 + $0x102] sm:$0xff]
    %v7674 = vld [vmem:[%s6825 + $0x112] sm:$0xff]
    %v7675 = vpack.c.bf16 %v7660, %v7659
    %v7676 = vpack.c.bf16 %v7662, %v7661
    %v7677 = vpack.c.bf16 %v7664, %v7663
    %v7678 = vpack.c.bf16 %v7666, %v7665
    %v7679 = vpack.c.bf16 %v7668, %v7667
    %v7680 = vpack.c.bf16 %v7670, %v7669
    %v7681 = vpack.c.bf16 %v7672, %v7671
    %v7682 = vpack.c.bf16 %v7674, %v7673
    %s7683 = scalar_lea.vmem %s3, 40
    %v7684 = vld [vmem:[%s7683] sm:$0xf]
    %v7685 = vld [vmem:[%s7683 + $0x4] sm:$0xf]
    %v7688 = vunpack.c.l.b16 %v7684
    %v7689 = vunpack.c.l.b16 %v7685
    %v7690 = vpack.c.b16 %v7689, %v7688
    %v7693 = vsel %vm6008, %v7675, 0
    %v7696 = vsel %vm6008, %v7676, 0
    %v7699 = vsel %vm6008, %v7677, 0
    %v7702 = vsel %vm6008, %v7678, 0
    %v7705 = vsel %vm6008, %v7679, 0
    %v7708 = vsel %vm6008, %v7680, 0
    %v7711 = vsel %vm6008, %v7681, 0
    %v7714 = vsel %vm6008, %v7682, 0
    %7716 = vmatprep.subr.bf16.mxu0 0
    %7717 = vmatpush1.bf16.msra.mxu0 %v7690
    %7718 = vmatprep.subr.bf16.mxu0 0
    %7719 = vmatpush1.bf16.msra.mxu0 0
    %7720 = vmatprep.subr.bf16.mxu0 0
    %7721 = vmatpush1.bf16.msra.mxu0 0
    %7722 = vmatprep.subr.bf16.mxu0 0
    %7723 = vmatpush1.bf16.msra.mxu0 0
    %7724 = vmatprep.subr.bf16.mxu0 0
    %7725 = vmatpush1.bf16.msra.mxu0 0
    %7726 = vmatprep.subr.bf16.mxu0 0
    %7727 = vmatpush1.bf16.msra.mxu0 0
    %7728 = vmatprep.subr.bf16.mxu0 0
    %7729 = vmatpush1.bf16.msra.mxu0 0
    %7730 = vmatprep.subr.bf16.mxu0 0
    %7731 = vmatpush1.bf16.msra.mxu0 0
    %7732 = vmatprep.subr.bf16.mxu0 0
    %7733 = vmatpush1.bf16.msra.mxu0 0
    %7734 = vmatprep.subr.bf16.mxu0 0
    %7735 = vmatpush1.bf16.msra.mxu0 0
    %7736 = vmatprep.subr.bf16.mxu0 0
    %7737 = vmatpush1.bf16.msra.mxu0 0
    %7738 = vmatprep.subr.bf16.mxu0 0
    %7739 = vmatpush1.bf16.msra.mxu0 0
    %7740 = vmatprep.subr.bf16.mxu0 0
    %7741 = vmatpush1.bf16.msra.mxu0 0
    %7742 = vmatprep.subr.bf16.mxu0 0
    %7743 = vmatpush1.bf16.msra.mxu0 0
    %7744 = vmatprep.subr.bf16.mxu0 0
    %7745 = vmatpush1.bf16.msra.mxu0 0
    %7746 = vmatprep.subr.bf16.mxu0 0
    %7747 = vmatpush1.bf16.msra.mxu0 0
    %7748 = vmatprep.mubr.bf16.mxu0 0
    %7749 = vmatmul.mubr.bf16.gmra.mrb[0].mxu0 %v7693
    %v7750 = vpop.f32.mrb[0].mxu0
    %v7751 = vadd.f32 0.0, %v7750
    %v7752 = vpop.f32.mrb[0].mxu0
    %v7753 = vpop.f32.mrb[0].mxu0
    %v7754 = vadd.f32 0.0, %v7753
    %v7755 = vpop.f32.mrb[0].mxu0
    %7756 = vmatprep.mubr.bf16.mxu0 0
    %7757 = vmatmul.mubr.bf16.gmra.mrb[0].mxu0 %v7696
    %v7758 = vpop.f32.mrb[0].mxu0
    %v7759 = vadd.f32 0.0, %v7758
    %v7760 = vpop.f32.mrb[0].mxu0
    %v7761 = vpop.f32.mrb[0].mxu0
    %v7762 = vadd.f32 0.0, %v7761
    %v7763 = vpop.f32.mrb[0].mxu0
    %7764 = vmatprep.mubr.bf16.mxu0 0
    %7765 = vmatmul.mubr.bf16.gmra.mrb[0].mxu0 %v7699
    %v7766 = vpop.f32.mrb[0].mxu0
    %v7767 = vadd.f32 0.0, %v7766
    %v7768 = vpop.f32.mrb[0].mxu0
    %v7769 = vpop.f32.mrb[0].mxu0
    %v7770 = vadd.f32 0.0, %v7769
    %v7771 = vpop.f32.mrb[0].mxu0
    %7772 = vmatprep.mubr.bf16.mxu0 0
    %7773 = vmatmul.mubr.bf16.gmra.mrb[0].mxu0 %v7702
    %v7774 = vpop.f32.mrb[0].mxu0
    %v7775 = vadd.f32 0.0, %v7774
    %v7776 = vpop.f32.mrb[0].mxu0
    %v7777 = vpop.f32.mrb[0].mxu0
    %v7778 = vadd.f32 0.0, %v7777
    %v7779 = vpop.f32.mrb[0].mxu0
    %7780 = vmatprep.mubr.bf16.mxu0 0
    %7781 = vmatmul.mubr.bf16.gmra.mrb[0].mxu0 %v7705
    %v7782 = vpop.f32.mrb[0].mxu0
    %v7783 = vadd.f32 0.0, %v7782
    %v7784 = vpop.f32.mrb[0].mxu0
    %v7785 = vpop.f32.mrb[0].mxu0
    %v7786 = vadd.f32 0.0, %v7785
    %v7787 = vpop.f32.mrb[0].mxu0
    %7788 = vmatprep.mubr.bf16.mxu0 0
    %7789 = vmatmul.mubr.bf16.gmra.mrb[0].mxu0 %v7708
    %v7790 = vpop.f32.mrb[0].mxu0
    %v7791 = vadd.f32 0.0, %v7790
    %v7792 = vpop.f32.mrb[0].mxu0
    %v7793 = vpop.f32.mrb[0].mxu0
    %v7794 = vadd.f32 0.0, %v7793
    %v7795 = vpop.f32.mrb[0].mxu0
    %7796 = vmatprep.mubr.bf16.mxu0 0
    %7797 = vmatmul.mubr.bf16.gmra.mrb[0].mxu0 %v7711
    %v7798 = vpop.f32.mrb[0].mxu0
    %v7799 = vadd.f32 0.0, %v7798
    %v7800 = vpop.f32.mrb[0].mxu0
    %v7801 = vpop.f32.mrb[0].mxu0
    %v7802 = vadd.f32 0.0, %v7801
    %v7803 = vpop.f32.mrb[0].mxu0
    %7804 = vmatprep.mubr.bf16.mxu0 0
    %7805 = vmatmul.mubr.bf16.gmra.mrb[0].mxu0 %v7714
    %v7806 = vpop.f32.mrb[0].mxu0
    %v7807 = vadd.f32 0.0, %v7806
    %v7808 = vpop.f32.mrb[0].mxu0
    %v7809 = vpop.f32.mrb[0].mxu0
    %v7810 = vadd.f32 0.0, %v7809
    %v7811 = vpop.f32.mrb[0].mxu0
    %7812 = vdwg.mxu0
    %v7813 = vadd.f32 %v7643, %v7751
    %v7814 = vadd.f32 %v7644, %v7754
    %v7815 = vadd.f32 %v7645, %v7759
    %v7816 = vadd.f32 %v7646, %v7762
    %v7817 = vadd.f32 %v7647, %v7767
    %v7818 = vadd.f32 %v7648, %v7770
    %v7819 = vadd.f32 %v7649, %v7775
    %v7820 = vadd.f32 %v7650, %v7778
    %v7821 = vadd.f32 %v7651, %v7783
    %v7822 = vadd.f32 %v7652, %v7786
    %v7823 = vadd.f32 %v7653, %v7791
    %v7824 = vadd.f32 %v7654, %v7794
    %v7825 = vadd.f32 %v7655, %v7799
    %v7826 = vadd.f32 %v7656, %v7802
    %v7827 = vadd.f32 %v7657, %v7807
    %v7828 = vadd.f32 %v7658, %v7810
    %s7829 = scalar_lea.vmem [#allocation2], 32
    %v7830 = vld [vmem:[%s7829] sm:$0xff]
    %v7831 = vld [vmem:[%s7829 + $0x10] sm:$0xff]
    %v7832 = vld [vmem:[%s7829 + $0x20] sm:$0xff]
    %v7833 = vld [vmem:[%s7829 + $0x30] sm:$0xff]
    %v7834 = vld [vmem:[%s7829 + $0x40] sm:$0xff]
    %v7835 = vld [vmem:[%s7829 + $0x50] sm:$0xff]
    %v7836 = vld [vmem:[%s7829 + $0x60] sm:$0xff]
    %v7837 = vld [vmem:[%s7829 + $0x70] sm:$0xff]
    %v7838 = vld [vmem:[%s7829 + $0xa0] sm:$0xff]
    %v7839 = vld [vmem:[%s7829 + $0xb0] sm:$0xff]
    %v7840 = vld [vmem:[%s7829 + $0xc0] sm:$0xff]
    %v7841 = vld [vmem:[%s7829 + $0xd0] sm:$0xff]
    %v7842 = vld [vmem:[%s7829 + $0xe0] sm:$0xff]
    %v7843 = vld [vmem:[%s7829 + $0xf0] sm:$0xff]
    %v7844 = vld [vmem:[%s7829 + $0x100] sm:$0xff]
    %v7845 = vld [vmem:[%s7829 + $0x110] sm:$0xff]
    %v7846 = vpack.c.bf16 %v7831, %v7830
    %v7847 = vpack.c.bf16 %v7833, %v7832
    %v7848 = vpack.c.bf16 %v7835, %v7834
    %v7849 = vpack.c.bf16 %v7837, %v7836
    %v7850 = vpack.c.bf16 %v7839, %v7838
    %v7851 = vpack.c.bf16 %v7841, %v7840
    %v7852 = vpack.c.bf16 %v7843, %v7842
    %v7853 = vpack.c.bf16 %v7845, %v7844
    %s7854 = scalar_lea.vmem %s3, 48
    %v7855 = vld [vmem:[%s7854] sm:$0xf]
    %v7856 = vld [vmem:[%s7854 + $0x4] sm:$0xf]
    %v7859 = vunpack.c.l.b16 %v7855
    %v7860 = vunpack.c.l.b16 %v7856
    %v7861 = vpack.c.b16 %v7860, %v7859
    %v7864 = vsel %vm6008, %v7846, 0
    %v7867 = vsel %vm6008, %v7847, 0
    %v7870 = vsel %vm6008, %v7848, 0
    %v7873 = vsel %vm6008, %v7849, 0
    %v7876 = vsel %vm6008, %v7850, 0
    %v7879 = vsel %vm6008, %v7851, 0
    %v7882 = vsel %vm6008, %v7852, 0
    %v7885 = vsel %vm6008, %v7853, 0
    %7887 = vmatprep.subr.bf16.mxu0 0
    %7888 = vmatpush1.bf16.msra.mxu0 %v7861
    %7889 = vmatprep.subr.bf16.mxu0 0
    %7890 = vmatpush1.bf16.msra.mxu0 0
    %7891 = vmatprep.subr.bf16.mxu0 0
    %7892 = vmatpush1.bf16.msra.mxu0 0
    %7893 = vmatprep.subr.bf16.mxu0 0
    %7894 = vmatpush1.bf16.msra.mxu0 0
    %7895 = vmatprep.subr.bf16.mxu0 0
    %7896 = vmatpush1.bf16.msra.mxu0 0
    %7897 = vmatprep.subr.bf16.mxu0 0
    %7898 = vmatpush1.bf16.msra.mxu0 0
    %7899 = vmatprep.subr.bf16.mxu0 0
    %7900 = vmatpush1.bf16.msra.mxu0 0
    %7901 = vmatprep.subr.bf16.mxu0 0
    %7902 = vmatpush1.bf16.msra.mxu0 0
    %7903 = vmatprep.subr.bf16.mxu0 0
    %7904 = vmatpush1.bf16.msra.mxu0 0
    %7905 = vmatprep.subr.bf16.mxu0 0
    %7906 = vmatpush1.bf16.msra.mxu0 0
    %7907 = vmatprep.subr.bf16.mxu0 0
    %7908 = vmatpush1.bf16.msra.mxu0 0
    %7909 = vmatprep.subr.bf16.mxu0 0
    %7910 = vmatpush1.bf16.msra.mxu0 0
    %7911 = vmatprep.subr.bf16.mxu0 0
    %7912 = vmatpush1.bf16.msra.mxu0 0
    %7913 = vmatprep.subr.bf16.mxu0 0
    %7914 = vmatpush1.bf16.msra.mxu0 0
    %7915 = vmatprep.subr.bf16.mxu0 0
    %7916 = vmatpush1.bf16.msra.mxu0 0
    %7917 = vmatprep.subr.bf16.mxu0 0
    %7918 = vmatpush1.bf16.msra.mxu0 0
    %7919 = vmatprep.mubr.bf16.mxu0 0
    %7920 = vmatmul.mubr.bf16.gmra.mrb[0].mxu0 %v7864
    %v7921 = vpop.f32.mrb[0].mxu0
    %v7922 = vadd.f32 0.0, %v7921
    %v7923 = vpop.f32.mrb[0].mxu0
    %v7924 = vpop.f32.mrb[0].mxu0
    %v7925 = vadd.f32 0.0, %v7924
    %v7926 = vpop.f32.mrb[0].mxu0
    %7927 = vmatprep.mubr.bf16.mxu0 0
    %7928 = vmatmul.mubr.bf16.gmra.mrb[0].mxu0 %v7867
    %v7929 = vpop.f32.mrb[0].mxu0
    %v7930 = vadd.f32 0.0, %v7929
    %v7931 = vpop.f32.mrb[0].mxu0
    %v7932 = vpop.f32.mrb[0].mxu0
    %v7933 = vadd.f32 0.0, %v7932
    %v7934 = vpop.f32.mrb[0].mxu0
    %7935 = vmatprep.mubr.bf16.mxu0 0
    %7936 = vmatmul.mubr.bf16.gmra.mrb[0].mxu0 %v7870
    %v7937 = vpop.f32.mrb[0].mxu0
    %v7938 = vadd.f32 0.0, %v7937
    %v7939 = vpop.f32.mrb[0].mxu0
    %v7940 = vpop.f32.mrb[0].mxu0
    %v7941 = vadd.f32 0.0, %v7940
    %v7942 = vpop.f32.mrb[0].mxu0
    %7943 = vmatprep.mubr.bf16.mxu0 0
    %7944 = vmatmul.mubr.bf16.gmra.mrb[0].mxu0 %v7873
    %v7945 = vpop.f32.mrb[0].mxu0
    %v7946 = vadd.f32 0.0, %v7945
    %v7947 = vpop.f32.mrb[0].mxu0
    %v7948 = vpop.f32.mrb[0].mxu0
    %v7949 = vadd.f32 0.0, %v7948
    %v7950 = vpop.f32.mrb[0].mxu0
    %7951 = vmatprep.mubr.bf16.mxu0 0
    %7952 = vmatmul.mubr.bf16.gmra.mrb[0].mxu0 %v7876
    %v7953 = vpop.f32.mrb[0].mxu0
    %v7954 = vadd.f32 0.0, %v7953
    %v7955 = vpop.f32.mrb[0].mxu0
    %v7956 = vpop.f32.mrb[0].mxu0
    %v7957 = vadd.f32 0.0, %v7956
    %v7958 = vpop.f32.mrb[0].mxu0
    %7959 = vmatprep.mubr.bf16.mxu0 0
    %7960 = vmatmul.mubr.bf16.gmra.mrb[0].mxu0 %v7879
    %v7961 = vpop.f32.mrb[0].mxu0
    %v7962 = vadd.f32 0.0, %v7961
    %v7963 = vpop.f32.mrb[0].mxu0
    %v7964 = vpop.f32.mrb[0].mxu0
    %v7965 = vadd.f32 0.0, %v7964
    %v7966 = vpop.f32.mrb[0].mxu0
    %7967 = vmatprep.mubr.bf16.mxu0 0
    %7968 = vmatmul.mubr.bf16.gmra.mrb[0].mxu0 %v7882
    %v7969 = vpop.f32.mrb[0].mxu0
    %v7970 = vadd.f32 0.0, %v7969
    %v7971 = vpop.f32.mrb[0].mxu0
    %v7972 = vpop.f32.mrb[0].mxu0
    %v7973 = vadd.f32 0.0, %v7972
    %v7974 = vpop.f32.mrb[0].mxu0
    %7975 = vmatprep.mubr.bf16.mxu0 0
    %7976 = vmatmul.mubr.bf16.gmra.mrb[0].mxu0 %v7885
    %v7977 = vpop.f32.mrb[0].mxu0
    %v7978 = vadd.f32 0.0, %v7977
    %v7979 = vpop.f32.mrb[0].mxu0
    %v7980 = vpop.f32.mrb[0].mxu0
    %v7981 = vadd.f32 0.0, %v7980
    %v7982 = vpop.f32.mrb[0].mxu0
    %7983 = vdwg.mxu0
    %v7984 = vadd.f32 %v7813, %v7922
    %v7985 = vadd.f32 %v7814, %v7925
    %v7986 = vadd.f32 %v7815, %v7930
    %v7987 = vadd.f32 %v7816, %v7933
    %v7988 = vadd.f32 %v7817, %v7938
    %v7989 = vadd.f32 %v7818, %v7941
    %v7990 = vadd.f32 %v7819, %v7946
    %v7991 = vadd.f32 %v7820, %v7949
    %v7992 = vadd.f32 %v7821, %v7954
    %v7993 = vadd.f32 %v7822, %v7957
    %v7994 = vadd.f32 %v7823, %v7962
    %v7995 = vadd.f32 %v7824, %v7965
    %v7996 = vadd.f32 %v7825, %v7970
    %v7997 = vadd.f32 %v7826, %v7973
    %v7998 = vadd.f32 %v7827, %v7978
    %v7999 = vadd.f32 %v7828, %v7981
    %v8000 = vld [vmem:[%s7829 + $0x1] sm:$0xff]
    %v8001 = vld [vmem:[%s7829 + $0x11] sm:$0xff]
    %v8002 = vld [vmem:[%s7829 + $0x21] sm:$0xff]
    %v8003 = vld [vmem:[%s7829 + $0x31] sm:$0xff]
    %v8004 = vld [vmem:[%s7829 + $0x41] sm:$0xff]
    %v8005 = vld [vmem:[%s7829 + $0x51] sm:$0xff]
    %v8006 = vld [vmem:[%s7829 + $0x61] sm:$0xff]
    %v8007 = vld [vmem:[%s7829 + $0x71] sm:$0xff]
    %v8008 = vld [vmem:[%s7829 + $0xa1] sm:$0xff]
    %v8009 = vld [vmem:[%s7829 + $0xb1] sm:$0xff]
    %v8010 = vld [vmem:[%s7829 + $0xc1] sm:$0xff]
    %v8011 = vld [vmem:[%s7829 + $0xd1] sm:$0xff]
    %v8012 = vld [vmem:[%s7829 + $0xe1] sm:$0xff]
    %v8013 = vld [vmem:[%s7829 + $0xf1] sm:$0xff]
    %v8014 = vld [vmem:[%s7829 + $0x101] sm:$0xff]
    %v8015 = vld [vmem:[%s7829 + $0x111] sm:$0xff]
    %v8016 = vpack.c.bf16 %v8001, %v8000
    %v8017 = vpack.c.bf16 %v8003, %v8002
    %v8018 = vpack.c.bf16 %v8005, %v8004
    %v8019 = vpack.c.bf16 %v8007, %v8006
    %v8020 = vpack.c.bf16 %v8009, %v8008
    %v8021 = vpack.c.bf16 %v8011, %v8010
    %v8022 = vpack.c.bf16 %v8013, %v8012
    %v8023 = vpack.c.bf16 %v8015, %v8014
    %s8024 = scalar_lea.vmem %s3, 56
    %v8025 = vld [vmem:[%s8024] sm:$0xf]
    %v8026 = vld [vmem:[%s8024 + $0x4] sm:$0xf]
    %v8029 = vunpack.c.l.b16 %v8025
    %v8030 = vunpack.c.l.b16 %v8026
    %v8031 = vpack.c.b16 %v8030, %v8029
    %v8034 = vsel %vm6008, %v8016, 0
    %v8037 = vsel %vm6008, %v8017, 0
    %v8040 = vsel %vm6008, %v8018, 0
    %v8043 = vsel %vm6008, %v8019, 0
    %v8046 = vsel %vm6008, %v8020, 0
    %v8049 = vsel %vm6008, %v8021, 0
    %v8052 = vsel %vm6008, %v8022, 0
    %v8055 = vsel %vm6008, %v8023, 0
    %8057 = vmatprep.subr.bf16.mxu0 0
    %8058 = vmatpush1.bf16.msra.mxu0 %v8031
    %8059 = vmatprep.subr.bf16.mxu0 0
    %8060 = vmatpush1.bf16.msra.mxu0 0
    %8061 = vmatprep.subr.bf16.mxu0 0
    %8062 = vmatpush1.bf16.msra.mxu0 0
    %8063 = vmatprep.subr.bf16.mxu0 0
    %8064 = vmatpush1.bf16.msra.mxu0 0
    %8065 = vmatprep.subr.bf16.mxu0 0
    %8066 = vmatpush1.bf16.msra.mxu0 0
    %8067 = vmatprep.subr.bf16.mxu0 0
    %8068 = vmatpush1.bf16.msra.mxu0 0
    %8069 = vmatprep.subr.bf16.mxu0 0
    %8070 = vmatpush1.bf16.msra.mxu0 0
    %8071 = vmatprep.subr.bf16.mxu0 0
    %8072 = vmatpush1.bf16.msra.mxu0 0
    %8073 = vmatprep.subr.bf16.mxu0 0
    %8074 = vmatpush1.bf16.msra.mxu0 0
    %8075 = vmatprep.subr.bf16.mxu0 0
    %8076 = vmatpush1.bf16.msra.mxu0 0
    %8077 = vmatprep.subr.bf16.mxu0 0
    %8078 = vmatpush1.bf16.msra.mxu0 0
    %8079 = vmatprep.subr.bf16.mxu0 0
    %8080 = vmatpush1.bf16.msra.mxu0 0
    %8081 = vmatprep.subr.bf16.mxu0 0
    %8082 = vmatpush1.bf16.msra.mxu0 0
    %8083 = vmatprep.subr.bf16.mxu0 0
    %8084 = vmatpush1.bf16.msra.mxu0 0
    %8085 = vmatprep.subr.bf16.mxu0 0
    %8086 = vmatpush1.bf16.msra.mxu0 0
    %8087 = vmatprep.subr.bf16.mxu0 0
    %8088 = vmatpush1.bf16.msra.mxu0 0
    %8089 = vmatprep.mubr.bf16.mxu0 0
    %8090 = vmatmul.mubr.bf16.gmra.mrb[0].mxu0 %v8034
    %v8091 = vpop.f32.mrb[0].mxu0
    %v8092 = vadd.f32 0.0, %v8091
    %v8093 = vpop.f32.mrb[0].mxu0
    %v8094 = vpop.f32.mrb[0].mxu0
    %v8095 = vadd.f32 0.0, %v8094
    %v8096 = vpop.f32.mrb[0].mxu0
    %8097 = vmatprep.mubr.bf16.mxu0 0
    %8098 = vmatmul.mubr.bf16.gmra.mrb[0].mxu0 %v8037
    %v8099 = vpop.f32.mrb[0].mxu0
    %v8100 = vadd.f32 0.0, %v8099
    %v8101 = vpop.f32.mrb[0].mxu0
    %v8102 = vpop.f32.mrb[0].mxu0
    %v8103 = vadd.f32 0.0, %v8102
    %v8104 = vpop.f32.mrb[0].mxu0
    %8105 = vmatprep.mubr.bf16.mxu0 0
    %8106 = vmatmul.mubr.bf16.gmra.mrb[0].mxu0 %v8040
    %v8107 = vpop.f32.mrb[0].mxu0
    %v8108 = vadd.f32 0.0, %v8107
    %v8109 = vpop.f32.mrb[0].mxu0
    %v8110 = vpop.f32.mrb[0].mxu0
    %v8111 = vadd.f32 0.0, %v8110
    %v8112 = vpop.f32.mrb[0].mxu0
    %8113 = vmatprep.mubr.bf16.mxu0 0
    %8114 = vmatmul.mubr.bf16.gmra.mrb[0].mxu0 %v8043
    %v8115 = vpop.f32.mrb[0].mxu0
    %v8116 = vadd.f32 0.0, %v8115
    %v8117 = vpop.f32.mrb[0].mxu0
    %v8118 = vpop.f32.mrb[0].mxu0
    %v8119 = vadd.f32 0.0, %v8118
    %v8120 = vpop.f32.mrb[0].mxu0
    %8121 = vmatprep.mubr.bf16.mxu0 0
    %8122 = vmatmul.mubr.bf16.gmra.mrb[0].mxu0 %v8046
    %v8123 = vpop.f32.mrb[0].mxu0
    %v8124 = vadd.f32 0.0, %v8123
    %v8125 = vpop.f32.mrb[0].mxu0
    %v8126 = vpop.f32.mrb[0].mxu0
    %v8127 = vadd.f32 0.0, %v8126
    %v8128 = vpop.f32.mrb[0].mxu0
    %8129 = vmatprep.mubr.bf16.mxu0 0
    %8130 = vmatmul.mubr.bf16.gmra.mrb[0].mxu0 %v8049
    %v8131 = vpop.f32.mrb[0].mxu0
    %v8132 = vadd.f32 0.0, %v8131
    %v8133 = vpop.f32.mrb[0].mxu0
    %v8134 = vpop.f32.mrb[0].mxu0
    %v8135 = vadd.f32 0.0, %v8134
    %v8136 = vpop.f32.mrb[0].mxu0
    %8137 = vmatprep.mubr.bf16.mxu0 0
    %8138 = vmatmul.mubr.bf16.gmra.mrb[0].mxu0 %v8052
    %v8139 = vpop.f32.mrb[0].mxu0
    %v8140 = vadd.f32 0.0, %v8139
    %v8141 = vpop.f32.mrb[0].mxu0
    %v8142 = vpop.f32.mrb[0].mxu0
    %v8143 = vadd.f32 0.0, %v8142
    %v8144 = vpop.f32.mrb[0].mxu0
    %8145 = vmatprep.mubr.bf16.mxu0 0
    %8146 = vmatmul.mubr.bf16.gmra.mrb[0].mxu0 %v8055
    %v8147 = vpop.f32.mrb[0].mxu0
    %v8148 = vadd.f32 0.0, %v8147
    %v8149 = vpop.f32.mrb[0].mxu0
    %v8150 = vpop.f32.mrb[0].mxu0
    %v8151 = vadd.f32 0.0, %v8150
    %v8152 = vpop.f32.mrb[0].mxu0
    %8153 = vdwg.mxu0
    %v8154 = vadd.f32 %v7984, %v8092
    %v8155 = vadd.f32 %v7985, %v8095
    %v8156 = vadd.f32 %v7986, %v8100
    %v8157 = vadd.f32 %v7987, %v8103
    %v8158 = vadd.f32 %v7988, %v8108
    %v8159 = vadd.f32 %v7989, %v8111
    %v8160 = vadd.f32 %v7990, %v8116
    %v8161 = vadd.f32 %v7991, %v8119
    %v8162 = vadd.f32 %v7992, %v8124
    %v8163 = vadd.f32 %v7993, %v8127
    %v8164 = vadd.f32 %v7994, %v8132
    %v8165 = vadd.f32 %v7995, %v8135
    %v8166 = vadd.f32 %v7996, %v8140
    %v8167 = vadd.f32 %v7997, %v8143
    %v8168 = vadd.f32 %v7998, %v8148
    %v8169 = vadd.f32 %v7999, %v8151
    %v8170 = vld [vmem:[%s7829 + $0x2] sm:$0xff]
    %v8171 = vld [vmem:[%s7829 + $0x12] sm:$0xff]
    %v8172 = vld [vmem:[%s7829 + $0x22] sm:$0xff]
    %v8173 = vld [vmem:[%s7829 + $0x32] sm:$0xff]
    %v8174 = vld [vmem:[%s7829 + $0x42] sm:$0xff]
    %v8175 = vld [vmem:[%s7829 + $0x52] sm:$0xff]
    %v8176 = vld [vmem:[%s7829 + $0x62] sm:$0xff]
    %v8177 = vld [vmem:[%s7829 + $0x72] sm:$0xff]
    %v8178 = vld [vmem:[%s7829 + $0xa2] sm:$0xff]
    %v8179 = vld [vmem:[%s7829 + $0xb2] sm:$0xff]
    %v8180 = vld [vmem:[%s7829 + $0xc2] sm:$0xff]
    %v8181 = vld [vmem:[%s7829 + $0xd2] sm:$0xff]
    %v8182 = vld [vmem:[%s7829 + $0xe2] sm:$0xff]
    %v8183 = vld [vmem:[%s7829 + $0xf2] sm:$0xff]
    %v8184 = vld [vmem:[%s7829 + $0x102] sm:$0xff]
    %v8185 = vld [vmem:[%s7829 + $0x112] sm:$0xff]
    %v8186 = vpack.c.bf16 %v8171, %v8170
    %v8187 = vpack.c.bf16 %v8173, %v8172
    %v8188 = vpack.c.bf16 %v8175, %v8174
    %v8189 = vpack.c.bf16 %v8177, %v8176
    %v8190 = vpack.c.bf16 %v8179, %v8178
    %v8191 = vpack.c.bf16 %v8181, %v8180
    %v8192 = vpack.c.bf16 %v8183, %v8182
    %v8193 = vpack.c.bf16 %v8185, %v8184
    %s8194 = scalar_lea.vmem %s3, 64
    %v8195 = vld [vmem:[%s8194] sm:$0xf]
    %v8196 = vld [vmem:[%s8194 + $0x4] sm:$0xf]
    %v8199 = vunpack.c.l.b16 %v8195
    %v8200 = vunpack.c.l.b16 %v8196
    %v8201 = vpack.c.b16 %v8200, %v8199
    %v8204 = vsel %vm6008, %v8186, 0
    %v8207 = vsel %vm6008, %v8187, 0
    %v8210 = vsel %vm6008, %v8188, 0
    %v8213 = vsel %vm6008, %v8189, 0
    %v8216 = vsel %vm6008, %v8190, 0
    %v8219 = vsel %vm6008, %v8191, 0
    %v8222 = vsel %vm6008, %v8192, 0
    %v8225 = vsel %vm6008, %v8193, 0
    %8227 = vmatprep.subr.bf16.mxu0 0
    %8228 = vmatpush1.bf16.msra.mxu0 %v8201
    %8229 = vmatprep.subr.bf16.mxu0 0
    %8230 = vmatpush1.bf16.msra.mxu0 0
    %8231 = vmatprep.subr.bf16.mxu0 0
    %8232 = vmatpush1.bf16.msra.mxu0 0
    %8233 = vmatprep.subr.bf16.mxu0 0
    %8234 = vmatpush1.bf16.msra.mxu0 0
    %8235 = vmatprep.subr.bf16.mxu0 0
    %8236 = vmatpush1.bf16.msra.mxu0 0
    %8237 = vmatprep.subr.bf16.mxu0 0
    %8238 = vmatpush1.bf16.msra.mxu0 0
    %8239 = vmatprep.subr.bf16.mxu0 0
    %8240 = vmatpush1.bf16.msra.mxu0 0
    %8241 = vmatprep.subr.bf16.mxu0 0
    %8242 = vmatpush1.bf16.msra.mxu0 0
    %8243 = vmatprep.subr.bf16.mxu0 0
    %8244 = vmatpush1.bf16.msra.mxu0 0
    %8245 = vmatprep.subr.bf16.mxu0 0
    %8246 = vmatpush1.bf16.msra.mxu0 0
    %8247 = vmatprep.subr.bf16.mxu0 0
    %8248 = vmatpush1.bf16.msra.mxu0 0
    %8249 = vmatprep.subr.bf16.mxu0 0
    %8250 = vmatpush1.bf16.msra.mxu0 0
    %8251 = vmatprep.subr.bf16.mxu0 0
    %8252 = vmatpush1.bf16.msra.mxu0 0
    %8253 = vmatprep.subr.bf16.mxu0 0
    %8254 = vmatpush1.bf16.msra.mxu0 0
    %8255 = vmatprep.subr.bf16.mxu0 0
    %8256 = vmatpush1.bf16.msra.mxu0 0
    %8257 = vmatprep.subr.bf16.mxu0 0
    %8258 = vmatpush1.bf16.msra.mxu0 0
    %8259 = vmatprep.mubr.bf16.mxu0 0
    %8260 = vmatmul.mubr.bf16.gmra.mrb[0].mxu0 %v8204
    %v8261 = vpop.f32.mrb[0].mxu0
    %v8262 = vadd.f32 0.0, %v8261
    %v8263 = vpop.f32.mrb[0].mxu0
    %v8264 = vpop.f32.mrb[0].mxu0
    %v8265 = vadd.f32 0.0, %v8264
    %v8266 = vpop.f32.mrb[0].mxu0
    %8267 = vmatprep.mubr.bf16.mxu0 0
    %8268 = vmatmul.mubr.bf16.gmra.mrb[0].mxu0 %v8207
    %v8269 = vpop.f32.mrb[0].mxu0
    %v8270 = vadd.f32 0.0, %v8269
    %v8271 = vpop.f32.mrb[0].mxu0
    %v8272 = vpop.f32.mrb[0].mxu0
    %v8273 = vadd.f32 0.0, %v8272
    %v8274 = vpop.f32.mrb[0].mxu0
    %8275 = vmatprep.mubr.bf16.mxu0 0
    %8276 = vmatmul.mubr.bf16.gmra.mrb[0].mxu0 %v8210
    %v8277 = vpop.f32.mrb[0].mxu0
    %v8278 = vadd.f32 0.0, %v8277
    %v8279 = vpop.f32.mrb[0].mxu0
    %v8280 = vpop.f32.mrb[0].mxu0
    %v8281 = vadd.f32 0.0, %v8280
    %v8282 = vpop.f32.mrb[0].mxu0
    %8283 = vmatprep.mubr.bf16.mxu0 0
    %8284 = vmatmul.mubr.bf16.gmra.mrb[0].mxu0 %v8213
    %v8285 = vpop.f32.mrb[0].mxu0
    %v8286 = vadd.f32 0.0, %v8285
    %v8287 = vpop.f32.mrb[0].mxu0
    %v8288 = vpop.f32.mrb[0].mxu0
    %v8289 = vadd.f32 0.0, %v8288
    %v8290 = vpop.f32.mrb[0].mxu0
    %8291 = vmatprep.mubr.bf16.mxu0 0
    %8292 = vmatmul.mubr.bf16.gmra.mrb[0].mxu0 %v8216
    %v8293 = vpop.f32.mrb[0].mxu0
    %v8294 = vadd.f32 0.0, %v8293
    %v8295 = vpop.f32.mrb[0].mxu0
    %v8296 = vpop.f32.mrb[0].mxu0
    %v8297 = vadd.f32 0.0, %v8296
    %v8298 = vpop.f32.mrb[0].mxu0
    %8299 = vmatprep.mubr.bf16.mxu0 0
    %8300 = vmatmul.mubr.bf16.gmra.mrb[0].mxu0 %v8219
    %v8301 = vpop.f32.mrb[0].mxu0
    %v8302 = vadd.f32 0.0, %v8301
    %v8303 = vpop.f32.mrb[0].mxu0
    %v8304 = vpop.f32.mrb[0].mxu0
    %v8305 = vadd.f32 0.0, %v8304
    %v8306 = vpop.f32.mrb[0].mxu0
    %8307 = vmatprep.mubr.bf16.mxu0 0
    %8308 = vmatmul.mubr.bf16.gmra.mrb[0].mxu0 %v8222
    %v8309 = vpop.f32.mrb[0].mxu0
    %v8310 = vadd.f32 0.0, %v8309
    %v8311 = vpop.f32.mrb[0].mxu0
    %v8312 = vpop.f32.mrb[0].mxu0
    %v8313 = vadd.f32 0.0, %v8312
    %v8314 = vpop.f32.mrb[0].mxu0
    %8315 = vmatprep.mubr.bf16.mxu0 0
    %8316 = vmatmul.mubr.bf16.gmra.mrb[0].mxu0 %v8225
    %v8317 = vpop.f32.mrb[0].mxu0
    %v8318 = vadd.f32 0.0, %v8317
    %v8319 = vpop.f32.mrb[0].mxu0
    %v8320 = vpop.f32.mrb[0].mxu0
    %v8321 = vadd.f32 0.0, %v8320
    %v8322 = vpop.f32.mrb[0].mxu0
    %8323 = vdwg.mxu0
    %v8324 = vadd.f32 %v8154, %v8262
    %v8325 = vadd.f32 %v8155, %v8265
    %v8326 = vadd.f32 %v8156, %v8270
    %v8327 = vadd.f32 %v8157, %v8273
    %v8328 = vadd.f32 %v8158, %v8278
    %v8329 = vadd.f32 %v8159, %v8281
    %v8330 = vadd.f32 %v8160, %v8286
    %v8331 = vadd.f32 %v8161, %v8289
    %v8332 = vadd.f32 %v8162, %v8294
    %v8333 = vadd.f32 %v8163, %v8297
    %v8334 = vadd.f32 %v8164, %v8302
    %v8335 = vadd.f32 %v8165, %v8305
    %v8336 = vadd.f32 %v8166, %v8310
    %v8337 = vadd.f32 %v8167, %v8313
    %v8338 = vadd.f32 %v8168, %v8318
    %v8339 = vadd.f32 %v8169, %v8321
    %v8340 = vld [vmem:[%s4] sm:$0x1]
    %v8342 = vlaneseq
    %v8343 = vshrl.u32 %v8342, 7
    %v8344 = vsub.s32 0, %v8343
    %v8345 = vrot.slane %v8340, %v8344
    %v8347 = vadd.f32 %v8324, %v8345
    %v8348 = vadd.f32 %v8325, %v8345
    %v8349 = vadd.f32 %v8326, %v8345
    %v8350 = vadd.f32 %v8327, %v8345
    %v8351 = vadd.f32 %v8328, %v8345
    %v8352 = vadd.f32 %v8329, %v8345
    %v8353 = vadd.f32 %v8330, %v8345
    %v8354 = vadd.f32 %v8331, %v8345
    %v8355 = vadd.f32 %v8332, %v8345
    %v8356 = vadd.f32 %v8333, %v8345
    %v8357 = vadd.f32 %v8334, %v8345
    %v8358 = vadd.f32 %v8335, %v8345
    %v8359 = vadd.f32 %v8336, %v8345
    %v8360 = vadd.f32 %v8337, %v8345
    %v8361 = vadd.f32 %v8338, %v8345
    %v8362 = vadd.f32 %v8339, %v8345
    %v8363 = vmax.f32 %v8347, 0.0
    %v8364 = vmax.f32 %v8348, 0.0
    %v8365 = vmax.f32 %v8349, 0.0
    %v8366 = vmax.f32 %v8350, 0.0
    %v8367 = vmax.f32 %v8351, 0.0
    %v8368 = vmax.f32 %v8352, 0.0
    %v8369 = vmax.f32 %v8353, 0.0
    %v8370 = vmax.f32 %v8354, 0.0
    %v8371 = vmax.f32 %v8355, 0.0
    %v8372 = vmax.f32 %v8356, 0.0
    %v8373 = vmax.f32 %v8357, 0.0
    %v8374 = vmax.f32 %v8358, 0.0
    %v8375 = vmax.f32 %v8359, 0.0
    %v8376 = vmax.f32 %v8360, 0.0
    %v8377 = vmax.f32 %v8361, 0.0
    %v8378 = vmax.f32 %v8362, 0.0
    %v8379 = vmax.f32 %v8363, %v8364
    %v8380 = vmax.f32 %v8365, %v8366
    %v8381 = vmax.f32 %v8367, %v8368
    %v8382 = vmax.f32 %v8369, %v8370
    %v8383 = vmax.f32 %v8371, %v8372
    %v8384 = vmax.f32 %v8373, %v8374
    %v8385 = vmax.f32 %v8375, %v8376
    %v8386 = vmax.f32 %v8377, %v8378
    %v8395 = vcombine.high %v8379, %v8379
    %v8397 = vunpack.c.l.s4 1983009808
    %v8398 = vunpack.c.0.s8 %v8397
    %v8399 = vlaneseq
    %v8400 = vshrl.u32 %v8399, 7
    %v8401 = vsub.s32 %v8398, %v8400
    %v8402 = vrot.slane %v8379, %v8401
    %v8404 = vunpack.c.l.s4 1983009808
    %v8405 = vunpack.c.0.s8 %v8404
    %v8406 = vlaneseq
    %v8407 = vshrl.u32 %v8406, 7
    %v8408 = vsub.s32 %v8405, %v8407
    %v8409 = vrot.slane %v8395, %v8408
    %v8410 = vcombine.high %v8402, %v8402
    %v8411 = vcombine.high %v8409, %v8409
    %v8412 = vcombine.high %v8380, %v8380
    %v8414 = vunpack.c.l.s4 1983009808
    %v8415 = vunpack.c.0.s8 %v8414
    %v8416 = vlaneseq
    %v8417 = vshrl.u32 %v8416, 7
    %v8418 = vsub.s32 %v8415, %v8417
    %v8419 = vrot.slane %v8380, %v8418
    %v8421 = vunpack.c.l.s4 1983009808
    %v8422 = vunpack.c.0.s8 %v8421
    %v8423 = vlaneseq
    %v8424 = vshrl.u32 %v8423, 7
    %v8425 = vsub.s32 %v8422, %v8424
    %v8426 = vrot.slane %v8412, %v8425
    %v8427 = vcombine.high %v8419, %v8419
    %v8428 = vcombine.high %v8426, %v8426
    %v8429 = vcombine.high %v8381, %v8381
    %v8431 = vunpack.c.l.s4 1983009808
    %v8432 = vunpack.c.0.s8 %v8431
    %v8433 = vlaneseq
    %v8434 = vshrl.u32 %v8433, 7
    %v8435 = vsub.s32 %v8432, %v8434
    %v8436 = vrot.slane %v8381, %v8435
    %v8438 = vunpack.c.l.s4 1983009808
    %v8439 = vunpack.c.0.s8 %v8438
    %v8440 = vlaneseq
    %v8441 = vshrl.u32 %v8440, 7
    %v8442 = vsub.s32 %v8439, %v8441
    %v8443 = vrot.slane %v8429, %v8442
    %v8444 = vcombine.high %v8436, %v8436
    %v8445 = vcombine.high %v8443, %v8443
    %v8446 = vcombine.high %v8382, %v8382
    %v8448 = vunpack.c.l.s4 1983009808
    %v8449 = vunpack.c.0.s8 %v8448
    %v8450 = vlaneseq
    %v8451 = vshrl.u32 %v8450, 7
    %v8452 = vsub.s32 %v8449, %v8451
    %v8453 = vrot.slane %v8382, %v8452
    %v8455 = vunpack.c.l.s4 1983009808
    %v8456 = vunpack.c.0.s8 %v8455
    %v8457 = vlaneseq
    %v8458 = vshrl.u32 %v8457, 7
    %v8459 = vsub.s32 %v8456, %v8458
    %v8460 = vrot.slane %v8446, %v8459
    %v8461 = vcombine.high %v8453, %v8453
    %v8462 = vcombine.high %v8460, %v8460
    %v8463 = vcombine.high %v8383, %v8383
    %v8465 = vunpack.c.l.s4 1983009808
    %v8466 = vunpack.c.0.s8 %v8465
    %v8467 = vlaneseq
    %v8468 = vshrl.u32 %v8467, 7
    %v8469 = vsub.s32 %v8466, %v8468
    %v8470 = vrot.slane %v8383, %v8469
    %v8472 = vunpack.c.l.s4 1983009808
    %v8473 = vunpack.c.0.s8 %v8472
    %v8474 = vlaneseq
    %v8475 = vshrl.u32 %v8474, 7
    %v8476 = vsub.s32 %v8473, %v8475
    %v8477 = vrot.slane %v8463, %v8476
    %v8478 = vcombine.high %v8470, %v8470
    %v8479 = vcombine.high %v8477, %v8477
    %v8480 = vcombine.high %v8384, %v8384
    %v8482 = vunpack.c.l.s4 1983009808
    %v8483 = vunpack.c.0.s8 %v8482
    %v8484 = vlaneseq
    %v8485 = vshrl.u32 %v8484, 7
    %v8486 = vsub.s32 %v8483, %v8485
    %v8487 = vrot.slane %v8384, %v8486
    %v8489 = vunpack.c.l.s4 1983009808
    %v8490 = vunpack.c.0.s8 %v8489
    %v8491 = vlaneseq
    %v8492 = vshrl.u32 %v8491, 7
    %v8493 = vsub.s32 %v8490, %v8492
    %v8494 = vrot.slane %v8480, %v8493
    %v8495 = vcombine.high %v8487, %v8487
    %v8496 = vcombine.high %v8494, %v8494
    %v8497 = vcombine.high %v8385, %v8385
    %v8499 = vunpack.c.l.s4 1983009808
    %v8500 = vunpack.c.0.s8 %v8499
    %v8501 = vlaneseq
    %v8502 = vshrl.u32 %v8501, 7
    %v8503 = vsub.s32 %v8500, %v8502
    %v8504 = vrot.slane %v8385, %v8503
    %v8506 = vunpack.c.l.s4 1983009808
    %v8507 = vunpack.c.0.s8 %v8506
    %v8508 = vlaneseq
    %v8509 = vshrl.u32 %v8508, 7
    %v8510 = vsub.s32 %v8507, %v8509
    %v8511 = vrot.slane %v8497, %v8510
    %v8512 = vcombine.high %v8504, %v8504
    %v8513 = vcombine.high %v8511, %v8511
    %v8514 = vcombine.high %v8386, %v8386
    %v8516 = vunpack.c.l.s4 1983009808
    %v8517 = vunpack.c.0.s8 %v8516
    %v8518 = vlaneseq
    %v8519 = vshrl.u32 %v8518, 7
    %v8520 = vsub.s32 %v8517, %v8519
    %v8521 = vrot.slane %v8386, %v8520
    %v8523 = vunpack.c.l.s4 1983009808
    %v8524 = vunpack.c.0.s8 %v8523
    %v8525 = vlaneseq
    %v8526 = vshrl.u32 %v8525, 7
    %v8527 = vsub.s32 %v8524, %v8526
    %v8528 = vrot.slane %v8514, %v8527
    %v8529 = vcombine.high %v8521, %v8521
    %v8530 = vcombine.high %v8528, %v8528
    %v8563 = vrot.slane %v8402, 7
    %v8564 = vrot.slane %v8563, 2
    %v8565 = vrot.slane %v8410, 7
    %v8566 = vrot.slane %v8565, 2
    %v8567 = vrot.slane %v8409, 7
    %v8568 = vrot.slane %v8567, 2
    %v8569 = vrot.slane %v8411, 7
    %v8570 = vrot.slane %v8569, 2
    %v8571 = vrot.slane %v8419, 7
    %v8572 = vrot.slane %v8571, 2
    %v8573 = vrot.slane %v8427, 7
    %v8574 = vrot.slane %v8573, 2
    %v8575 = vrot.slane %v8426, 7
    %v8576 = vrot.slane %v8575, 2
    %v8577 = vrot.slane %v8428, 7
    %v8578 = vrot.slane %v8577, 2
    %v8579 = vrot.slane %v8436, 7
    %v8580 = vrot.slane %v8579, 2
    %v8581 = vrot.slane %v8444, 7
    %v8582 = vrot.slane %v8581, 2
    %v8583 = vrot.slane %v8443, 7
    %v8584 = vrot.slane %v8583, 2
    %v8585 = vrot.slane %v8445, 7
    %v8586 = vrot.slane %v8585, 2
    %v8587 = vrot.slane %v8453, 7
    %v8588 = vrot.slane %v8587, 2
    %v8589 = vrot.slane %v8461, 7
    %v8590 = vrot.slane %v8589, 2
    %v8591 = vrot.slane %v8460, 7
    %v8592 = vrot.slane %v8591, 2
    %v8593 = vrot.slane %v8462, 7
    %v8594 = vrot.slane %v8593, 2
    %v8595 = vrot.slane %v8470, 7
    %v8596 = vrot.slane %v8595, 2
    %v8597 = vrot.slane %v8478, 7
    %v8598 = vrot.slane %v8597, 2
    %v8599 = vrot.slane %v8477, 7
    %v8600 = vrot.slane %v8599, 2
    %v8601 = vrot.slane %v8479, 7
    %v8602 = vrot.slane %v8601, 2
    %v8603 = vrot.slane %v8487, 7
    %v8604 = vrot.slane %v8603, 2
    %v8605 = vrot.slane %v8495, 7
    %v8606 = vrot.slane %v8605, 2
    %v8607 = vrot.slane %v8494, 7
    %v8608 = vrot.slane %v8607, 2
    %v8609 = vrot.slane %v8496, 7
    %v8610 = vrot.slane %v8609, 2
    %v8611 = vrot.slane %v8504, 7
    %v8612 = vrot.slane %v8611, 2
    %v8613 = vrot.slane %v8512, 7
    %v8614 = vrot.slane %v8613, 2
    %v8615 = vrot.slane %v8511, 7
    %v8616 = vrot.slane %v8615, 2
    %v8617 = vrot.slane %v8513, 7
    %v8618 = vrot.slane %v8617, 2
    %v8619 = vrot.slane %v8521, 7
    %v8620 = vrot.slane %v8619, 2
    %v8621 = vrot.slane %v8529, 7
    %v8622 = vrot.slane %v8621, 2
    %v8623 = vrot.slane %v8528, 7
    %v8624 = vrot.slane %v8623, 2
    %v8625 = vrot.slane %v8530, 7
    %v8626 = vrot.slane %v8625, 2
    %v8659 = vmax.f32 %v8402, %v8564
    %v8660 = vmax.f32 %v8410, %v8566
    %v8661 = vmax.f32 %v8409, %v8568
    %v8662 = vmax.f32 %v8411, %v8570
    %v8663 = vmax.f32 %v8419, %v8572
    %v8664 = vmax.f32 %v8427, %v8574
    %v8665 = vmax.f32 %v8426, %v8576
    %v8666 = vmax.f32 %v8428, %v8578
    %v8667 = vmax.f32 %v8436, %v8580
    %v8668 = vmax.f32 %v8444, %v8582
    %v8669 = vmax.f32 %v8443, %v8584
    %v8670 = vmax.f32 %v8445, %v8586
    %v8671 = vmax.f32 %v8453, %v8588
    %v8672 = vmax.f32 %v8461, %v8590
    %v8673 = vmax.f32 %v8460, %v8592
    %v8674 = vmax.f32 %v8462, %v8594
    %v8675 = vmax.f32 %v8470, %v8596
    %v8676 = vmax.f32 %v8478, %v8598
    %v8677 = vmax.f32 %v8477, %v8600
    %v8678 = vmax.f32 %v8479, %v8602
    %v8679 = vmax.f32 %v8487, %v8604
    %v8680 = vmax.f32 %v8495, %v8606
    %v8681 = vmax.f32 %v8494, %v8608
    %v8682 = vmax.f32 %v8496, %v8610
    %v8683 = vmax.f32 %v8504, %v8612
    %v8684 = vmax.f32 %v8512, %v8614
    %v8685 = vmax.f32 %v8511, %v8616
    %v8686 = vmax.f32 %v8513, %v8618
    %v8687 = vmax.f32 %v8521, %v8620
    %v8688 = vmax.f32 %v8529, %v8622
    %v8689 = vmax.f32 %v8528, %v8624
    %v8690 = vmax.f32 %v8530, %v8626
    %v8691 = vpack.c.bf16 %v8659, %v8659
    %v8692 = vpack.c.bf16 %v8675, %v8675
    %v8693 = vld [vmem:[%s5] sm:$0xf]
    %v8694 = vld [vmem:[%s5 + $0x4] sm:$0xf]
    %v8695 = vld [vmem:[%s5 + $0x8] sm:$0xf]
    %v8696 = vld [vmem:[%s5 + $0xc] sm:$0xf]
    %v8697 = vpack.c.bf16 %v8660, %v8660
    %v8698 = vpack.c.bf16 %v8676, %v8676
    %s8699 = scalar_lea.vmem %s5, 16
    %v8700 = vld [vmem:[%s8699] sm:$0xf]
    %v8701 = vld [vmem:[%s8699 + $0x4] sm:$0xf]
    %v8702 = vld [vmem:[%s8699 + $0x8] sm:$0xf]
    %v8703 = vld [vmem:[%s8699 + $0xc] sm:$0xf]
    %v8706 = vunpack.c.l.b16 %v8697
    %v8707 = vunpack.c.l.b16 %v8698
    %v8708 = vrot.slane %v8707, 7
    %v8709 = vsel %vm6690, %v8708, %v8706
    %v8710 = vpack.c.b16 %v8709, %v8709
    %v8715 = vunpack.c.l.b16 %v8700
    %v8716 = vunpack.c.l.b16 %v8701
    %v8717 = vunpack.c.l.b16 %v8702
    %v8718 = vunpack.c.l.b16 %v8703
    %v8719 = vpack.c.b16 %v8716, %v8715
    %v8720 = vpack.c.b16 %v8718, %v8717
    %vm8723 = vcmask 261120
    %v8725 = vsel %vm8723, %v8710, 0
    %8727 = vmatprep.subr.bf16.mxu0 0
    %8728 = vmatpush1.bf16.msra.mxu0 %v8719
    %8729 = vmatprep.subr.bf16.mxu0 0
    %8730 = vmatpush1.bf16.msra.mxu0 %v8720
    %8731 = vmatprep.subr.bf16.mxu0 0
    %8732 = vmatpush1.bf16.msra.mxu0 0
    %8733 = vmatprep.subr.bf16.mxu0 0
    %8734 = vmatpush1.bf16.msra.mxu0 0
    %8735 = vmatprep.subr.bf16.mxu0 0
    %8736 = vmatpush1.bf16.msra.mxu0 0
    %8737 = vmatprep.subr.bf16.mxu0 0
    %8738 = vmatpush1.bf16.msra.mxu0 0
    %8739 = vmatprep.subr.bf16.mxu0 0
    %8740 = vmatpush1.bf16.msra.mxu0 0
    %8741 = vmatprep.subr.bf16.mxu0 0
    %8742 = vmatpush1.bf16.msra.mxu0 0
    %8743 = vmatprep.subr.bf16.mxu0 0
    %8744 = vmatpush1.bf16.msra.mxu0 0
    %8745 = vmatprep.subr.bf16.mxu0 0
    %8746 = vmatpush1.bf16.msra.mxu0 0
    %8747 = vmatprep.subr.bf16.mxu0 0
    %8748 = vmatpush1.bf16.msra.mxu0 0
    %8749 = vmatprep.subr.bf16.mxu0 0
    %8750 = vmatpush1.bf16.msra.mxu0 0
    %8751 = vmatprep.subr.bf16.mxu0 0
    %8752 = vmatpush1.bf16.msra.mxu0 0
    %8753 = vmatprep.subr.bf16.mxu0 0
    %8754 = vmatpush1.bf16.msra.mxu0 0
    %8755 = vmatprep.subr.bf16.mxu0 0
    %8756 = vmatpush1.bf16.msra.mxu0 0
    %8757 = vmatprep.subr.bf16.mxu0 0
    %8758 = vmatpush1.bf16.msra.mxu0 0
    %8759 = vmatprep.mubr.bf16.mxu0 0
    %8760 = vmatmul.mubr.bf16.gmra.mrb[0].mxu0 %v8725
    %v8761 = vpop.f32.mrb[0].mxu0
    %v8762 = vadd.f32 0.0, %v8761
    %v8763 = vpop.f32.mrb[0].mxu0
    %v8764 = vpop.f32.mrb[0].mxu0
    %v8765 = vpop.f32.mrb[0].mxu0
    %8766 = vdwg.mxu0
    %v8769 = vunpack.c.l.b16 %v8691
    %v8770 = vunpack.c.l.b16 %v8692
    %v8771 = vrot.slane %v8770, 7
    %v8772 = vsel %vm6690, %v8771, %v8769
    %v8773 = vpack.c.b16 %v8772, %v8772
    %v8778 = vunpack.c.l.b16 %v8693
    %v8779 = vunpack.c.l.b16 %v8694
    %v8780 = vunpack.c.l.b16 %v8695
    %v8781 = vunpack.c.l.b16 %v8696
    %v8782 = vpack.c.b16 %v8779, %v8778
    %v8783 = vpack.c.b16 %v8781, %v8780
    %v8787 = vsel %vm8723, %v8773, 0
    %8789 = vmatprep.subr.bf16.mxu0 0
    %8790 = vmatpush1.bf16.msra.mxu0 %v8782
    %8791 = vmatprep.subr.bf16.mxu0 0
    %8792 = vmatpush1.bf16.msra.mxu0 %v8783
    %8793 = vmatprep.subr.bf16.mxu0 0
    %8794 = vmatpush1.bf16.msra.mxu0 0
    %8795 = vmatprep.subr.bf16.mxu0 0
    %8796 = vmatpush1.bf16.msra.mxu0 0
    %8797 = vmatprep.subr.bf16.mxu0 0
    %8798 = vmatpush1.bf16.msra.mxu0 0
    %8799 = vmatprep.subr.bf16.mxu0 0
    %8800 = vmatpush1.bf16.msra.mxu0 0
    %8801 = vmatprep.subr.bf16.mxu0 0
    %8802 = vmatpush1.bf16.msra.mxu0 0
    %8803 = vmatprep.subr.bf16.mxu0 0
    %8804 = vmatpush1.bf16.msra.mxu0 0
    %8805 = vmatprep.subr.bf16.mxu0 0
    %8806 = vmatpush1.bf16.msra.mxu0 0
    %8807 = vmatprep.subr.bf16.mxu0 0
    %8808 = vmatpush1.bf16.msra.mxu0 0
    %8809 = vmatprep.subr.bf16.mxu0 0
    %8810 = vmatpush1.bf16.msra.mxu0 0
    %8811 = vmatprep.subr.bf16.mxu0 0
    %8812 = vmatpush1.bf16.msra.mxu0 0
    %8813 = vmatprep.subr.bf16.mxu0 0
    %8814 = vmatpush1.bf16.msra.mxu0 0
    %8815 = vmatprep.subr.bf16.mxu0 0
    %8816 = vmatpush1.bf16.msra.mxu0 0
    %8817 = vmatprep.subr.bf16.mxu0 0
    %8818 = vmatpush1.bf16.msra.mxu0 0
    %8819 = vmatprep.subr.bf16.mxu0 0
    %8820 = vmatpush1.bf16.msra.mxu0 0
    %8821 = vmatprep.mubr.bf16.mxu0 0
    %8822 = vmatmul.mubr.bf16.gmra.mrb[0].mxu0 %v8787
    %v8823 = vpop.f32.mrb[0].mxu0
    %v8824 = vadd.f32 %v8762, %v8823
    %v8825 = vpop.f32.mrb[0].mxu0
    %v8826 = vpop.f32.mrb[0].mxu0
    %v8827 = vpop.f32.mrb[0].mxu0
    %8828 = vdwg.mxu0
    %v8829 = vpack.c.bf16 %v8661, %v8661
    %v8830 = vpack.c.bf16 %v8677, %v8677
    %s8831 = scalar_lea.vmem %s5, 32
    %v8832 = vld [vmem:[%s8831] sm:$0xf]
    %v8833 = vld [vmem:[%s8831 + $0x4] sm:$0xf]
    %v8834 = vld [vmem:[%s8831 + $0x8] sm:$0xf]
    %v8835 = vld [vmem:[%s8831 + $0xc] sm:$0xf]
    %v8838 = vunpack.c.l.b16 %v8829
    %v8839 = vunpack.c.l.b16 %v8830
    %v8840 = vrot.slane %v8839, 7
    %v8841 = vsel %vm6690, %v8840, %v8838
    %v8842 = vpack.c.b16 %v8841, %v8841
    %v8847 = vunpack.c.l.b16 %v8832
    %v8848 = vunpack.c.l.b16 %v8833
    %v8849 = vunpack.c.l.b16 %v8834
    %v8850 = vunpack.c.l.b16 %v8835
    %v8851 = vpack.c.b16 %v8848, %v8847
    %v8852 = vpack.c.b16 %v8850, %v8849
    %v8856 = vsel %vm8723, %v8842, 0
    %8858 = vmatprep.subr.bf16.mxu0 0
    %8859 = vmatpush1.bf16.msra.mxu0 %v8851
    %8860 = vmatprep.subr.bf16.mxu0 0
    %8861 = vmatpush1.bf16.msra.mxu0 %v8852
    %8862 = vmatprep.subr.bf16.mxu0 0
    %8863 = vmatpush1.bf16.msra.mxu0 0
    %8864 = vmatprep.subr.bf16.mxu0 0
    %8865 = vmatpush1.bf16.msra.mxu0 0
    %8866 = vmatprep.subr.bf16.mxu0 0
    %8867 = vmatpush1.bf16.msra.mxu0 0
    %8868 = vmatprep.subr.bf16.mxu0 0
    %8869 = vmatpush1.bf16.msra.mxu0 0
    %8870 = vmatprep.subr.bf16.mxu0 0
    %8871 = vmatpush1.bf16.msra.mxu0 0
    %8872 = vmatprep.subr.bf16.mxu0 0
    %8873 = vmatpush1.bf16.msra.mxu0 0
    %8874 = vmatprep.subr.bf16.mxu0 0
    %8875 = vmatpush1.bf16.msra.mxu0 0
    %8876 = vmatprep.subr.bf16.mxu0 0
    %8877 = vmatpush1.bf16.msra.mxu0 0
    %8878 = vmatprep.subr.bf16.mxu0 0
    %8879 = vmatpush1.bf16.msra.mxu0 0
    %8880 = vmatprep.subr.bf16.mxu0 0
    %8881 = vmatpush1.bf16.msra.mxu0 0
    %8882 = vmatprep.subr.bf16.mxu0 0
    %8883 = vmatpush1.bf16.msra.mxu0 0
    %8884 = vmatprep.subr.bf16.mxu0 0
    %8885 = vmatpush1.bf16.msra.mxu0 0
    %8886 = vmatprep.subr.bf16.mxu0 0
    %8887 = vmatpush1.bf16.msra.mxu0 0
    %8888 = vmatprep.subr.bf16.mxu0 0
    %8889 = vmatpush1.bf16.msra.mxu0 0
    %8890 = vmatprep.mubr.bf16.mxu0 0
    %8891 = vmatmul.mubr.bf16.gmra.mrb[0].mxu0 %v8856
    %v8892 = vpop.f32.mrb[0].mxu0
    %v8893 = vadd.f32 0.0, %v8892
    %v8894 = vpop.f32.mrb[0].mxu0
    %v8895 = vpop.f32.mrb[0].mxu0
    %v8896 = vpop.f32.mrb[0].mxu0
    %8897 = vdwg.mxu0
    %v8898 = vadd.f32 %v8824, %v8893
    %v8899 = vpack.c.bf16 %v8662, %v8662
    %v8900 = vpack.c.bf16 %v8678, %v8678
    %s8901 = scalar_lea.vmem %s5, 48
    %v8902 = vld [vmem:[%s8901] sm:$0xf]
    %v8903 = vld [vmem:[%s8901 + $0x4] sm:$0xf]
    %v8904 = vld [vmem:[%s8901 + $0x8] sm:$0xf]
    %v8905 = vld [vmem:[%s8901 + $0xc] sm:$0xf]
    %v8908 = vunpack.c.l.b16 %v8899
    %v8909 = vunpack.c.l.b16 %v8900
    %v8910 = vrot.slane %v8909, 7
    %v8911 = vsel %vm6690, %v8910, %v8908
    %v8912 = vpack.c.b16 %v8911, %v8911
    %v8917 = vunpack.c.l.b16 %v8902
    %v8918 = vunpack.c.l.b16 %v8903
    %v8919 = vunpack.c.l.b16 %v8904
    %v8920 = vunpack.c.l.b16 %v8905
    %v8921 = vpack.c.b16 %v8918, %v8917
    %v8922 = vpack.c.b16 %v8920, %v8919
    %v8926 = vsel %vm8723, %v8912, 0
    %8928 = vmatprep.subr.bf16.mxu0 0
    %8929 = vmatpush1.bf16.msra.mxu0 %v8921
    %8930 = vmatprep.subr.bf16.mxu0 0
    %8931 = vmatpush1.bf16.msra.mxu0 %v8922
    %8932 = vmatprep.subr.bf16.mxu0 0
    %8933 = vmatpush1.bf16.msra.mxu0 0
    %8934 = vmatprep.subr.bf16.mxu0 0
    %8935 = vmatpush1.bf16.msra.mxu0 0
    %8936 = vmatprep.subr.bf16.mxu0 0
    %8937 = vmatpush1.bf16.msra.mxu0 0
    %8938 = vmatprep.subr.bf16.mxu0 0
    %8939 = vmatpush1.bf16.msra.mxu0 0
    %8940 = vmatprep.subr.bf16.mxu0 0
    %8941 = vmatpush1.bf16.msra.mxu0 0
    %8942 = vmatprep.subr.bf16.mxu0 0
    %8943 = vmatpush1.bf16.msra.mxu0 0
    %8944 = vmatprep.subr.bf16.mxu0 0
    %8945 = vmatpush1.bf16.msra.mxu0 0
    %8946 = vmatprep.subr.bf16.mxu0 0
    %8947 = vmatpush1.bf16.msra.mxu0 0
    %8948 = vmatprep.subr.bf16.mxu0 0
    %8949 = vmatpush1.bf16.msra.mxu0 0
    %8950 = vmatprep.subr.bf16.mxu0 0
    %8951 = vmatpush1.bf16.msra.mxu0 0
    %8952 = vmatprep.subr.bf16.mxu0 0
    %8953 = vmatpush1.bf16.msra.mxu0 0
    %8954 = vmatprep.subr.bf16.mxu0 0
    %8955 = vmatpush1.bf16.msra.mxu0 0
    %8956 = vmatprep.subr.bf16.mxu0 0
    %8957 = vmatpush1.bf16.msra.mxu0 0
    %8958 = vmatprep.subr.bf16.mxu0 0
    %8959 = vmatpush1.bf16.msra.mxu0 0
    %8960 = vmatprep.mubr.bf16.mxu0 0
    %8961 = vmatmul.mubr.bf16.gmra.mrb[0].mxu0 %v8926
    %v8962 = vpop.f32.mrb[0].mxu0
    %v8963 = vadd.f32 0.0, %v8962
    %v8964 = vpop.f32.mrb[0].mxu0
    %v8965 = vpop.f32.mrb[0].mxu0
    %v8966 = vpop.f32.mrb[0].mxu0
    %8967 = vdwg.mxu0
    %v8968 = vadd.f32 %v8898, %v8963
    %v8969 = vpack.c.bf16 %v8663, %v8663
    %v8970 = vpack.c.bf16 %v8679, %v8679
    %s8971 = scalar_lea.vmem %s5, 64
    %v8972 = vld [vmem:[%s8971] sm:$0xf]
    %v8973 = vld [vmem:[%s8971 + $0x4] sm:$0xf]
    %v8974 = vld [vmem:[%s8971 + $0x8] sm:$0xf]
    %v8975 = vld [vmem:[%s8971 + $0xc] sm:$0xf]
    %v8978 = vunpack.c.l.b16 %v8969
    %v8979 = vunpack.c.l.b16 %v8970
    %v8980 = vrot.slane %v8979, 7
    %v8981 = vsel %vm6690, %v8980, %v8978
    %v8982 = vpack.c.b16 %v8981, %v8981
    %v8987 = vunpack.c.l.b16 %v8972
    %v8988 = vunpack.c.l.b16 %v8973
    %v8989 = vunpack.c.l.b16 %v8974
    %v8990 = vunpack.c.l.b16 %v8975
    %v8991 = vpack.c.b16 %v8988, %v8987
    %v8992 = vpack.c.b16 %v8990, %v8989
    %v8996 = vsel %vm8723, %v8982, 0
    %8998 = vmatprep.subr.bf16.mxu0 0
    %8999 = vmatpush1.bf16.msra.mxu0 %v8991
    %9000 = vmatprep.subr.bf16.mxu0 0
    %9001 = vmatpush1.bf16.msra.mxu0 %v8992
    %9002 = vmatprep.subr.bf16.mxu0 0
    %9003 = vmatpush1.bf16.msra.mxu0 0
    %9004 = vmatprep.subr.bf16.mxu0 0
    %9005 = vmatpush1.bf16.msra.mxu0 0
    %9006 = vmatprep.subr.bf16.mxu0 0
    %9007 = vmatpush1.bf16.msra.mxu0 0
    %9008 = vmatprep.subr.bf16.mxu0 0
    %9009 = vmatpush1.bf16.msra.mxu0 0
    %9010 = vmatprep.subr.bf16.mxu0 0
    %9011 = vmatpush1.bf16.msra.mxu0 0
    %9012 = vmatprep.subr.bf16.mxu0 0
    %9013 = vmatpush1.bf16.msra.mxu0 0
    %9014 = vmatprep.subr.bf16.mxu0 0
    %9015 = vmatpush1.bf16.msra.mxu0 0
    %9016 = vmatprep.subr.bf16.mxu0 0
    %9017 = vmatpush1.bf16.msra.mxu0 0
    %9018 = vmatprep.subr.bf16.mxu0 0
    %9019 = vmatpush1.bf16.msra.mxu0 0
    %9020 = vmatprep.subr.bf16.mxu0 0
    %9021 = vmatpush1.bf16.msra.mxu0 0
    %9022 = vmatprep.subr.bf16.mxu0 0
    %9023 = vmatpush1.bf16.msra.mxu0 0
    %9024 = vmatprep.subr.bf16.mxu0 0
    %9025 = vmatpush1.bf16.msra.mxu0 0
    %9026 = vmatprep.subr.bf16.mxu0 0
    %9027 = vmatpush1.bf16.msra.mxu0 0
    %9028 = vmatprep.subr.bf16.mxu0 0
    %9029 = vmatpush1.bf16.msra.mxu0 0
    %9030 = vmatprep.mubr.bf16.mxu0 0
    %9031 = vmatmul.mubr.bf16.gmra.mrb[0].mxu0 %v8996
    %v9032 = vpop.f32.mrb[0].mxu0
    %v9033 = vadd.f32 0.0, %v9032
    %v9034 = vpop.f32.mrb[0].mxu0
    %v9035 = vpop.f32.mrb[0].mxu0
    %v9036 = vpop.f32.mrb[0].mxu0
    %9037 = vdwg.mxu0
    %v9038 = vadd.f32 %v8968, %v9033
    %v9039 = vpack.c.bf16 %v8664, %v8664
    %v9040 = vpack.c.bf16 %v8680, %v8680
    %s9041 = scalar_lea.vmem %s5, 80
    %v9042 = vld [vmem:[%s9041] sm:$0xf]
    %v9043 = vld [vmem:[%s9041 + $0x4] sm:$0xf]
    %v9044 = vld [vmem:[%s9041 + $0x8] sm:$0xf]
    %v9045 = vld [vmem:[%s9041 + $0xc] sm:$0xf]
    %v9048 = vunpack.c.l.b16 %v9039
    %v9049 = vunpack.c.l.b16 %v9040
    %v9050 = vrot.slane %v9049, 7
    %v9051 = vsel %vm6690, %v9050, %v9048
    %v9052 = vpack.c.b16 %v9051, %v9051
    %v9057 = vunpack.c.l.b16 %v9042
    %v9058 = vunpack.c.l.b16 %v9043
    %v9059 = vunpack.c.l.b16 %v9044
    %v9060 = vunpack.c.l.b16 %v9045
    %v9061 = vpack.c.b16 %v9058, %v9057
    %v9062 = vpack.c.b16 %v9060, %v9059
    %v9066 = vsel %vm8723, %v9052, 0
    %9068 = vmatprep.subr.bf16.mxu0 0
    %9069 = vmatpush1.bf16.msra.mxu0 %v9061
    %9070 = vmatprep.subr.bf16.mxu0 0
    %9071 = vmatpush1.bf16.msra.mxu0 %v9062
    %9072 = vmatprep.subr.bf16.mxu0 0
    %9073 = vmatpush1.bf16.msra.mxu0 0
    %9074 = vmatprep.subr.bf16.mxu0 0
    %9075 = vmatpush1.bf16.msra.mxu0 0
    %9076 = vmatprep.subr.bf16.mxu0 0
    %9077 = vmatpush1.bf16.msra.mxu0 0
    %9078 = vmatprep.subr.bf16.mxu0 0
    %9079 = vmatpush1.bf16.msra.mxu0 0
    %9080 = vmatprep.subr.bf16.mxu0 0
    %9081 = vmatpush1.bf16.msra.mxu0 0
    %9082 = vmatprep.subr.bf16.mxu0 0
    %9083 = vmatpush1.bf16.msra.mxu0 0
    %9084 = vmatprep.subr.bf16.mxu0 0
    %9085 = vmatpush1.bf16.msra.mxu0 0
    %9086 = vmatprep.subr.bf16.mxu0 0
    %9087 = vmatpush1.bf16.msra.mxu0 0
    %9088 = vmatprep.subr.bf16.mxu0 0
    %9089 = vmatpush1.bf16.msra.mxu0 0
    %9090 = vmatprep.subr.bf16.mxu0 0
    %9091 = vmatpush1.bf16.msra.mxu0 0
    %9092 = vmatprep.subr.bf16.mxu0 0
    %9093 = vmatpush1.bf16.msra.mxu0 0
    %9094 = vmatprep.subr.bf16.mxu0 0
    %9095 = vmatpush1.bf16.msra.mxu0 0
    %9096 = vmatprep.subr.bf16.mxu0 0
    %9097 = vmatpush1.bf16.msra.mxu0 0
    %9098 = vmatprep.subr.bf16.mxu0 0
    %9099 = vmatpush1.bf16.msra.mxu0 0
    %9100 = vmatprep.mubr.bf16.mxu0 0
    %9101 = vmatmul.mubr.bf16.gmra.mrb[0].mxu0 %v9066
    %v9102 = vpop.f32.mrb[0].mxu0
    %v9103 = vadd.f32 0.0, %v9102
    %v9104 = vpop.f32.mrb[0].mxu0
    %v9105 = vpop.f32.mrb[0].mxu0
    %v9106 = vpop.f32.mrb[0].mxu0
    %9107 = vdwg.mxu0
    %v9108 = vadd.f32 %v9038, %v9103
    %v9109 = vpack.c.bf16 %v8665, %v8665
    %v9110 = vpack.c.bf16 %v8681, %v8681
    %s9111 = scalar_lea.vmem %s5, 96
    %v9112 = vld [vmem:[%s9111] sm:$0xf]
    %v9113 = vld [vmem:[%s9111 + $0x4] sm:$0xf]
    %v9114 = vld [vmem:[%s9111 + $0x8] sm:$0xf]
    %v9115 = vld [vmem:[%s9111 + $0xc] sm:$0xf]
    %v9118 = vunpack.c.l.b16 %v9109
    %v9119 = vunpack.c.l.b16 %v9110
    %v9120 = vrot.slane %v9119, 7
    %v9121 = vsel %vm6690, %v9120, %v9118
    %v9122 = vpack.c.b16 %v9121, %v9121
    %v9127 = vunpack.c.l.b16 %v9112
    %v9128 = vunpack.c.l.b16 %v9113
    %v9129 = vunpack.c.l.b16 %v9114
    %v9130 = vunpack.c.l.b16 %v9115
    %v9131 = vpack.c.b16 %v9128, %v9127
    %v9132 = vpack.c.b16 %v9130, %v9129
    %v9136 = vsel %vm8723, %v9122, 0
    %9138 = vmatprep.subr.bf16.mxu0 0
    %9139 = vmatpush1.bf16.msra.mxu0 %v9131
    %9140 = vmatprep.subr.bf16.mxu0 0
    %9141 = vmatpush1.bf16.msra.mxu0 %v9132
    %9142 = vmatprep.subr.bf16.mxu0 0
    %9143 = vmatpush1.bf16.msra.mxu0 0
    %9144 = vmatprep.subr.bf16.mxu0 0
    %9145 = vmatpush1.bf16.msra.mxu0 0
    %9146 = vmatprep.subr.bf16.mxu0 0
    %9147 = vmatpush1.bf16.msra.mxu0 0
    %9148 = vmatprep.subr.bf16.mxu0 0
    %9149 = vmatpush1.bf16.msra.mxu0 0
    %9150 = vmatprep.subr.bf16.mxu0 0
    %9151 = vmatpush1.bf16.msra.mxu0 0
    %9152 = vmatprep.subr.bf16.mxu0 0
    %9153 = vmatpush1.bf16.msra.mxu0 0
    %9154 = vmatprep.subr.bf16.mxu0 0
    %9155 = vmatpush1.bf16.msra.mxu0 0
    %9156 = vmatprep.subr.bf16.mxu0 0
    %9157 = vmatpush1.bf16.msra.mxu0 0
    %9158 = vmatprep.subr.bf16.mxu0 0
    %9159 = vmatpush1.bf16.msra.mxu0 0
    %9160 = vmatprep.subr.bf16.mxu0 0
    %9161 = vmatpush1.bf16.msra.mxu0 0
    %9162 = vmatprep.subr.bf16.mxu0 0
    %9163 = vmatpush1.bf16.msra.mxu0 0
    %9164 = vmatprep.subr.bf16.mxu0 0
    %9165 = vmatpush1.bf16.msra.mxu0 0
    %9166 = vmatprep.subr.bf16.mxu0 0
    %9167 = vmatpush1.bf16.msra.mxu0 0
    %9168 = vmatprep.subr.bf16.mxu0 0
    %9169 = vmatpush1.bf16.msra.mxu0 0
    %9170 = vmatprep.mubr.bf16.mxu0 0
    %9171 = vmatmul.mubr.bf16.gmra.mrb[0].mxu0 %v9136
    %v9172 = vpop.f32.mrb[0].mxu0
    %v9173 = vadd.f32 0.0, %v9172
    %v9174 = vpop.f32.mrb[0].mxu0
    %v9175 = vpop.f32.mrb[0].mxu0
    %v9176 = vpop.f32.mrb[0].mxu0
    %9177 = vdwg.mxu0
    %v9178 = vadd.f32 %v9108, %v9173
    %v9179 = vpack.c.bf16 %v8666, %v8666
    %v9180 = vpack.c.bf16 %v8682, %v8682
    %s9181 = scalar_lea.vmem %s5, 112
    %v9182 = vld [vmem:[%s9181] sm:$0xf]
    %v9183 = vld [vmem:[%s9181 + $0x4] sm:$0xf]
    %v9184 = vld [vmem:[%s9181 + $0x8] sm:$0xf]
    %v9185 = vld [vmem:[%s9181 + $0xc] sm:$0xf]
    %v9188 = vunpack.c.l.b16 %v9179
    %v9189 = vunpack.c.l.b16 %v9180
    %v9190 = vrot.slane %v9189, 7
    %v9191 = vsel %vm6690, %v9190, %v9188
    %v9192 = vpack.c.b16 %v9191, %v9191
    %v9197 = vunpack.c.l.b16 %v9182
    %v9198 = vunpack.c.l.b16 %v9183
    %v9199 = vunpack.c.l.b16 %v9184
    %v9200 = vunpack.c.l.b16 %v9185
    %v9201 = vpack.c.b16 %v9198, %v9197
    %v9202 = vpack.c.b16 %v9200, %v9199
    %v9206 = vsel %vm8723, %v9192, 0
    %9208 = vmatprep.subr.bf16.mxu0 0
    %9209 = vmatpush1.bf16.msra.mxu0 %v9201
    %9210 = vmatprep.subr.bf16.mxu0 0
    %9211 = vmatpush1.bf16.msra.mxu0 %v9202
    %9212 = vmatprep.subr.bf16.mxu0 0
    %9213 = vmatpush1.bf16.msra.mxu0 0
    %9214 = vmatprep.subr.bf16.mxu0 0
    %9215 = vmatpush1.bf16.msra.mxu0 0
    %9216 = vmatprep.subr.bf16.mxu0 0
    %9217 = vmatpush1.bf16.msra.mxu0 0
    %9218 = vmatprep.subr.bf16.mxu0 0
    %9219 = vmatpush1.bf16.msra.mxu0 0
    %9220 = vmatprep.subr.bf16.mxu0 0
    %9221 = vmatpush1.bf16.msra.mxu0 0
    %9222 = vmatprep.subr.bf16.mxu0 0
    %9223 = vmatpush1.bf16.msra.mxu0 0
    %9224 = vmatprep.subr.bf16.mxu0 0
    %9225 = vmatpush1.bf16.msra.mxu0 0
    %9226 = vmatprep.subr.bf16.mxu0 0
    %9227 = vmatpush1.bf16.msra.mxu0 0
    %9228 = vmatprep.subr.bf16.mxu0 0
    %9229 = vmatpush1.bf16.msra.mxu0 0
    %9230 = vmatprep.subr.bf16.mxu0 0
    %9231 = vmatpush1.bf16.msra.mxu0 0
    %9232 = vmatprep.subr.bf16.mxu0 0
    %9233 = vmatpush1.bf16.msra.mxu0 0
    %9234 = vmatprep.subr.bf16.mxu0 0
    %9235 = vmatpush1.bf16.msra.mxu0 0
    %9236 = vmatprep.subr.bf16.mxu0 0
    %9237 = vmatpush1.bf16.msra.mxu0 0
    %9238 = vmatprep.subr.bf16.mxu0 0
    %9239 = vmatpush1.bf16.msra.mxu0 0
    %9240 = vmatprep.mubr.bf16.mxu0 0
    %9241 = vmatmul.mubr.bf16.gmra.mrb[0].mxu0 %v9206
    %v9242 = vpop.f32.mrb[0].mxu0
    %v9243 = vadd.f32 0.0, %v9242
    %v9244 = vpop.f32.mrb[0].mxu0
    %v9245 = vpop.f32.mrb[0].mxu0
    %v9246 = vpop.f32.mrb[0].mxu0
    %9247 = vdwg.mxu0
    %v9248 = vadd.f32 %v9178, %v9243
    %v9249 = vpack.c.bf16 %v8667, %v8667
    %v9250 = vpack.c.bf16 %v8683, %v8683
    %s9251 = scalar_lea.vmem %s5, 128
    %v9252 = vld [vmem:[%s9251] sm:$0xf]
    %v9253 = vld [vmem:[%s9251 + $0x4] sm:$0xf]
    %v9254 = vld [vmem:[%s9251 + $0x8] sm:$0xf]
    %v9255 = vld [vmem:[%s9251 + $0xc] sm:$0xf]
    %v9258 = vunpack.c.l.b16 %v9249
    %v9259 = vunpack.c.l.b16 %v9250
    %v9260 = vrot.slane %v9259, 7
    %v9261 = vsel %vm6690, %v9260, %v9258
    %v9262 = vpack.c.b16 %v9261, %v9261
    %v9267 = vunpack.c.l.b16 %v9252
    %v9268 = vunpack.c.l.b16 %v9253
    %v9269 = vunpack.c.l.b16 %v9254
    %v9270 = vunpack.c.l.b16 %v9255
    %v9271 = vpack.c.b16 %v9268, %v9267
    %v9272 = vpack.c.b16 %v9270, %v9269
    %v9276 = vsel %vm8723, %v9262, 0
    %9278 = vmatprep.subr.bf16.mxu0 0
    %9279 = vmatpush1.bf16.msra.mxu0 %v9271
    %9280 = vmatprep.subr.bf16.mxu0 0
    %9281 = vmatpush1.bf16.msra.mxu0 %v9272
    %9282 = vmatprep.subr.bf16.mxu0 0
    %9283 = vmatpush1.bf16.msra.mxu0 0
    %9284 = vmatprep.subr.bf16.mxu0 0
    %9285 = vmatpush1.bf16.msra.mxu0 0
    %9286 = vmatprep.subr.bf16.mxu0 0
    %9287 = vmatpush1.bf16.msra.mxu0 0
    %9288 = vmatprep.subr.bf16.mxu0 0
    %9289 = vmatpush1.bf16.msra.mxu0 0
    %9290 = vmatprep.subr.bf16.mxu0 0
    %9291 = vmatpush1.bf16.msra.mxu0 0
    %9292 = vmatprep.subr.bf16.mxu0 0
    %9293 = vmatpush1.bf16.msra.mxu0 0
    %9294 = vmatprep.subr.bf16.mxu0 0
    %9295 = vmatpush1.bf16.msra.mxu0 0
    %9296 = vmatprep.subr.bf16.mxu0 0
    %9297 = vmatpush1.bf16.msra.mxu0 0
    %9298 = vmatprep.subr.bf16.mxu0 0
    %9299 = vmatpush1.bf16.msra.mxu0 0
    %9300 = vmatprep.subr.bf16.mxu0 0
    %9301 = vmatpush1.bf16.msra.mxu0 0
    %9302 = vmatprep.subr.bf16.mxu0 0
    %9303 = vmatpush1.bf16.msra.mxu0 0
    %9304 = vmatprep.subr.bf16.mxu0 0
    %9305 = vmatpush1.bf16.msra.mxu0 0
    %9306 = vmatprep.subr.bf16.mxu0 0
    %9307 = vmatpush1.bf16.msra.mxu0 0
    %9308 = vmatprep.subr.bf16.mxu0 0
    %9309 = vmatpush1.bf16.msra.mxu0 0
    %9310 = vmatprep.mubr.bf16.mxu0 0
    %9311 = vmatmul.mubr.bf16.gmra.mrb[0].mxu0 %v9276
    %v9312 = vpop.f32.mrb[0].mxu0
    %v9313 = vadd.f32 0.0, %v9312
    %v9314 = vpop.f32.mrb[0].mxu0
    %v9315 = vpop.f32.mrb[0].mxu0
    %v9316 = vpop.f32.mrb[0].mxu0
    %9317 = vdwg.mxu0
    %v9318 = vadd.f32 %v9248, %v9313
    %v9319 = vpack.c.bf16 %v8668, %v8668
    %v9320 = vpack.c.bf16 %v8684, %v8684
    %s9321 = scalar_lea.vmem %s5, 144
    %v9322 = vld [vmem:[%s9321] sm:$0xf]
    %v9323 = vld [vmem:[%s9321 + $0x4] sm:$0xf]
    %v9324 = vld [vmem:[%s9321 + $0x8] sm:$0xf]
    %v9325 = vld [vmem:[%s9321 + $0xc] sm:$0xf]
    %v9328 = vunpack.c.l.b16 %v9319
    %v9329 = vunpack.c.l.b16 %v9320
    %v9330 = vrot.slane %v9329, 7
    %v9331 = vsel %vm6690, %v9330, %v9328
    %v9332 = vpack.c.b16 %v9331, %v9331
    %v9337 = vunpack.c.l.b16 %v9322
    %v9338 = vunpack.c.l.b16 %v9323
    %v9339 = vunpack.c.l.b16 %v9324
    %v9340 = vunpack.c.l.b16 %v9325
    %v9341 = vpack.c.b16 %v9338, %v9337
    %v9342 = vpack.c.b16 %v9340, %v9339
    %v9346 = vsel %vm8723, %v9332, 0
    %9348 = vmatprep.subr.bf16.mxu0 0
    %9349 = vmatpush1.bf16.msra.mxu0 %v9341
    %9350 = vmatprep.subr.bf16.mxu0 0
    %9351 = vmatpush1.bf16.msra.mxu0 %v9342
    %9352 = vmatprep.subr.bf16.mxu0 0
    %9353 = vmatpush1.bf16.msra.mxu0 0
    %9354 = vmatprep.subr.bf16.mxu0 0
    %9355 = vmatpush1.bf16.msra.mxu0 0
    %9356 = vmatprep.subr.bf16.mxu0 0
    %9357 = vmatpush1.bf16.msra.mxu0 0
    %9358 = vmatprep.subr.bf16.mxu0 0
    %9359 = vmatpush1.bf16.msra.mxu0 0
    %9360 = vmatprep.subr.bf16.mxu0 0
    %9361 = vmatpush1.bf16.msra.mxu0 0
    %9362 = vmatprep.subr.bf16.mxu0 0
    %9363 = vmatpush1.bf16.msra.mxu0 0
    %9364 = vmatprep.subr.bf16.mxu0 0
    %9365 = vmatpush1.bf16.msra.mxu0 0
    %9366 = vmatprep.subr.bf16.mxu0 0
    %9367 = vmatpush1.bf16.msra.mxu0 0
    %9368 = vmatprep.subr.bf16.mxu0 0
    %9369 = vmatpush1.bf16.msra.mxu0 0
    %9370 = vmatprep.subr.bf16.mxu0 0
    %9371 = vmatpush1.bf16.msra.mxu0 0
    %9372 = vmatprep.subr.bf16.mxu0 0
    %9373 = vmatpush1.bf16.msra.mxu0 0
    %9374 = vmatprep.subr.bf16.mxu0 0
    %9375 = vmatpush1.bf16.msra.mxu0 0
    %9376 = vmatprep.subr.bf16.mxu0 0
    %9377 = vmatpush1.bf16.msra.mxu0 0
    %9378 = vmatprep.subr.bf16.mxu0 0
    %9379 = vmatpush1.bf16.msra.mxu0 0
    %9380 = vmatprep.mubr.bf16.mxu0 0
    %9381 = vmatmul.mubr.bf16.gmra.mrb[0].mxu0 %v9346
    %v9382 = vpop.f32.mrb[0].mxu0
    %v9383 = vadd.f32 0.0, %v9382
    %v9384 = vpop.f32.mrb[0].mxu0
    %v9385 = vpop.f32.mrb[0].mxu0
    %v9386 = vpop.f32.mrb[0].mxu0
    %9387 = vdwg.mxu0
    %v9388 = vadd.f32 %v9318, %v9383
    %v9389 = vpack.c.bf16 %v8669, %v8669
    %v9390 = vpack.c.bf16 %v8685, %v8685
    %s9391 = scalar_lea.vmem %s5, 160
    %v9392 = vld [vmem:[%s9391] sm:$0xf]
    %v9393 = vld [vmem:[%s9391 + $0x4] sm:$0xf]
    %v9394 = vld [vmem:[%s9391 + $0x8] sm:$0xf]
    %v9395 = vld [vmem:[%s9391 + $0xc] sm:$0xf]
    %v9398 = vunpack.c.l.b16 %v9389
    %v9399 = vunpack.c.l.b16 %v9390
    %v9400 = vrot.slane %v9399, 7
    %v9401 = vsel %vm6690, %v9400, %v9398
    %v9402 = vpack.c.b16 %v9401, %v9401
    %v9407 = vunpack.c.l.b16 %v9392
    %v9408 = vunpack.c.l.b16 %v9393
    %v9409 = vunpack.c.l.b16 %v9394
    %v9410 = vunpack.c.l.b16 %v9395
    %v9411 = vpack.c.b16 %v9408, %v9407
    %v9412 = vpack.c.b16 %v9410, %v9409
    %v9416 = vsel %vm8723, %v9402, 0
    %9418 = vmatprep.subr.bf16.mxu0 0
    %9419 = vmatpush1.bf16.msra.mxu0 %v9411
    %9420 = vmatprep.subr.bf16.mxu0 0
    %9421 = vmatpush1.bf16.msra.mxu0 %v9412
    %9422 = vmatprep.subr.bf16.mxu0 0
    %9423 = vmatpush1.bf16.msra.mxu0 0
    %9424 = vmatprep.subr.bf16.mxu0 0
    %9425 = vmatpush1.bf16.msra.mxu0 0
    %9426 = vmatprep.subr.bf16.mxu0 0
    %9427 = vmatpush1.bf16.msra.mxu0 0
    %9428 = vmatprep.subr.bf16.mxu0 0
    %9429 = vmatpush1.bf16.msra.mxu0 0
    %9430 = vmatprep.subr.bf16.mxu0 0
    %9431 = vmatpush1.bf16.msra.mxu0 0
    %9432 = vmatprep.subr.bf16.mxu0 0
    %9433 = vmatpush1.bf16.msra.mxu0 0
    %9434 = vmatprep.subr.bf16.mxu0 0
    %9435 = vmatpush1.bf16.msra.mxu0 0
    %9436 = vmatprep.subr.bf16.mxu0 0
    %9437 = vmatpush1.bf16.msra.mxu0 0
    %9438 = vmatprep.subr.bf16.mxu0 0
    %9439 = vmatpush1.bf16.msra.mxu0 0
    %9440 = vmatprep.subr.bf16.mxu0 0
    %9441 = vmatpush1.bf16.msra.mxu0 0
    %9442 = vmatprep.subr.bf16.mxu0 0
    %9443 = vmatpush1.bf16.msra.mxu0 0
    %9444 = vmatprep.subr.bf16.mxu0 0
    %9445 = vmatpush1.bf16.msra.mxu0 0
    %9446 = vmatprep.subr.bf16.mxu0 0
    %9447 = vmatpush1.bf16.msra.mxu0 0
    %9448 = vmatprep.subr.bf16.mxu0 0
    %9449 = vmatpush1.bf16.msra.mxu0 0
    %9450 = vmatprep.mubr.bf16.mxu0 0
    %9451 = vmatmul.mubr.bf16.gmra.mrb[0].mxu0 %v9416
    %v9452 = vpop.f32.mrb[0].mxu0
    %v9453 = vadd.f32 0.0, %v9452
    %v9454 = vpop.f32.mrb[0].mxu0
    %v9455 = vpop.f32.mrb[0].mxu0
    %v9456 = vpop.f32.mrb[0].mxu0
    %9457 = vdwg.mxu0
    %v9458 = vadd.f32 %v9388, %v9453
    %v9459 = vpack.c.bf16 %v8670, %v8670
    %v9460 = vpack.c.bf16 %v8686, %v8686
    %s9461 = scalar_lea.vmem %s5, 176
    %v9462 = vld [vmem:[%s9461] sm:$0xf]
    %v9463 = vld [vmem:[%s9461 + $0x4] sm:$0xf]
    %v9464 = vld [vmem:[%s9461 + $0x8] sm:$0xf]
    %v9465 = vld [vmem:[%s9461 + $0xc] sm:$0xf]
    %v9468 = vunpack.c.l.b16 %v9459
    %v9469 = vunpack.c.l.b16 %v9460
    %v9470 = vrot.slane %v9469, 7
    %v9471 = vsel %vm6690, %v9470, %v9468
    %v9472 = vpack.c.b16 %v9471, %v9471
    %v9477 = vunpack.c.l.b16 %v9462
    %v9478 = vunpack.c.l.b16 %v9463
    %v9479 = vunpack.c.l.b16 %v9464
    %v9480 = vunpack.c.l.b16 %v9465
    %v9481 = vpack.c.b16 %v9478, %v9477
    %v9482 = vpack.c.b16 %v9480, %v9479
    %v9486 = vsel %vm8723, %v9472, 0
    %9488 = vmatprep.subr.bf16.mxu0 0
    %9489 = vmatpush1.bf16.msra.mxu0 %v9481
    %9490 = vmatprep.subr.bf16.mxu0 0
    %9491 = vmatpush1.bf16.msra.mxu0 %v9482
    %9492 = vmatprep.subr.bf16.mxu0 0
    %9493 = vmatpush1.bf16.msra.mxu0 0
    %9494 = vmatprep.subr.bf16.mxu0 0
    %9495 = vmatpush1.bf16.msra.mxu0 0
    %9496 = vmatprep.subr.bf16.mxu0 0
    %9497 = vmatpush1.bf16.msra.mxu0 0
    %9498 = vmatprep.subr.bf16.mxu0 0
    %9499 = vmatpush1.bf16.msra.mxu0 0
    %9500 = vmatprep.subr.bf16.mxu0 0
    %9501 = vmatpush1.bf16.msra.mxu0 0
    %9502 = vmatprep.subr.bf16.mxu0 0
    %9503 = vmatpush1.bf16.msra.mxu0 0
    %9504 = vmatprep.subr.bf16.mxu0 0
    %9505 = vmatpush1.bf16.msra.mxu0 0
    %9506 = vmatprep.subr.bf16.mxu0 0
    %9507 = vmatpush1.bf16.msra.mxu0 0
    %9508 = vmatprep.subr.bf16.mxu0 0
    %9509 = vmatpush1.bf16.msra.mxu0 0
    %9510 = vmatprep.subr.bf16.mxu0 0
    %9511 = vmatpush1.bf16.msra.mxu0 0
    %9512 = vmatprep.subr.bf16.mxu0 0
    %9513 = vmatpush1.bf16.msra.mxu0 0
    %9514 = vmatprep.subr.bf16.mxu0 0
    %9515 = vmatpush1.bf16.msra.mxu0 0
    %9516 = vmatprep.subr.bf16.mxu0 0
    %9517 = vmatpush1.bf16.msra.mxu0 0
    %9518 = vmatprep.subr.bf16.mxu0 0
    %9519 = vmatpush1.bf16.msra.mxu0 0
    %9520 = vmatprep.mubr.bf16.mxu0 0
    %9521 = vmatmul.mubr.bf16.gmra.mrb[0].mxu0 %v9486
    %v9522 = vpop.f32.mrb[0].mxu0
    %v9523 = vadd.f32 0.0, %v9522
    %v9524 = vpop.f32.mrb[0].mxu0
    %v9525 = vpop.f32.mrb[0].mxu0
    %v9526 = vpop.f32.mrb[0].mxu0
    %9527 = vdwg.mxu0
    %v9528 = vadd.f32 %v9458, %v9523
    %v9529 = vpack.c.bf16 %v8671, %v8671
    %v9530 = vpack.c.bf16 %v8687, %v8687
    %s9531 = scalar_lea.vmem %s5, 192
    %v9532 = vld [vmem:[%s9531] sm:$0xf]
    %v9533 = vld [vmem:[%s9531 + $0x4] sm:$0xf]
    %v9534 = vld [vmem:[%s9531 + $0x8] sm:$0xf]
    %v9535 = vld [vmem:[%s9531 + $0xc] sm:$0xf]
    %v9538 = vunpack.c.l.b16 %v9529
    %v9539 = vunpack.c.l.b16 %v9530
    %v9540 = vrot.slane %v9539, 7
    %v9541 = vsel %vm6690, %v9540, %v9538
    %v9542 = vpack.c.b16 %v9541, %v9541
    %v9547 = vunpack.c.l.b16 %v9532
    %v9548 = vunpack.c.l.b16 %v9533
    %v9549 = vunpack.c.l.b16 %v9534
    %v9550 = vunpack.c.l.b16 %v9535
    %v9551 = vpack.c.b16 %v9548, %v9547
    %v9552 = vpack.c.b16 %v9550, %v9549
    %v9556 = vsel %vm8723, %v9542, 0
    %9558 = vmatprep.subr.bf16.mxu0 0
    %9559 = vmatpush1.bf16.msra.mxu0 %v9551
    %9560 = vmatprep.subr.bf16.mxu0 0
    %9561 = vmatpush1.bf16.msra.mxu0 %v9552
    %9562 = vmatprep.subr.bf16.mxu0 0
    %9563 = vmatpush1.bf16.msra.mxu0 0
    %9564 = vmatprep.subr.bf16.mxu0 0
    %9565 = vmatpush1.bf16.msra.mxu0 0
    %9566 = vmatprep.subr.bf16.mxu0 0
    %9567 = vmatpush1.bf16.msra.mxu0 0
    %9568 = vmatprep.subr.bf16.mxu0 0
    %9569 = vmatpush1.bf16.msra.mxu0 0
    %9570 = vmatprep.subr.bf16.mxu0 0
    %9571 = vmatpush1.bf16.msra.mxu0 0
    %9572 = vmatprep.subr.bf16.mxu0 0
    %9573 = vmatpush1.bf16.msra.mxu0 0
    %9574 = vmatprep.subr.bf16.mxu0 0
    %9575 = vmatpush1.bf16.msra.mxu0 0
    %9576 = vmatprep.subr.bf16.mxu0 0
    %9577 = vmatpush1.bf16.msra.mxu0 0
    %9578 = vmatprep.subr.bf16.mxu0 0
    %9579 = vmatpush1.bf16.msra.mxu0 0
    %9580 = vmatprep.subr.bf16.mxu0 0
    %9581 = vmatpush1.bf16.msra.mxu0 0
    %9582 = vmatprep.subr.bf16.mxu0 0
    %9583 = vmatpush1.bf16.msra.mxu0 0
    %9584 = vmatprep.subr.bf16.mxu0 0
    %9585 = vmatpush1.bf16.msra.mxu0 0
    %9586 = vmatprep.subr.bf16.mxu0 0
    %9587 = vmatpush1.bf16.msra.mxu0 0
    %9588 = vmatprep.subr.bf16.mxu0 0
    %9589 = vmatpush1.bf16.msra.mxu0 0
    %9590 = vmatprep.mubr.bf16.mxu0 0
    %9591 = vmatmul.mubr.bf16.gmra.mrb[0].mxu0 %v9556
    %v9592 = vpop.f32.mrb[0].mxu0
    %v9593 = vadd.f32 0.0, %v9592
    %v9594 = vpop.f32.mrb[0].mxu0
    %v9595 = vpop.f32.mrb[0].mxu0
    %v9596 = vpop.f32.mrb[0].mxu0
    %9597 = vdwg.mxu0
    %v9598 = vadd.f32 %v9528, %v9593
    %v9599 = vpack.c.bf16 %v8672, %v8672
    %v9600 = vpack.c.bf16 %v8688, %v8688
    %s9601 = scalar_lea.vmem %s5, 208
    %v9602 = vld [vmem:[%s9601] sm:$0xf]
    %v9603 = vld [vmem:[%s9601 + $0x4] sm:$0xf]
    %v9604 = vld [vmem:[%s9601 + $0x8] sm:$0xf]
    %v9605 = vld [vmem:[%s9601 + $0xc] sm:$0xf]
    %v9608 = vunpack.c.l.b16 %v9599
    %v9609 = vunpack.c.l.b16 %v9600
    %v9610 = vrot.slane %v9609, 7
    %v9611 = vsel %vm6690, %v9610, %v9608
    %v9612 = vpack.c.b16 %v9611, %v9611
    %v9617 = vunpack.c.l.b16 %v9602
    %v9618 = vunpack.c.l.b16 %v9603
    %v9619 = vunpack.c.l.b16 %v9604
    %v9620 = vunpack.c.l.b16 %v9605
    %v9621 = vpack.c.b16 %v9618, %v9617
    %v9622 = vpack.c.b16 %v9620, %v9619
    %v9626 = vsel %vm8723, %v9612, 0
    %9628 = vmatprep.subr.bf16.mxu0 0
    %9629 = vmatpush1.bf16.msra.mxu0 %v9621
    %9630 = vmatprep.subr.bf16.mxu0 0
    %9631 = vmatpush1.bf16.msra.mxu0 %v9622
    %9632 = vmatprep.subr.bf16.mxu0 0
    %9633 = vmatpush1.bf16.msra.mxu0 0
    %9634 = vmatprep.subr.bf16.mxu0 0
    %9635 = vmatpush1.bf16.msra.mxu0 0
    %9636 = vmatprep.subr.bf16.mxu0 0
    %9637 = vmatpush1.bf16.msra.mxu0 0
    %9638 = vmatprep.subr.bf16.mxu0 0
    %9639 = vmatpush1.bf16.msra.mxu0 0
    %9640 = vmatprep.subr.bf16.mxu0 0
    %9641 = vmatpush1.bf16.msra.mxu0 0
    %9642 = vmatprep.subr.bf16.mxu0 0
    %9643 = vmatpush1.bf16.msra.mxu0 0
    %9644 = vmatprep.subr.bf16.mxu0 0
    %9645 = vmatpush1.bf16.msra.mxu0 0
    %9646 = vmatprep.subr.bf16.mxu0 0
    %9647 = vmatpush1.bf16.msra.mxu0 0
    %9648 = vmatprep.subr.bf16.mxu0 0
    %9649 = vmatpush1.bf16.msra.mxu0 0
    %9650 = vmatprep.subr.bf16.mxu0 0
    %9651 = vmatpush1.bf16.msra.mxu0 0
    %9652 = vmatprep.subr.bf16.mxu0 0
    %9653 = vmatpush1.bf16.msra.mxu0 0
    %9654 = vmatprep.subr.bf16.mxu0 0
    %9655 = vmatpush1.bf16.msra.mxu0 0
    %9656 = vmatprep.subr.bf16.mxu0 0
    %9657 = vmatpush1.bf16.msra.mxu0 0
    %9658 = vmatprep.subr.bf16.mxu0 0
    %9659 = vmatpush1.bf16.msra.mxu0 0
    %9660 = vmatprep.mubr.bf16.mxu0 0
    %9661 = vmatmul.mubr.bf16.gmra.mrb[0].mxu0 %v9626
    %v9662 = vpop.f32.mrb[0].mxu0
    %v9663 = vadd.f32 0.0, %v9662
    %v9664 = vpop.f32.mrb[0].mxu0
    %v9665 = vpop.f32.mrb[0].mxu0
    %v9666 = vpop.f32.mrb[0].mxu0
    %9667 = vdwg.mxu0
    %v9668 = vadd.f32 %v9598, %v9663
    %v9669 = vpack.c.bf16 %v8673, %v8673
    %v9670 = vpack.c.bf16 %v8689, %v8689
    %s9671 = scalar_lea.vmem %s5, 224
    %v9672 = vld [vmem:[%s9671] sm:$0xf]
    %v9673 = vld [vmem:[%s9671 + $0x4] sm:$0xf]
    %v9674 = vld [vmem:[%s9671 + $0x8] sm:$0xf]
    %v9675 = vld [vmem:[%s9671 + $0xc] sm:$0xf]
    %v9678 = vunpack.c.l.b16 %v9669
    %v9679 = vunpack.c.l.b16 %v9670
    %v9680 = vrot.slane %v9679, 7
    %v9681 = vsel %vm6690, %v9680, %v9678
    %v9682 = vpack.c.b16 %v9681, %v9681
    %v9687 = vunpack.c.l.b16 %v9672
    %v9688 = vunpack.c.l.b16 %v9673
    %v9689 = vunpack.c.l.b16 %v9674
    %v9690 = vunpack.c.l.b16 %v9675
    %v9691 = vpack.c.b16 %v9688, %v9687
    %v9692 = vpack.c.b16 %v9690, %v9689
    %v9696 = vsel %vm8723, %v9682, 0
    %9698 = vmatprep.subr.bf16.mxu0 0
    %9699 = vmatpush1.bf16.msra.mxu0 %v9691
    %9700 = vmatprep.subr.bf16.mxu0 0
    %9701 = vmatpush1.bf16.msra.mxu0 %v9692
    %9702 = vmatprep.subr.bf16.mxu0 0
    %9703 = vmatpush1.bf16.msra.mxu0 0
    %9704 = vmatprep.subr.bf16.mxu0 0
    %9705 = vmatpush1.bf16.msra.mxu0 0
    %9706 = vmatprep.subr.bf16.mxu0 0
    %9707 = vmatpush1.bf16.msra.mxu0 0
    %9708 = vmatprep.subr.bf16.mxu0 0
    %9709 = vmatpush1.bf16.msra.mxu0 0
    %9710 = vmatprep.subr.bf16.mxu0 0
    %9711 = vmatpush1.bf16.msra.mxu0 0
    %9712 = vmatprep.subr.bf16.mxu0 0
    %9713 = vmatpush1.bf16.msra.mxu0 0
    %9714 = vmatprep.subr.bf16.mxu0 0
    %9715 = vmatpush1.bf16.msra.mxu0 0
    %9716 = vmatprep.subr.bf16.mxu0 0
    %9717 = vmatpush1.bf16.msra.mxu0 0
    %9718 = vmatprep.subr.bf16.mxu0 0
    %9719 = vmatpush1.bf16.msra.mxu0 0
    %9720 = vmatprep.subr.bf16.mxu0 0
    %9721 = vmatpush1.bf16.msra.mxu0 0
    %9722 = vmatprep.subr.bf16.mxu0 0
    %9723 = vmatpush1.bf16.msra.mxu0 0
    %9724 = vmatprep.subr.bf16.mxu0 0
    %9725 = vmatpush1.bf16.msra.mxu0 0
    %9726 = vmatprep.subr.bf16.mxu0 0
    %9727 = vmatpush1.bf16.msra.mxu0 0
    %9728 = vmatprep.subr.bf16.mxu0 0
    %9729 = vmatpush1.bf16.msra.mxu0 0
    %9730 = vmatprep.mubr.bf16.mxu0 0
    %9731 = vmatmul.mubr.bf16.gmra.mrb[0].mxu0 %v9696
    %v9732 = vpop.f32.mrb[0].mxu0
    %v9733 = vadd.f32 0.0, %v9732
    %v9734 = vpop.f32.mrb[0].mxu0
    %v9735 = vpop.f32.mrb[0].mxu0
    %v9736 = vpop.f32.mrb[0].mxu0
    %9737 = vdwg.mxu0
    %v9738 = vadd.f32 %v9668, %v9733
    %v9739 = vpack.c.bf16 %v8674, %v8674
    %v9740 = vpack.c.bf16 %v8690, %v8690
    %s9741 = scalar_lea.vmem %s5, 240
    %v9742 = vld [vmem:[%s9741] sm:$0xf]
    %v9743 = vld [vmem:[%s9741 + $0x4] sm:$0xf]
    %v9744 = vld [vmem:[%s9741 + $0x8] sm:$0xf]
    %v9745 = vld [vmem:[%s9741 + $0xc] sm:$0xf]
    %v9748 = vunpack.c.l.b16 %v9739
    %v9749 = vunpack.c.l.b16 %v9740
    %v9750 = vrot.slane %v9749, 7
    %v9751 = vsel %vm6690, %v9750, %v9748
    %v9752 = vpack.c.b16 %v9751, %v9751
    %v9757 = vunpack.c.l.b16 %v9742
    %v9758 = vunpack.c.l.b16 %v9743
    %v9759 = vunpack.c.l.b16 %v9744
    %v9760 = vunpack.c.l.b16 %v9745
    %v9761 = vpack.c.b16 %v9758, %v9757
    %v9762 = vpack.c.b16 %v9760, %v9759
    %v9766 = vsel %vm8723, %v9752, 0
    %9768 = vmatprep.subr.bf16.mxu0 0
    %9769 = vmatpush1.bf16.msra.mxu0 %v9761
    %9770 = vmatprep.subr.bf16.mxu0 0
    %9771 = vmatpush1.bf16.msra.mxu0 %v9762
    %9772 = vmatprep.subr.bf16.mxu0 0
    %9773 = vmatpush1.bf16.msra.mxu0 0
    %9774 = vmatprep.subr.bf16.mxu0 0
    %9775 = vmatpush1.bf16.msra.mxu0 0
    %9776 = vmatprep.subr.bf16.mxu0 0
    %9777 = vmatpush1.bf16.msra.mxu0 0
    %9778 = vmatprep.subr.bf16.mxu0 0
    %9779 = vmatpush1.bf16.msra.mxu0 0
    %9780 = vmatprep.subr.bf16.mxu0 0
    %9781 = vmatpush1.bf16.msra.mxu0 0
    %9782 = vmatprep.subr.bf16.mxu0 0
    %9783 = vmatpush1.bf16.msra.mxu0 0
    %9784 = vmatprep.subr.bf16.mxu0 0
    %9785 = vmatpush1.bf16.msra.mxu0 0
    %9786 = vmatprep.subr.bf16.mxu0 0
    %9787 = vmatpush1.bf16.msra.mxu0 0
    %9788 = vmatprep.subr.bf16.mxu0 0
    %9789 = vmatpush1.bf16.msra.mxu0 0
    %9790 = vmatprep.subr.bf16.mxu0 0
    %9791 = vmatpush1.bf16.msra.mxu0 0
    %9792 = vmatprep.subr.bf16.mxu0 0
    %9793 = vmatpush1.bf16.msra.mxu0 0
    %9794 = vmatprep.subr.bf16.mxu0 0
    %9795 = vmatpush1.bf16.msra.mxu0 0
    %9796 = vmatprep.subr.bf16.mxu0 0
    %9797 = vmatpush1.bf16.msra.mxu0 0
    %9798 = vmatprep.subr.bf16.mxu0 0
    %9799 = vmatpush1.bf16.msra.mxu0 0
    %9800 = vmatprep.mubr.bf16.mxu0 0
    %9801 = vmatmul.mubr.bf16.gmra.mrb[0].mxu0 %v9766
    %v9802 = vpop.f32.mrb[0].mxu0
    %v9803 = vadd.f32 0.0, %v9802
    %v9804 = vpop.f32.mrb[0].mxu0
    %v9805 = vpop.f32.mrb[0].mxu0
    %v9806 = vpop.f32.mrb[0].mxu0
    %9807 = vdwg.mxu0
    %v9808 = vadd.f32 %v9738, %v9803
    %v9809 = vld [vmem:[%s6] sm:$0x1]
    %v9811 = vlaneseq
    %v9812 = vshrl.u32 %v9811, 7
    %v9813 = vsub.s32 0, %v9812
    %v9814 = vrot.slane %v9809, %v9813
    %v9816 = vadd.f32 %v9808, %v9814
    %v9817 = vmax.f32 %v9816, 0.0
    %v9818 = vpack.c.bf16 %v9817, %v9817
    %v9819 = vld [vmem:[%s7] sm:$0xf]
    %v9820 = vld [vmem:[%s7 + $0x4] sm:$0xf]
    %v9821 = vld [vmem:[%s7 + $0x8] sm:$0xf]
    %v9822 = vld [vmem:[%s7 + $0xc] sm:$0xf]
    %v9823 = vld [vmem:[%s7 + $0x10] sm:$0xf]
    %v9824 = vld [vmem:[%s7 + $0x14] sm:$0xf]
    %v9825 = vld [vmem:[%s7 + $0x18] sm:$0xf]
    %v9826 = vld [vmem:[%s7 + $0x1c] sm:$0xf]
    %v9827 = vld [vmem:[%s7 + $0x20] sm:$0xf]
    %v9828 = vld [vmem:[%s7 + $0x24] sm:$0xf]
    %v9829 = vld [vmem:[%s7 + $0x28] sm:$0xf]
    %v9830 = vld [vmem:[%s7 + $0x2c] sm:$0xf]
    %v9831 = vld [vmem:[%s7 + $0x30] sm:$0xf]
    %v9832 = vld [vmem:[%s7 + $0x34] sm:$0xf]
    %v9833 = vld [vmem:[%s7 + $0x38] sm:$0xf]
    %v9834 = vld [vmem:[%s7 + $0x3c] sm:$0xf]
    %v9835 = vld [vmem:[%s8] sm:$0x1]
    %v9837 = vlaneseq
    %v9838 = vshrl.u32 %v9837, 7
    %v9839 = vsub.s32 0, %v9838
    %v9840 = vrot.slane %v9835, %v9839
    %v9858 = vunpack.c.l.b16 %v9819
    %v9859 = vunpack.c.l.b16 %v9820
    %v9860 = vunpack.c.l.b16 %v9821
    %v9861 = vunpack.c.l.b16 %v9822
    %v9862 = vunpack.c.l.b16 %v9823
    %v9863 = vunpack.c.l.b16 %v9824
    %v9864 = vunpack.c.l.b16 %v9825
    %v9865 = vunpack.c.l.b16 %v9826
    %v9866 = vunpack.c.l.b16 %v9827
    %v9867 = vunpack.c.l.b16 %v9828
    %v9868 = vunpack.c.l.b16 %v9829
    %v9869 = vunpack.c.l.b16 %v9830
    %v9870 = vunpack.c.l.b16 %v9831
    %v9871 = vunpack.c.l.b16 %v9832
    %v9872 = vunpack.c.l.b16 %v9833
    %v9873 = vunpack.c.l.b16 %v9834
    %v9874 = vpack.c.b16 %v9859, %v9858
    %v9875 = vpack.c.b16 %v9861, %v9860
    %v9876 = vpack.c.b16 %v9863, %v9862
    %v9877 = vpack.c.b16 %v9865, %v9864
    %v9878 = vpack.c.b16 %v9867, %v9866
    %v9879 = vpack.c.b16 %v9869, %v9868
    %v9880 = vpack.c.b16 %v9871, %v9870
    %v9881 = vpack.c.b16 %v9873, %v9872
    %9890 = vmatprep.subr.bf16.mxu0 0
    %9891 = vmatpush1.bf16.msra.mxu0 %v9874
    %9892 = vmatprep.subr.bf16.mxu0 0
    %9893 = vmatpush1.bf16.msra.mxu0 %v9875
    %9894 = vmatprep.subr.bf16.mxu0 0
    %9895 = vmatpush1.bf16.msra.mxu0 %v9876
    %9896 = vmatprep.subr.bf16.mxu0 0
    %9897 = vmatpush1.bf16.msra.mxu0 %v9877
    %9898 = vmatprep.subr.bf16.mxu0 0
    %9899 = vmatpush1.bf16.msra.mxu0 %v9878
    %9900 = vmatprep.subr.bf16.mxu0 0
    %9901 = vmatpush1.bf16.msra.mxu0 %v9879
    %9902 = vmatprep.subr.bf16.mxu0 0
    %9903 = vmatpush1.bf16.msra.mxu0 %v9880
    %9904 = vmatprep.subr.bf16.mxu0 0
    %9905 = vmatpush1.bf16.msra.mxu0 %v9881
    %9906 = vmatprep.subr.bf16.mxu0 0
    %9907 = vmatpush1.bf16.msra.mxu0 0
    %9908 = vmatprep.subr.bf16.mxu0 0
    %9909 = vmatpush1.bf16.msra.mxu0 0
    %9910 = vmatprep.subr.bf16.mxu0 0
    %9911 = vmatpush1.bf16.msra.mxu0 0
    %9912 = vmatprep.subr.bf16.mxu0 0
    %9913 = vmatpush1.bf16.msra.mxu0 0
    %9914 = vmatprep.subr.bf16.mxu0 0
    %9915 = vmatpush1.bf16.msra.mxu0 0
    %9916 = vmatprep.subr.bf16.mxu0 0
    %9917 = vmatpush1.bf16.msra.mxu0 0
    %9918 = vmatprep.subr.bf16.mxu0 0
    %9919 = vmatpush1.bf16.msra.mxu0 0
    %9920 = vmatprep.subr.bf16.mxu0 0
    %9921 = vmatpush1.bf16.msra.mxu0 0
    %9922 = vmatprep.mubr.bf16.mxu0 0
    %9923 = vmatmul.mubr.bf16.gmra.mrb[0].mxu0 %v9818
    %v9924 = vpop.f32.mrb[0].mxu0
    %v9925 = vadd.f32 %v9840, %v9924
    %v9926 = vpop.f32.mrb[0].mxu0
    %v9927 = vpop.f32.mrb[0].mxu0
    %v9928 = vpop.f32.mrb[0].mxu0
    %9929 = vdwg.mxu0
    %9930 = vst [vmem:[#allocation3] sm:$0x3] %v9925
    // Predicated region
    $region38: #{forward.1} parent=1 // pred_check
      _
    $region39: #{forward.1} parent=1 // pred_check_branch
      %9932 = sbr.rel (0) target = $region41
    $region40: #{forward.1} parent=1 // pred_region
      %s9934 = ssub.s32 32, 32
      %9935 = vsyncadd [#allocation4], %s9934
      %s9937 = sshll.u32 [#allocation3], 4
      %s9938 = int_to_ptr.vmem [resolvable:$true] %s9937
      %9940 = dma.vmem_to_hbm [thread:$0]  %s9938, 32, %s9, [#allocation4]
    $region41: #{forward.1} parent=1 // pred_fallthru
      _
    // Predicated region
    $region42: #{forward.1} parent=1 // pred_check
      _
    $region43: #{forward.1} parent=1 // pred_check_branch
      %9942 = sbr.rel (0) target = $region45
    $region44: #{forward.1} parent=1 // pred_region
      %9943 = dma.done [#allocation4], 32
    $region45: #{forward.1} parent=1 // pred_fallthru
      _
    %9944 = vsyncpa [#allocation4], 1

</llo_original>
